<compile_context>
chip_gen: v6e
topology: v6e:2x2x1
jax: 0.10.0
libtpu: 0.0.40
codegen_flags: <defaults>
</compile_context>

<pallas_src>
from functools import partial

import numpy as np
import jax
import jax.numpy as jnp
from jax.experimental import pallas as pl
from jax.experimental.pallas import tpu as pltpu

_HIGHEST = jax.lax.Precision.HIGHEST


# ----------------------------------------------------------------------------
# bilinear interpolation helpers (PyTorch align_corners=False)
# ----------------------------------------------------------------------------
def _round_up(x, m):
    return (x + m - 1) // m * m


def bilinear_matrix(in_size, out_size):
    """1-D bilinear interpolation weights, PyTorch align_corners=False."""
    ratio = in_size / out_size
    o = np.arange(out_size, dtype=np.float64)
    src = np.maximum(ratio * (o + 0.5) - 0.5, 0.0)     # PyTorch clamps negative src
    i0 = np.clip(np.floor(src).astype(np.int64), 0, in_size - 1)
    i1 = np.minimum(i0 + 1, in_size - 1)
    lam1 = src - i0
    A = np.zeros((out_size, in_size), dtype=np.float64)
    A[np.arange(out_size), i0] += 1.0 - lam1
    A[np.arange(out_size), i1] += lam1
    return A.astype(np.float32)


def _bilinear_taps(in_size, out_size, out_pad):
    """2-tap form: out[i] = (1-lam1[i])*in[r0[i]] + lam1[i]*in[min(r0[i]+1, in-1)]."""
    ratio = in_size / out_size
    o = np.arange(out_size, dtype=np.float64)
    src = np.maximum(ratio * (o + 0.5) - 0.5, 0.0)
    i0 = np.clip(np.floor(src).astype(np.int64), 0, in_size - 1)
    lam1 = (src - i0).astype(np.float32)
    i0 = i0.astype(np.int32)
    pad = out_pad - out_size
    if pad > 0:
        i0 = np.pad(i0, (0, pad))
        lam1 = np.pad(lam1, (0, pad))
    return i0, lam1


# ----------------------------------------------------------------------------
# fused kernel: (folded) projections + separable bilinear upsample + ReLU + pred
# ----------------------------------------------------------------------------
def _segformer_head_kernel(rowidx_ref, lam_ref,                      # SMEM (scalar prefetch)
                           x1_ref, x2_ref, x3_ref, x4_ref,           # activations
                           awt2_ref, awt3_ref, awt4_ref,             # width interp (Ws, W1)
                           g1_ref, g2_ref, g3_ref, g4_ref,           # folded weights (E, Ck)
                           bias_ref, wp_ref, bp_ref,                 # (E,1), (nc,E), (nc,1)
                           o_ref,                                    # (1, nc, tp)
                           mid2_ref, mid3_ref, mid4_ref,             # VMEM scratch (Hs, E, W1)
                           *, compute_dtype):
    f32 = jnp.float32
    E = g1_ref.shape[0]
    W1 = awt2_ref.shape[1]
    tp = x1_ref.shape[2]
    rows_per_tile = tp // W1
    j = pl.program_id(1)

    # ---- once per batch element: project low-res maps (fuse+BN already folded
    # into the weights) and upsample along W into persistent VMEM scratch. ----
    @pl.when(j == 0)
    def _prepass():
        def build(mid_ref, g_ref, x_ref, awt_ref):
            hs = mid_ref.shape[0]
            ws = awt_ref.shape[0]
            low = jnp.dot(g_ref[...], x_ref[0].astype(compute_dtype),
                          preferred_element_type=f32)                # (E, hs*ws)
            aw = awt_ref[...]
            for r in range(hs):                                      # static unroll
                mid_ref[r] = jnp.dot(low[:, r * ws:(r + 1) * ws].astype(compute_dtype),
                                     aw, preferred_element_type=f32)  # (E, W1)
        build(mid2_ref, g2_ref, x2_ref, awt2_ref)
        build(mid3_ref, g3_ref, x3_ref, awt3_ref)
        build(mid4_ref, g4_ref, x4_ref, awt4_ref)

    # ---- per pixel tile ----
    # c1 contribution (full resolution, no upsample); pixels on lanes.
    acc = jnp.dot(g1_ref[...], x1_ref[0].astype(compute_dtype),
                  preferred_element_type=f32)                         # (E, tp)

    # height stage of the bilinear upsample: 2-tap blend of scratch rows.
    row0 = j * rows_per_tile
    cols = []
    for i in range(rows_per_tile):                                    # static unroll
        g = row0 + i                                                  # global output row
        blend = None
        for k, mid_ref in enumerate((mid2_ref, mid3_ref, mid4_ref)):
            hs = mid_ref.shape[0]
            r0 = rowidx_ref[k, g]
            r1 = jnp.minimum(r0 + 1, hs - 1)
            l1 = lam_ref[k, g]
            c = (1.0 - l1) * mid_ref[r0] + l1 * mid_ref[r1]           # (E, W1)
            blend = c if blend is None else blend + c
        cols.append(blend)
    up = jnp.concatenate(cols, axis=-1)                               # (E, tp)

    h = jnp.maximum(acc + up + bias_ref[...], 0.0)                    # folded BN + ReLU
    # Dropout2d(0.1) is identity in eval mode.
    out = jnp.dot(wp_ref[...], h.astype(compute_dtype),
                  preferred_element_type=f32) + bp_ref[...]           # (nc, tp)
    o_ref[0] = out.astype(o_ref.dtype)


@partial(jax.jit, static_argnames=("tile_pixels", "compute_dtype", "out_dtype"))
def segformer_head_forward(params, c1, c2, c3, c4, *,
                           tile_pixels=1024,
                           compute_dtype=jnp.float32,
                           out_dtype=jnp.float32):
    N, C1, H1, W1 = c1.shape
    E = params["w1"].shape[0]
    nc = params["wp"].shape[0]
    P1 = H1 * W1
    C2, H2, W2 = c2.shape[1:]
    C3, H3, W3 = c3.shape[1:]
    C4, H4, W4 = c4.shape[1:]
    P2, P3, P4 = H2 * W2, H3 * W3, H4 * W4

    # pixel tile: lane-dense (multiple of 128) and a whole number of output rows
    lane_q = int(np.lcm(128, W1))
    tp = max(lane_q, (int(tile_pixels) // lane_q) * lane_q)
    tp = min(tp, _round_up(P1, lane_q))
    rows_per_tile = tp // W1
    rows_pad = _round_up(H1, rows_per_tile)
    P1p = rows_pad * W1
    n_tiles = rows_pad // rows_per_tile

    # pixels-on-lanes slabs (free reshapes of NCHW)
    x1 = c1.reshape(N, C1, P1)
    if P1p != P1:
        x1 = jnp.pad(x1, ((0, 0), (0, 0), (0, P1p - P1)))
    x2 = c2.reshape(N, C2, P2)
    x3 = c3.reshape(N, C3, P3)
    x4 = c4.reshape(N, C4, P4)

    # --- fold linear_fuse (concat order [c4,c3,c2,c1]) and eval-BatchNorm into
    #     the per-scale projection weights + one merged bias (trace time) ---
    wf = params["wf"]
    F4, F3, F2, F1 = wf[:, :E], wf[:, E:2 * E], wf[:, 2 * E:3 * E], wf[:, 3 * E:]
    s = params["bn_scale"]
    hdot = partial(jnp.matmul, precision=_HIGHEST)
    G1 = s[:, None] * hdot(F1, params["w1"])
    G2 = s[:, None] * hdot(F2, params["w2"])
    G3 = s[:, None] * hdot(F3, params["w3"])
    G4 = s[:, None] * hdot(F4, params["w4"])
    bias = (s * (hdot(F1, params["b1"]) + hdot(F2, params["b2"])
                 + hdot(F3, params["b3"]) + hdot(F4, params["b4"]))
            + params["bn_shift"])

    # separable bilinear factors: width as a tiny matmul matrix (Ws, W1),
    # height as 2-tap (index, weight) tables (scalar-prefetched into SMEM).
    awt2 = jnp.asarray(bilinear_matrix(W2, W1).T)
    awt3 = jnp.asarray(bilinear_matrix(W3, W1).T)
    awt4 = jnp.asarray(bilinear_matrix(W4, W1).T)
    taps = [_bilinear_taps(hh, H1, rows_pad) for hh in (H2, H3, H4)]
    rowidx = jnp.asarray(np.stack([t[0] for t in taps]))    # (3, rows_pad) int32
    lam = jnp.asarray(np.stack([t[1] for t in taps]))       # (3, rows_pad) f32

    cd = compute_dtype
    col = lambda v: v.reshape(-1, 1)

    def fixed(shape):
        zeros = (0,) * len(shape)
        return pl.BlockSpec(shape, lambda n, j, *_: zeros)

    grid_spec = pltpu.PrefetchScalarGridSpec(
        num_scalar_prefetch=2,
        grid=(N, n_tiles),
        in_specs=[
            pl.BlockSpec((1, C1, tp), lambda n, j, *_: (n, 0, j)),   # c1 tile
            pl.BlockSpec((1, C2, P2), lambda n, j, *_: (n, 0, 0)),   # full low-res maps
            pl.BlockSpec((1, C3, P3), lambda n, j, *_: (n, 0, 0)),
            pl.BlockSpec((1, C4, P4), lambda n, j, *_: (n, 0, 0)),
            fixed((W2, W1)), fixed((W3, W1)), fixed((W4, W1)),
            fixed((E, C1)), fixed((E, C2)), fixed((E, C3)), fixed((E, C4)),
            fixed((E, 1)), fixed((nc, E)), fixed((nc, 1)),
        ],
        out_specs=pl.BlockSpec((1, nc, tp), lambda n, j, *_: (n, 0, j)),
        scratch_shapes=[
            pltpu.VMEM((H2, E, W1), jnp.float32),
            pltpu.VMEM((H3, E, W1), jnp.float32),
            pltpu.VMEM((H4, E, W1), jnp.float32),
        ],
    )

    out = pl.pallas_call(
        partial(_segformer_head_kernel, compute_dtype=cd),
        out_shape=jax.ShapeDtypeStruct((N, nc, P1p), out_dtype),
        grid_spec=grid_spec,
        compiler_params=pltpu.CompilerParams(
            # pixel-tile axis is sequential ("arbitrary") so the per-batch
            # pre-pass scratch is reused across tiles; batch is "parallel".
            dimension_semantics=("parallel", "arbitrary"),
            # v7x-safe (64 MiB physical); raise towards ~100 MiB and sweep
            # tile_pixels upward on v5e/v6e (128 MiB VMEM).
            vmem_limit_bytes=48 * 1024 * 1024,
        ),
    )(rowidx, lam,
      x1, x2, x3, x4,
      awt2.astype(cd), awt3.astype(cd), awt4.astype(cd),
      G1.astype(cd), G2.astype(cd), G3.astype(cd), G4.astype(cd),
      col(bias), params["wp"].astype(cd), col(params["bp"]))

    # (N, nc, H*W) is already NCHW order: cheap slice + free reshape
    return out[:, :, :P1].reshape(N, nc, H1, W1)


# ----------------------------------------------------------------------------
# pure-jnp reference (un-folded params, channels-last path)
# ----------------------------------------------------------------------------
def reference_forward(params, c1, c2, c3, c4):
    N, _, H1, W1 = c1.shape
    outs = []
    # concat order matches torch.cat([_c4, _c3, _c2, _c1], dim=1)
    for c, w, b in ((c4, params["w4"], params["b4"]),
                    (c3, params["w3"], params["b3"]),
                    (c2, params["w2"], params["b2"]),
                    (c1, params["w1"], params["b1"])):
        n, C, h, wd = c.shape
        x = jnp.transpose(c, (0, 2, 3, 1)).reshape(n * h * wd, C)
        y = (jnp.matmul(x, w.T, precision=_HIGHEST) + b).reshape(n, h, wd, -1)
        if (h, wd) != (H1, W1):
            Ah = jnp.asarray(bilinear_matrix(h, H1))
            Aw = jnp.asarray(bilinear_matrix(wd, W1))
            y = jnp.einsum("oh,nhwe->nowe", Ah, y, precision=_HIGHEST)
            y = jnp.einsum("pw,nowe->nope", Aw, y, precision=_HIGHEST)
        outs.append(y)
    x = jnp.concatenate(outs, axis=-1).reshape(N * H1 * W1, -1)
    h_ = jnp.maximum(jnp.matmul(x, params["wf"].T, precision=_HIGHEST)
                     * params["bn_scale"] + params["bn_shift"], 0.0)
    o = jnp.matmul(h_, params["wp"].T, precision=_HIGHEST) + params["bp"]
    return jnp.transpose(o.reshape(N, H1, W1, -1), (0, 3, 1, 2))


# ----------------------------------------------------------------------------
# parameter init (PyTorch weight layouts)
# ----------------------------------------------------------------------------
def init_params(key, in_channels, embedding_dim, num_classes):
    ks = jax.random.split(key, 16)
    params = {}
    # MLP projections: torch Linear weight (E, C_in), bias (E,)
    for i, (name, cin) in enumerate(zip(("1", "2", "3", "4"), in_channels)):
        params["w" + name] = jax.random.normal(
            ks[2 * i], (embedding_dim, cin), jnp.float32) * 0.1
        params["b" + name] = jax.random.normal(
            ks[2 * i + 1], (embedding_dim,), jnp.float32) * 0.05
    # linear_fuse: 1x1 conv (E, 4E), no bias
    params["wf"] = jax.random.normal(
        ks[8], (embedding_dim, 4 * embedding_dim), jnp.float32) * 0.1
    # BatchNorm (eval) folded into scale/shift
    gamma = 1.0 + 0.1 * jax.random.normal(ks[9], (embedding_dim,), jnp.float32)
    beta = 0.05 * jax.random.normal(ks[10], (embedding_dim,), jnp.float32)
    running_mean = 0.05 * jax.random.normal(ks[11], (embedding_dim,), jnp.float32)
    running_var = 1.0 + 0.1 * jnp.abs(jax.random.normal(ks[12], (embedding_dim,), jnp.float32))
    eps = 1e-5
    scale = gamma / jnp.sqrt(running_var + eps)
    params["bn_scale"] = scale
    params["bn_shift"] = beta - running_mean * scale
    # linear_pred: 1x1 conv (num_classes, E) + bias
    params["wp"] = jax.random.normal(ks[13], (num_classes, embedding_dim), jnp.float32) * 0.1
    params["bp"] = jax.random.normal(ks[14], (num_classes,), jnp.float32) * 0.05
    return params


if __name__ == "__main__":
    # feature_strides=[4,8,16,32] over a 64x64 image
    in_channels = (8, 16, 32, 64)
    embedding_dim = 32
    num_classes = 8
    N = 2
    H1, W1 = 16, 16

    key = jax.random.PRNGKey(0)
    k_in, k_par = jax.random.split(key)
    k1, k2, k3, k4 = jax.random.split(k_in, 4)
    c1 = jax.random.normal(k1, (N, in_channels[0], 16, 16), jnp.float32)
    c2 = jax.random.normal(k2, (N, in_channels[1], 8, 8), jnp.float32)
    c3 = jax.random.normal(k3, (N, in_channels[2], 4, 4), jnp.float32)
    c4 = jax.random.normal(k4, (N, in_channels[3], 2, 2), jnp.float32)

    params = init_params(k_par, in_channels, embedding_dim, num_classes)

    # f32 path
    out = jax.block_until_ready(segformer_head_forward(params, c1, c2, c3, c4))
    assert out.shape == (N, num_classes, H1, W1), out.shape
    ref = jax.block_until_ready(reference_forward(params, c1, c2, c3, c4))
    np.testing.assert_allclose(np.asarray(out), np.asarray(ref), rtol=5e-3, atol=5e-3)

    # bf16 MXU-operand path (f32 accumulation) — looser tolerance
    out_bf16 = jax.block_until_ready(
        segformer_head_forward(params, c1, c2, c3, c4, compute_dtype=jnp.bfloat16))
    np.testing.assert_allclose(np.asarray(out_bf16), np.asarray(ref), rtol=6e-2, atol=6e-2)

    print("KERNEL_OK")
</pallas_src>

<mosaic_0001>
module attributes {stable_mosaic.version = 11 : i64} {
  func.func @_segformer_head_kernel(%arg0: i32, %arg1: i32, %arg2: memref<3x16xi32, #tpu.memory_space<smem>>, %arg3: memref<3x16xf32, #tpu.memory_space<smem>>, %arg4: memref<1x8x256xf32, #tpu.memory_space<vmem>>, %arg5: memref<1x16x64xf32, #tpu.memory_space<vmem>>, %arg6: memref<1x32x16xf32, #tpu.memory_space<vmem>>, %arg7: memref<1x64x4xf32, #tpu.memory_space<vmem>>, %arg8: memref<8x16xf32, #tpu.memory_space<vmem>>, %arg9: memref<4x16xf32, #tpu.memory_space<vmem>>, %arg10: memref<2x16xf32, #tpu.memory_space<vmem>>, %arg11: memref<32x8xf32, #tpu.memory_space<vmem>>, %arg12: memref<32x16xf32, #tpu.memory_space<vmem>>, %arg13: memref<32x32xf32, #tpu.memory_space<vmem>>, %arg14: memref<32x64xf32, #tpu.memory_space<vmem>>, %arg15: memref<32x1xf32, #tpu.memory_space<vmem>>, %arg16: memref<8x32xf32, #tpu.memory_space<vmem>>, %arg17: memref<8x1xf32, #tpu.memory_space<vmem>>, %arg18: memref<1x8x256xf32, #tpu.memory_space<vmem>>, %arg19: memref<8x32x16xf32, #tpu.memory_space<vmem>>, %arg20: memref<4x32x16xf32, #tpu.memory_space<vmem>>, %arg21: memref<2x32x16xf32, #tpu.memory_space<vmem>>) attributes {dimension_semantics = [#tpu.dimension_semantics<parallel>, #tpu.dimension_semantics<arbitrary>], iteration_bounds = array<i64: 2, 1>, scalar_prefetch = 2 : i64, scratch_operands = 3 : i64, tpu.core_type = #tpu.core_type<tc>, window_params = [{transform_indices = @transform_0, window_bounds = array<i64: 1, 8, 256>}, {transform_indices = @transform_1, window_bounds = array<i64: 1, 16, 64>}, {transform_indices = @transform_2, window_bounds = array<i64: 1, 32, 16>}, {transform_indices = @transform_3, window_bounds = array<i64: 1, 64, 4>}, {pipeline_mode = #tpu.pipeline_mode<synchronous>, transform_indices = @transform_4, window_bounds = array<i64: 8, 16>}, {pipeline_mode = #tpu.pipeline_mode<synchronous>, transform_indices = @transform_5, window_bounds = array<i64: 4, 16>}, {pipeline_mode = #tpu.pipeline_mode<synchronous>, transform_indices = @transform_6, window_bounds = array<i64: 2, 16>}, {pipeline_mode = #tpu.pipeline_mode<synchronous>, transform_indices = @transform_7, window_bounds = array<i64: 32, 8>}, {pipeline_mode = #tpu.pipeline_mode<synchronous>, transform_indices = @transform_8, window_bounds = array<i64: 32, 16>}, {pipeline_mode = #tpu.pipeline_mode<synchronous>, transform_indices = @transform_9, window_bounds = array<i64: 32, 32>}, {pipeline_mode = #tpu.pipeline_mode<synchronous>, transform_indices = @transform_10, window_bounds = array<i64: 32, 64>}, {pipeline_mode = #tpu.pipeline_mode<synchronous>, transform_indices = @transform_11, window_bounds = array<i64: 32, 1>}, {pipeline_mode = #tpu.pipeline_mode<synchronous>, transform_indices = @transform_12, window_bounds = array<i64: 8, 32>}, {pipeline_mode = #tpu.pipeline_mode<synchronous>, transform_indices = @transform_13, window_bounds = array<i64: 8, 1>}, {transform_indices = @transform_14, window_bounds = array<i64: 1, 8, 256>}]} {
    %c0_i32 = arith.constant 0 : i32
    %0 = arith.cmpi eq, %arg1, %c0_i32 : i32
    %1 = arith.extui %0 : i1 to i32
    %c0_i32_0 = arith.constant 0 : i32
    %2 = arith.cmpi ne, %1, %c0_i32_0 : i32
    scf.if %2 {
      %c0_447 = arith.constant 0 : index
      %c0_448 = arith.constant 0 : index
      %935 = vector.load %arg12[%c0_447, %c0_448] : memref<32x16xf32, #tpu.memory_space<vmem>>, vector<32x16xf32>
      %c0_449 = arith.constant 0 : index
      %c0_450 = arith.constant 0 : index
      %c0_451 = arith.constant 0 : index
      %936 = vector.load %arg5[%c0_449, %c0_450, %c0_451] : memref<1x16x64xf32, #tpu.memory_space<vmem>>, vector<1x16x64xf32>
      %937 = vector.shape_cast %936 : vector<1x16x64xf32> to vector<16x64xf32>
      %cst_452 = arith.constant dense<0.000000e+00> : vector<32x64xf32>
      %938 = tpu.matmul %935, %937, %cst_452 {dimension_numbers = #tpu.dot_dimension_numbers<[1], [0], [0], [1], [0, 0, 1, 1], [], []>} : vector<32x16xf32>, vector<16x64xf32>, vector<32x64xf32> -> vector<32x64xf32>
      %c0_453 = arith.constant 0 : index
      %c0_454 = arith.constant 0 : index
      %939 = vector.load %arg8[%c0_453, %c0_454] : memref<8x16xf32, #tpu.memory_space<vmem>>, vector<8x16xf32>
      %940 = vector.extract_strided_slice %938 {offsets = [0, 0], sizes = [32, 8], strides = [1, 1]} : vector<32x64xf32> to vector<32x8xf32>
      %cst_455 = arith.constant dense<0.000000e+00> : vector<32x16xf32>
      %941 = tpu.matmul %940, %939, %cst_455 {dimension_numbers = #tpu.dot_dimension_numbers<[1], [0], [0], [1], [0, 0, 1, 1], [], []>} : vector<32x8xf32>, vector<8x16xf32>, vector<32x16xf32> -> vector<32x16xf32>
      %c0_456 = arith.constant 0 : index
      %c0_457 = arith.constant 0 : index
      %c0_458 = arith.constant 0 : index
      %942 = vector.load %arg19[%c0_456, %c0_457, %c0_458] : memref<8x32x16xf32, #tpu.memory_space<vmem>>, vector<1x32x16xf32>
      %943 = vector.shape_cast %942 : vector<1x32x16xf32> to vector<32x16xf32>
      %944 = vector.shape_cast %941 : vector<32x16xf32> to vector<1x32x16xf32>
      tpu.vector_store %arg19[%c0_456, %c0_457, %c0_458], %944 {strides = array<i32>} : memref<8x32x16xf32, #tpu.memory_space<vmem>>, vector<1x32x16xf32>,
      %945 = vector.extract_strided_slice %938 {offsets = [0, 8], sizes = [32, 8], strides = [1, 1]} : vector<32x64xf32> to vector<32x8xf32>
      %cst_459 = arith.constant dense<0.000000e+00> : vector<32x16xf32>
      %946 = tpu.matmul %945, %939, %cst_459 {dimension_numbers = #tpu.dot_dimension_numbers<[1], [0], [0], [1], [0, 0, 1, 1], [], []>} : vector<32x8xf32>, vector<8x16xf32>, vector<32x16xf32> -> vector<32x16xf32>
      %c1_460 = arith.constant 1 : index
      %c0_461 = arith.constant 0 : index
      %c0_462 = arith.constant 0 : index
      %947 = vector.load %arg19[%c1_460, %c0_461, %c0_462] : memref<8x32x16xf32, #tpu.memory_space<vmem>>, vector<1x32x16xf32>
      %948 = vector.shape_cast %947 : vector<1x32x16xf32> to vector<32x16xf32>
      %949 = vector.shape_cast %946 : vector<32x16xf32> to vector<1x32x16xf32>
      tpu.vector_store %arg19[%c1_460, %c0_461, %c0_462], %949 {strides = array<i32>} : memref<8x32x16xf32, #tpu.memory_space<vmem>>, vector<1x32x16xf32>,
      %950 = vector.extract_strided_slice %938 {offsets = [0, 16], sizes = [32, 8], strides = [1, 1]} : vector<32x64xf32> to vector<32x8xf32>
      %cst_463 = arith.constant dense<0.000000e+00> : vector<32x16xf32>
      %951 = tpu.matmul %950, %939, %cst_463 {dimension_numbers = #tpu.dot_dimension_numbers<[1], [0], [0], [1], [0, 0, 1, 1], [], []>} : vector<32x8xf32>, vector<8x16xf32>, vector<32x16xf32> -> vector<32x16xf32>
      %c2_464 = arith.constant 2 : index
      %c0_465 = arith.constant 0 : index
      %c0_466 = arith.constant 0 : index
      %952 = vector.load %arg19[%c2_464, %c0_465, %c0_466] : memref<8x32x16xf32, #tpu.memory_space<vmem>>, vector<1x32x16xf32>
      %953 = vector.shape_cast %952 : vector<1x32x16xf32> to vector<32x16xf32>
      %954 = vector.shape_cast %951 : vector<32x16xf32> to vector<1x32x16xf32>
      tpu.vector_store %arg19[%c2_464, %c0_465, %c0_466], %954 {strides = array<i32>} : memref<8x32x16xf32, #tpu.memory_space<vmem>>, vector<1x32x16xf32>,
      %955 = vector.extract_strided_slice %938 {offsets = [0, 24], sizes = [32, 8], strides = [1, 1]} : vector<32x64xf32> to vector<32x8xf32>
      %cst_467 = arith.constant dense<0.000000e+00> : vector<32x16xf32>
      %956 = tpu.matmul %955, %939, %cst_467 {dimension_numbers = #tpu.dot_dimension_numbers<[1], [0], [0], [1], [0, 0, 1, 1], [], []>} : vector<32x8xf32>, vector<8x16xf32>, vector<32x16xf32> -> vector<32x16xf32>
      %c3 = arith.constant 3 : index
      %c0_468 = arith.constant 0 : index
      %c0_469 = arith.constant 0 : index
      %957 = vector.load %arg19[%c3, %c0_468, %c0_469] : memref<8x32x16xf32, #tpu.memory_space<vmem>>, vector<1x32x16xf32>
      %958 = vector.shape_cast %957 : vector<1x32x16xf32> to vector<32x16xf32>
      %959 = vector.shape_cast %956 : vector<32x16xf32> to vector<1x32x16xf32>
      tpu.vector_store %arg19[%c3, %c0_468, %c0_469], %959 {strides = array<i32>} : memref<8x32x16xf32, #tpu.memory_space<vmem>>, vector<1x32x16xf32>,
      %960 = vector.extract_strided_slice %938 {offsets = [0, 32], sizes = [32, 8], strides = [1, 1]} : vector<32x64xf32> to vector<32x8xf32>
      %cst_470 = arith.constant dense<0.000000e+00> : vector<32x16xf32>
      %961 = tpu.matmul %960, %939, %cst_470 {dimension_numbers = #tpu.dot_dimension_numbers<[1], [0], [0], [1], [0, 0, 1, 1], [], []>} : vector<32x8xf32>, vector<8x16xf32>, vector<32x16xf32> -> vector<32x16xf32>
      %c4 = arith.constant 4 : index
      %c0_471 = arith.constant 0 : index
      %c0_472 = arith.constant 0 : index
      %962 = vector.load %arg19[%c4, %c0_471, %c0_472] : memref<8x32x16xf32, #tpu.memory_space<vmem>>, vector<1x32x16xf32>
      %963 = vector.shape_cast %962 : vector<1x32x16xf32> to vector<32x16xf32>
      %964 = vector.shape_cast %961 : vector<32x16xf32> to vector<1x32x16xf32>
      tpu.vector_store %arg19[%c4, %c0_471, %c0_472], %964 {strides = array<i32>} : memref<8x32x16xf32, #tpu.memory_space<vmem>>, vector<1x32x16xf32>,
      %965 = vector.extract_strided_slice %938 {offsets = [0, 40], sizes = [32, 8], strides = [1, 1]} : vector<32x64xf32> to vector<32x8xf32>
      %cst_473 = arith.constant dense<0.000000e+00> : vector<32x16xf32>
      %966 = tpu.matmul %965, %939, %cst_473 {dimension_numbers = #tpu.dot_dimension_numbers<[1], [0], [0], [1], [0, 0, 1, 1], [], []>} : vector<32x8xf32>, vector<8x16xf32>, vector<32x16xf32> -> vector<32x16xf32>
      %c5 = arith.constant 5 : index
      %c0_474 = arith.constant 0 : index
      %c0_475 = arith.constant 0 : index
      %967 = vector.load %arg19[%c5, %c0_474, %c0_475] : memref<8x32x16xf32, #tpu.memory_space<vmem>>, vector<1x32x16xf32>
      %968 = vector.shape_cast %967 : vector<1x32x16xf32> to vector<32x16xf32>
      %969 = vector.shape_cast %966 : vector<32x16xf32> to vector<1x32x16xf32>
      tpu.vector_store %arg19[%c5, %c0_474, %c0_475], %969 {strides = array<i32>} : memref<8x32x16xf32, #tpu.memory_space<vmem>>, vector<1x32x16xf32>,
      %970 = vector.extract_strided_slice %938 {offsets = [0, 48], sizes = [32, 8], strides = [1, 1]} : vector<32x64xf32> to vector<32x8xf32>
      %cst_476 = arith.constant dense<0.000000e+00> : vector<32x16xf32>
      %971 = tpu.matmul %970, %939, %cst_476 {dimension_numbers = #tpu.dot_dimension_numbers<[1], [0], [0], [1], [0, 0, 1, 1], [], []>} : vector<32x8xf32>, vector<8x16xf32>, vector<32x16xf32> -> vector<32x16xf32>
      %c6 = arith.constant 6 : index
      %c0_477 = arith.constant 0 : index
      %c0_478 = arith.constant 0 : index
      %972 = vector.load %arg19[%c6, %c0_477, %c0_478] : memref<8x32x16xf32, #tpu.memory_space<vmem>>, vector<1x32x16xf32>
      %973 = vector.shape_cast %972 : vector<1x32x16xf32> to vector<32x16xf32>
      %974 = vector.shape_cast %971 : vector<32x16xf32> to vector<1x32x16xf32>
      tpu.vector_store %arg19[%c6, %c0_477, %c0_478], %974 {strides = array<i32>} : memref<8x32x16xf32, #tpu.memory_space<vmem>>, vector<1x32x16xf32>,
      %975 = vector.extract_strided_slice %938 {offsets = [0, 56], sizes = [32, 8], strides = [1, 1]} : vector<32x64xf32> to vector<32x8xf32>
      %cst_479 = arith.constant dense<0.000000e+00> : vector<32x16xf32>
      %976 = tpu.matmul %975, %939, %cst_479 {dimension_numbers = #tpu.dot_dimension_numbers<[1], [0], [0], [1], [0, 0, 1, 1], [], []>} : vector<32x8xf32>, vector<8x16xf32>, vector<32x16xf32> -> vector<32x16xf32>
      %c7 = arith.constant 7 : index
      %c0_480 = arith.constant 0 : index
      %c0_481 = arith.constant 0 : index
      %977 = vector.load %arg19[%c7, %c0_480, %c0_481] : memref<8x32x16xf32, #tpu.memory_space<vmem>>, vector<1x32x16xf32>
      %978 = vector.shape_cast %977 : vector<1x32x16xf32> to vector<32x16xf32>
      %979 = vector.shape_cast %976 : vector<32x16xf32> to vector<1x32x16xf32>
      tpu.vector_store %arg19[%c7, %c0_480, %c0_481], %979 {strides = array<i32>} : memref<8x32x16xf32, #tpu.memory_space<vmem>>, vector<1x32x16xf32>,
      %c0_482 = arith.constant 0 : index
      %c0_483 = arith.constant 0 : index
      %980 = vector.load %arg13[%c0_482, %c0_483] : memref<32x32xf32, #tpu.memory_space<vmem>>, vector<32x32xf32>
      %c0_484 = arith.constant 0 : index
      %c0_485 = arith.constant 0 : index
      %c0_486 = arith.constant 0 : index
      %981 = vector.load %arg6[%c0_484, %c0_485, %c0_486] : memref<1x32x16xf32, #tpu.memory_space<vmem>>, vector<1x32x16xf32>
      %982 = vector.shape_cast %981 : vector<1x32x16xf32> to vector<32x16xf32>
      %cst_487 = arith.constant dense<0.000000e+00> : vector<32x16xf32>
      %983 = tpu.matmul %980, %982, %cst_487 {dimension_numbers = #tpu.dot_dimension_numbers<[1], [0], [0], [1], [0, 0, 1, 1], [], []>} : vector<32x32xf32>, vector<32x16xf32>, vector<32x16xf32> -> vector<32x16xf32>
      %c0_488 = arith.constant 0 : index
      %c0_489 = arith.constant 0 : index
      %984 = vector.load %arg9[%c0_488, %c0_489] : memref<4x16xf32, #tpu.memory_space<vmem>>, vector<4x16xf32>
      %985 = vector.extract_strided_slice %983 {offsets = [0, 0], sizes = [32, 4], strides = [1, 1]} : vector<32x16xf32> to vector<32x4xf32>
      %cst_490 = arith.constant dense<0.000000e+00> : vector<32x16xf32>
      %986 = tpu.matmul %985, %984, %cst_490 {dimension_numbers = #tpu.dot_dimension_numbers<[1], [0], [0], [1], [0, 0, 1, 1], [], []>} : vector<32x4xf32>, vector<4x16xf32>, vector<32x16xf32> -> vector<32x16xf32>
      %c0_491 = arith.constant 0 : index
      %c0_492 = arith.constant 0 : index
      %c0_493 = arith.constant 0 : index
      %987 = vector.load %arg20[%c0_491, %c0_492, %c0_493] : memref<4x32x16xf32, #tpu.memory_space<vmem>>, vector<1x32x16xf32>
      %988 = vector.shape_cast %987 : vector<1x32x16xf32> to vector<32x16xf32>
      %989 = vector.shape_cast %986 : vector<32x16xf32> to vector<1x32x16xf32>
      tpu.vector_store %arg20[%c0_491, %c0_492, %c0_493], %989 {strides = array<i32>} : memref<4x32x16xf32, #tpu.memory_space<vmem>>, vector<1x32x16xf32>,
      %990 = vector.extract_strided_slice %983 {offsets = [0, 4], sizes = [32, 4], strides = [1, 1]} : vector<32x16xf32> to vector<32x4xf32>
      %cst_494 = arith.constant dense<0.000000e+00> : vector<32x16xf32>
      %991 = tpu.matmul %990, %984, %cst_494 {dimension_numbers = #tpu.dot_dimension_numbers<[1], [0], [0], [1], [0, 0, 1, 1], [], []>} : vector<32x4xf32>, vector<4x16xf32>, vector<32x16xf32> -> vector<32x16xf32>
      %c1_495 = arith.constant 1 : index
      %c0_496 = arith.constant 0 : index
      %c0_497 = arith.constant 0 : index
      %992 = vector.load %arg20[%c1_495, %c0_496, %c0_497] : memref<4x32x16xf32, #tpu.memory_space<vmem>>, vector<1x32x16xf32>
      %993 = vector.shape_cast %992 : vector<1x32x16xf32> to vector<32x16xf32>
      %994 = vector.shape_cast %991 : vector<32x16xf32> to vector<1x32x16xf32>
      tpu.vector_store %arg20[%c1_495, %c0_496, %c0_497], %994 {strides = array<i32>} : memref<4x32x16xf32, #tpu.memory_space<vmem>>, vector<1x32x16xf32>,
      %995 = vector.extract_strided_slice %983 {offsets = [0, 8], sizes = [32, 4], strides = [1, 1]} : vector<32x16xf32> to vector<32x4xf32>
      %cst_498 = arith.constant dense<0.000000e+00> : vector<32x16xf32>
      %996 = tpu.matmul %995, %984, %cst_498 {dimension_numbers = #tpu.dot_dimension_numbers<[1], [0], [0], [1], [0, 0, 1, 1], [], []>} : vector<32x4xf32>, vector<4x16xf32>, vector<32x16xf32> -> vector<32x16xf32>
      %c2_499 = arith.constant 2 : index
      %c0_500 = arith.constant 0 : index
      %c0_501 = arith.constant 0 : index
      %997 = vector.load %arg20[%c2_499, %c0_500, %c0_501] : memref<4x32x16xf32, #tpu.memory_space<vmem>>, vector<1x32x16xf32>
      %998 = vector.shape_cast %997 : vector<1x32x16xf32> to vector<32x16xf32>
      %999 = vector.shape_cast %996 : vector<32x16xf32> to vector<1x32x16xf32>
      tpu.vector_store %arg20[%c2_499, %c0_500, %c0_501], %999 {strides = array<i32>} : memref<4x32x16xf32, #tpu.memory_space<vmem>>, vector<1x32x16xf32>,
      %1000 = vector.extract_strided_slice %983 {offsets = [0, 12], sizes = [32, 4], strides = [1, 1]} : vector<32x16xf32> to vector<32x4xf32>
      %cst_502 = arith.constant dense<0.000000e+00> : vector<32x16xf32>
      %1001 = tpu.matmul %1000, %984, %cst_502 {dimension_numbers = #tpu.dot_dimension_numbers<[1], [0], [0], [1], [0, 0, 1, 1], [], []>} : vector<32x4xf32>, vector<4x16xf32>, vector<32x16xf32> -> vector<32x16xf32>
      %c3_503 = arith.constant 3 : index
      %c0_504 = arith.constant 0 : index
      %c0_505 = arith.constant 0 : index
      %1002 = vector.load %arg20[%c3_503, %c0_504, %c0_505] : memref<4x32x16xf32, #tpu.memory_space<vmem>>, vector<1x32x16xf32>
      %1003 = vector.shape_cast %1002 : vector<1x32x16xf32> to vector<32x16xf32>
      %1004 = vector.shape_cast %1001 : vector<32x16xf32> to vector<1x32x16xf32>
      tpu.vector_store %arg20[%c3_503, %c0_504, %c0_505], %1004 {strides = array<i32>} : memref<4x32x16xf32, #tpu.memory_space<vmem>>, vector<1x32x16xf32>,
      %c0_506 = arith.constant 0 : index
      %c0_507 = arith.constant 0 : index
      %1005 = vector.load %arg14[%c0_506, %c0_507] : memref<32x64xf32, #tpu.memory_space<vmem>>, vector<32x64xf32>
      %c0_508 = arith.constant 0 : index
      %c0_509 = arith.constant 0 : index
      %c0_510 = arith.constant 0 : index
      %1006 = vector.load %arg7[%c0_508, %c0_509, %c0_510] : memref<1x64x4xf32, #tpu.memory_space<vmem>>, vector<1x64x4xf32>
      %1007 = vector.shape_cast %1006 : vector<1x64x4xf32> to vector<64x4xf32>
      %cst_511 = arith.constant dense<0.000000e+00> : vector<32x4xf32>
      %1008 = tpu.matmul %1005, %1007, %cst_511 {dimension_numbers = #tpu.dot_dimension_numbers<[1], [0], [0], [1], [0, 0, 1, 1], [], []>} : vector<32x64xf32>, vector<64x4xf32>, vector<32x4xf32> -> vector<32x4xf32>
      %c0_512 = arith.constant 0 : index
      %c0_513 = arith.constant 0 : index
      %1009 = vector.load %arg10[%c0_512, %c0_513] : memref<2x16xf32, #tpu.memory_space<vmem>>, vector<2x16xf32>
      %1010 = vector.extract_strided_slice %1008 {offsets = [0, 0], sizes = [32, 2], strides = [1, 1]} : vector<32x4xf32> to vector<32x2xf32>
      %cst_514 = arith.constant dense<0.000000e+00> : vector<32x16xf32>
      %1011 = tpu.matmul %1010, %1009, %cst_514 {dimension_numbers = #tpu.dot_dimension_numbers<[1], [0], [0], [1], [0, 0, 1, 1], [], []>} : vector<32x2xf32>, vector<2x16xf32>, vector<32x16xf32> -> vector<32x16xf32>
      %c0_515 = arith.constant 0 : index
      %c0_516 = arith.constant 0 : index
      %c0_517 = arith.constant 0 : index
      %1012 = vector.load %arg21[%c0_515, %c0_516, %c0_517] : memref<2x32x16xf32, #tpu.memory_space<vmem>>, vector<1x32x16xf32>
      %1013 = vector.shape_cast %1012 : vector<1x32x16xf32> to vector<32x16xf32>
      %1014 = vector.shape_cast %1011 : vector<32x16xf32> to vector<1x32x16xf32>
      tpu.vector_store %arg21[%c0_515, %c0_516, %c0_517], %1014 {strides = array<i32>} : memref<2x32x16xf32, #tpu.memory_space<vmem>>, vector<1x32x16xf32>,
      %1015 = vector.extract_strided_slice %1008 {offsets = [0, 2], sizes = [32, 2], strides = [1, 1]} : vector<32x4xf32> to vector<32x2xf32>
      %cst_518 = arith.constant dense<0.000000e+00> : vector<32x16xf32>
      %1016 = tpu.matmul %1015, %1009, %cst_518 {dimension_numbers = #tpu.dot_dimension_numbers<[1], [0], [0], [1], [0, 0, 1, 1], [], []>} : vector<32x2xf32>, vector<2x16xf32>, vector<32x16xf32> -> vector<32x16xf32>
      %c1_519 = arith.constant 1 : index
      %c0_520 = arith.constant 0 : index
      %c0_521 = arith.constant 0 : index
      %1017 = vector.load %arg21[%c1_519, %c0_520, %c0_521] : memref<2x32x16xf32, #tpu.memory_space<vmem>>, vector<1x32x16xf32>
      %1018 = vector.shape_cast %1017 : vector<1x32x16xf32> to vector<32x16xf32>
      %1019 = vector.shape_cast %1016 : vector<32x16xf32> to vector<1x32x16xf32>
      tpu.vector_store %arg21[%c1_519, %c0_520, %c0_521], %1019 {strides = array<i32>} : memref<2x32x16xf32, #tpu.memory_space<vmem>>, vector<1x32x16xf32>,
    } else {
    }
    %c0 = arith.constant 0 : index
    %c0_1 = arith.constant 0 : index
    %3 = vector.load %arg11[%c0, %c0_1] : memref<32x8xf32, #tpu.memory_space<vmem>>, vector<32x8xf32>
    %c0_2 = arith.constant 0 : index
    %c0_3 = arith.constant 0 : index
    %c0_4 = arith.constant 0 : index
    %4 = vector.load %arg4[%c0_2, %c0_3, %c0_4] : memref<1x8x256xf32, #tpu.memory_space<vmem>>, vector<1x8x256xf32>
    %5 = vector.shape_cast %4 : vector<1x8x256xf32> to vector<8x256xf32>
    %cst = arith.constant dense<0.000000e+00> : vector<32x256xf32>
    %6 = tpu.matmul %3, %5, %cst {dimension_numbers = #tpu.dot_dimension_numbers<[1], [0], [0], [1], [0, 0, 1, 1], [], []>} : vector<32x8xf32>, vector<8x256xf32>, vector<32x256xf32> -> vector<32x256xf32>
    %c16_i32 = arith.constant 16 : i32
    %7 = arith.muli %arg1, %c16_i32 : i32
    %c0_i32_5 = arith.constant 0 : i32
    %8 = arith.addi %7, %c0_i32_5 : i32
    %c0_6 = arith.constant 0 : index
    %9 = arith.index_cast %8 : i32 to index
    %10 = memref.load %arg2[%c0_6, %9] : memref<3x16xi32, #tpu.memory_space<smem>>
    %c1_i32 = arith.constant 1 : i32
    %11 = arith.addi %10, %c1_i32 : i32
    %c7_i32 = arith.constant 7 : i32
    %12 = arith.minsi %11, %c7_i32 : i32
    %c0_7 = arith.constant 0 : index
    %13 = arith.index_cast %8 : i32 to index
    %14 = memref.load %arg3[%c0_7, %13] : memref<3x16xf32, #tpu.memory_space<smem>>
    %cst_8 = arith.constant 1.000000e+00 : f32
    %15 = arith.subf %cst_8, %14 : f32
    %16 = arith.index_cast %10 : i32 to index
    %c0_9 = arith.constant 0 : index
    %c0_10 = arith.constant 0 : index
    %17 = vector.load %arg19[%16, %c0_9, %c0_10] : memref<8x32x16xf32, #tpu.memory_space<vmem>>, vector<1x32x16xf32>
    %18 = vector.shape_cast %17 : vector<1x32x16xf32> to vector<32x16xf32>
    %19 = vector.broadcast %15 : f32 to vector<32x16xf32>
    %20 = arith.mulf %19, %18 : vector<32x16xf32>
    %21 = arith.index_cast %12 : i32 to index
    %c0_11 = arith.constant 0 : index
    %c0_12 = arith.constant 0 : index
    %22 = vector.load %arg19[%21, %c0_11, %c0_12] : memref<8x32x16xf32, #tpu.memory_space<vmem>>, vector<1x32x16xf32>
    %23 = vector.shape_cast %22 : vector<1x32x16xf32> to vector<32x16xf32>
    %24 = vector.broadcast %14 : f32 to vector<32x16xf32>
    %25 = arith.mulf %24, %23 : vector<32x16xf32>
    %26 = arith.addf %20, %25 : vector<32x16xf32>
    %c1 = arith.constant 1 : index
    %27 = arith.index_cast %8 : i32 to index
    %28 = memref.load %arg2[%c1, %27] : memref<3x16xi32, #tpu.memory_space<smem>>
    %c1_i32_13 = arith.constant 1 : i32
    %29 = arith.addi %28, %c1_i32_13 : i32
    %c3_i32 = arith.constant 3 : i32
    %30 = arith.minsi %29, %c3_i32 : i32
    %c1_14 = arith.constant 1 : index
    %31 = arith.index_cast %8 : i32 to index
    %32 = memref.load %arg3[%c1_14, %31] : memref<3x16xf32, #tpu.memory_space<smem>>
    %cst_15 = arith.constant 1.000000e+00 : f32
    %33 = arith.subf %cst_15, %32 : f32
    %34 = arith.index_cast %28 : i32 to index
    %c0_16 = arith.constant 0 : index
    %c0_17 = arith.constant 0 : index
    %35 = vector.load %arg20[%34, %c0_16, %c0_17] : memref<4x32x16xf32, #tpu.memory_space<vmem>>, vector<1x32x16xf32>
    %36 = vector.shape_cast %35 : vector<1x32x16xf32> to vector<32x16xf32>
    %37 = vector.broadcast %33 : f32 to vector<32x16xf32>
    %38 = arith.mulf %37, %36 : vector<32x16xf32>
    %39 = arith.index_cast %30 : i32 to index
    %c0_18 = arith.constant 0 : index
    %c0_19 = arith.constant 0 : index
    %40 = vector.load %arg20[%39, %c0_18, %c0_19] : memref<4x32x16xf32, #tpu.memory_space<vmem>>, vector<1x32x16xf32>
    %41 = vector.shape_cast %40 : vector<1x32x16xf32> to vector<32x16xf32>
    %42 = vector.broadcast %32 : f32 to vector<32x16xf32>
    %43 = arith.mulf %42, %41 : vector<32x16xf32>
    %44 = arith.addf %38, %43 : vector<32x16xf32>
    %45 = arith.addf %26, %44 : vector<32x16xf32>
    %c2 = arith.constant 2 : index
    %46 = arith.index_cast %8 : i32 to index
    %47 = memref.load %arg2[%c2, %46] : memref<3x16xi32, #tpu.memory_space<smem>>
    %c1_i32_20 = arith.constant 1 : i32
    %48 = arith.addi %47, %c1_i32_20 : i32
    %c1_i32_21 = arith.constant 1 : i32
    %49 = arith.minsi %48, %c1_i32_21 : i32
    %c2_22 = arith.constant 2 : index
    %50 = arith.index_cast %8 : i32 to index
    %51 = memref.load %arg3[%c2_22, %50] : memref<3x16xf32, #tpu.memory_space<smem>>
    %cst_23 = arith.constant 1.000000e+00 : f32
    %52 = arith.subf %cst_23, %51 : f32
    %53 = arith.index_cast %47 : i32 to index
    %c0_24 = arith.constant 0 : index
    %c0_25 = arith.constant 0 : index
    %54 = vector.load %arg21[%53, %c0_24, %c0_25] : memref<2x32x16xf32, #tpu.memory_space<vmem>>, vector<1x32x16xf32>
    %55 = vector.shape_cast %54 : vector<1x32x16xf32> to vector<32x16xf32>
    %56 = vector.broadcast %52 : f32 to vector<32x16xf32>
    %57 = arith.mulf %56, %55 : vector<32x16xf32>
    %58 = arith.index_cast %49 : i32 to index
    %c0_26 = arith.constant 0 : index
    %c0_27 = arith.constant 0 : index
    %59 = vector.load %arg21[%58, %c0_26, %c0_27] : memref<2x32x16xf32, #tpu.memory_space<vmem>>, vector<1x32x16xf32>
    %60 = vector.shape_cast %59 : vector<1x32x16xf32> to vector<32x16xf32>
    %61 = vector.broadcast %51 : f32 to vector<32x16xf32>
    %62 = arith.mulf %61, %60 : vector<32x16xf32>
    %63 = arith.addf %57, %62 : vector<32x16xf32>
    %64 = arith.addf %45, %63 : vector<32x16xf32>
    %c1_i32_28 = arith.constant 1 : i32
    %65 = arith.addi %7, %c1_i32_28 : i32
    %c0_29 = arith.constant 0 : index
    %66 = arith.index_cast %65 : i32 to index
    %67 = memref.load %arg2[%c0_29, %66] : memref<3x16xi32, #tpu.memory_space<smem>>
    %c1_i32_30 = arith.constant 1 : i32
    %68 = arith.addi %67, %c1_i32_30 : i32
    %c7_i32_31 = arith.constant 7 : i32
    %69 = arith.minsi %68, %c7_i32_31 : i32
    %c0_32 = arith.constant 0 : index
    %70 = arith.index_cast %65 : i32 to index
    %71 = memref.load %arg3[%c0_32, %70] : memref<3x16xf32, #tpu.memory_space<smem>>
    %cst_33 = arith.constant 1.000000e+00 : f32
    %72 = arith.subf %cst_33, %71 : f32
    %73 = arith.index_cast %67 : i32 to index
    %c0_34 = arith.constant 0 : index
    %c0_35 = arith.constant 0 : index
    %74 = vector.load %arg19[%73, %c0_34, %c0_35] : memref<8x32x16xf32, #tpu.memory_space<vmem>>, vector<1x32x16xf32>
    %75 = vector.shape_cast %74 : vector<1x32x16xf32> to vector<32x16xf32>
    %76 = vector.broadcast %72 : f32 to vector<32x16xf32>
    %77 = arith.mulf %76, %75 : vector<32x16xf32>
    %78 = arith.index_cast %69 : i32 to index
    %c0_36 = arith.constant 0 : index
    %c0_37 = arith.constant 0 : index
    %79 = vector.load %arg19[%78, %c0_36, %c0_37] : memref<8x32x16xf32, #tpu.memory_space<vmem>>, vector<1x32x16xf32>
    %80 = vector.shape_cast %79 : vector<1x32x16xf32> to vector<32x16xf32>
    %81 = vector.broadcast %71 : f32 to vector<32x16xf32>
    %82 = arith.mulf %81, %80 : vector<32x16xf32>
    %83 = arith.addf %77, %82 : vector<32x16xf32>
    %c1_38 = arith.constant 1 : index
    %84 = arith.index_cast %65 : i32 to index
    %85 = memref.load %arg2[%c1_38, %84] : memref<3x16xi32, #tpu.memory_space<smem>>
    %c1_i32_39 = arith.constant 1 : i32
    %86 = arith.addi %85, %c1_i32_39 : i32
    %c3_i32_40 = arith.constant 3 : i32
    %87 = arith.minsi %86, %c3_i32_40 : i32
    %c1_41 = arith.constant 1 : index
    %88 = arith.index_cast %65 : i32 to index
    %89 = memref.load %arg3[%c1_41, %88] : memref<3x16xf32, #tpu.memory_space<smem>>
    %cst_42 = arith.constant 1.000000e+00 : f32
    %90 = arith.subf %cst_42, %89 : f32
    %91 = arith.index_cast %85 : i32 to index
    %c0_43 = arith.constant 0 : index
    %c0_44 = arith.constant 0 : index
    %92 = vector.load %arg20[%91, %c0_43, %c0_44] : memref<4x32x16xf32, #tpu.memory_space<vmem>>, vector<1x32x16xf32>
    %93 = vector.shape_cast %92 : vector<1x32x16xf32> to vector<32x16xf32>
    %94 = vector.broadcast %90 : f32 to vector<32x16xf32>
    %95 = arith.mulf %94, %93 : vector<32x16xf32>
    %96 = arith.index_cast %87 : i32 to index
    %c0_45 = arith.constant 0 : index
    %c0_46 = arith.constant 0 : index
    %97 = vector.load %arg20[%96, %c0_45, %c0_46] : memref<4x32x16xf32, #tpu.memory_space<vmem>>, vector<1x32x16xf32>
    %98 = vector.shape_cast %97 : vector<1x32x16xf32> to vector<32x16xf32>
    %99 = vector.broadcast %89 : f32 to vector<32x16xf32>
    %100 = arith.mulf %99, %98 : vector<32x16xf32>
    %101 = arith.addf %95, %100 : vector<32x16xf32>
    %102 = arith.addf %83, %101 : vector<32x16xf32>
    %c2_47 = arith.constant 2 : index
    %103 = arith.index_cast %65 : i32 to index
    %104 = memref.load %arg2[%c2_47, %103] : memref<3x16xi32, #tpu.memory_space<smem>>
    %c1_i32_48 = arith.constant 1 : i32
    %105 = arith.addi %104, %c1_i32_48 : i32
    %c1_i32_49 = arith.constant 1 : i32
    %106 = arith.minsi %105, %c1_i32_49 : i32
    %c2_50 = arith.constant 2 : index
    %107 = arith.index_cast %65 : i32 to index
    %108 = memref.load %arg3[%c2_50, %107] : memref<3x16xf32, #tpu.memory_space<smem>>
    %cst_51 = arith.constant 1.000000e+00 : f32
    %109 = arith.subf %cst_51, %108 : f32
    %110 = arith.index_cast %104 : i32 to index
    %c0_52 = arith.constant 0 : index
    %c0_53 = arith.constant 0 : index
    %111 = vector.load %arg21[%110, %c0_52, %c0_53] : memref<2x32x16xf32, #tpu.memory_space<vmem>>, vector<1x32x16xf32>
    %112 = vector.shape_cast %111 : vector<1x32x16xf32> to vector<32x16xf32>
    %113 = vector.broadcast %109 : f32 to vector<32x16xf32>
    %114 = arith.mulf %113, %112 : vector<32x16xf32>
    %115 = arith.index_cast %106 : i32 to index
    %c0_54 = arith.constant 0 : index
    %c0_55 = arith.constant 0 : index
    %116 = vector.load %arg21[%115, %c0_54, %c0_55] : memref<2x32x16xf32, #tpu.memory_space<vmem>>, vector<1x32x16xf32>
    %117 = vector.shape_cast %116 : vector<1x32x16xf32> to vector<32x16xf32>
    %118 = vector.broadcast %108 : f32 to vector<32x16xf32>
    %119 = arith.mulf %118, %117 : vector<32x16xf32>
    %120 = arith.addf %114, %119 : vector<32x16xf32>
    %121 = arith.addf %102, %120 : vector<32x16xf32>
    %c2_i32 = arith.constant 2 : i32
    %122 = arith.addi %7, %c2_i32 : i32
    %c0_56 = arith.constant 0 : index
    %123 = arith.index_cast %122 : i32 to index
    %124 = memref.load %arg2[%c0_56, %123] : memref<3x16xi32, #tpu.memory_space<smem>>
    %c1_i32_57 = arith.constant 1 : i32
    %125 = arith.addi %124, %c1_i32_57 : i32
    %c7_i32_58 = arith.constant 7 : i32
    %126 = arith.minsi %125, %c7_i32_58 : i32
    %c0_59 = arith.constant 0 : index
    %127 = arith.index_cast %122 : i32 to index
    %128 = memref.load %arg3[%c0_59, %127] : memref<3x16xf32, #tpu.memory_space<smem>>
    %cst_60 = arith.constant 1.000000e+00 : f32
    %129 = arith.subf %cst_60, %128 : f32
    %130 = arith.index_cast %124 : i32 to index
    %c0_61 = arith.constant 0 : index
    %c0_62 = arith.constant 0 : index
    %131 = vector.load %arg19[%130, %c0_61, %c0_62] : memref<8x32x16xf32, #tpu.memory_space<vmem>>, vector<1x32x16xf32>
    %132 = vector.shape_cast %131 : vector<1x32x16xf32> to vector<32x16xf32>
    %133 = vector.broadcast %129 : f32 to vector<32x16xf32>
    %134 = arith.mulf %133, %132 : vector<32x16xf32>
    %135 = arith.index_cast %126 : i32 to index
    %c0_63 = arith.constant 0 : index
    %c0_64 = arith.constant 0 : index
    %136 = vector.load %arg19[%135, %c0_63, %c0_64] : memref<8x32x16xf32, #tpu.memory_space<vmem>>, vector<1x32x16xf32>
    %137 = vector.shape_cast %136 : vector<1x32x16xf32> to vector<32x16xf32>
    %138 = vector.broadcast %128 : f32 to vector<32x16xf32>
    %139 = arith.mulf %138, %137 : vector<32x16xf32>
    %140 = arith.addf %134, %139 : vector<32x16xf32>
    %c1_65 = arith.constant 1 : index
    %141 = arith.index_cast %122 : i32 to index
    %142 = memref.load %arg2[%c1_65, %141] : memref<3x16xi32, #tpu.memory_space<smem>>
    %c1_i32_66 = arith.constant 1 : i32
    %143 = arith.addi %142, %c1_i32_66 : i32
    %c3_i32_67 = arith.constant 3 : i32
    %144 = arith.minsi %143, %c3_i32_67 : i32
    %c1_68 = arith.constant 1 : index
    %145 = arith.index_cast %122 : i32 to index
    %146 = memref.load %arg3[%c1_68, %145] : memref<3x16xf32, #tpu.memory_space<smem>>
    %cst_69 = arith.constant 1.000000e+00 : f32
    %147 = arith.subf %cst_69, %146 : f32
    %148 = arith.index_cast %142 : i32 to index
    %c0_70 = arith.constant 0 : index
    %c0_71 = arith.constant 0 : index
    %149 = vector.load %arg20[%148, %c0_70, %c0_71] : memref<4x32x16xf32, #tpu.memory_space<vmem>>, vector<1x32x16xf32>
    %150 = vector.shape_cast %149 : vector<1x32x16xf32> to vector<32x16xf32>
    %151 = vector.broadcast %147 : f32 to vector<32x16xf32>
    %152 = arith.mulf %151, %150 : vector<32x16xf32>
    %153 = arith.index_cast %144 : i32 to index
    %c0_72 = arith.constant 0 : index
    %c0_73 = arith.constant 0 : index
    %154 = vector.load %arg20[%153, %c0_72, %c0_73] : memref<4x32x16xf32, #tpu.memory_space<vmem>>, vector<1x32x16xf32>
    %155 = vector.shape_cast %154 : vector<1x32x16xf32> to vector<32x16xf32>
    %156 = vector.broadcast %146 : f32 to vector<32x16xf32>
    %157 = arith.mulf %156, %155 : vector<32x16xf32>
    %158 = arith.addf %152, %157 : vector<32x16xf32>
    %159 = arith.addf %140, %158 : vector<32x16xf32>
    %c2_74 = arith.constant 2 : index
    %160 = arith.index_cast %122 : i32 to index
    %161 = memref.load %arg2[%c2_74, %160] : memref<3x16xi32, #tpu.memory_space<smem>>
    %c1_i32_75 = arith.constant 1 : i32
    %162 = arith.addi %161, %c1_i32_75 : i32
    %c1_i32_76 = arith.constant 1 : i32
    %163 = arith.minsi %162, %c1_i32_76 : i32
    %c2_77 = arith.constant 2 : index
    %164 = arith.index_cast %122 : i32 to index
    %165 = memref.load %arg3[%c2_77, %164] : memref<3x16xf32, #tpu.memory_space<smem>>
    %cst_78 = arith.constant 1.000000e+00 : f32
    %166 = arith.subf %cst_78, %165 : f32
    %167 = arith.index_cast %161 : i32 to index
    %c0_79 = arith.constant 0 : index
    %c0_80 = arith.constant 0 : index
    %168 = vector.load %arg21[%167, %c0_79, %c0_80] : memref<2x32x16xf32, #tpu.memory_space<vmem>>, vector<1x32x16xf32>
    %169 = vector.shape_cast %168 : vector<1x32x16xf32> to vector<32x16xf32>
    %170 = vector.broadcast %166 : f32 to vector<32x16xf32>
    %171 = arith.mulf %170, %169 : vector<32x16xf32>
    %172 = arith.index_cast %163 : i32 to index
    %c0_81 = arith.constant 0 : index
    %c0_82 = arith.constant 0 : index
    %173 = vector.load %arg21[%172, %c0_81, %c0_82] : memref<2x32x16xf32, #tpu.memory_space<vmem>>, vector<1x32x16xf32>
    %174 = vector.shape_cast %173 : vector<1x32x16xf32> to vector<32x16xf32>
    %175 = vector.broadcast %165 : f32 to vector<32x16xf32>
    %176 = arith.mulf %175, %174 : vector<32x16xf32>
    %177 = arith.addf %171, %176 : vector<32x16xf32>
    %178 = arith.addf %159, %177 : vector<32x16xf32>
    %c3_i32_83 = arith.constant 3 : i32
    %179 = arith.addi %7, %c3_i32_83 : i32
    %c0_84 = arith.constant 0 : index
    %180 = arith.index_cast %179 : i32 to index
    %181 = memref.load %arg2[%c0_84, %180] : memref<3x16xi32, #tpu.memory_space<smem>>
    %c1_i32_85 = arith.constant 1 : i32
    %182 = arith.addi %181, %c1_i32_85 : i32
    %c7_i32_86 = arith.constant 7 : i32
    %183 = arith.minsi %182, %c7_i32_86 : i32
    %c0_87 = arith.constant 0 : index
    %184 = arith.index_cast %179 : i32 to index
    %185 = memref.load %arg3[%c0_87, %184] : memref<3x16xf32, #tpu.memory_space<smem>>
    %cst_88 = arith.constant 1.000000e+00 : f32
    %186 = arith.subf %cst_88, %185 : f32
    %187 = arith.index_cast %181 : i32 to index
    %c0_89 = arith.constant 0 : index
    %c0_90 = arith.constant 0 : index
    %188 = vector.load %arg19[%187, %c0_89, %c0_90] : memref<8x32x16xf32, #tpu.memory_space<vmem>>, vector<1x32x16xf32>
    %189 = vector.shape_cast %188 : vector<1x32x16xf32> to vector<32x16xf32>
    %190 = vector.broadcast %186 : f32 to vector<32x16xf32>
    %191 = arith.mulf %190, %189 : vector<32x16xf32>
    %192 = arith.index_cast %183 : i32 to index
    %c0_91 = arith.constant 0 : index
    %c0_92 = arith.constant 0 : index
    %193 = vector.load %arg19[%192, %c0_91, %c0_92] : memref<8x32x16xf32, #tpu.memory_space<vmem>>, vector<1x32x16xf32>
    %194 = vector.shape_cast %193 : vector<1x32x16xf32> to vector<32x16xf32>
    %195 = vector.broadcast %185 : f32 to vector<32x16xf32>
    %196 = arith.mulf %195, %194 : vector<32x16xf32>
    %197 = arith.addf %191, %196 : vector<32x16xf32>
    %c1_93 = arith.constant 1 : index
    %198 = arith.index_cast %179 : i32 to index
    %199 = memref.load %arg2[%c1_93, %198] : memref<3x16xi32, #tpu.memory_space<smem>>
    %c1_i32_94 = arith.constant 1 : i32
    %200 = arith.addi %199, %c1_i32_94 : i32
    %c3_i32_95 = arith.constant 3 : i32
    %201 = arith.minsi %200, %c3_i32_95 : i32
    %c1_96 = arith.constant 1 : index
    %202 = arith.index_cast %179 : i32 to index
    %203 = memref.load %arg3[%c1_96, %202] : memref<3x16xf32, #tpu.memory_space<smem>>
    %cst_97 = arith.constant 1.000000e+00 : f32
    %204 = arith.subf %cst_97, %203 : f32
    %205 = arith.index_cast %199 : i32 to index
    %c0_98 = arith.constant 0 : index
    %c0_99 = arith.constant 0 : index
    %206 = vector.load %arg20[%205, %c0_98, %c0_99] : memref<4x32x16xf32, #tpu.memory_space<vmem>>, vector<1x32x16xf32>
    %207 = vector.shape_cast %206 : vector<1x32x16xf32> to vector<32x16xf32>
    %208 = vector.broadcast %204 : f32 to vector<32x16xf32>
    %209 = arith.mulf %208, %207 : vector<32x16xf32>
    %210 = arith.index_cast %201 : i32 to index
    %c0_100 = arith.constant 0 : index
    %c0_101 = arith.constant 0 : index
    %211 = vector.load %arg20[%210, %c0_100, %c0_101] : memref<4x32x16xf32, #tpu.memory_space<vmem>>, vector<1x32x16xf32>
    %212 = vector.shape_cast %211 : vector<1x32x16xf32> to vector<32x16xf32>
    %213 = vector.broadcast %203 : f32 to vector<32x16xf32>
    %214 = arith.mulf %213, %212 : vector<32x16xf32>
    %215 = arith.addf %209, %214 : vector<32x16xf32>
    %216 = arith.addf %197, %215 : vector<32x16xf32>
    %c2_102 = arith.constant 2 : index
    %217 = arith.index_cast %179 : i32 to index
    %218 = memref.load %arg2[%c2_102, %217] : memref<3x16xi32, #tpu.memory_space<smem>>
    %c1_i32_103 = arith.constant 1 : i32
    %219 = arith.addi %218, %c1_i32_103 : i32
    %c1_i32_104 = arith.constant 1 : i32
    %220 = arith.minsi %219, %c1_i32_104 : i32
    %c2_105 = arith.constant 2 : index
    %221 = arith.index_cast %179 : i32 to index
    %222 = memref.load %arg3[%c2_105, %221] : memref<3x16xf32, #tpu.memory_space<smem>>
    %cst_106 = arith.constant 1.000000e+00 : f32
    %223 = arith.subf %cst_106, %222 : f32
    %224 = arith.index_cast %218 : i32 to index
    %c0_107 = arith.constant 0 : index
    %c0_108 = arith.constant 0 : index
    %225 = vector.load %arg21[%224, %c0_107, %c0_108] : memref<2x32x16xf32, #tpu.memory_space<vmem>>, vector<1x32x16xf32>
    %226 = vector.shape_cast %225 : vector<1x32x16xf32> to vector<32x16xf32>
    %227 = vector.broadcast %223 : f32 to vector<32x16xf32>
    %228 = arith.mulf %227, %226 : vector<32x16xf32>
    %229 = arith.index_cast %220 : i32 to index
    %c0_109 = arith.constant 0 : index
    %c0_110 = arith.constant 0 : index
    %230 = vector.load %arg21[%229, %c0_109, %c0_110] : memref<2x32x16xf32, #tpu.memory_space<vmem>>, vector<1x32x16xf32>
    %231 = vector.shape_cast %230 : vector<1x32x16xf32> to vector<32x16xf32>
    %232 = vector.broadcast %222 : f32 to vector<32x16xf32>
    %233 = arith.mulf %232, %231 : vector<32x16xf32>
    %234 = arith.addf %228, %233 : vector<32x16xf32>
    %235 = arith.addf %216, %234 : vector<32x16xf32>
    %c4_i32 = arith.constant 4 : i32
    %236 = arith.addi %7, %c4_i32 : i32
    %c0_111 = arith.constant 0 : index
    %237 = arith.index_cast %236 : i32 to index
    %238 = memref.load %arg2[%c0_111, %237] : memref<3x16xi32, #tpu.memory_space<smem>>
    %c1_i32_112 = arith.constant 1 : i32
    %239 = arith.addi %238, %c1_i32_112 : i32
    %c7_i32_113 = arith.constant 7 : i32
    %240 = arith.minsi %239, %c7_i32_113 : i32
    %c0_114 = arith.constant 0 : index
    %241 = arith.index_cast %236 : i32 to index
    %242 = memref.load %arg3[%c0_114, %241] : memref<3x16xf32, #tpu.memory_space<smem>>
    %cst_115 = arith.constant 1.000000e+00 : f32
    %243 = arith.subf %cst_115, %242 : f32
    %244 = arith.index_cast %238 : i32 to index
    %c0_116 = arith.constant 0 : index
    %c0_117 = arith.constant 0 : index
    %245 = vector.load %arg19[%244, %c0_116, %c0_117] : memref<8x32x16xf32, #tpu.memory_space<vmem>>, vector<1x32x16xf32>
    %246 = vector.shape_cast %245 : vector<1x32x16xf32> to vector<32x16xf32>
    %247 = vector.broadcast %243 : f32 to vector<32x16xf32>
    %248 = arith.mulf %247, %246 : vector<32x16xf32>
    %249 = arith.index_cast %240 : i32 to index
    %c0_118 = arith.constant 0 : index
    %c0_119 = arith.constant 0 : index
    %250 = vector.load %arg19[%249, %c0_118, %c0_119] : memref<8x32x16xf32, #tpu.memory_space<vmem>>, vector<1x32x16xf32>
    %251 = vector.shape_cast %250 : vector<1x32x16xf32> to vector<32x16xf32>
    %252 = vector.broadcast %242 : f32 to vector<32x16xf32>
    %253 = arith.mulf %252, %251 : vector<32x16xf32>
    %254 = arith.addf %248, %253 : vector<32x16xf32>
    %c1_120 = arith.constant 1 : index
    %255 = arith.index_cast %236 : i32 to index
    %256 = memref.load %arg2[%c1_120, %255] : memref<3x16xi32, #tpu.memory_space<smem>>
    %c1_i32_121 = arith.constant 1 : i32
    %257 = arith.addi %256, %c1_i32_121 : i32
    %c3_i32_122 = arith.constant 3 : i32
    %258 = arith.minsi %257, %c3_i32_122 : i32
    %c1_123 = arith.constant 1 : index
    %259 = arith.index_cast %236 : i32 to index
    %260 = memref.load %arg3[%c1_123, %259] : memref<3x16xf32, #tpu.memory_space<smem>>
    %cst_124 = arith.constant 1.000000e+00 : f32
    %261 = arith.subf %cst_124, %260 : f32
    %262 = arith.index_cast %256 : i32 to index
    %c0_125 = arith.constant 0 : index
    %c0_126 = arith.constant 0 : index
    %263 = vector.load %arg20[%262, %c0_125, %c0_126] : memref<4x32x16xf32, #tpu.memory_space<vmem>>, vector<1x32x16xf32>
    %264 = vector.shape_cast %263 : vector<1x32x16xf32> to vector<32x16xf32>
    %265 = vector.broadcast %261 : f32 to vector<32x16xf32>
    %266 = arith.mulf %265, %264 : vector<32x16xf32>
    %267 = arith.index_cast %258 : i32 to index
    %c0_127 = arith.constant 0 : index
    %c0_128 = arith.constant 0 : index
    %268 = vector.load %arg20[%267, %c0_127, %c0_128] : memref<4x32x16xf32, #tpu.memory_space<vmem>>, vector<1x32x16xf32>
    %269 = vector.shape_cast %268 : vector<1x32x16xf32> to vector<32x16xf32>
    %270 = vector.broadcast %260 : f32 to vector<32x16xf32>
    %271 = arith.mulf %270, %269 : vector<32x16xf32>
    %272 = arith.addf %266, %271 : vector<32x16xf32>
    %273 = arith.addf %254, %272 : vector<32x16xf32>
    %c2_129 = arith.constant 2 : index
    %274 = arith.index_cast %236 : i32 to index
    %275 = memref.load %arg2[%c2_129, %274] : memref<3x16xi32, #tpu.memory_space<smem>>
    %c1_i32_130 = arith.constant 1 : i32
    %276 = arith.addi %275, %c1_i32_130 : i32
    %c1_i32_131 = arith.constant 1 : i32
    %277 = arith.minsi %276, %c1_i32_131 : i32
    %c2_132 = arith.constant 2 : index
    %278 = arith.index_cast %236 : i32 to index
    %279 = memref.load %arg3[%c2_132, %278] : memref<3x16xf32, #tpu.memory_space<smem>>
    %cst_133 = arith.constant 1.000000e+00 : f32
    %280 = arith.subf %cst_133, %279 : f32
    %281 = arith.index_cast %275 : i32 to index
    %c0_134 = arith.constant 0 : index
    %c0_135 = arith.constant 0 : index
    %282 = vector.load %arg21[%281, %c0_134, %c0_135] : memref<2x32x16xf32, #tpu.memory_space<vmem>>, vector<1x32x16xf32>
    %283 = vector.shape_cast %282 : vector<1x32x16xf32> to vector<32x16xf32>
    %284 = vector.broadcast %280 : f32 to vector<32x16xf32>
    %285 = arith.mulf %284, %283 : vector<32x16xf32>
    %286 = arith.index_cast %277 : i32 to index
    %c0_136 = arith.constant 0 : index
    %c0_137 = arith.constant 0 : index
    %287 = vector.load %arg21[%286, %c0_136, %c0_137] : memref<2x32x16xf32, #tpu.memory_space<vmem>>, vector<1x32x16xf32>
    %288 = vector.shape_cast %287 : vector<1x32x16xf32> to vector<32x16xf32>
    %289 = vector.broadcast %279 : f32 to vector<32x16xf32>
    %290 = arith.mulf %289, %288 : vector<32x16xf32>
    %291 = arith.addf %285, %290 : vector<32x16xf32>
    %292 = arith.addf %273, %291 : vector<32x16xf32>
    %c5_i32 = arith.constant 5 : i32
    %293 = arith.addi %7, %c5_i32 : i32
    %c0_138 = arith.constant 0 : index
    %294 = arith.index_cast %293 : i32 to index
    %295 = memref.load %arg2[%c0_138, %294] : memref<3x16xi32, #tpu.memory_space<smem>>
    %c1_i32_139 = arith.constant 1 : i32
    %296 = arith.addi %295, %c1_i32_139 : i32
    %c7_i32_140 = arith.constant 7 : i32
    %297 = arith.minsi %296, %c7_i32_140 : i32
    %c0_141 = arith.constant 0 : index
    %298 = arith.index_cast %293 : i32 to index
    %299 = memref.load %arg3[%c0_141, %298] : memref<3x16xf32, #tpu.memory_space<smem>>
    %cst_142 = arith.constant 1.000000e+00 : f32
    %300 = arith.subf %cst_142, %299 : f32
    %301 = arith.index_cast %295 : i32 to index
    %c0_143 = arith.constant 0 : index
    %c0_144 = arith.constant 0 : index
    %302 = vector.load %arg19[%301, %c0_143, %c0_144] : memref<8x32x16xf32, #tpu.memory_space<vmem>>, vector<1x32x16xf32>
    %303 = vector.shape_cast %302 : vector<1x32x16xf32> to vector<32x16xf32>
    %304 = vector.broadcast %300 : f32 to vector<32x16xf32>
    %305 = arith.mulf %304, %303 : vector<32x16xf32>
    %306 = arith.index_cast %297 : i32 to index
    %c0_145 = arith.constant 0 : index
    %c0_146 = arith.constant 0 : index
    %307 = vector.load %arg19[%306, %c0_145, %c0_146] : memref<8x32x16xf32, #tpu.memory_space<vmem>>, vector<1x32x16xf32>
    %308 = vector.shape_cast %307 : vector<1x32x16xf32> to vector<32x16xf32>
    %309 = vector.broadcast %299 : f32 to vector<32x16xf32>
    %310 = arith.mulf %309, %308 : vector<32x16xf32>
    %311 = arith.addf %305, %310 : vector<32x16xf32>
    %c1_147 = arith.constant 1 : index
    %312 = arith.index_cast %293 : i32 to index
    %313 = memref.load %arg2[%c1_147, %312] : memref<3x16xi32, #tpu.memory_space<smem>>
    %c1_i32_148 = arith.constant 1 : i32
    %314 = arith.addi %313, %c1_i32_148 : i32
    %c3_i32_149 = arith.constant 3 : i32
    %315 = arith.minsi %314, %c3_i32_149 : i32
    %c1_150 = arith.constant 1 : index
    %316 = arith.index_cast %293 : i32 to index
    %317 = memref.load %arg3[%c1_150, %316] : memref<3x16xf32, #tpu.memory_space<smem>>
    %cst_151 = arith.constant 1.000000e+00 : f32
    %318 = arith.subf %cst_151, %317 : f32
    %319 = arith.index_cast %313 : i32 to index
    %c0_152 = arith.constant 0 : index
    %c0_153 = arith.constant 0 : index
    %320 = vector.load %arg20[%319, %c0_152, %c0_153] : memref<4x32x16xf32, #tpu.memory_space<vmem>>, vector<1x32x16xf32>
    %321 = vector.shape_cast %320 : vector<1x32x16xf32> to vector<32x16xf32>
    %322 = vector.broadcast %318 : f32 to vector<32x16xf32>
    %323 = arith.mulf %322, %321 : vector<32x16xf32>
    %324 = arith.index_cast %315 : i32 to index
    %c0_154 = arith.constant 0 : index
    %c0_155 = arith.constant 0 : index
    %325 = vector.load %arg20[%324, %c0_154, %c0_155] : memref<4x32x16xf32, #tpu.memory_space<vmem>>, vector<1x32x16xf32>
    %326 = vector.shape_cast %325 : vector<1x32x16xf32> to vector<32x16xf32>
    %327 = vector.broadcast %317 : f32 to vector<32x16xf32>
    %328 = arith.mulf %327, %326 : vector<32x16xf32>
    %329 = arith.addf %323, %328 : vector<32x16xf32>
    %330 = arith.addf %311, %329 : vector<32x16xf32>
    %c2_156 = arith.constant 2 : index
    %331 = arith.index_cast %293 : i32 to index
    %332 = memref.load %arg2[%c2_156, %331] : memref<3x16xi32, #tpu.memory_space<smem>>
    %c1_i32_157 = arith.constant 1 : i32
    %333 = arith.addi %332, %c1_i32_157 : i32
    %c1_i32_158 = arith.constant 1 : i32
    %334 = arith.minsi %333, %c1_i32_158 : i32
    %c2_159 = arith.constant 2 : index
    %335 = arith.index_cast %293 : i32 to index
    %336 = memref.load %arg3[%c2_159, %335] : memref<3x16xf32, #tpu.memory_space<smem>>
    %cst_160 = arith.constant 1.000000e+00 : f32
    %337 = arith.subf %cst_160, %336 : f32
    %338 = arith.index_cast %332 : i32 to index
    %c0_161 = arith.constant 0 : index
    %c0_162 = arith.constant 0 : index
    %339 = vector.load %arg21[%338, %c0_161, %c0_162] : memref<2x32x16xf32, #tpu.memory_space<vmem>>, vector<1x32x16xf32>
    %340 = vector.shape_cast %339 : vector<1x32x16xf32> to vector<32x16xf32>
    %341 = vector.broadcast %337 : f32 to vector<32x16xf32>
    %342 = arith.mulf %341, %340 : vector<32x16xf32>
    %343 = arith.index_cast %334 : i32 to index
    %c0_163 = arith.constant 0 : index
    %c0_164 = arith.constant 0 : index
    %344 = vector.load %arg21[%343, %c0_163, %c0_164] : memref<2x32x16xf32, #tpu.memory_space<vmem>>, vector<1x32x16xf32>
    %345 = vector.shape_cast %344 : vector<1x32x16xf32> to vector<32x16xf32>
    %346 = vector.broadcast %336 : f32 to vector<32x16xf32>
    %347 = arith.mulf %346, %345 : vector<32x16xf32>
    %348 = arith.addf %342, %347 : vector<32x16xf32>
    %349 = arith.addf %330, %348 : vector<32x16xf32>
    %c6_i32 = arith.constant 6 : i32
    %350 = arith.addi %7, %c6_i32 : i32
    %c0_165 = arith.constant 0 : index
    %351 = arith.index_cast %350 : i32 to index
    %352 = memref.load %arg2[%c0_165, %351] : memref<3x16xi32, #tpu.memory_space<smem>>
    %c1_i32_166 = arith.constant 1 : i32
    %353 = arith.addi %352, %c1_i32_166 : i32
    %c7_i32_167 = arith.constant 7 : i32
    %354 = arith.minsi %353, %c7_i32_167 : i32
    %c0_168 = arith.constant 0 : index
    %355 = arith.index_cast %350 : i32 to index
    %356 = memref.load %arg3[%c0_168, %355] : memref<3x16xf32, #tpu.memory_space<smem>>
    %cst_169 = arith.constant 1.000000e+00 : f32
    %357 = arith.subf %cst_169, %356 : f32
    %358 = arith.index_cast %352 : i32 to index
    %c0_170 = arith.constant 0 : index
    %c0_171 = arith.constant 0 : index
    %359 = vector.load %arg19[%358, %c0_170, %c0_171] : memref<8x32x16xf32, #tpu.memory_space<vmem>>, vector<1x32x16xf32>
    %360 = vector.shape_cast %359 : vector<1x32x16xf32> to vector<32x16xf32>
    %361 = vector.broadcast %357 : f32 to vector<32x16xf32>
    %362 = arith.mulf %361, %360 : vector<32x16xf32>
    %363 = arith.index_cast %354 : i32 to index
    %c0_172 = arith.constant 0 : index
    %c0_173 = arith.constant 0 : index
    %364 = vector.load %arg19[%363, %c0_172, %c0_173] : memref<8x32x16xf32, #tpu.memory_space<vmem>>, vector<1x32x16xf32>
    %365 = vector.shape_cast %364 : vector<1x32x16xf32> to vector<32x16xf32>
    %366 = vector.broadcast %356 : f32 to vector<32x16xf32>
    %367 = arith.mulf %366, %365 : vector<32x16xf32>
    %368 = arith.addf %362, %367 : vector<32x16xf32>
    %c1_174 = arith.constant 1 : index
    %369 = arith.index_cast %350 : i32 to index
    %370 = memref.load %arg2[%c1_174, %369] : memref<3x16xi32, #tpu.memory_space<smem>>
    %c1_i32_175 = arith.constant 1 : i32
    %371 = arith.addi %370, %c1_i32_175 : i32
    %c3_i32_176 = arith.constant 3 : i32
    %372 = arith.minsi %371, %c3_i32_176 : i32
    %c1_177 = arith.constant 1 : index
    %373 = arith.index_cast %350 : i32 to index
    %374 = memref.load %arg3[%c1_177, %373] : memref<3x16xf32, #tpu.memory_space<smem>>
    %cst_178 = arith.constant 1.000000e+00 : f32
    %375 = arith.subf %cst_178, %374 : f32
    %376 = arith.index_cast %370 : i32 to index
    %c0_179 = arith.constant 0 : index
    %c0_180 = arith.constant 0 : index
    %377 = vector.load %arg20[%376, %c0_179, %c0_180] : memref<4x32x16xf32, #tpu.memory_space<vmem>>, vector<1x32x16xf32>
    %378 = vector.shape_cast %377 : vector<1x32x16xf32> to vector<32x16xf32>
    %379 = vector.broadcast %375 : f32 to vector<32x16xf32>
    %380 = arith.mulf %379, %378 : vector<32x16xf32>
    %381 = arith.index_cast %372 : i32 to index
    %c0_181 = arith.constant 0 : index
    %c0_182 = arith.constant 0 : index
    %382 = vector.load %arg20[%381, %c0_181, %c0_182] : memref<4x32x16xf32, #tpu.memory_space<vmem>>, vector<1x32x16xf32>
    %383 = vector.shape_cast %382 : vector<1x32x16xf32> to vector<32x16xf32>
    %384 = vector.broadcast %374 : f32 to vector<32x16xf32>
    %385 = arith.mulf %384, %383 : vector<32x16xf32>
    %386 = arith.addf %380, %385 : vector<32x16xf32>
    %387 = arith.addf %368, %386 : vector<32x16xf32>
    %c2_183 = arith.constant 2 : index
    %388 = arith.index_cast %350 : i32 to index
    %389 = memref.load %arg2[%c2_183, %388] : memref<3x16xi32, #tpu.memory_space<smem>>
    %c1_i32_184 = arith.constant 1 : i32
    %390 = arith.addi %389, %c1_i32_184 : i32
    %c1_i32_185 = arith.constant 1 : i32
    %391 = arith.minsi %390, %c1_i32_185 : i32
    %c2_186 = arith.constant 2 : index
    %392 = arith.index_cast %350 : i32 to index
    %393 = memref.load %arg3[%c2_186, %392] : memref<3x16xf32, #tpu.memory_space<smem>>
    %cst_187 = arith.constant 1.000000e+00 : f32
    %394 = arith.subf %cst_187, %393 : f32
    %395 = arith.index_cast %389 : i32 to index
    %c0_188 = arith.constant 0 : index
    %c0_189 = arith.constant 0 : index
    %396 = vector.load %arg21[%395, %c0_188, %c0_189] : memref<2x32x16xf32, #tpu.memory_space<vmem>>, vector<1x32x16xf32>
    %397 = vector.shape_cast %396 : vector<1x32x16xf32> to vector<32x16xf32>
    %398 = vector.broadcast %394 : f32 to vector<32x16xf32>
    %399 = arith.mulf %398, %397 : vector<32x16xf32>
    %400 = arith.index_cast %391 : i32 to index
    %c0_190 = arith.constant 0 : index
    %c0_191 = arith.constant 0 : index
    %401 = vector.load %arg21[%400, %c0_190, %c0_191] : memref<2x32x16xf32, #tpu.memory_space<vmem>>, vector<1x32x16xf32>
    %402 = vector.shape_cast %401 : vector<1x32x16xf32> to vector<32x16xf32>
    %403 = vector.broadcast %393 : f32 to vector<32x16xf32>
    %404 = arith.mulf %403, %402 : vector<32x16xf32>
    %405 = arith.addf %399, %404 : vector<32x16xf32>
    %406 = arith.addf %387, %405 : vector<32x16xf32>
    %c7_i32_192 = arith.constant 7 : i32
    %407 = arith.addi %7, %c7_i32_192 : i32
    %c0_193 = arith.constant 0 : index
    %408 = arith.index_cast %407 : i32 to index
    %409 = memref.load %arg2[%c0_193, %408] : memref<3x16xi32, #tpu.memory_space<smem>>
    %c1_i32_194 = arith.constant 1 : i32
    %410 = arith.addi %409, %c1_i32_194 : i32
    %c7_i32_195 = arith.constant 7 : i32
    %411 = arith.minsi %410, %c7_i32_195 : i32
    %c0_196 = arith.constant 0 : index
    %412 = arith.index_cast %407 : i32 to index
    %413 = memref.load %arg3[%c0_196, %412] : memref<3x16xf32, #tpu.memory_space<smem>>
    %cst_197 = arith.constant 1.000000e+00 : f32
    %414 = arith.subf %cst_197, %413 : f32
    %415 = arith.index_cast %409 : i32 to index
    %c0_198 = arith.constant 0 : index
    %c0_199 = arith.constant 0 : index
    %416 = vector.load %arg19[%415, %c0_198, %c0_199] : memref<8x32x16xf32, #tpu.memory_space<vmem>>, vector<1x32x16xf32>
    %417 = vector.shape_cast %416 : vector<1x32x16xf32> to vector<32x16xf32>
    %418 = vector.broadcast %414 : f32 to vector<32x16xf32>
    %419 = arith.mulf %418, %417 : vector<32x16xf32>
    %420 = arith.index_cast %411 : i32 to index
    %c0_200 = arith.constant 0 : index
    %c0_201 = arith.constant 0 : index
    %421 = vector.load %arg19[%420, %c0_200, %c0_201] : memref<8x32x16xf32, #tpu.memory_space<vmem>>, vector<1x32x16xf32>
    %422 = vector.shape_cast %421 : vector<1x32x16xf32> to vector<32x16xf32>
    %423 = vector.broadcast %413 : f32 to vector<32x16xf32>
    %424 = arith.mulf %423, %422 : vector<32x16xf32>
    %425 = arith.addf %419, %424 : vector<32x16xf32>
    %c1_202 = arith.constant 1 : index
    %426 = arith.index_cast %407 : i32 to index
    %427 = memref.load %arg2[%c1_202, %426] : memref<3x16xi32, #tpu.memory_space<smem>>
    %c1_i32_203 = arith.constant 1 : i32
    %428 = arith.addi %427, %c1_i32_203 : i32
    %c3_i32_204 = arith.constant 3 : i32
    %429 = arith.minsi %428, %c3_i32_204 : i32
    %c1_205 = arith.constant 1 : index
    %430 = arith.index_cast %407 : i32 to index
    %431 = memref.load %arg3[%c1_205, %430] : memref<3x16xf32, #tpu.memory_space<smem>>
    %cst_206 = arith.constant 1.000000e+00 : f32
    %432 = arith.subf %cst_206, %431 : f32
    %433 = arith.index_cast %427 : i32 to index
    %c0_207 = arith.constant 0 : index
    %c0_208 = arith.constant 0 : index
    %434 = vector.load %arg20[%433, %c0_207, %c0_208] : memref<4x32x16xf32, #tpu.memory_space<vmem>>, vector<1x32x16xf32>
    %435 = vector.shape_cast %434 : vector<1x32x16xf32> to vector<32x16xf32>
    %436 = vector.broadcast %432 : f32 to vector<32x16xf32>
    %437 = arith.mulf %436, %435 : vector<32x16xf32>
    %438 = arith.index_cast %429 : i32 to index
    %c0_209 = arith.constant 0 : index
    %c0_210 = arith.constant 0 : index
    %439 = vector.load %arg20[%438, %c0_209, %c0_210] : memref<4x32x16xf32, #tpu.memory_space<vmem>>, vector<1x32x16xf32>
    %440 = vector.shape_cast %439 : vector<1x32x16xf32> to vector<32x16xf32>
    %441 = vector.broadcast %431 : f32 to vector<32x16xf32>
    %442 = arith.mulf %441, %440 : vector<32x16xf32>
    %443 = arith.addf %437, %442 : vector<32x16xf32>
    %444 = arith.addf %425, %443 : vector<32x16xf32>
    %c2_211 = arith.constant 2 : index
    %445 = arith.index_cast %407 : i32 to index
    %446 = memref.load %arg2[%c2_211, %445] : memref<3x16xi32, #tpu.memory_space<smem>>
    %c1_i32_212 = arith.constant 1 : i32
    %447 = arith.addi %446, %c1_i32_212 : i32
    %c1_i32_213 = arith.constant 1 : i32
    %448 = arith.minsi %447, %c1_i32_213 : i32
    %c2_214 = arith.constant 2 : index
    %449 = arith.index_cast %407 : i32 to index
    %450 = memref.load %arg3[%c2_214, %449] : memref<3x16xf32, #tpu.memory_space<smem>>
    %cst_215 = arith.constant 1.000000e+00 : f32
    %451 = arith.subf %cst_215, %450 : f32
    %452 = arith.index_cast %446 : i32 to index
    %c0_216 = arith.constant 0 : index
    %c0_217 = arith.constant 0 : index
    %453 = vector.load %arg21[%452, %c0_216, %c0_217] : memref<2x32x16xf32, #tpu.memory_space<vmem>>, vector<1x32x16xf32>
    %454 = vector.shape_cast %453 : vector<1x32x16xf32> to vector<32x16xf32>
    %455 = vector.broadcast %451 : f32 to vector<32x16xf32>
    %456 = arith.mulf %455, %454 : vector<32x16xf32>
    %457 = arith.index_cast %448 : i32 to index
    %c0_218 = arith.constant 0 : index
    %c0_219 = arith.constant 0 : index
    %458 = vector.load %arg21[%457, %c0_218, %c0_219] : memref<2x32x16xf32, #tpu.memory_space<vmem>>, vector<1x32x16xf32>
    %459 = vector.shape_cast %458 : vector<1x32x16xf32> to vector<32x16xf32>
    %460 = vector.broadcast %450 : f32 to vector<32x16xf32>
    %461 = arith.mulf %460, %459 : vector<32x16xf32>
    %462 = arith.addf %456, %461 : vector<32x16xf32>
    %463 = arith.addf %444, %462 : vector<32x16xf32>
    %c8_i32 = arith.constant 8 : i32
    %464 = arith.addi %7, %c8_i32 : i32
    %c0_220 = arith.constant 0 : index
    %465 = arith.index_cast %464 : i32 to index
    %466 = memref.load %arg2[%c0_220, %465] : memref<3x16xi32, #tpu.memory_space<smem>>
    %c1_i32_221 = arith.constant 1 : i32
    %467 = arith.addi %466, %c1_i32_221 : i32
    %c7_i32_222 = arith.constant 7 : i32
    %468 = arith.minsi %467, %c7_i32_222 : i32
    %c0_223 = arith.constant 0 : index
    %469 = arith.index_cast %464 : i32 to index
    %470 = memref.load %arg3[%c0_223, %469] : memref<3x16xf32, #tpu.memory_space<smem>>
    %cst_224 = arith.constant 1.000000e+00 : f32
    %471 = arith.subf %cst_224, %470 : f32
    %472 = arith.index_cast %466 : i32 to index
    %c0_225 = arith.constant 0 : index
    %c0_226 = arith.constant 0 : index
    %473 = vector.load %arg19[%472, %c0_225, %c0_226] : memref<8x32x16xf32, #tpu.memory_space<vmem>>, vector<1x32x16xf32>
    %474 = vector.shape_cast %473 : vector<1x32x16xf32> to vector<32x16xf32>
    %475 = vector.broadcast %471 : f32 to vector<32x16xf32>
    %476 = arith.mulf %475, %474 : vector<32x16xf32>
    %477 = arith.index_cast %468 : i32 to index
    %c0_227 = arith.constant 0 : index
    %c0_228 = arith.constant 0 : index
    %478 = vector.load %arg19[%477, %c0_227, %c0_228] : memref<8x32x16xf32, #tpu.memory_space<vmem>>, vector<1x32x16xf32>
    %479 = vector.shape_cast %478 : vector<1x32x16xf32> to vector<32x16xf32>
    %480 = vector.broadcast %470 : f32 to vector<32x16xf32>
    %481 = arith.mulf %480, %479 : vector<32x16xf32>
    %482 = arith.addf %476, %481 : vector<32x16xf32>
    %c1_229 = arith.constant 1 : index
    %483 = arith.index_cast %464 : i32 to index
    %484 = memref.load %arg2[%c1_229, %483] : memref<3x16xi32, #tpu.memory_space<smem>>
    %c1_i32_230 = arith.constant 1 : i32
    %485 = arith.addi %484, %c1_i32_230 : i32
    %c3_i32_231 = arith.constant 3 : i32
    %486 = arith.minsi %485, %c3_i32_231 : i32
    %c1_232 = arith.constant 1 : index
    %487 = arith.index_cast %464 : i32 to index
    %488 = memref.load %arg3[%c1_232, %487] : memref<3x16xf32, #tpu.memory_space<smem>>
    %cst_233 = arith.constant 1.000000e+00 : f32
    %489 = arith.subf %cst_233, %488 : f32
    %490 = arith.index_cast %484 : i32 to index
    %c0_234 = arith.constant 0 : index
    %c0_235 = arith.constant 0 : index
    %491 = vector.load %arg20[%490, %c0_234, %c0_235] : memref<4x32x16xf32, #tpu.memory_space<vmem>>, vector<1x32x16xf32>
    %492 = vector.shape_cast %491 : vector<1x32x16xf32> to vector<32x16xf32>
    %493 = vector.broadcast %489 : f32 to vector<32x16xf32>
    %494 = arith.mulf %493, %492 : vector<32x16xf32>
    %495 = arith.index_cast %486 : i32 to index
    %c0_236 = arith.constant 0 : index
    %c0_237 = arith.constant 0 : index
    %496 = vector.load %arg20[%495, %c0_236, %c0_237] : memref<4x32x16xf32, #tpu.memory_space<vmem>>, vector<1x32x16xf32>
    %497 = vector.shape_cast %496 : vector<1x32x16xf32> to vector<32x16xf32>
    %498 = vector.broadcast %488 : f32 to vector<32x16xf32>
    %499 = arith.mulf %498, %497 : vector<32x16xf32>
    %500 = arith.addf %494, %499 : vector<32x16xf32>
    %501 = arith.addf %482, %500 : vector<32x16xf32>
    %c2_238 = arith.constant 2 : index
    %502 = arith.index_cast %464 : i32 to index
    %503 = memref.load %arg2[%c2_238, %502] : memref<3x16xi32, #tpu.memory_space<smem>>
    %c1_i32_239 = arith.constant 1 : i32
    %504 = arith.addi %503, %c1_i32_239 : i32
    %c1_i32_240 = arith.constant 1 : i32
    %505 = arith.minsi %504, %c1_i32_240 : i32
    %c2_241 = arith.constant 2 : index
    %506 = arith.index_cast %464 : i32 to index
    %507 = memref.load %arg3[%c2_241, %506] : memref<3x16xf32, #tpu.memory_space<smem>>
    %cst_242 = arith.constant 1.000000e+00 : f32
    %508 = arith.subf %cst_242, %507 : f32
    %509 = arith.index_cast %503 : i32 to index
    %c0_243 = arith.constant 0 : index
    %c0_244 = arith.constant 0 : index
    %510 = vector.load %arg21[%509, %c0_243, %c0_244] : memref<2x32x16xf32, #tpu.memory_space<vmem>>, vector<1x32x16xf32>
    %511 = vector.shape_cast %510 : vector<1x32x16xf32> to vector<32x16xf32>
    %512 = vector.broadcast %508 : f32 to vector<32x16xf32>
    %513 = arith.mulf %512, %511 : vector<32x16xf32>
    %514 = arith.index_cast %505 : i32 to index
    %c0_245 = arith.constant 0 : index
    %c0_246 = arith.constant 0 : index
    %515 = vector.load %arg21[%514, %c0_245, %c0_246] : memref<2x32x16xf32, #tpu.memory_space<vmem>>, vector<1x32x16xf32>
    %516 = vector.shape_cast %515 : vector<1x32x16xf32> to vector<32x16xf32>
    %517 = vector.broadcast %507 : f32 to vector<32x16xf32>
    %518 = arith.mulf %517, %516 : vector<32x16xf32>
    %519 = arith.addf %513, %518 : vector<32x16xf32>
    %520 = arith.addf %501, %519 : vector<32x16xf32>
    %c9_i32 = arith.constant 9 : i32
    %521 = arith.addi %7, %c9_i32 : i32
    %c0_247 = arith.constant 0 : index
    %522 = arith.index_cast %521 : i32 to index
    %523 = memref.load %arg2[%c0_247, %522] : memref<3x16xi32, #tpu.memory_space<smem>>
    %c1_i32_248 = arith.constant 1 : i32
    %524 = arith.addi %523, %c1_i32_248 : i32
    %c7_i32_249 = arith.constant 7 : i32
    %525 = arith.minsi %524, %c7_i32_249 : i32
    %c0_250 = arith.constant 0 : index
    %526 = arith.index_cast %521 : i32 to index
    %527 = memref.load %arg3[%c0_250, %526] : memref<3x16xf32, #tpu.memory_space<smem>>
    %cst_251 = arith.constant 1.000000e+00 : f32
    %528 = arith.subf %cst_251, %527 : f32
    %529 = arith.index_cast %523 : i32 to index
    %c0_252 = arith.constant 0 : index
    %c0_253 = arith.constant 0 : index
    %530 = vector.load %arg19[%529, %c0_252, %c0_253] : memref<8x32x16xf32, #tpu.memory_space<vmem>>, vector<1x32x16xf32>
    %531 = vector.shape_cast %530 : vector<1x32x16xf32> to vector<32x16xf32>
    %532 = vector.broadcast %528 : f32 to vector<32x16xf32>
    %533 = arith.mulf %532, %531 : vector<32x16xf32>
    %534 = arith.index_cast %525 : i32 to index
    %c0_254 = arith.constant 0 : index
    %c0_255 = arith.constant 0 : index
    %535 = vector.load %arg19[%534, %c0_254, %c0_255] : memref<8x32x16xf32, #tpu.memory_space<vmem>>, vector<1x32x16xf32>
    %536 = vector.shape_cast %535 : vector<1x32x16xf32> to vector<32x16xf32>
    %537 = vector.broadcast %527 : f32 to vector<32x16xf32>
    %538 = arith.mulf %537, %536 : vector<32x16xf32>
    %539 = arith.addf %533, %538 : vector<32x16xf32>
    %c1_256 = arith.constant 1 : index
    %540 = arith.index_cast %521 : i32 to index
    %541 = memref.load %arg2[%c1_256, %540] : memref<3x16xi32, #tpu.memory_space<smem>>
    %c1_i32_257 = arith.constant 1 : i32
    %542 = arith.addi %541, %c1_i32_257 : i32
    %c3_i32_258 = arith.constant 3 : i32
    %543 = arith.minsi %542, %c3_i32_258 : i32
    %c1_259 = arith.constant 1 : index
    %544 = arith.index_cast %521 : i32 to index
    %545 = memref.load %arg3[%c1_259, %544] : memref<3x16xf32, #tpu.memory_space<smem>>
    %cst_260 = arith.constant 1.000000e+00 : f32
    %546 = arith.subf %cst_260, %545 : f32
    %547 = arith.index_cast %541 : i32 to index
    %c0_261 = arith.constant 0 : index
    %c0_262 = arith.constant 0 : index
    %548 = vector.load %arg20[%547, %c0_261, %c0_262] : memref<4x32x16xf32, #tpu.memory_space<vmem>>, vector<1x32x16xf32>
    %549 = vector.shape_cast %548 : vector<1x32x16xf32> to vector<32x16xf32>
    %550 = vector.broadcast %546 : f32 to vector<32x16xf32>
    %551 = arith.mulf %550, %549 : vector<32x16xf32>
    %552 = arith.index_cast %543 : i32 to index
    %c0_263 = arith.constant 0 : index
    %c0_264 = arith.constant 0 : index
    %553 = vector.load %arg20[%552, %c0_263, %c0_264] : memref<4x32x16xf32, #tpu.memory_space<vmem>>, vector<1x32x16xf32>
    %554 = vector.shape_cast %553 : vector<1x32x16xf32> to vector<32x16xf32>
    %555 = vector.broadcast %545 : f32 to vector<32x16xf32>
    %556 = arith.mulf %555, %554 : vector<32x16xf32>
    %557 = arith.addf %551, %556 : vector<32x16xf32>
    %558 = arith.addf %539, %557 : vector<32x16xf32>
    %c2_265 = arith.constant 2 : index
    %559 = arith.index_cast %521 : i32 to index
    %560 = memref.load %arg2[%c2_265, %559] : memref<3x16xi32, #tpu.memory_space<smem>>
    %c1_i32_266 = arith.constant 1 : i32
    %561 = arith.addi %560, %c1_i32_266 : i32
    %c1_i32_267 = arith.constant 1 : i32
    %562 = arith.minsi %561, %c1_i32_267 : i32
    %c2_268 = arith.constant 2 : index
    %563 = arith.index_cast %521 : i32 to index
    %564 = memref.load %arg3[%c2_268, %563] : memref<3x16xf32, #tpu.memory_space<smem>>
    %cst_269 = arith.constant 1.000000e+00 : f32
    %565 = arith.subf %cst_269, %564 : f32
    %566 = arith.index_cast %560 : i32 to index
    %c0_270 = arith.constant 0 : index
    %c0_271 = arith.constant 0 : index
    %567 = vector.load %arg21[%566, %c0_270, %c0_271] : memref<2x32x16xf32, #tpu.memory_space<vmem>>, vector<1x32x16xf32>
    %568 = vector.shape_cast %567 : vector<1x32x16xf32> to vector<32x16xf32>
    %569 = vector.broadcast %565 : f32 to vector<32x16xf32>
    %570 = arith.mulf %569, %568 : vector<32x16xf32>
    %571 = arith.index_cast %562 : i32 to index
    %c0_272 = arith.constant 0 : index
    %c0_273 = arith.constant 0 : index
    %572 = vector.load %arg21[%571, %c0_272, %c0_273] : memref<2x32x16xf32, #tpu.memory_space<vmem>>, vector<1x32x16xf32>
    %573 = vector.shape_cast %572 : vector<1x32x16xf32> to vector<32x16xf32>
    %574 = vector.broadcast %564 : f32 to vector<32x16xf32>
    %575 = arith.mulf %574, %573 : vector<32x16xf32>
    %576 = arith.addf %570, %575 : vector<32x16xf32>
    %577 = arith.addf %558, %576 : vector<32x16xf32>
    %c10_i32 = arith.constant 10 : i32
    %578 = arith.addi %7, %c10_i32 : i32
    %c0_274 = arith.constant 0 : index
    %579 = arith.index_cast %578 : i32 to index
    %580 = memref.load %arg2[%c0_274, %579] : memref<3x16xi32, #tpu.memory_space<smem>>
    %c1_i32_275 = arith.constant 1 : i32
    %581 = arith.addi %580, %c1_i32_275 : i32
    %c7_i32_276 = arith.constant 7 : i32
    %582 = arith.minsi %581, %c7_i32_276 : i32
    %c0_277 = arith.constant 0 : index
    %583 = arith.index_cast %578 : i32 to index
    %584 = memref.load %arg3[%c0_277, %583] : memref<3x16xf32, #tpu.memory_space<smem>>
    %cst_278 = arith.constant 1.000000e+00 : f32
    %585 = arith.subf %cst_278, %584 : f32
    %586 = arith.index_cast %580 : i32 to index
    %c0_279 = arith.constant 0 : index
    %c0_280 = arith.constant 0 : index
    %587 = vector.load %arg19[%586, %c0_279, %c0_280] : memref<8x32x16xf32, #tpu.memory_space<vmem>>, vector<1x32x16xf32>
    %588 = vector.shape_cast %587 : vector<1x32x16xf32> to vector<32x16xf32>
    %589 = vector.broadcast %585 : f32 to vector<32x16xf32>
    %590 = arith.mulf %589, %588 : vector<32x16xf32>
    %591 = arith.index_cast %582 : i32 to index
    %c0_281 = arith.constant 0 : index
    %c0_282 = arith.constant 0 : index
    %592 = vector.load %arg19[%591, %c0_281, %c0_282] : memref<8x32x16xf32, #tpu.memory_space<vmem>>, vector<1x32x16xf32>
    %593 = vector.shape_cast %592 : vector<1x32x16xf32> to vector<32x16xf32>
    %594 = vector.broadcast %584 : f32 to vector<32x16xf32>
    %595 = arith.mulf %594, %593 : vector<32x16xf32>
    %596 = arith.addf %590, %595 : vector<32x16xf32>
    %c1_283 = arith.constant 1 : index
    %597 = arith.index_cast %578 : i32 to index
    %598 = memref.load %arg2[%c1_283, %597] : memref<3x16xi32, #tpu.memory_space<smem>>
    %c1_i32_284 = arith.constant 1 : i32
    %599 = arith.addi %598, %c1_i32_284 : i32
    %c3_i32_285 = arith.constant 3 : i32
    %600 = arith.minsi %599, %c3_i32_285 : i32
    %c1_286 = arith.constant 1 : index
    %601 = arith.index_cast %578 : i32 to index
    %602 = memref.load %arg3[%c1_286, %601] : memref<3x16xf32, #tpu.memory_space<smem>>
    %cst_287 = arith.constant 1.000000e+00 : f32
    %603 = arith.subf %cst_287, %602 : f32
    %604 = arith.index_cast %598 : i32 to index
    %c0_288 = arith.constant 0 : index
    %c0_289 = arith.constant 0 : index
    %605 = vector.load %arg20[%604, %c0_288, %c0_289] : memref<4x32x16xf32, #tpu.memory_space<vmem>>, vector<1x32x16xf32>
    %606 = vector.shape_cast %605 : vector<1x32x16xf32> to vector<32x16xf32>
    %607 = vector.broadcast %603 : f32 to vector<32x16xf32>
    %608 = arith.mulf %607, %606 : vector<32x16xf32>
    %609 = arith.index_cast %600 : i32 to index
    %c0_290 = arith.constant 0 : index
    %c0_291 = arith.constant 0 : index
    %610 = vector.load %arg20[%609, %c0_290, %c0_291] : memref<4x32x16xf32, #tpu.memory_space<vmem>>, vector<1x32x16xf32>
    %611 = vector.shape_cast %610 : vector<1x32x16xf32> to vector<32x16xf32>
    %612 = vector.broadcast %602 : f32 to vector<32x16xf32>
    %613 = arith.mulf %612, %611 : vector<32x16xf32>
    %614 = arith.addf %608, %613 : vector<32x16xf32>
    %615 = arith.addf %596, %614 : vector<32x16xf32>
    %c2_292 = arith.constant 2 : index
    %616 = arith.index_cast %578 : i32 to index
    %617 = memref.load %arg2[%c2_292, %616] : memref<3x16xi32, #tpu.memory_space<smem>>
    %c1_i32_293 = arith.constant 1 : i32
    %618 = arith.addi %617, %c1_i32_293 : i32
    %c1_i32_294 = arith.constant 1 : i32
    %619 = arith.minsi %618, %c1_i32_294 : i32
    %c2_295 = arith.constant 2 : index
    %620 = arith.index_cast %578 : i32 to index
    %621 = memref.load %arg3[%c2_295, %620] : memref<3x16xf32, #tpu.memory_space<smem>>
    %cst_296 = arith.constant 1.000000e+00 : f32
    %622 = arith.subf %cst_296, %621 : f32
    %623 = arith.index_cast %617 : i32 to index
    %c0_297 = arith.constant 0 : index
    %c0_298 = arith.constant 0 : index
    %624 = vector.load %arg21[%623, %c0_297, %c0_298] : memref<2x32x16xf32, #tpu.memory_space<vmem>>, vector<1x32x16xf32>
    %625 = vector.shape_cast %624 : vector<1x32x16xf32> to vector<32x16xf32>
    %626 = vector.broadcast %622 : f32 to vector<32x16xf32>
    %627 = arith.mulf %626, %625 : vector<32x16xf32>
    %628 = arith.index_cast %619 : i32 to index
    %c0_299 = arith.constant 0 : index
    %c0_300 = arith.constant 0 : index
    %629 = vector.load %arg21[%628, %c0_299, %c0_300] : memref<2x32x16xf32, #tpu.memory_space<vmem>>, vector<1x32x16xf32>
    %630 = vector.shape_cast %629 : vector<1x32x16xf32> to vector<32x16xf32>
    %631 = vector.broadcast %621 : f32 to vector<32x16xf32>
    %632 = arith.mulf %631, %630 : vector<32x16xf32>
    %633 = arith.addf %627, %632 : vector<32x16xf32>
    %634 = arith.addf %615, %633 : vector<32x16xf32>
    %c11_i32 = arith.constant 11 : i32
    %635 = arith.addi %7, %c11_i32 : i32
    %c0_301 = arith.constant 0 : index
    %636 = arith.index_cast %635 : i32 to index
    %637 = memref.load %arg2[%c0_301, %636] : memref<3x16xi32, #tpu.memory_space<smem>>
    %c1_i32_302 = arith.constant 1 : i32
    %638 = arith.addi %637, %c1_i32_302 : i32
    %c7_i32_303 = arith.constant 7 : i32
    %639 = arith.minsi %638, %c7_i32_303 : i32
    %c0_304 = arith.constant 0 : index
    %640 = arith.index_cast %635 : i32 to index
    %641 = memref.load %arg3[%c0_304, %640] : memref<3x16xf32, #tpu.memory_space<smem>>
    %cst_305 = arith.constant 1.000000e+00 : f32
    %642 = arith.subf %cst_305, %641 : f32
    %643 = arith.index_cast %637 : i32 to index
    %c0_306 = arith.constant 0 : index
    %c0_307 = arith.constant 0 : index
    %644 = vector.load %arg19[%643, %c0_306, %c0_307] : memref<8x32x16xf32, #tpu.memory_space<vmem>>, vector<1x32x16xf32>
    %645 = vector.shape_cast %644 : vector<1x32x16xf32> to vector<32x16xf32>
    %646 = vector.broadcast %642 : f32 to vector<32x16xf32>
    %647 = arith.mulf %646, %645 : vector<32x16xf32>
    %648 = arith.index_cast %639 : i32 to index
    %c0_308 = arith.constant 0 : index
    %c0_309 = arith.constant 0 : index
    %649 = vector.load %arg19[%648, %c0_308, %c0_309] : memref<8x32x16xf32, #tpu.memory_space<vmem>>, vector<1x32x16xf32>
    %650 = vector.shape_cast %649 : vector<1x32x16xf32> to vector<32x16xf32>
    %651 = vector.broadcast %641 : f32 to vector<32x16xf32>
    %652 = arith.mulf %651, %650 : vector<32x16xf32>
    %653 = arith.addf %647, %652 : vector<32x16xf32>
    %c1_310 = arith.constant 1 : index
    %654 = arith.index_cast %635 : i32 to index
    %655 = memref.load %arg2[%c1_310, %654] : memref<3x16xi32, #tpu.memory_space<smem>>
    %c1_i32_311 = arith.constant 1 : i32
    %656 = arith.addi %655, %c1_i32_311 : i32
    %c3_i32_312 = arith.constant 3 : i32
    %657 = arith.minsi %656, %c3_i32_312 : i32
    %c1_313 = arith.constant 1 : index
    %658 = arith.index_cast %635 : i32 to index
    %659 = memref.load %arg3[%c1_313, %658] : memref<3x16xf32, #tpu.memory_space<smem>>
    %cst_314 = arith.constant 1.000000e+00 : f32
    %660 = arith.subf %cst_314, %659 : f32
    %661 = arith.index_cast %655 : i32 to index
    %c0_315 = arith.constant 0 : index
    %c0_316 = arith.constant 0 : index
    %662 = vector.load %arg20[%661, %c0_315, %c0_316] : memref<4x32x16xf32, #tpu.memory_space<vmem>>, vector<1x32x16xf32>
    %663 = vector.shape_cast %662 : vector<1x32x16xf32> to vector<32x16xf32>
    %664 = vector.broadcast %660 : f32 to vector<32x16xf32>
    %665 = arith.mulf %664, %663 : vector<32x16xf32>
    %666 = arith.index_cast %657 : i32 to index
    %c0_317 = arith.constant 0 : index
    %c0_318 = arith.constant 0 : index
    %667 = vector.load %arg20[%666, %c0_317, %c0_318] : memref<4x32x16xf32, #tpu.memory_space<vmem>>, vector<1x32x16xf32>
    %668 = vector.shape_cast %667 : vector<1x32x16xf32> to vector<32x16xf32>
    %669 = vector.broadcast %659 : f32 to vector<32x16xf32>
    %670 = arith.mulf %669, %668 : vector<32x16xf32>
    %671 = arith.addf %665, %670 : vector<32x16xf32>
    %672 = arith.addf %653, %671 : vector<32x16xf32>
    %c2_319 = arith.constant 2 : index
    %673 = arith.index_cast %635 : i32 to index
    %674 = memref.load %arg2[%c2_319, %673] : memref<3x16xi32, #tpu.memory_space<smem>>
    %c1_i32_320 = arith.constant 1 : i32
    %675 = arith.addi %674, %c1_i32_320 : i32
    %c1_i32_321 = arith.constant 1 : i32
    %676 = arith.minsi %675, %c1_i32_321 : i32
    %c2_322 = arith.constant 2 : index
    %677 = arith.index_cast %635 : i32 to index
    %678 = memref.load %arg3[%c2_322, %677] : memref<3x16xf32, #tpu.memory_space<smem>>
    %cst_323 = arith.constant 1.000000e+00 : f32
    %679 = arith.subf %cst_323, %678 : f32
    %680 = arith.index_cast %674 : i32 to index
    %c0_324 = arith.constant 0 : index
    %c0_325 = arith.constant 0 : index
    %681 = vector.load %arg21[%680, %c0_324, %c0_325] : memref<2x32x16xf32, #tpu.memory_space<vmem>>, vector<1x32x16xf32>
    %682 = vector.shape_cast %681 : vector<1x32x16xf32> to vector<32x16xf32>
    %683 = vector.broadcast %679 : f32 to vector<32x16xf32>
    %684 = arith.mulf %683, %682 : vector<32x16xf32>
    %685 = arith.index_cast %676 : i32 to index
    %c0_326 = arith.constant 0 : index
    %c0_327 = arith.constant 0 : index
    %686 = vector.load %arg21[%685, %c0_326, %c0_327] : memref<2x32x16xf32, #tpu.memory_space<vmem>>, vector<1x32x16xf32>
    %687 = vector.shape_cast %686 : vector<1x32x16xf32> to vector<32x16xf32>
    %688 = vector.broadcast %678 : f32 to vector<32x16xf32>
    %689 = arith.mulf %688, %687 : vector<32x16xf32>
    %690 = arith.addf %684, %689 : vector<32x16xf32>
    %691 = arith.addf %672, %690 : vector<32x16xf32>
    %c12_i32 = arith.constant 12 : i32
    %692 = arith.addi %7, %c12_i32 : i32
    %c0_328 = arith.constant 0 : index
    %693 = arith.index_cast %692 : i32 to index
    %694 = memref.load %arg2[%c0_328, %693] : memref<3x16xi32, #tpu.memory_space<smem>>
    %c1_i32_329 = arith.constant 1 : i32
    %695 = arith.addi %694, %c1_i32_329 : i32
    %c7_i32_330 = arith.constant 7 : i32
    %696 = arith.minsi %695, %c7_i32_330 : i32
    %c0_331 = arith.constant 0 : index
    %697 = arith.index_cast %692 : i32 to index
    %698 = memref.load %arg3[%c0_331, %697] : memref<3x16xf32, #tpu.memory_space<smem>>
    %cst_332 = arith.constant 1.000000e+00 : f32
    %699 = arith.subf %cst_332, %698 : f32
    %700 = arith.index_cast %694 : i32 to index
    %c0_333 = arith.constant 0 : index
    %c0_334 = arith.constant 0 : index
    %701 = vector.load %arg19[%700, %c0_333, %c0_334] : memref<8x32x16xf32, #tpu.memory_space<vmem>>, vector<1x32x16xf32>
    %702 = vector.shape_cast %701 : vector<1x32x16xf32> to vector<32x16xf32>
    %703 = vector.broadcast %699 : f32 to vector<32x16xf32>
    %704 = arith.mulf %703, %702 : vector<32x16xf32>
    %705 = arith.index_cast %696 : i32 to index
    %c0_335 = arith.constant 0 : index
    %c0_336 = arith.constant 0 : index
    %706 = vector.load %arg19[%705, %c0_335, %c0_336] : memref<8x32x16xf32, #tpu.memory_space<vmem>>, vector<1x32x16xf32>
    %707 = vector.shape_cast %706 : vector<1x32x16xf32> to vector<32x16xf32>
    %708 = vector.broadcast %698 : f32 to vector<32x16xf32>
    %709 = arith.mulf %708, %707 : vector<32x16xf32>
    %710 = arith.addf %704, %709 : vector<32x16xf32>
    %c1_337 = arith.constant 1 : index
    %711 = arith.index_cast %692 : i32 to index
    %712 = memref.load %arg2[%c1_337, %711] : memref<3x16xi32, #tpu.memory_space<smem>>
    %c1_i32_338 = arith.constant 1 : i32
    %713 = arith.addi %712, %c1_i32_338 : i32
    %c3_i32_339 = arith.constant 3 : i32
    %714 = arith.minsi %713, %c3_i32_339 : i32
    %c1_340 = arith.constant 1 : index
    %715 = arith.index_cast %692 : i32 to index
    %716 = memref.load %arg3[%c1_340, %715] : memref<3x16xf32, #tpu.memory_space<smem>>
    %cst_341 = arith.constant 1.000000e+00 : f32
    %717 = arith.subf %cst_341, %716 : f32
    %718 = arith.index_cast %712 : i32 to index
    %c0_342 = arith.constant 0 : index
    %c0_343 = arith.constant 0 : index
    %719 = vector.load %arg20[%718, %c0_342, %c0_343] : memref<4x32x16xf32, #tpu.memory_space<vmem>>, vector<1x32x16xf32>
    %720 = vector.shape_cast %719 : vector<1x32x16xf32> to vector<32x16xf32>
    %721 = vector.broadcast %717 : f32 to vector<32x16xf32>
    %722 = arith.mulf %721, %720 : vector<32x16xf32>
    %723 = arith.index_cast %714 : i32 to index
    %c0_344 = arith.constant 0 : index
    %c0_345 = arith.constant 0 : index
    %724 = vector.load %arg20[%723, %c0_344, %c0_345] : memref<4x32x16xf32, #tpu.memory_space<vmem>>, vector<1x32x16xf32>
    %725 = vector.shape_cast %724 : vector<1x32x16xf32> to vector<32x16xf32>
    %726 = vector.broadcast %716 : f32 to vector<32x16xf32>
    %727 = arith.mulf %726, %725 : vector<32x16xf32>
    %728 = arith.addf %722, %727 : vector<32x16xf32>
    %729 = arith.addf %710, %728 : vector<32x16xf32>
    %c2_346 = arith.constant 2 : index
    %730 = arith.index_cast %692 : i32 to index
    %731 = memref.load %arg2[%c2_346, %730] : memref<3x16xi32, #tpu.memory_space<smem>>
    %c1_i32_347 = arith.constant 1 : i32
    %732 = arith.addi %731, %c1_i32_347 : i32
    %c1_i32_348 = arith.constant 1 : i32
    %733 = arith.minsi %732, %c1_i32_348 : i32
    %c2_349 = arith.constant 2 : index
    %734 = arith.index_cast %692 : i32 to index
    %735 = memref.load %arg3[%c2_349, %734] : memref<3x16xf32, #tpu.memory_space<smem>>
    %cst_350 = arith.constant 1.000000e+00 : f32
    %736 = arith.subf %cst_350, %735 : f32
    %737 = arith.index_cast %731 : i32 to index
    %c0_351 = arith.constant 0 : index
    %c0_352 = arith.constant 0 : index
    %738 = vector.load %arg21[%737, %c0_351, %c0_352] : memref<2x32x16xf32, #tpu.memory_space<vmem>>, vector<1x32x16xf32>
    %739 = vector.shape_cast %738 : vector<1x32x16xf32> to vector<32x16xf32>
    %740 = vector.broadcast %736 : f32 to vector<32x16xf32>
    %741 = arith.mulf %740, %739 : vector<32x16xf32>
    %742 = arith.index_cast %733 : i32 to index
    %c0_353 = arith.constant 0 : index
    %c0_354 = arith.constant 0 : index
    %743 = vector.load %arg21[%742, %c0_353, %c0_354] : memref<2x32x16xf32, #tpu.memory_space<vmem>>, vector<1x32x16xf32>
    %744 = vector.shape_cast %743 : vector<1x32x16xf32> to vector<32x16xf32>
    %745 = vector.broadcast %735 : f32 to vector<32x16xf32>
    %746 = arith.mulf %745, %744 : vector<32x16xf32>
    %747 = arith.addf %741, %746 : vector<32x16xf32>
    %748 = arith.addf %729, %747 : vector<32x16xf32>
    %c13_i32 = arith.constant 13 : i32
    %749 = arith.addi %7, %c13_i32 : i32
    %c0_355 = arith.constant 0 : index
    %750 = arith.index_cast %749 : i32 to index
    %751 = memref.load %arg2[%c0_355, %750] : memref<3x16xi32, #tpu.memory_space<smem>>
    %c1_i32_356 = arith.constant 1 : i32
    %752 = arith.addi %751, %c1_i32_356 : i32
    %c7_i32_357 = arith.constant 7 : i32
    %753 = arith.minsi %752, %c7_i32_357 : i32
    %c0_358 = arith.constant 0 : index
    %754 = arith.index_cast %749 : i32 to index
    %755 = memref.load %arg3[%c0_358, %754] : memref<3x16xf32, #tpu.memory_space<smem>>
    %cst_359 = arith.constant 1.000000e+00 : f32
    %756 = arith.subf %cst_359, %755 : f32
    %757 = arith.index_cast %751 : i32 to index
    %c0_360 = arith.constant 0 : index
    %c0_361 = arith.constant 0 : index
    %758 = vector.load %arg19[%757, %c0_360, %c0_361] : memref<8x32x16xf32, #tpu.memory_space<vmem>>, vector<1x32x16xf32>
    %759 = vector.shape_cast %758 : vector<1x32x16xf32> to vector<32x16xf32>
    %760 = vector.broadcast %756 : f32 to vector<32x16xf32>
    %761 = arith.mulf %760, %759 : vector<32x16xf32>
    %762 = arith.index_cast %753 : i32 to index
    %c0_362 = arith.constant 0 : index
    %c0_363 = arith.constant 0 : index
    %763 = vector.load %arg19[%762, %c0_362, %c0_363] : memref<8x32x16xf32, #tpu.memory_space<vmem>>, vector<1x32x16xf32>
    %764 = vector.shape_cast %763 : vector<1x32x16xf32> to vector<32x16xf32>
    %765 = vector.broadcast %755 : f32 to vector<32x16xf32>
    %766 = arith.mulf %765, %764 : vector<32x16xf32>
    %767 = arith.addf %761, %766 : vector<32x16xf32>
    %c1_364 = arith.constant 1 : index
    %768 = arith.index_cast %749 : i32 to index
    %769 = memref.load %arg2[%c1_364, %768] : memref<3x16xi32, #tpu.memory_space<smem>>
    %c1_i32_365 = arith.constant 1 : i32
    %770 = arith.addi %769, %c1_i32_365 : i32
    %c3_i32_366 = arith.constant 3 : i32
    %771 = arith.minsi %770, %c3_i32_366 : i32
    %c1_367 = arith.constant 1 : index
    %772 = arith.index_cast %749 : i32 to index
    %773 = memref.load %arg3[%c1_367, %772] : memref<3x16xf32, #tpu.memory_space<smem>>
    %cst_368 = arith.constant 1.000000e+00 : f32
    %774 = arith.subf %cst_368, %773 : f32
    %775 = arith.index_cast %769 : i32 to index
    %c0_369 = arith.constant 0 : index
    %c0_370 = arith.constant 0 : index
    %776 = vector.load %arg20[%775, %c0_369, %c0_370] : memref<4x32x16xf32, #tpu.memory_space<vmem>>, vector<1x32x16xf32>
    %777 = vector.shape_cast %776 : vector<1x32x16xf32> to vector<32x16xf32>
    %778 = vector.broadcast %774 : f32 to vector<32x16xf32>
    %779 = arith.mulf %778, %777 : vector<32x16xf32>
    %780 = arith.index_cast %771 : i32 to index
    %c0_371 = arith.constant 0 : index
    %c0_372 = arith.constant 0 : index
    %781 = vector.load %arg20[%780, %c0_371, %c0_372] : memref<4x32x16xf32, #tpu.memory_space<vmem>>, vector<1x32x16xf32>
    %782 = vector.shape_cast %781 : vector<1x32x16xf32> to vector<32x16xf32>
    %783 = vector.broadcast %773 : f32 to vector<32x16xf32>
    %784 = arith.mulf %783, %782 : vector<32x16xf32>
    %785 = arith.addf %779, %784 : vector<32x16xf32>
    %786 = arith.addf %767, %785 : vector<32x16xf32>
    %c2_373 = arith.constant 2 : index
    %787 = arith.index_cast %749 : i32 to index
    %788 = memref.load %arg2[%c2_373, %787] : memref<3x16xi32, #tpu.memory_space<smem>>
    %c1_i32_374 = arith.constant 1 : i32
    %789 = arith.addi %788, %c1_i32_374 : i32
    %c1_i32_375 = arith.constant 1 : i32
    %790 = arith.minsi %789, %c1_i32_375 : i32
    %c2_376 = arith.constant 2 : index
    %791 = arith.index_cast %749 : i32 to index
    %792 = memref.load %arg3[%c2_376, %791] : memref<3x16xf32, #tpu.memory_space<smem>>
    %cst_377 = arith.constant 1.000000e+00 : f32
    %793 = arith.subf %cst_377, %792 : f32
    %794 = arith.index_cast %788 : i32 to index
    %c0_378 = arith.constant 0 : index
    %c0_379 = arith.constant 0 : index
    %795 = vector.load %arg21[%794, %c0_378, %c0_379] : memref<2x32x16xf32, #tpu.memory_space<vmem>>, vector<1x32x16xf32>
    %796 = vector.shape_cast %795 : vector<1x32x16xf32> to vector<32x16xf32>
    %797 = vector.broadcast %793 : f32 to vector<32x16xf32>
    %798 = arith.mulf %797, %796 : vector<32x16xf32>
    %799 = arith.index_cast %790 : i32 to index
    %c0_380 = arith.constant 0 : index
    %c0_381 = arith.constant 0 : index
    %800 = vector.load %arg21[%799, %c0_380, %c0_381] : memref<2x32x16xf32, #tpu.memory_space<vmem>>, vector<1x32x16xf32>
    %801 = vector.shape_cast %800 : vector<1x32x16xf32> to vector<32x16xf32>
    %802 = vector.broadcast %792 : f32 to vector<32x16xf32>
    %803 = arith.mulf %802, %801 : vector<32x16xf32>
    %804 = arith.addf %798, %803 : vector<32x16xf32>
    %805 = arith.addf %786, %804 : vector<32x16xf32>
    %c14_i32 = arith.constant 14 : i32
    %806 = arith.addi %7, %c14_i32 : i32
    %c0_382 = arith.constant 0 : index
    %807 = arith.index_cast %806 : i32 to index
    %808 = memref.load %arg2[%c0_382, %807] : memref<3x16xi32, #tpu.memory_space<smem>>
    %c1_i32_383 = arith.constant 1 : i32
    %809 = arith.addi %808, %c1_i32_383 : i32
    %c7_i32_384 = arith.constant 7 : i32
    %810 = arith.minsi %809, %c7_i32_384 : i32
    %c0_385 = arith.constant 0 : index
    %811 = arith.index_cast %806 : i32 to index
    %812 = memref.load %arg3[%c0_385, %811] : memref<3x16xf32, #tpu.memory_space<smem>>
    %cst_386 = arith.constant 1.000000e+00 : f32
    %813 = arith.subf %cst_386, %812 : f32
    %814 = arith.index_cast %808 : i32 to index
    %c0_387 = arith.constant 0 : index
    %c0_388 = arith.constant 0 : index
    %815 = vector.load %arg19[%814, %c0_387, %c0_388] : memref<8x32x16xf32, #tpu.memory_space<vmem>>, vector<1x32x16xf32>
    %816 = vector.shape_cast %815 : vector<1x32x16xf32> to vector<32x16xf32>
    %817 = vector.broadcast %813 : f32 to vector<32x16xf32>
    %818 = arith.mulf %817, %816 : vector<32x16xf32>
    %819 = arith.index_cast %810 : i32 to index
    %c0_389 = arith.constant 0 : index
    %c0_390 = arith.constant 0 : index
    %820 = vector.load %arg19[%819, %c0_389, %c0_390] : memref<8x32x16xf32, #tpu.memory_space<vmem>>, vector<1x32x16xf32>
    %821 = vector.shape_cast %820 : vector<1x32x16xf32> to vector<32x16xf32>
    %822 = vector.broadcast %812 : f32 to vector<32x16xf32>
    %823 = arith.mulf %822, %821 : vector<32x16xf32>
    %824 = arith.addf %818, %823 : vector<32x16xf32>
    %c1_391 = arith.constant 1 : index
    %825 = arith.index_cast %806 : i32 to index
    %826 = memref.load %arg2[%c1_391, %825] : memref<3x16xi32, #tpu.memory_space<smem>>
    %c1_i32_392 = arith.constant 1 : i32
    %827 = arith.addi %826, %c1_i32_392 : i32
    %c3_i32_393 = arith.constant 3 : i32
    %828 = arith.minsi %827, %c3_i32_393 : i32
    %c1_394 = arith.constant 1 : index
    %829 = arith.index_cast %806 : i32 to index
    %830 = memref.load %arg3[%c1_394, %829] : memref<3x16xf32, #tpu.memory_space<smem>>
    %cst_395 = arith.constant 1.000000e+00 : f32
    %831 = arith.subf %cst_395, %830 : f32
    %832 = arith.index_cast %826 : i32 to index
    %c0_396 = arith.constant 0 : index
    %c0_397 = arith.constant 0 : index
    %833 = vector.load %arg20[%832, %c0_396, %c0_397] : memref<4x32x16xf32, #tpu.memory_space<vmem>>, vector<1x32x16xf32>
    %834 = vector.shape_cast %833 : vector<1x32x16xf32> to vector<32x16xf32>
    %835 = vector.broadcast %831 : f32 to vector<32x16xf32>
    %836 = arith.mulf %835, %834 : vector<32x16xf32>
    %837 = arith.index_cast %828 : i32 to index
    %c0_398 = arith.constant 0 : index
    %c0_399 = arith.constant 0 : index
    %838 = vector.load %arg20[%837, %c0_398, %c0_399] : memref<4x32x16xf32, #tpu.memory_space<vmem>>, vector<1x32x16xf32>
    %839 = vector.shape_cast %838 : vector<1x32x16xf32> to vector<32x16xf32>
    %840 = vector.broadcast %830 : f32 to vector<32x16xf32>
    %841 = arith.mulf %840, %839 : vector<32x16xf32>
    %842 = arith.addf %836, %841 : vector<32x16xf32>
    %843 = arith.addf %824, %842 : vector<32x16xf32>
    %c2_400 = arith.constant 2 : index
    %844 = arith.index_cast %806 : i32 to index
    %845 = memref.load %arg2[%c2_400, %844] : memref<3x16xi32, #tpu.memory_space<smem>>
    %c1_i32_401 = arith.constant 1 : i32
    %846 = arith.addi %845, %c1_i32_401 : i32
    %c1_i32_402 = arith.constant 1 : i32
    %847 = arith.minsi %846, %c1_i32_402 : i32
    %c2_403 = arith.constant 2 : index
    %848 = arith.index_cast %806 : i32 to index
    %849 = memref.load %arg3[%c2_403, %848] : memref<3x16xf32, #tpu.memory_space<smem>>
    %cst_404 = arith.constant 1.000000e+00 : f32
    %850 = arith.subf %cst_404, %849 : f32
    %851 = arith.index_cast %845 : i32 to index
    %c0_405 = arith.constant 0 : index
    %c0_406 = arith.constant 0 : index
    %852 = vector.load %arg21[%851, %c0_405, %c0_406] : memref<2x32x16xf32, #tpu.memory_space<vmem>>, vector<1x32x16xf32>
    %853 = vector.shape_cast %852 : vector<1x32x16xf32> to vector<32x16xf32>
    %854 = vector.broadcast %850 : f32 to vector<32x16xf32>
    %855 = arith.mulf %854, %853 : vector<32x16xf32>
    %856 = arith.index_cast %847 : i32 to index
    %c0_407 = arith.constant 0 : index
    %c0_408 = arith.constant 0 : index
    %857 = vector.load %arg21[%856, %c0_407, %c0_408] : memref<2x32x16xf32, #tpu.memory_space<vmem>>, vector<1x32x16xf32>
    %858 = vector.shape_cast %857 : vector<1x32x16xf32> to vector<32x16xf32>
    %859 = vector.broadcast %849 : f32 to vector<32x16xf32>
    %860 = arith.mulf %859, %858 : vector<32x16xf32>
    %861 = arith.addf %855, %860 : vector<32x16xf32>
    %862 = arith.addf %843, %861 : vector<32x16xf32>
    %c15_i32 = arith.constant 15 : i32
    %863 = arith.addi %7, %c15_i32 : i32
    %c0_409 = arith.constant 0 : index
    %864 = arith.index_cast %863 : i32 to index
    %865 = memref.load %arg2[%c0_409, %864] : memref<3x16xi32, #tpu.memory_space<smem>>
    %c1_i32_410 = arith.constant 1 : i32
    %866 = arith.addi %865, %c1_i32_410 : i32
    %c7_i32_411 = arith.constant 7 : i32
    %867 = arith.minsi %866, %c7_i32_411 : i32
    %c0_412 = arith.constant 0 : index
    %868 = arith.index_cast %863 : i32 to index
    %869 = memref.load %arg3[%c0_412, %868] : memref<3x16xf32, #tpu.memory_space<smem>>
    %cst_413 = arith.constant 1.000000e+00 : f32
    %870 = arith.subf %cst_413, %869 : f32
    %871 = arith.index_cast %865 : i32 to index
    %c0_414 = arith.constant 0 : index
    %c0_415 = arith.constant 0 : index
    %872 = vector.load %arg19[%871, %c0_414, %c0_415] : memref<8x32x16xf32, #tpu.memory_space<vmem>>, vector<1x32x16xf32>
    %873 = vector.shape_cast %872 : vector<1x32x16xf32> to vector<32x16xf32>
    %874 = vector.broadcast %870 : f32 to vector<32x16xf32>
    %875 = arith.mulf %874, %873 : vector<32x16xf32>
    %876 = arith.index_cast %867 : i32 to index
    %c0_416 = arith.constant 0 : index
    %c0_417 = arith.constant 0 : index
    %877 = vector.load %arg19[%876, %c0_416, %c0_417] : memref<8x32x16xf32, #tpu.memory_space<vmem>>, vector<1x32x16xf32>
    %878 = vector.shape_cast %877 : vector<1x32x16xf32> to vector<32x16xf32>
    %879 = vector.broadcast %869 : f32 to vector<32x16xf32>
    %880 = arith.mulf %879, %878 : vector<32x16xf32>
    %881 = arith.addf %875, %880 : vector<32x16xf32>
    %c1_418 = arith.constant 1 : index
    %882 = arith.index_cast %863 : i32 to index
    %883 = memref.load %arg2[%c1_418, %882] : memref<3x16xi32, #tpu.memory_space<smem>>
    %c1_i32_419 = arith.constant 1 : i32
    %884 = arith.addi %883, %c1_i32_419 : i32
    %c3_i32_420 = arith.constant 3 : i32
    %885 = arith.minsi %884, %c3_i32_420 : i32
    %c1_421 = arith.constant 1 : index
    %886 = arith.index_cast %863 : i32 to index
    %887 = memref.load %arg3[%c1_421, %886] : memref<3x16xf32, #tpu.memory_space<smem>>
    %cst_422 = arith.constant 1.000000e+00 : f32
    %888 = arith.subf %cst_422, %887 : f32
    %889 = arith.index_cast %883 : i32 to index
    %c0_423 = arith.constant 0 : index
    %c0_424 = arith.constant 0 : index
    %890 = vector.load %arg20[%889, %c0_423, %c0_424] : memref<4x32x16xf32, #tpu.memory_space<vmem>>, vector<1x32x16xf32>
    %891 = vector.shape_cast %890 : vector<1x32x16xf32> to vector<32x16xf32>
    %892 = vector.broadcast %888 : f32 to vector<32x16xf32>
    %893 = arith.mulf %892, %891 : vector<32x16xf32>
    %894 = arith.index_cast %885 : i32 to index
    %c0_425 = arith.constant 0 : index
    %c0_426 = arith.constant 0 : index
    %895 = vector.load %arg20[%894, %c0_425, %c0_426] : memref<4x32x16xf32, #tpu.memory_space<vmem>>, vector<1x32x16xf32>
    %896 = vector.shape_cast %895 : vector<1x32x16xf32> to vector<32x16xf32>
    %897 = vector.broadcast %887 : f32 to vector<32x16xf32>
    %898 = arith.mulf %897, %896 : vector<32x16xf32>
    %899 = arith.addf %893, %898 : vector<32x16xf32>
    %900 = arith.addf %881, %899 : vector<32x16xf32>
    %c2_427 = arith.constant 2 : index
    %901 = arith.index_cast %863 : i32 to index
    %902 = memref.load %arg2[%c2_427, %901] : memref<3x16xi32, #tpu.memory_space<smem>>
    %c1_i32_428 = arith.constant 1 : i32
    %903 = arith.addi %902, %c1_i32_428 : i32
    %c1_i32_429 = arith.constant 1 : i32
    %904 = arith.minsi %903, %c1_i32_429 : i32
    %c2_430 = arith.constant 2 : index
    %905 = arith.index_cast %863 : i32 to index
    %906 = memref.load %arg3[%c2_430, %905] : memref<3x16xf32, #tpu.memory_space<smem>>
    %cst_431 = arith.constant 1.000000e+00 : f32
    %907 = arith.subf %cst_431, %906 : f32
    %908 = arith.index_cast %902 : i32 to index
    %c0_432 = arith.constant 0 : index
    %c0_433 = arith.constant 0 : index
    %909 = vector.load %arg21[%908, %c0_432, %c0_433] : memref<2x32x16xf32, #tpu.memory_space<vmem>>, vector<1x32x16xf32>
    %910 = vector.shape_cast %909 : vector<1x32x16xf32> to vector<32x16xf32>
    %911 = vector.broadcast %907 : f32 to vector<32x16xf32>
    %912 = arith.mulf %911, %910 : vector<32x16xf32>
    %913 = arith.index_cast %904 : i32 to index
    %c0_434 = arith.constant 0 : index
    %c0_435 = arith.constant 0 : index
    %914 = vector.load %arg21[%913, %c0_434, %c0_435] : memref<2x32x16xf32, #tpu.memory_space<vmem>>, vector<1x32x16xf32>
    %915 = vector.shape_cast %914 : vector<1x32x16xf32> to vector<32x16xf32>
    %916 = vector.broadcast %906 : f32 to vector<32x16xf32>
    %917 = arith.mulf %916, %915 : vector<32x16xf32>
    %918 = arith.addf %912, %917 : vector<32x16xf32>
    %919 = arith.addf %900, %918 : vector<32x16xf32>
    %920 = tpu.concatenate %64, %121, %178, %235, %292, %349, %406, %463, %520, %577, %634, %691, %748, %805, %862, %919 in 1 : vector<32x16xf32>, vector<32x16xf32>, vector<32x16xf32>, vector<32x16xf32>, vector<32x16xf32>, vector<32x16xf32>, vector<32x16xf32>, vector<32x16xf32>, vector<32x16xf32>, vector<32x16xf32>, vector<32x16xf32>, vector<32x16xf32>, vector<32x16xf32>, vector<32x16xf32>, vector<32x16xf32>, vector<32x16xf32> -> vector<32x256xf32>
    %921 = arith.addf %6, %920 : vector<32x256xf32>
    %c0_436 = arith.constant 0 : index
    %c0_437 = arith.constant 0 : index
    %922 = vector.load %arg15[%c0_436, %c0_437] : memref<32x1xf32, #tpu.memory_space<vmem>>, vector<32x1xf32>
    %923 = vector.broadcast %922 : vector<32x1xf32> to vector<32x256xf32>
    %924 = arith.addf %921, %923 : vector<32x256xf32>
    %cst_438 = arith.constant 0.000000e+00 : f32
    %925 = vector.broadcast %cst_438 : f32 to vector<32x256xf32>
    %926 = arith.maximumf %924, %925 : vector<32x256xf32>
    %c0_439 = arith.constant 0 : index
    %c0_440 = arith.constant 0 : index
    %927 = vector.load %arg16[%c0_439, %c0_440] : memref<8x32xf32, #tpu.memory_space<vmem>>, vector<8x32xf32>
    %cst_441 = arith.constant dense<0.000000e+00> : vector<8x256xf32>
    %928 = tpu.matmul %927, %926, %cst_441 {dimension_numbers = #tpu.dot_dimension_numbers<[1], [0], [0], [1], [0, 0, 1, 1], [], []>} : vector<8x32xf32>, vector<32x256xf32>, vector<8x256xf32> -> vector<8x256xf32>
    %c0_442 = arith.constant 0 : index
    %c0_443 = arith.constant 0 : index
    %929 = vector.load %arg17[%c0_442, %c0_443] : memref<8x1xf32, #tpu.memory_space<vmem>>, vector<8x1xf32>
    %930 = vector.broadcast %929 : vector<8x1xf32> to vector<8x256xf32>
    %931 = arith.addf %928, %930 : vector<8x256xf32>
    %c0_444 = arith.constant 0 : index
    %c0_445 = arith.constant 0 : index
    %c0_446 = arith.constant 0 : index
    %932 = vector.load %arg18[%c0_444, %c0_445, %c0_446] : memref<1x8x256xf32, #tpu.memory_space<vmem>>, vector<1x8x256xf32>
    %933 = vector.shape_cast %932 : vector<1x8x256xf32> to vector<8x256xf32>
    %934 = vector.shape_cast %931 : vector<8x256xf32> to vector<1x8x256xf32>
    tpu.vector_store %arg18[%c0_444, %c0_445, %c0_446], %934 {strides = array<i32>} : memref<1x8x256xf32, #tpu.memory_space<vmem>>, vector<1x8x256xf32>,
    return
  }
  func.func @transform_0(%arg0: i32, %arg1: i32, %arg2: memref<3x16xi32, #tpu.memory_space<smem>>, %arg3: memref<3x16xf32, #tpu.memory_space<smem>>) -> (i32, i32, i32) {
    %c0_i32 = arith.constant 0 : i32
    %c0_i32_0 = arith.constant 0 : i32
    return %arg0, %c0_i32, %arg1 : i32, i32, i32
  }
  func.func @transform_1(%arg0: i32, %arg1: i32, %arg2: memref<3x16xi32, #tpu.memory_space<smem>>, %arg3: memref<3x16xf32, #tpu.memory_space<smem>>) -> (i32, i32, i32) {
    %c0_i32 = arith.constant 0 : i32
    %c0_i32_0 = arith.constant 0 : i32
    %c0_i32_1 = arith.constant 0 : i32
    return %arg0, %c0_i32, %c0_i32_0 : i32, i32, i32
  }
  func.func @transform_2(%arg0: i32, %arg1: i32, %arg2: memref<3x16xi32, #tpu.memory_space<smem>>, %arg3: memref<3x16xf32, #tpu.memory_space<smem>>) -> (i32, i32, i32) {
    %c0_i32 = arith.constant 0 : i32
    %c0_i32_0 = arith.constant 0 : i32
    %c0_i32_1 = arith.constant 0 : i32
    return %arg0, %c0_i32, %c0_i32_0 : i32, i32, i32
  }
  func.func @transform_3(%arg0: i32, %arg1: i32, %arg2: memref<3x16xi32, #tpu.memory_space<smem>>, %arg3: memref<3x16xf32, #tpu.memory_space<smem>>) -> (i32, i32, i32) {
    %c0_i32 = arith.constant 0 : i32
    %c0_i32_0 = arith.constant 0 : i32
    %c0_i32_1 = arith.constant 0 : i32
    return %arg0, %c0_i32, %c0_i32_0 : i32, i32, i32
  }
  func.func @transform_4(%arg0: i32, %arg1: i32, %arg2: memref<3x16xi32, #tpu.memory_space<smem>>, %arg3: memref<3x16xf32, #tpu.memory_space<smem>>) -> (i32, i32) {
    %c0_i32 = arith.constant 0 : i32
    %c0_i32_0 = arith.constant 0 : i32
    %c0_i32_1 = arith.constant 0 : i32
    return %c0_i32, %c0_i32_0 : i32, i32
  }
  func.func @transform_5(%arg0: i32, %arg1: i32, %arg2: memref<3x16xi32, #tpu.memory_space<smem>>, %arg3: memref<3x16xf32, #tpu.memory_space<smem>>) -> (i32, i32) {
    %c0_i32 = arith.constant 0 : i32
    %c0_i32_0 = arith.constant 0 : i32
    %c0_i32_1 = arith.constant 0 : i32
    return %c0_i32, %c0_i32_0 : i32, i32
  }
  func.func @transform_6(%arg0: i32, %arg1: i32, %arg2: memref<3x16xi32, #tpu.memory_space<smem>>, %arg3: memref<3x16xf32, #tpu.memory_space<smem>>) -> (i32, i32) {
    %c0_i32 = arith.constant 0 : i32
    %c0_i32_0 = arith.constant 0 : i32
    %c0_i32_1 = arith.constant 0 : i32
    return %c0_i32, %c0_i32_0 : i32, i32
  }
  func.func @transform_7(%arg0: i32, %arg1: i32, %arg2: memref<3x16xi32, #tpu.memory_space<smem>>, %arg3: memref<3x16xf32, #tpu.memory_space<smem>>) -> (i32, i32) {
    %c0_i32 = arith.constant 0 : i32
    %c0_i32_0 = arith.constant 0 : i32
    %c0_i32_1 = arith.constant 0 : i32
    return %c0_i32, %c0_i32_0 : i32, i32
  }
  func.func @transform_8(%arg0: i32, %arg1: i32, %arg2: memref<3x16xi32, #tpu.memory_space<smem>>, %arg3: memref<3x16xf32, #tpu.memory_space<smem>>) -> (i32, i32) {
    %c0_i32 = arith.constant 0 : i32
    %c0_i32_0 = arith.constant 0 : i32
    %c0_i32_1 = arith.constant 0 : i32
    return %c0_i32, %c0_i32_0 : i32, i32
  }
  func.func @transform_9(%arg0: i32, %arg1: i32, %arg2: memref<3x16xi32, #tpu.memory_space<smem>>, %arg3: memref<3x16xf32, #tpu.memory_space<smem>>) -> (i32, i32) {
    %c0_i32 = arith.constant 0 : i32
    %c0_i32_0 = arith.constant 0 : i32
    %c0_i32_1 = arith.constant 0 : i32
    return %c0_i32, %c0_i32_0 : i32, i32
  }
  func.func @transform_10(%arg0: i32, %arg1: i32, %arg2: memref<3x16xi32, #tpu.memory_space<smem>>, %arg3: memref<3x16xf32, #tpu.memory_space<smem>>) -> (i32, i32) {
    %c0_i32 = arith.constant 0 : i32
    %c0_i32_0 = arith.constant 0 : i32
    %c0_i32_1 = arith.constant 0 : i32
    return %c0_i32, %c0_i32_0 : i32, i32
  }
  func.func @transform_11(%arg0: i32, %arg1: i32, %arg2: memref<3x16xi32, #tpu.memory_space<smem>>, %arg3: memref<3x16xf32, #tpu.memory_space<smem>>) -> (i32, i32) {
    %c0_i32 = arith.constant 0 : i32
    %c0_i32_0 = arith.constant 0 : i32
    %c0_i32_1 = arith.constant 0 : i32
    return %c0_i32, %c0_i32_0 : i32, i32
  }
  func.func @transform_12(%arg0: i32, %arg1: i32, %arg2: memref<3x16xi32, #tpu.memory_space<smem>>, %arg3: memref<3x16xf32, #tpu.memory_space<smem>>) -> (i32, i32) {
    %c0_i32 = arith.constant 0 : i32
    %c0_i32_0 = arith.constant 0 : i32
    %c0_i32_1 = arith.constant 0 : i32
    return %c0_i32, %c0_i32_0 : i32, i32
  }
  func.func @transform_13(%arg0: i32, %arg1: i32, %arg2: memref<3x16xi32, #tpu.memory_space<smem>>, %arg3: memref<3x16xf32, #tpu.memory_space<smem>>) -> (i32, i32) {
    %c0_i32 = arith.constant 0 : i32
    %c0_i32_0 = arith.constant 0 : i32
    %c0_i32_1 = arith.constant 0 : i32
    return %c0_i32, %c0_i32_0 : i32, i32
  }
  func.func @transform_14(%arg0: i32, %arg1: i32, %arg2: memref<3x16xi32, #tpu.memory_space<smem>>, %arg3: memref<3x16xf32, #tpu.memory_space<smem>>) -> (i32, i32, i32) {
    %c0_i32 = arith.constant 0 : i32
    %c0_i32_0 = arith.constant 0 : i32
    return %arg0, %c0_i32, %arg1 : i32, i32, i32
  }
}

</mosaic_0001>

<llo_original>
// kernel: segformer_head_forward.1
$region0: #{segformer_head_forward.1}
  #allocation0 [shape = 'u32[]', space=smem, size = 0x4, offset = 0x4, fixed_abs, tag = 'smem constant byte address 0x4 - core index']
  #allocation1 [shape = 'u32[144,128]{1,0:T(1,128)}', space=vmem, size = 0x12000, scoped, tag = 'internal scratch']
  #allocation2 [shape = 'f32[8,32,16]{2,1,0:T(8,128)}', space=vmem, size = 0x20000, scoped, tag = 'scratch operand']
  #allocation3 [shape = 'f32[4,32,16]{2,1,0:T(8,128)}', space=vmem, size = 0x10000, scoped, tag = 'scratch operand']
  #allocation4 [shape = 'f32[2,32,16]{2,1,0:T(8,128)}', space=vmem, size = 0x8000, scoped, tag = 'scratch operand']
  #allocation5 [shape = 's32[1]{0}', space=sflag, size = 0x4, scoped, tag = 'scoped memory for segformer_head_forward.1']
  #allocation6 [shape = 'u8[2048]{0}', space=smem, size = 0x800, scoped, tag = 'prefetched SMEM operand 0']
  #allocation7 [shape = 'u8[2048]{0}', space=smem, size = 0x800, scoped, tag = 'prefetched SMEM operand 1']
  %s0 = inlined_call_operand.vmem [shape: s32[3,16], index: 0, kind: input, shape index: {}]
  %s1 = inlined_call_operand.vmem [shape: f32[3,16], index: 1, kind: input, shape index: {}]
  %s2 = inlined_call_operand.vmem [shape: f32[2,8,256], index: 2, kind: input, shape index: {}]
  %s3 = inlined_call_operand.vmem [shape: f32[2,16,64], index: 3, kind: input, shape index: {}]
  %s4 = inlined_call_operand.vmem [shape: f32[2,32,16], index: 4, kind: input, shape index: {}]
  %s5 = inlined_call_operand.vmem [shape: f32[2,64,4], index: 5, kind: input, shape index: {}]
  %s6 = inlined_call_operand.vmem [shape: f32[8,16], index: 6, kind: input, shape index: {}]
  %s7 = inlined_call_operand.vmem [shape: f32[4,16], index: 7, kind: input, shape index: {}]
  %s8 = inlined_call_operand.vmem [shape: f32[2,16], index: 8, kind: input, shape index: {}]
  %s9 = inlined_call_operand.vmem [shape: f32[32,8], index: 9, kind: input, shape index: {}]
  %s10 = inlined_call_operand.vmem [shape: f32[32,16], index: 10, kind: input, shape index: {}]
  %s11 = inlined_call_operand.vmem [shape: f32[32,32], index: 11, kind: input, shape index: {}]
  %s12 = inlined_call_operand.vmem [shape: f32[32,64], index: 12, kind: input, shape index: {}]
  %s13 = inlined_call_operand.vmem [shape: f32[32,1], index: 13, kind: input, shape index: {}]
  %s14 = inlined_call_operand.vmem [shape: f32[8,32], index: 14, kind: input, shape index: {}]
  %s15 = inlined_call_operand.vmem [shape: f32[8,1], index: 15, kind: input, shape index: {}]
  %s16 = inlined_call_operand.vmem [shape: f32[2,8,256], index: 16, kind: output, shape index: {}]
  %s17 = sld [smem:[#allocation0]]
  $region93: #{segformer_head_forward.1} parent=0
    _
  %s19 = ssub.s32 1, %s17
  %s20 = scalar_select 0, %s19, %s17
  %s21 = sshll.u32 %s0, 4
  %s22 = int_to_ptr.vmem [resolvable:$true] %s21
  %24 = dma.vmem_to_smem %s22, 64, [#allocation6], [#allocation5]
  %s25 = sshll.u32 %s1, 4
  %s26 = int_to_ptr.vmem [resolvable:$true] %s25
  %28 = dma.vmem_to_smem %s26, 64, [#allocation7], [#allocation5]
  %29 = dma.done [#allocation5], 128
  %30 = sfence
  loop: start=0, step=1, limit=4
  $region2: #{segformer_head_forward.1} parent=0 // loop_pre_header
    _
  $region3: #{segformer_head_forward.1} parent=0 // loop_header
    %s32 = sphi 0, %s36
    %p33 = scmp.ge.s32.totalorder %s32, 4
    %s39 = sphi 0, %s51
    %s40 = sphi 0, %s47
    %s41 = sphi 0, %s39
    %s42 = sphi 0, %s40
    %s43 = sphi 0, %s41
    %s44 = sphi 0, %s42
    %s56 = sphi 0, %s58
    %s59 = sphi 0, %s56
    %s60 = sphi 0, %s59
    %s76 = sphi 0, %s60
    %s82 = sphi 0, %s84
    %s85 = sphi 0, %s82
    %s86 = sphi 0, %s85
    %s102 = sphi 0, %s86
    %s108 = sphi 0, %s110
    %s111 = sphi 0, %s108
    %s112 = sphi 0, %s111
    %s128 = sphi 0, %s112
    %s134 = sphi 0, %s136
    %s137 = sphi 0, %s134
    %s138 = sphi 0, %s137
    %s154 = sphi 0, %s138
    %s158 = sphi 0, %s158
    %s160 = sphi 0, %s158
    %s161 = sphi 0, %s160
    %s175 = sphi 0, %s161
    %s179 = sphi 0, %s179
    %s181 = sphi 0, %s179
    %s182 = sphi 0, %s181
    %s196 = sphi 0, %s182
    %s200 = sphi 0, %s200
    %s202 = sphi 0, %s200
    %s203 = sphi 0, %s202
    %s217 = sphi 0, %s203
    %s221 = sphi 0, %s221
    %s223 = sphi 0, %s221
    %s224 = sphi 0, %s223
    %s238 = sphi 0, %s224
    %s242 = sphi 0, %s242
    %s244 = sphi 0, %s242
    %s245 = sphi 0, %s244
    %s259 = sphi 0, %s245
    %s263 = sphi 0, %s263
    %s265 = sphi 0, %s263
    %s266 = sphi 0, %s265
    %s280 = sphi 0, %s266
    %s284 = sphi 0, %s284
    %s286 = sphi 0, %s284
    %s287 = sphi 0, %s286
    %s301 = sphi 0, %s287
    %s305 = sphi 0, %s305
    %s307 = sphi 0, %s305
    %s308 = sphi 0, %s307
    %s322 = sphi 0, %s308
    %s326 = sphi 0, %s326
    %s328 = sphi 0, %s326
    %s329 = sphi 0, %s328
    %s343 = sphi 0, %s329
    %s347 = sphi 0, %s347
    %s349 = sphi 0, %s347
    %s350 = sphi 0, %s349
    %s364 = sphi 0, %s350
    %s372 = sphi 0, %s374
    %s375 = sphi 0, %s372
    %s376 = sphi 0, %s375
    %s392 = sphi 0, %s376
  $region4: #{segformer_head_forward.1} parent=0 // loop_header_branch
    %35 = sbr.rel (%p33) target = $region8
  $region5: #{segformer_head_forward.1} parent=0 // loop_body
    %s37 = ssub.s32 %s32, 1
    %s38 = ssub.s32 %s32, 2
    %s45 = sadd.s32 1, %s40
    %p46 = scmp.ge.s32.totalorder %s45, 1
    %s47 = scalar_select %p46, 0, %s45
    %s48 = sadd.s32 1, %s39
    %s49 = scalar_select %p46, %s48, %s39
    %p50 = scmp.ge.s32.totalorder %s49, 2
    %s51 = scalar_select %p50, 0, %s49
    %s52 = ssub.s32 %s39, %s51
    %s53 = ssub.s32 %s40, %s47
    %s54 = sor.u32 %s52, %s53
    %p55 = scmp.eq.s32.totalorder %s54, 0
    %s57 = sadd.s32 %s56, 1
    %s58 = scalar_select %p55, %s56, %s57
    %p61 = pneg %p55
    %p62 = scmp.eq.s32.totalorder %s32, 1
    %p63 = por %p61, %p62
    %p64 = scmp.ne.s32.totalorder %s56, %s59
    %p65 = scmp.eq.s32.totalorder %s32, 0
    %p66 = por %p64, %p65
    %p67 = scmp.ne.s32.totalorder %s56, %s59
    %p68 = scmp.eq.s32.totalorder %s37, 1
    %p69 = por %p67, %p68
    %p70 = scmp.ne.s32.totalorder %s59, %s60
    %p71 = scmp.eq.s32.totalorder %s37, 0
    %p72 = por %p70, %p71
    %p73 = scmp.ne.s32.totalorder %s59, %s60
    %p74 = scmp.eq.s32.totalorder %s38, 1
    %p75 = por %p73, %p74
    %p77 = scmp.ne.s32.totalorder %s60, %s76
    %p78 = scmp.eq.s32.totalorder %s38, 0
    %p79 = por %p77, %p78
    %s80 = ssub.s32 %s39, %s51
    %p81 = scmp.eq.s32.totalorder %s80, 0
    %s83 = sadd.s32 %s82, 1
    %s84 = scalar_select %p81, %s82, %s83
    %p87 = pneg %p81
    %p88 = scmp.eq.s32.totalorder %s32, 1
    %p89 = por %p87, %p88
    %p90 = scmp.ne.s32.totalorder %s82, %s85
    %p91 = scmp.eq.s32.totalorder %s32, 0
    %p92 = por %p90, %p91
    %p93 = scmp.ne.s32.totalorder %s82, %s85
    %p94 = scmp.eq.s32.totalorder %s37, 1
    %p95 = por %p93, %p94
    %p96 = scmp.ne.s32.totalorder %s85, %s86
    %p97 = scmp.eq.s32.totalorder %s37, 0
    %p98 = por %p96, %p97
    %p99 = scmp.ne.s32.totalorder %s85, %s86
    %p100 = scmp.eq.s32.totalorder %s38, 1
    %p101 = por %p99, %p100
    %p103 = scmp.ne.s32.totalorder %s86, %s102
    %p104 = scmp.eq.s32.totalorder %s38, 0
    %p105 = por %p103, %p104
    %s106 = ssub.s32 %s39, %s51
    %p107 = scmp.eq.s32.totalorder %s106, 0
    %s109 = sadd.s32 %s108, 1
    %s110 = scalar_select %p107, %s108, %s109
    %p113 = pneg %p107
    %p114 = scmp.eq.s32.totalorder %s32, 1
    %p115 = por %p113, %p114
    %p116 = scmp.ne.s32.totalorder %s108, %s111
    %p117 = scmp.eq.s32.totalorder %s32, 0
    %p118 = por %p116, %p117
    %p119 = scmp.ne.s32.totalorder %s108, %s111
    %p120 = scmp.eq.s32.totalorder %s37, 1
    %p121 = por %p119, %p120
    %p122 = scmp.ne.s32.totalorder %s111, %s112
    %p123 = scmp.eq.s32.totalorder %s37, 0
    %p124 = por %p122, %p123
    %p125 = scmp.ne.s32.totalorder %s111, %s112
    %p126 = scmp.eq.s32.totalorder %s38, 1
    %p127 = por %p125, %p126
    %p129 = scmp.ne.s32.totalorder %s112, %s128
    %p130 = scmp.eq.s32.totalorder %s38, 0
    %p131 = por %p129, %p130
    %s132 = ssub.s32 %s39, %s51
    %p133 = scmp.eq.s32.totalorder %s132, 0
    %s135 = sadd.s32 %s134, 1
    %s136 = scalar_select %p133, %s134, %s135
    %p139 = pneg %p133
    %p140 = scmp.eq.s32.totalorder %s32, 1
    %p141 = por %p139, %p140
    %p142 = scmp.ne.s32.totalorder %s134, %s137
    %p143 = scmp.eq.s32.totalorder %s32, 0
    %p144 = por %p142, %p143
    %p145 = scmp.ne.s32.totalorder %s134, %s137
    %p146 = scmp.eq.s32.totalorder %s37, 1
    %p147 = por %p145, %p146
    %p148 = scmp.ne.s32.totalorder %s137, %s138
    %p149 = scmp.eq.s32.totalorder %s37, 0
    %p150 = por %p148, %p149
    %p151 = scmp.ne.s32.totalorder %s137, %s138
    %p152 = scmp.eq.s32.totalorder %s38, 1
    %p153 = por %p151, %p152
    %p155 = scmp.ne.s32.totalorder %s138, %s154
    %p156 = scmp.eq.s32.totalorder %s38, 0
    %p157 = por %p155, %p156
    %s159 = sadd.s32 %s158, 1
    %p162 = scmp.eq.s32.totalorder %s32, 1
    %p163 = scmp.ne.s32.totalorder %s158, %s160
    %p164 = scmp.eq.s32.totalorder %s32, 0
    %p165 = por %p163, %p164
    %p166 = scmp.ne.s32.totalorder %s158, %s160
    %p167 = scmp.eq.s32.totalorder %s37, 1
    %p168 = por %p166, %p167
    %p169 = scmp.ne.s32.totalorder %s160, %s161
    %p170 = scmp.eq.s32.totalorder %s37, 0
    %p171 = por %p169, %p170
    %p172 = scmp.ne.s32.totalorder %s160, %s161
    %p173 = scmp.eq.s32.totalorder %s38, 1
    %p174 = por %p172, %p173
    %p176 = scmp.ne.s32.totalorder %s161, %s175
    %p177 = scmp.eq.s32.totalorder %s38, 0
    %p178 = por %p176, %p177
    %s180 = sadd.s32 %s179, 1
    %p183 = scmp.eq.s32.totalorder %s32, 1
    %p184 = scmp.ne.s32.totalorder %s179, %s181
    %p185 = scmp.eq.s32.totalorder %s32, 0
    %p186 = por %p184, %p185
    %p187 = scmp.ne.s32.totalorder %s179, %s181
    %p188 = scmp.eq.s32.totalorder %s37, 1
    %p189 = por %p187, %p188
    %p190 = scmp.ne.s32.totalorder %s181, %s182
    %p191 = scmp.eq.s32.totalorder %s37, 0
    %p192 = por %p190, %p191
    %p193 = scmp.ne.s32.totalorder %s181, %s182
    %p194 = scmp.eq.s32.totalorder %s38, 1
    %p195 = por %p193, %p194
    %p197 = scmp.ne.s32.totalorder %s182, %s196
    %p198 = scmp.eq.s32.totalorder %s38, 0
    %p199 = por %p197, %p198
    %s201 = sadd.s32 %s200, 1
    %p204 = scmp.eq.s32.totalorder %s32, 1
    %p205 = scmp.ne.s32.totalorder %s200, %s202
    %p206 = scmp.eq.s32.totalorder %s32, 0
    %p207 = por %p205, %p206
    %p208 = scmp.ne.s32.totalorder %s200, %s202
    %p209 = scmp.eq.s32.totalorder %s37, 1
    %p210 = por %p208, %p209
    %p211 = scmp.ne.s32.totalorder %s202, %s203
    %p212 = scmp.eq.s32.totalorder %s37, 0
    %p213 = por %p211, %p212
    %p214 = scmp.ne.s32.totalorder %s202, %s203
    %p215 = scmp.eq.s32.totalorder %s38, 1
    %p216 = por %p214, %p215
    %p218 = scmp.ne.s32.totalorder %s203, %s217
    %p219 = scmp.eq.s32.totalorder %s38, 0
    %p220 = por %p218, %p219
    %s222 = sadd.s32 %s221, 1
    %p225 = scmp.eq.s32.totalorder %s32, 1
    %p226 = scmp.ne.s32.totalorder %s221, %s223
    %p227 = scmp.eq.s32.totalorder %s32, 0
    %p228 = por %p226, %p227
    %p229 = scmp.ne.s32.totalorder %s221, %s223
    %p230 = scmp.eq.s32.totalorder %s37, 1
    %p231 = por %p229, %p230
    %p232 = scmp.ne.s32.totalorder %s223, %s224
    %p233 = scmp.eq.s32.totalorder %s37, 0
    %p234 = por %p232, %p233
    %p235 = scmp.ne.s32.totalorder %s223, %s224
    %p236 = scmp.eq.s32.totalorder %s38, 1
    %p237 = por %p235, %p236
    %p239 = scmp.ne.s32.totalorder %s224, %s238
    %p240 = scmp.eq.s32.totalorder %s38, 0
    %p241 = por %p239, %p240
    %s243 = sadd.s32 %s242, 1
    %p246 = scmp.eq.s32.totalorder %s32, 1
    %p247 = scmp.ne.s32.totalorder %s242, %s244
    %p248 = scmp.eq.s32.totalorder %s32, 0
    %p249 = por %p247, %p248
    %p250 = scmp.ne.s32.totalorder %s242, %s244
    %p251 = scmp.eq.s32.totalorder %s37, 1
    %p252 = por %p250, %p251
    %p253 = scmp.ne.s32.totalorder %s244, %s245
    %p254 = scmp.eq.s32.totalorder %s37, 0
    %p255 = por %p253, %p254
    %p256 = scmp.ne.s32.totalorder %s244, %s245
    %p257 = scmp.eq.s32.totalorder %s38, 1
    %p258 = por %p256, %p257
    %p260 = scmp.ne.s32.totalorder %s245, %s259
    %p261 = scmp.eq.s32.totalorder %s38, 0
    %p262 = por %p260, %p261
    %s264 = sadd.s32 %s263, 1
    %p267 = scmp.eq.s32.totalorder %s32, 1
    %p268 = scmp.ne.s32.totalorder %s263, %s265
    %p269 = scmp.eq.s32.totalorder %s32, 0
    %p270 = por %p268, %p269
    %p271 = scmp.ne.s32.totalorder %s263, %s265
    %p272 = scmp.eq.s32.totalorder %s37, 1
    %p273 = por %p271, %p272
    %p274 = scmp.ne.s32.totalorder %s265, %s266
    %p275 = scmp.eq.s32.totalorder %s37, 0
    %p276 = por %p274, %p275
    %p277 = scmp.ne.s32.totalorder %s265, %s266
    %p278 = scmp.eq.s32.totalorder %s38, 1
    %p279 = por %p277, %p278
    %p281 = scmp.ne.s32.totalorder %s266, %s280
    %p282 = scmp.eq.s32.totalorder %s38, 0
    %p283 = por %p281, %p282
    %s285 = sadd.s32 %s284, 1
    %p288 = scmp.eq.s32.totalorder %s32, 1
    %p289 = scmp.ne.s32.totalorder %s284, %s286
    %p290 = scmp.eq.s32.totalorder %s32, 0
    %p291 = por %p289, %p290
    %p292 = scmp.ne.s32.totalorder %s284, %s286
    %p293 = scmp.eq.s32.totalorder %s37, 1
    %p294 = por %p292, %p293
    %p295 = scmp.ne.s32.totalorder %s286, %s287
    %p296 = scmp.eq.s32.totalorder %s37, 0
    %p297 = por %p295, %p296
    %p298 = scmp.ne.s32.totalorder %s286, %s287
    %p299 = scmp.eq.s32.totalorder %s38, 1
    %p300 = por %p298, %p299
    %p302 = scmp.ne.s32.totalorder %s287, %s301
    %p303 = scmp.eq.s32.totalorder %s38, 0
    %p304 = por %p302, %p303
    %s306 = sadd.s32 %s305, 1
    %p309 = scmp.eq.s32.totalorder %s32, 1
    %p310 = scmp.ne.s32.totalorder %s305, %s307
    %p311 = scmp.eq.s32.totalorder %s32, 0
    %p312 = por %p310, %p311
    %p313 = scmp.ne.s32.totalorder %s305, %s307
    %p314 = scmp.eq.s32.totalorder %s37, 1
    %p315 = por %p313, %p314
    %p316 = scmp.ne.s32.totalorder %s307, %s308
    %p317 = scmp.eq.s32.totalorder %s37, 0
    %p318 = por %p316, %p317
    %p319 = scmp.ne.s32.totalorder %s307, %s308
    %p320 = scmp.eq.s32.totalorder %s38, 1
    %p321 = por %p319, %p320
    %p323 = scmp.ne.s32.totalorder %s308, %s322
    %p324 = scmp.eq.s32.totalorder %s38, 0
    %p325 = por %p323, %p324
    %s327 = sadd.s32 %s326, 1
    %p330 = scmp.eq.s32.totalorder %s32, 1
    %p331 = scmp.ne.s32.totalorder %s326, %s328
    %p332 = scmp.eq.s32.totalorder %s32, 0
    %p333 = por %p331, %p332
    %p334 = scmp.ne.s32.totalorder %s326, %s328
    %p335 = scmp.eq.s32.totalorder %s37, 1
    %p336 = por %p334, %p335
    %p337 = scmp.ne.s32.totalorder %s328, %s329
    %p338 = scmp.eq.s32.totalorder %s37, 0
    %p339 = por %p337, %p338
    %p340 = scmp.ne.s32.totalorder %s328, %s329
    %p341 = scmp.eq.s32.totalorder %s38, 1
    %p342 = por %p340, %p341
    %p344 = scmp.ne.s32.totalorder %s329, %s343
    %p345 = scmp.eq.s32.totalorder %s38, 0
    %p346 = por %p344, %p345
    %s348 = sadd.s32 %s347, 1
    %p351 = scmp.eq.s32.totalorder %s32, 1
    %p352 = scmp.ne.s32.totalorder %s347, %s349
    %p353 = scmp.eq.s32.totalorder %s32, 0
    %p354 = por %p352, %p353
    %p355 = scmp.ne.s32.totalorder %s347, %s349
    %p356 = scmp.eq.s32.totalorder %s37, 1
    %p357 = por %p355, %p356
    %p358 = scmp.ne.s32.totalorder %s349, %s350
    %p359 = scmp.eq.s32.totalorder %s37, 0
    %p360 = por %p358, %p359
    %p361 = scmp.ne.s32.totalorder %s349, %s350
    %p362 = scmp.eq.s32.totalorder %s38, 1
    %p363 = por %p361, %p362
    %p365 = scmp.ne.s32.totalorder %s350, %s364
    %p366 = scmp.eq.s32.totalorder %s38, 0
    %p367 = por %p365, %p366
    %s368 = ssub.s32 %s39, %s51
    %s369 = ssub.s32 %s40, %s47
    %s370 = sor.u32 %s368, %s369
    %p371 = scmp.eq.s32.totalorder %s370, 0
    %s373 = sadd.s32 %s372, 1
    %s374 = scalar_select %p371, %s372, %s373
    %p377 = pneg %p371
    %p378 = scmp.eq.s32.totalorder %s32, 1
    %p379 = por %p377, %p378
    %p380 = scmp.ne.s32.totalorder %s372, %s375
    %p381 = scmp.eq.s32.totalorder %s32, 0
    %p382 = por %p380, %p381
    %p383 = scmp.ne.s32.totalorder %s372, %s375
    %p384 = scmp.eq.s32.totalorder %s37, 1
    %p385 = por %p383, %p384
    %p386 = scmp.ne.s32.totalorder %s375, %s376
    %p387 = scmp.eq.s32.totalorder %s37, 0
    %p388 = por %p386, %p387
    %p389 = scmp.ne.s32.totalorder %s375, %s376
    %p390 = scmp.eq.s32.totalorder %s38, 1
    %p391 = por %p389, %p390
    %p393 = scmp.ne.s32.totalorder %s376, %s392
    %p394 = scmp.eq.s32.totalorder %s38, 0
    %p395 = por %p393, %p394
    %p396 = scmp.le.s32.totalorder 1, %s32
    %p397 = scmp.lt.s32.totalorder %s32, 3
    %p398 = pnand %p396, %p397
    %p399 = pneg %p398
    // Predicated region
    $region9: #{segformer_head_forward.1} parent=5 // pred_check
      _
    $region10: #{segformer_head_forward.1} parent=5 // pred_check_branch
      %401 = sbr.rel (%p398) target = $region12
    $region11: #{segformer_head_forward.1} parent=5 // pred_region
      %s402 = ssub.s32 %s32, 1
      // Predicated region
      $region13: #{segformer_head_forward.1} parent=11 // pred_check
        %p403 = pneg %p171
      $region14: #{segformer_head_forward.1} parent=11 // pred_check_branch
        %405 = sbr.rel (%p403) target = $region16
      $region15: #{segformer_head_forward.1} parent=11 // pred_region
        _
      $region16: #{segformer_head_forward.1} parent=11 // pred_fallthru
        _
      // Predicated region
      $region17: #{segformer_head_forward.1} parent=11 // pred_check
        %p406 = pneg %p192
      $region18: #{segformer_head_forward.1} parent=11 // pred_check_branch
        %408 = sbr.rel (%p406) target = $region20
      $region19: #{segformer_head_forward.1} parent=11 // pred_region
        _
      $region20: #{segformer_head_forward.1} parent=11 // pred_fallthru
        _
      // Predicated region
      $region21: #{segformer_head_forward.1} parent=11 // pred_check
        %p409 = pneg %p213
      $region22: #{segformer_head_forward.1} parent=11 // pred_check_branch
        %411 = sbr.rel (%p409) target = $region24
      $region23: #{segformer_head_forward.1} parent=11 // pred_region
        _
      $region24: #{segformer_head_forward.1} parent=11 // pred_fallthru
        _
      // Predicated region
      $region25: #{segformer_head_forward.1} parent=11 // pred_check
        %p412 = pneg %p234
      $region26: #{segformer_head_forward.1} parent=11 // pred_check_branch
        %414 = sbr.rel (%p412) target = $region28
      $region27: #{segformer_head_forward.1} parent=11 // pred_region
        _
      $region28: #{segformer_head_forward.1} parent=11 // pred_fallthru
        _
      // Predicated region
      $region29: #{segformer_head_forward.1} parent=11 // pred_check
        %p415 = pneg %p255
      $region30: #{segformer_head_forward.1} parent=11 // pred_check_branch
        %417 = sbr.rel (%p415) target = $region32
      $region31: #{segformer_head_forward.1} parent=11 // pred_region
        _
      $region32: #{segformer_head_forward.1} parent=11 // pred_fallthru
        _
      // Predicated region
      $region33: #{segformer_head_forward.1} parent=11 // pred_check
        %p418 = pneg %p276
      $region34: #{segformer_head_forward.1} parent=11 // pred_check_branch
        %420 = sbr.rel (%p418) target = $region36
      $region35: #{segformer_head_forward.1} parent=11 // pred_region
        _
      $region36: #{segformer_head_forward.1} parent=11 // pred_fallthru
        _
      // Predicated region
      $region37: #{segformer_head_forward.1} parent=11 // pred_check
        %p421 = pneg %p297
      $region38: #{segformer_head_forward.1} parent=11 // pred_check_branch
        %423 = sbr.rel (%p421) target = $region40
      $region39: #{segformer_head_forward.1} parent=11 // pred_region
        _
      $region40: #{segformer_head_forward.1} parent=11 // pred_fallthru
        _
      // Predicated region
      $region41: #{segformer_head_forward.1} parent=11 // pred_check
        %p424 = pneg %p318
      $region42: #{segformer_head_forward.1} parent=11 // pred_check_branch
        %426 = sbr.rel (%p424) target = $region44
      $region43: #{segformer_head_forward.1} parent=11 // pred_region
        _
      $region44: #{segformer_head_forward.1} parent=11 // pred_fallthru
        _
      // Predicated region
      $region45: #{segformer_head_forward.1} parent=11 // pred_check
        %p427 = pneg %p339
      $region46: #{segformer_head_forward.1} parent=11 // pred_check_branch
        %429 = sbr.rel (%p427) target = $region48
      $region47: #{segformer_head_forward.1} parent=11 // pred_region
        _
      $region48: #{segformer_head_forward.1} parent=11 // pred_fallthru
        _
      // Predicated region
      $region49: #{segformer_head_forward.1} parent=11 // pred_check
        %p430 = pneg %p360
      $region50: #{segformer_head_forward.1} parent=11 // pred_check_branch
        %432 = sbr.rel (%p430) target = $region52
      $region51: #{segformer_head_forward.1} parent=11 // pred_region
        _
      $region52: #{segformer_head_forward.1} parent=11 // pred_fallthru
        _
    $region12: #{segformer_head_forward.1} parent=5 // pred_fallthru
      _
    %p433 = scmp.lt.s32.totalorder %s32, 2
    // Predicated region
    $region53: #{segformer_head_forward.1} parent=5 // pred_check
      %p434 = pneg %p433
    $region54: #{segformer_head_forward.1} parent=5 // pred_check_branch
      %436 = sbr.rel (%p434) target = $region56
    $region55: #{segformer_head_forward.1} parent=5 // pred_region
      // Predicated region
      $region57: #{segformer_head_forward.1} parent=55 // pred_check
        %p437 = pneg %p66
      $region58: #{segformer_head_forward.1} parent=55 // pred_check_branch
        %439 = sbr.rel (%p437) target = $region60
      $region59: #{segformer_head_forward.1} parent=55 // pred_region
        %s440 = smul.u32 2, %s40
        %p441 = scmp.lt.s32.totalorder %s39, 1
        %s442 = scalar_select %p441, %s39, 1
        %p443 = scmp.lt.s32.totalorder %s440, 1
        %s444 = scalar_select %p443, %s440, 1
        %s445 = smul.addr %s442, 2
        %s446 = sadd.s32 %s444, %s445
        %s447 = smul.addr %s446, 8
        %s448 = scalar_lea.vmem %s2, %s447
        %s449 = smul.u32 2, %s40
      $region60: #{segformer_head_forward.1} parent=55 // pred_fallthru
        _
      // Predicated region
      $region61: #{segformer_head_forward.1} parent=55 // pred_check
        %p450 = pneg %p92
      $region62: #{segformer_head_forward.1} parent=55 // pred_check_branch
        %452 = sbr.rel (%p450) target = $region64
      $region63: #{segformer_head_forward.1} parent=55 // pred_region
        %p453 = scmp.lt.s32.totalorder %s39, 1
        %s454 = scalar_select %p453, %s39, 1
        %s455 = smul.addr %s454, 2
        %s456 = smul.addr %s455, 8
        %s457 = scalar_lea.vmem %s3, %s456
      $region64: #{segformer_head_forward.1} parent=55 // pred_fallthru
        _
      // Predicated region
      $region65: #{segformer_head_forward.1} parent=55 // pred_check
        %p458 = pneg %p118
      $region66: #{segformer_head_forward.1} parent=55 // pred_check_branch
        %460 = sbr.rel (%p458) target = $region68
      $region67: #{segformer_head_forward.1} parent=55 // pred_region
        %p461 = scmp.lt.s32.totalorder %s39, 1
        %s462 = scalar_select %p461, %s39, 1
        %s463 = smul.addr %s462, 4
        %s464 = smul.addr %s463, 8
        %s465 = scalar_lea.vmem %s4, %s464
      $region68: #{segformer_head_forward.1} parent=55 // pred_fallthru
        _
      // Predicated region
      $region69: #{segformer_head_forward.1} parent=55 // pred_check
        %p466 = pneg %p144
      $region70: #{segformer_head_forward.1} parent=55 // pred_check_branch
        %468 = sbr.rel (%p466) target = $region72
      $region71: #{segformer_head_forward.1} parent=55 // pred_region
        %p469 = scmp.lt.s32.totalorder %s39, 1
        %s470 = scalar_select %p469, %s39, 1
        %s471 = smul.addr %s470, 8
        %s472 = smul.addr %s471, 8
        %s473 = scalar_lea.vmem %s5, %s472
      $region72: #{segformer_head_forward.1} parent=55 // pred_fallthru
        _
    $region56: #{segformer_head_forward.1} parent=5 // pred_fallthru
      _
    %p474 = scmp.le.s32.totalorder 1, %s32
    %p475 = scmp.lt.s32.totalorder %s32, 3
    %p476 = pnand %p474, %p475
    %p477 = pneg %p476
    // Predicated region
    $region73: #{segformer_head_forward.1} parent=5 // pred_check
      _
    $region74: #{segformer_head_forward.1} parent=5 // pred_check_branch
      %479 = sbr.rel (%p476) target = $region76
    $region75: #{segformer_head_forward.1} parent=5 // pred_region
      %s480 = ssub.s32 %s32, 1
      %s481 = smul.u32 2, %s42
      %p482 = scmp.lt.s32.totalorder %s41, 1
      %s483 = scalar_select %p482, %s41, 1
      %p484 = scmp.lt.s32.totalorder %s481, 1
      %s485 = scalar_select %p484, %s481, 1
      %s486 = smul.addr %s483, 2
      %s487 = sadd.s32 %s485, %s486
      %s488 = smul.addr %s487, 8
      %s489 = scalar_lea.vmem %s2, %s488
      %p490 = pneg %p72
      %p491 = pneg %p69
      %p492 = scmp.lt.s32.totalorder %s41, 1
      %s493 = scalar_select %p492, %s41, 1
      %s494 = smul.addr %s493, 2
      %s495 = smul.addr %s494, 8
      %s496 = scalar_lea.vmem %s3, %s495
      %p497 = pneg %p98
      %p498 = pneg %p95
      %p499 = scmp.lt.s32.totalorder %s41, 1
      %s500 = scalar_select %p499, %s41, 1
      %s501 = smul.addr %s500, 4
      %s502 = smul.addr %s501, 8
      %s503 = scalar_lea.vmem %s4, %s502
      %p504 = pneg %p124
      %p505 = pneg %p121
      %p506 = scmp.lt.s32.totalorder %s41, 1
      %s507 = scalar_select %p506, %s41, 1
      %s508 = smul.addr %s507, 8
      %s509 = smul.addr %s508, 8
      %s510 = scalar_lea.vmem %s5, %s509
      %p511 = pneg %p150
      %p512 = pneg %p147
      %p513 = pneg %p171
      %p514 = pneg %p168
      %p515 = pneg %p192
      %p516 = pneg %p189
      %p517 = pneg %p213
      %p518 = pneg %p210
      %p519 = pneg %p234
      %p520 = pneg %p231
      %p521 = pneg %p255
      %p522 = pneg %p252
      %p523 = pneg %p276
      %p524 = pneg %p273
      %p525 = pneg %p297
      %p526 = pneg %p294
      %p527 = pneg %p318
      %p528 = pneg %p315
      %p529 = pneg %p339
      %p530 = pneg %p336
      %p531 = pneg %p360
      %p532 = pneg %p357
      %p533 = pneg %p388
      %p534 = pneg %p385
      %s535 = smul.u32 2, %s42
      %p536 = scmp.lt.s32.totalorder %s41, 1
      %s537 = scalar_select %p536, %s41, 1
      %p538 = scmp.lt.s32.totalorder %s535, 1
      %s539 = scalar_select %p538, %s535, 1
      %s540 = smul.addr %s537, 2
      %s541 = sadd.s32 %s539, %s540
      %s542 = smul.addr %s541, 8
      %s543 = scalar_lea.vmem %s16, %s542
      %s544 = smul.u32 2, %s42
      %p545 = scmp.lt.s32.totalorder %s41, 1
      %s546 = scalar_select %p545, %s41, 1
      %p547 = scmp.lt.s32.totalorder %s544, 1
      %s548 = scalar_select %p547, %s544, 1
      %s549 = smul.addr %s546, 2
      %s550 = sadd.s32 %s548, %s549
      %s551 = smul.addr %s550, 8
      %s552 = scalar_lea.vmem %s2, %s551
      %s553 = smul.u32 2, %s42
      %p554 = scmp.lt.s32.totalorder %s41, 1
      %s555 = scalar_select %p554, %s41, 1
      %s556 = smul.addr %s555, 2
      %s557 = smul.addr %s556, 8
      %s558 = scalar_lea.vmem %s3, %s557
      %p559 = scmp.lt.s32.totalorder %s41, 1
      %s560 = scalar_select %p559, %s41, 1
      %s561 = smul.addr %s560, 4
      %s562 = smul.addr %s561, 8
      %s563 = scalar_lea.vmem %s4, %s562
      %p564 = scmp.lt.s32.totalorder %s41, 1
      %s565 = scalar_select %p564, %s41, 1
      %s566 = smul.addr %s565, 8
      %s567 = smul.addr %s566, 8
      %s568 = scalar_lea.vmem %s5, %s567
      %s569 = smul.u32 2, %s42
      %p570 = scmp.lt.s32.totalorder %s41, 1
      %s571 = scalar_select %p570, %s41, 1
      %p572 = scmp.lt.s32.totalorder %s569, 1
      %s573 = scalar_select %p572, %s569, 1
      %s574 = smul.addr %s571, 2
      %s575 = sadd.s32 %s573, %s574
      %s576 = smul.addr %s575, 8
      %s577 = scalar_lea.vmem %s16, %s576
      %s578 = smul.u32 2, %s42
      %p579 = scmp.eq.s32.totalorder %s42, 0
      // Predicated region
      $region77: #{segformer_head_forward.1} parent=75 // pred_check
        %p580 = pneg %p579
      $region78: #{segformer_head_forward.1} parent=75 // pred_check_branch
        %582 = sbr.rel (%p580) target = $region80
      $region79: #{segformer_head_forward.1} parent=75 // pred_region
        %v583 = vld [vmem:[%s10] sm:$0xff]
        %v584 = vld [vmem:[%s10 + $0x8] sm:$0xff]
        %v585 = vld [vmem:[%s10 + $0x10] sm:$0xff]
        %v586 = vld [vmem:[%s10 + $0x18] sm:$0xff]
        %v587 = vld [vmem:[%s558] sm:$0xff]
        %v588 = vld [vmem:[%s558 + $0x8] sm:$0xff]
        %vm589 = vcmask 130048
        %v591 = vsel %vm589, %v583, 0
        %v594 = vsel %vm589, %v584, 0
        %v597 = vsel %vm589, %v585, 0
        %v600 = vsel %vm589, %v586, 0
        %602 = vmatprep.subr.mxu0 0.0
        %603 = vmatpush1.msra.mxu0 0.0
        %604 = vmatprep.subr.mxu0 0.0
        %605 = vmatpush1.msra.mxu0 0.0
        %606 = vmatprep.subr.mxu0 0.0
        %607 = vmatpush1.msra.mxu0 0.0
        %608 = vmatprep.subr.mxu0 0.0
        %609 = vmatpush1.msra.mxu0 0.0
        %610 = vmatprep.subr.mxu0 0.0
        %611 = vmatpush1.msra.mxu0 0.0
        %612 = vmatprep.subr.mxu0 0.0
        %613 = vmatpush1.msra.mxu0 0.0
        %614 = vmatprep.subr.mxu0 0.0
        %615 = vmatpush1.msra.mxu0 0.0
        %616 = vmatprep.subr.mxu0 0.0
        %617 = vmatpush1.msra.mxu0 0.0
        %618 = vmatprep.subr.mxu0 0.0
        %619 = vmatpush1.msra.mxu0 0.0
        %620 = vmatprep.subr.mxu0 0.0
        %621 = vmatpush1.msra.mxu0 0.0
        %622 = vmatprep.subr.mxu0 0.0
        %623 = vmatpush1.msra.mxu0 0.0
        %624 = vmatprep.subr.mxu0 0.0
        %625 = vmatpush1.msra.mxu0 0.0
        %626 = vmatprep.subr.mxu0 0.0
        %627 = vmatpush1.msra.mxu0 0.0
        %628 = vmatprep.subr.mxu0 0.0
        %629 = vmatpush1.msra.mxu0 0.0
        %630 = vmatprep.subr.mxu0 0.0
        %631 = vmatpush1.msra.mxu0 %v588
        %632 = vmatprep.subr.mxu0 0.0
        %633 = vmatpush1.msra.mxu0 %v587
        %634 = vmatprep.subr.mxu0 0.0
        %635 = vmatpush2.msra.mxu0 0.0
        %636 = vmatprep.subr.mxu0 0.0
        %637 = vmatpush2.msra.mxu0 0.0
        %638 = vmatprep.subr.mxu0 0.0
        %639 = vmatpush2.msra.mxu0 0.0
        %640 = vmatprep.subr.mxu0 0.0
        %641 = vmatpush2.msra.mxu0 0.0
        %642 = vmatprep.subr.mxu0 0.0
        %643 = vmatpush2.msra.mxu0 0.0
        %644 = vmatprep.subr.mxu0 0.0
        %645 = vmatpush2.msra.mxu0 0.0
        %646 = vmatprep.subr.mxu0 0.0
        %647 = vmatpush2.msra.mxu0 0.0
        %648 = vmatprep.subr.mxu0 0.0
        %649 = vmatpush2.msra.mxu0 0.0
        %650 = vmatprep.subr.mxu0 0.0
        %651 = vmatpush2.msra.mxu0 0.0
        %652 = vmatprep.subr.mxu0 0.0
        %653 = vmatpush2.msra.mxu0 0.0
        %654 = vmatprep.subr.mxu0 0.0
        %655 = vmatpush2.msra.mxu0 0.0
        %656 = vmatprep.subr.mxu0 0.0
        %657 = vmatpush2.msra.mxu0 0.0
        %658 = vmatprep.subr.mxu0 0.0
        %659 = vmatpush2.msra.mxu0 0.0
        %660 = vmatprep.subr.mxu0 0.0
        %661 = vmatpush2.msra.mxu0 0.0
        %662 = vmatprep.subr.mxu0 0.0
        %663 = vmatpush2.msra.mxu0 0.0
        %664 = vmatprep.subr.mxu0 0.0
        %665 = vmatpush2.msra.mxu0 0.0
        %666 = vmatprep.mubr.f32.mxu0 0.0
        %667 = vmatmul.mubr.f32.gmra.mxu0 %v591
        %v668 = vpop.f32.mrf.mxu0
        %v669 = vadd.f32 0.0, %v668
        %v670 = vpop.f32.mrf.mxu0
        %671 = vmatprep.mubr.f32.mxu0 0.0
        %672 = vmatmul.mubr.f32.gmra.mxu0 %v594
        %v673 = vpop.f32.mrf.mxu0
        %v674 = vadd.f32 0.0, %v673
        %v675 = vpop.f32.mrf.mxu0
        %676 = vmatprep.mubr.f32.mxu0 0.0
        %677 = vmatmul.mubr.f32.gmra.mxu0 %v597
        %v678 = vpop.f32.mrf.mxu0
        %v679 = vadd.f32 0.0, %v678
        %v680 = vpop.f32.mrf.mxu0
        %681 = vmatprep.mubr.f32.mxu0 0.0
        %682 = vmatmul.mubr.f32.gmra.mxu0 %v600
        %v683 = vpop.f32.mrf.mxu0
        %v684 = vadd.f32 0.0, %v683
        %v685 = vpop.f32.mrf.mxu0
        %686 = vdwg.mxu0
        %v687 = vld [vmem:[%s6] sm:$0xff]
        %vm688 = vcmask 64512
        %v690 = vsel %vm688, %v669, 0
        %v693 = vsel %vm688, %v674, 0
        %v696 = vsel %vm688, %v679, 0
        %v699 = vsel %vm688, %v684, 0
        %701 = vmatprep.subr.mxu0 0.0
        %702 = vmatpush1.msra.mxu0 0.0
        %703 = vmatprep.subr.mxu0 0.0
        %704 = vmatpush1.msra.mxu0 0.0
        %705 = vmatprep.subr.mxu0 0.0
        %706 = vmatpush1.msra.mxu0 0.0
        %707 = vmatprep.subr.mxu0 0.0
        %708 = vmatpush1.msra.mxu0 0.0
        %709 = vmatprep.subr.mxu0 0.0
        %710 = vmatpush1.msra.mxu0 0.0
        %711 = vmatprep.subr.mxu0 0.0
        %712 = vmatpush1.msra.mxu0 0.0
        %713 = vmatprep.subr.mxu0 0.0
        %714 = vmatpush1.msra.mxu0 0.0
        %715 = vmatprep.subr.mxu0 0.0
        %716 = vmatpush1.msra.mxu0 0.0
        %717 = vmatprep.subr.mxu0 0.0
        %718 = vmatpush1.msra.mxu0 0.0
        %719 = vmatprep.subr.mxu0 0.0
        %720 = vmatpush1.msra.mxu0 0.0
        %721 = vmatprep.subr.mxu0 0.0
        %722 = vmatpush1.msra.mxu0 0.0
        %723 = vmatprep.subr.mxu0 0.0
        %724 = vmatpush1.msra.mxu0 0.0
        %725 = vmatprep.subr.mxu0 0.0
        %726 = vmatpush1.msra.mxu0 0.0
        %727 = vmatprep.subr.mxu0 0.0
        %728 = vmatpush1.msra.mxu0 0.0
        %729 = vmatprep.subr.mxu0 0.0
        %730 = vmatpush1.msra.mxu0 0.0
        %731 = vmatprep.subr.mxu0 0.0
        %732 = vmatpush1.msra.mxu0 %v687
        %733 = vmatprep.subr.mxu0 0.0
        %734 = vmatpush2.msra.mxu0 0.0
        %735 = vmatprep.subr.mxu0 0.0
        %736 = vmatpush2.msra.mxu0 0.0
        %737 = vmatprep.subr.mxu0 0.0
        %738 = vmatpush2.msra.mxu0 0.0
        %739 = vmatprep.subr.mxu0 0.0
        %740 = vmatpush2.msra.mxu0 0.0
        %741 = vmatprep.subr.mxu0 0.0
        %742 = vmatpush2.msra.mxu0 0.0
        %743 = vmatprep.subr.mxu0 0.0
        %744 = vmatpush2.msra.mxu0 0.0
        %745 = vmatprep.subr.mxu0 0.0
        %746 = vmatpush2.msra.mxu0 0.0
        %747 = vmatprep.subr.mxu0 0.0
        %748 = vmatpush2.msra.mxu0 0.0
        %749 = vmatprep.subr.mxu0 0.0
        %750 = vmatpush2.msra.mxu0 0.0
        %751 = vmatprep.subr.mxu0 0.0
        %752 = vmatpush2.msra.mxu0 0.0
        %753 = vmatprep.subr.mxu0 0.0
        %754 = vmatpush2.msra.mxu0 0.0
        %755 = vmatprep.subr.mxu0 0.0
        %756 = vmatpush2.msra.mxu0 0.0
        %757 = vmatprep.subr.mxu0 0.0
        %758 = vmatpush2.msra.mxu0 0.0
        %759 = vmatprep.subr.mxu0 0.0
        %760 = vmatpush2.msra.mxu0 0.0
        %761 = vmatprep.subr.mxu0 0.0
        %762 = vmatpush2.msra.mxu0 0.0
        %763 = vmatprep.subr.mxu0 0.0
        %764 = vmatpush2.msra.mxu0 0.0
        %765 = vmatprep.mubr.f32.mxu0 0.0
        %766 = vmatmul.mubr.f32.gmra.mxu0 %v690
        %v767 = vpop.f32.mrf.mxu0
        %v768 = vadd.f32 0.0, %v767
        %v769 = vpop.f32.mrf.mxu0
        %770 = vmatprep.mubr.f32.mxu0 0.0
        %771 = vmatmul.mubr.f32.gmra.mxu0 %v693
        %v772 = vpop.f32.mrf.mxu0
        %v773 = vadd.f32 0.0, %v772
        %v774 = vpop.f32.mrf.mxu0
        %775 = vmatprep.mubr.f32.mxu0 0.0
        %776 = vmatmul.mubr.f32.gmra.mxu0 %v696
        %v777 = vpop.f32.mrf.mxu0
        %v778 = vadd.f32 0.0, %v777
        %v779 = vpop.f32.mrf.mxu0
        %780 = vmatprep.mubr.f32.mxu0 0.0
        %781 = vmatmul.mubr.f32.gmra.mxu0 %v699
        %v782 = vpop.f32.mrf.mxu0
        %v783 = vadd.f32 0.0, %v782
        %v784 = vpop.f32.mrf.mxu0
        %785 = vdwg.mxu0
        %786 = vst.msk [vmem:[#allocation2] sm:$0xff] %vm589, %v768
        %787 = vst.msk [vmem:[#allocation2 + $0x8] sm:$0xff] %vm589, %v773
        %788 = vst.msk [vmem:[#allocation2 + $0x10] sm:$0xff] %vm589, %v778
        %789 = vst.msk [vmem:[#allocation2 + $0x18] sm:$0xff] %vm589, %v783
        %790 = vrot.lane.b32.xlu0 %v669, 120
        %v791 = vpop.permute.xlu0 %790
        %792 = vrot.lane.b32.xlu0 %v674, 120
        %v793 = vpop.permute.xlu0 %792
        %794 = vrot.lane.b32.xlu0 %v679, 120
        %v795 = vpop.permute.xlu0 %794
        %796 = vrot.lane.b32.xlu0 %v684, 120
        %v797 = vpop.permute.xlu0 %796
        %v798 = vsel %vm688, %v791, 0
        %v800 = vsel %vm688, %v793, 0
        %v802 = vsel %vm688, %v795, 0
        %v804 = vsel %vm688, %v797, 0
        %806 = vmatprep.subr.mxu0 0.0
        %807 = vmatpush1.msra.mxu0 0.0
        %808 = vmatprep.subr.mxu0 0.0
        %809 = vmatpush1.msra.mxu0 0.0
        %810 = vmatprep.subr.mxu0 0.0
        %811 = vmatpush1.msra.mxu0 0.0
        %812 = vmatprep.subr.mxu0 0.0
        %813 = vmatpush1.msra.mxu0 0.0
        %814 = vmatprep.subr.mxu0 0.0
        %815 = vmatpush1.msra.mxu0 0.0
        %816 = vmatprep.subr.mxu0 0.0
        %817 = vmatpush1.msra.mxu0 0.0
        %818 = vmatprep.subr.mxu0 0.0
        %819 = vmatpush1.msra.mxu0 0.0
        %820 = vmatprep.subr.mxu0 0.0
        %821 = vmatpush1.msra.mxu0 0.0
        %822 = vmatprep.subr.mxu0 0.0
        %823 = vmatpush1.msra.mxu0 0.0
        %824 = vmatprep.subr.mxu0 0.0
        %825 = vmatpush1.msra.mxu0 0.0
        %826 = vmatprep.subr.mxu0 0.0
        %827 = vmatpush1.msra.mxu0 0.0
        %828 = vmatprep.subr.mxu0 0.0
        %829 = vmatpush1.msra.mxu0 0.0
        %830 = vmatprep.subr.mxu0 0.0
        %831 = vmatpush1.msra.mxu0 0.0
        %832 = vmatprep.subr.mxu0 0.0
        %833 = vmatpush1.msra.mxu0 0.0
        %834 = vmatprep.subr.mxu0 0.0
        %835 = vmatpush1.msra.mxu0 0.0
        %836 = vmatprep.subr.mxu0 0.0
        %837 = vmatpush1.msra.mxu0 %v687
        %838 = vmatprep.subr.mxu0 0.0
        %839 = vmatpush2.msra.mxu0 0.0
        %840 = vmatprep.subr.mxu0 0.0
        %841 = vmatpush2.msra.mxu0 0.0
        %842 = vmatprep.subr.mxu0 0.0
        %843 = vmatpush2.msra.mxu0 0.0
        %844 = vmatprep.subr.mxu0 0.0
        %845 = vmatpush2.msra.mxu0 0.0
        %846 = vmatprep.subr.mxu0 0.0
        %847 = vmatpush2.msra.mxu0 0.0
        %848 = vmatprep.subr.mxu0 0.0
        %849 = vmatpush2.msra.mxu0 0.0
        %850 = vmatprep.subr.mxu0 0.0
        %851 = vmatpush2.msra.mxu0 0.0
        %852 = vmatprep.subr.mxu0 0.0
        %853 = vmatpush2.msra.mxu0 0.0
        %854 = vmatprep.subr.mxu0 0.0
        %855 = vmatpush2.msra.mxu0 0.0
        %856 = vmatprep.subr.mxu0 0.0
        %857 = vmatpush2.msra.mxu0 0.0
        %858 = vmatprep.subr.mxu0 0.0
        %859 = vmatpush2.msra.mxu0 0.0
        %860 = vmatprep.subr.mxu0 0.0
        %861 = vmatpush2.msra.mxu0 0.0
        %862 = vmatprep.subr.mxu0 0.0
        %863 = vmatpush2.msra.mxu0 0.0
        %864 = vmatprep.subr.mxu0 0.0
        %865 = vmatpush2.msra.mxu0 0.0
        %866 = vmatprep.subr.mxu0 0.0
        %867 = vmatpush2.msra.mxu0 0.0
        %868 = vmatprep.subr.mxu0 0.0
        %869 = vmatpush2.msra.mxu0 0.0
        %870 = vmatprep.mubr.f32.mxu0 0.0
        %871 = vmatmul.mubr.f32.gmra.mxu0 %v798
        %v872 = vpop.f32.mrf.mxu0
        %v873 = vadd.f32 0.0, %v872
        %v874 = vpop.f32.mrf.mxu0
        %875 = vmatprep.mubr.f32.mxu0 0.0
        %876 = vmatmul.mubr.f32.gmra.mxu0 %v800
        %v877 = vpop.f32.mrf.mxu0
        %v878 = vadd.f32 0.0, %v877
        %v879 = vpop.f32.mrf.mxu0
        %880 = vmatprep.mubr.f32.mxu0 0.0
        %881 = vmatmul.mubr.f32.gmra.mxu0 %v802
        %v882 = vpop.f32.mrf.mxu0
        %v883 = vadd.f32 0.0, %v882
        %v884 = vpop.f32.mrf.mxu0
        %885 = vmatprep.mubr.f32.mxu0 0.0
        %886 = vmatmul.mubr.f32.gmra.mxu0 %v804
        %v887 = vpop.f32.mrf.mxu0
        %v888 = vadd.f32 0.0, %v887
        %v889 = vpop.f32.mrf.mxu0
        %890 = vdwg.mxu0
        %s891 = scalar_lea.vmem [#allocation2], 32
        %892 = vst.msk [vmem:[%s891] sm:$0xff] %vm589, %v873
        %893 = vst.msk [vmem:[%s891 + $0x8] sm:$0xff] %vm589, %v878
        %894 = vst.msk [vmem:[%s891 + $0x10] sm:$0xff] %vm589, %v883
        %895 = vst.msk [vmem:[%s891 + $0x18] sm:$0xff] %vm589, %v888
        %896 = vrot.lane.b32.xlu0 %v669, 112
        %v897 = vpop.permute.xlu0 %896
        %898 = vrot.lane.b32.xlu0 %v674, 112
        %v899 = vpop.permute.xlu0 %898
        %900 = vrot.lane.b32.xlu0 %v679, 112
        %v901 = vpop.permute.xlu0 %900
        %902 = vrot.lane.b32.xlu0 %v684, 112
        %v903 = vpop.permute.xlu0 %902
        %v904 = vsel %vm688, %v897, 0
        %v906 = vsel %vm688, %v899, 0
        %v908 = vsel %vm688, %v901, 0
        %v910 = vsel %vm688, %v903, 0
        %912 = vmatprep.subr.mxu0 0.0
        %913 = vmatpush1.msra.mxu0 0.0
        %914 = vmatprep.subr.mxu0 0.0
        %915 = vmatpush1.msra.mxu0 0.0
        %916 = vmatprep.subr.mxu0 0.0
        %917 = vmatpush1.msra.mxu0 0.0
        %918 = vmatprep.subr.mxu0 0.0
        %919 = vmatpush1.msra.mxu0 0.0
        %920 = vmatprep.subr.mxu0 0.0
        %921 = vmatpush1.msra.mxu0 0.0
        %922 = vmatprep.subr.mxu0 0.0
        %923 = vmatpush1.msra.mxu0 0.0
        %924 = vmatprep.subr.mxu0 0.0
        %925 = vmatpush1.msra.mxu0 0.0
        %926 = vmatprep.subr.mxu0 0.0
        %927 = vmatpush1.msra.mxu0 0.0
        %928 = vmatprep.subr.mxu0 0.0
        %929 = vmatpush1.msra.mxu0 0.0
        %930 = vmatprep.subr.mxu0 0.0
        %931 = vmatpush1.msra.mxu0 0.0
        %932 = vmatprep.subr.mxu0 0.0
        %933 = vmatpush1.msra.mxu0 0.0
        %934 = vmatprep.subr.mxu0 0.0
        %935 = vmatpush1.msra.mxu0 0.0
        %936 = vmatprep.subr.mxu0 0.0
        %937 = vmatpush1.msra.mxu0 0.0
        %938 = vmatprep.subr.mxu0 0.0
        %939 = vmatpush1.msra.mxu0 0.0
        %940 = vmatprep.subr.mxu0 0.0
        %941 = vmatpush1.msra.mxu0 0.0
        %942 = vmatprep.subr.mxu0 0.0
        %943 = vmatpush1.msra.mxu0 %v687
        %944 = vmatprep.subr.mxu0 0.0
        %945 = vmatpush2.msra.mxu0 0.0
        %946 = vmatprep.subr.mxu0 0.0
        %947 = vmatpush2.msra.mxu0 0.0
        %948 = vmatprep.subr.mxu0 0.0
        %949 = vmatpush2.msra.mxu0 0.0
        %950 = vmatprep.subr.mxu0 0.0
        %951 = vmatpush2.msra.mxu0 0.0
        %952 = vmatprep.subr.mxu0 0.0
        %953 = vmatpush2.msra.mxu0 0.0
        %954 = vmatprep.subr.mxu0 0.0
        %955 = vmatpush2.msra.mxu0 0.0
        %956 = vmatprep.subr.mxu0 0.0
        %957 = vmatpush2.msra.mxu0 0.0
        %958 = vmatprep.subr.mxu0 0.0
        %959 = vmatpush2.msra.mxu0 0.0
        %960 = vmatprep.subr.mxu0 0.0
        %961 = vmatpush2.msra.mxu0 0.0
        %962 = vmatprep.subr.mxu0 0.0
        %963 = vmatpush2.msra.mxu0 0.0
        %964 = vmatprep.subr.mxu0 0.0
        %965 = vmatpush2.msra.mxu0 0.0
        %966 = vmatprep.subr.mxu0 0.0
        %967 = vmatpush2.msra.mxu0 0.0
        %968 = vmatprep.subr.mxu0 0.0
        %969 = vmatpush2.msra.mxu0 0.0
        %970 = vmatprep.subr.mxu0 0.0
        %971 = vmatpush2.msra.mxu0 0.0
        %972 = vmatprep.subr.mxu0 0.0
        %973 = vmatpush2.msra.mxu0 0.0
        %974 = vmatprep.subr.mxu0 0.0
        %975 = vmatpush2.msra.mxu0 0.0
        %976 = vmatprep.mubr.f32.mxu0 0.0
        %977 = vmatmul.mubr.f32.gmra.mxu0 %v904
        %v978 = vpop.f32.mrf.mxu0
        %v979 = vadd.f32 0.0, %v978
        %v980 = vpop.f32.mrf.mxu0
        %981 = vmatprep.mubr.f32.mxu0 0.0
        %982 = vmatmul.mubr.f32.gmra.mxu0 %v906
        %v983 = vpop.f32.mrf.mxu0
        %v984 = vadd.f32 0.0, %v983
        %v985 = vpop.f32.mrf.mxu0
        %986 = vmatprep.mubr.f32.mxu0 0.0
        %987 = vmatmul.mubr.f32.gmra.mxu0 %v908
        %v988 = vpop.f32.mrf.mxu0
        %v989 = vadd.f32 0.0, %v988
        %v990 = vpop.f32.mrf.mxu0
        %991 = vmatprep.mubr.f32.mxu0 0.0
        %992 = vmatmul.mubr.f32.gmra.mxu0 %v910
        %v993 = vpop.f32.mrf.mxu0
        %v994 = vadd.f32 0.0, %v993
        %v995 = vpop.f32.mrf.mxu0
        %996 = vdwg.mxu0
        %s997 = scalar_lea.vmem [#allocation2], 64
        %998 = vst.msk [vmem:[%s997] sm:$0xff] %vm589, %v979
        %999 = vst.msk [vmem:[%s997 + $0x8] sm:$0xff] %vm589, %v984
        %1000 = vst.msk [vmem:[%s997 + $0x10] sm:$0xff] %vm589, %v989
        %1001 = vst.msk [vmem:[%s997 + $0x18] sm:$0xff] %vm589, %v994
        %1002 = vrot.lane.b32.xlu0 %v669, 104
        %v1003 = vpop.permute.xlu0 %1002
        %1004 = vrot.lane.b32.xlu0 %v674, 104
        %v1005 = vpop.permute.xlu0 %1004
        %1006 = vrot.lane.b32.xlu0 %v679, 104
        %v1007 = vpop.permute.xlu0 %1006
        %1008 = vrot.lane.b32.xlu0 %v684, 104
        %v1009 = vpop.permute.xlu0 %1008
        %v1010 = vsel %vm688, %v1003, 0
        %v1012 = vsel %vm688, %v1005, 0
        %v1014 = vsel %vm688, %v1007, 0
        %v1016 = vsel %vm688, %v1009, 0
        %1018 = vmatprep.subr.mxu0 0.0
        %1019 = vmatpush1.msra.mxu0 0.0
        %1020 = vmatprep.subr.mxu0 0.0
        %1021 = vmatpush1.msra.mxu0 0.0
        %1022 = vmatprep.subr.mxu0 0.0
        %1023 = vmatpush1.msra.mxu0 0.0
        %1024 = vmatprep.subr.mxu0 0.0
        %1025 = vmatpush1.msra.mxu0 0.0
        %1026 = vmatprep.subr.mxu0 0.0
        %1027 = vmatpush1.msra.mxu0 0.0
        %1028 = vmatprep.subr.mxu0 0.0
        %1029 = vmatpush1.msra.mxu0 0.0
        %1030 = vmatprep.subr.mxu0 0.0
        %1031 = vmatpush1.msra.mxu0 0.0
        %1032 = vmatprep.subr.mxu0 0.0
        %1033 = vmatpush1.msra.mxu0 0.0
        %1034 = vmatprep.subr.mxu0 0.0
        %1035 = vmatpush1.msra.mxu0 0.0
        %1036 = vmatprep.subr.mxu0 0.0
        %1037 = vmatpush1.msra.mxu0 0.0
        %1038 = vmatprep.subr.mxu0 0.0
        %1039 = vmatpush1.msra.mxu0 0.0
        %1040 = vmatprep.subr.mxu0 0.0
        %1041 = vmatpush1.msra.mxu0 0.0
        %1042 = vmatprep.subr.mxu0 0.0
        %1043 = vmatpush1.msra.mxu0 0.0
        %1044 = vmatprep.subr.mxu0 0.0
        %1045 = vmatpush1.msra.mxu0 0.0
        %1046 = vmatprep.subr.mxu0 0.0
        %1047 = vmatpush1.msra.mxu0 0.0
        %1048 = vmatprep.subr.mxu0 0.0
        %1049 = vmatpush1.msra.mxu0 %v687
        %1050 = vmatprep.subr.mxu0 0.0
        %1051 = vmatpush2.msra.mxu0 0.0
        %1052 = vmatprep.subr.mxu0 0.0
        %1053 = vmatpush2.msra.mxu0 0.0
        %1054 = vmatprep.subr.mxu0 0.0
        %1055 = vmatpush2.msra.mxu0 0.0
        %1056 = vmatprep.subr.mxu0 0.0
        %1057 = vmatpush2.msra.mxu0 0.0
        %1058 = vmatprep.subr.mxu0 0.0
        %1059 = vmatpush2.msra.mxu0 0.0
        %1060 = vmatprep.subr.mxu0 0.0
        %1061 = vmatpush2.msra.mxu0 0.0
        %1062 = vmatprep.subr.mxu0 0.0
        %1063 = vmatpush2.msra.mxu0 0.0
        %1064 = vmatprep.subr.mxu0 0.0
        %1065 = vmatpush2.msra.mxu0 0.0
        %1066 = vmatprep.subr.mxu0 0.0
        %1067 = vmatpush2.msra.mxu0 0.0
        %1068 = vmatprep.subr.mxu0 0.0
        %1069 = vmatpush2.msra.mxu0 0.0
        %1070 = vmatprep.subr.mxu0 0.0
        %1071 = vmatpush2.msra.mxu0 0.0
        %1072 = vmatprep.subr.mxu0 0.0
        %1073 = vmatpush2.msra.mxu0 0.0
        %1074 = vmatprep.subr.mxu0 0.0
        %1075 = vmatpush2.msra.mxu0 0.0
        %1076 = vmatprep.subr.mxu0 0.0
        %1077 = vmatpush2.msra.mxu0 0.0
        %1078 = vmatprep.subr.mxu0 0.0
        %1079 = vmatpush2.msra.mxu0 0.0
        %1080 = vmatprep.subr.mxu0 0.0
        %1081 = vmatpush2.msra.mxu0 0.0
        %1082 = vmatprep.mubr.f32.mxu0 0.0
        %1083 = vmatmul.mubr.f32.gmra.mxu0 %v1010
        %v1084 = vpop.f32.mrf.mxu0
        %v1085 = vadd.f32 0.0, %v1084
        %v1086 = vpop.f32.mrf.mxu0
        %1087 = vmatprep.mubr.f32.mxu0 0.0
        %1088 = vmatmul.mubr.f32.gmra.mxu0 %v1012
        %v1089 = vpop.f32.mrf.mxu0
        %v1090 = vadd.f32 0.0, %v1089
        %v1091 = vpop.f32.mrf.mxu0
        %1092 = vmatprep.mubr.f32.mxu0 0.0
        %1093 = vmatmul.mubr.f32.gmra.mxu0 %v1014
        %v1094 = vpop.f32.mrf.mxu0
        %v1095 = vadd.f32 0.0, %v1094
        %v1096 = vpop.f32.mrf.mxu0
        %1097 = vmatprep.mubr.f32.mxu0 0.0
        %1098 = vmatmul.mubr.f32.gmra.mxu0 %v1016
        %v1099 = vpop.f32.mrf.mxu0
        %v1100 = vadd.f32 0.0, %v1099
        %v1101 = vpop.f32.mrf.mxu0
        %1102 = vdwg.mxu0
        %s1103 = scalar_lea.vmem [#allocation2], 96
        %1104 = vst.msk [vmem:[%s1103] sm:$0xff] %vm589, %v1085
        %1105 = vst.msk [vmem:[%s1103 + $0x8] sm:$0xff] %vm589, %v1090
        %1106 = vst.msk [vmem:[%s1103 + $0x10] sm:$0xff] %vm589, %v1095
        %1107 = vst.msk [vmem:[%s1103 + $0x18] sm:$0xff] %vm589, %v1100
        %1108 = vrot.lane.b32.xlu0 %v669, 96
        %v1109 = vpop.permute.xlu0 %1108
        %1110 = vrot.lane.b32.xlu0 %v674, 96
        %v1111 = vpop.permute.xlu0 %1110
        %1112 = vrot.lane.b32.xlu0 %v679, 96
        %v1113 = vpop.permute.xlu0 %1112
        %1114 = vrot.lane.b32.xlu0 %v684, 96
        %v1115 = vpop.permute.xlu0 %1114
        %v1116 = vsel %vm688, %v1109, 0
        %v1118 = vsel %vm688, %v1111, 0
        %v1120 = vsel %vm688, %v1113, 0
        %v1122 = vsel %vm688, %v1115, 0
        %1124 = vmatprep.subr.mxu0 0.0
        %1125 = vmatpush1.msra.mxu0 0.0
        %1126 = vmatprep.subr.mxu0 0.0
        %1127 = vmatpush1.msra.mxu0 0.0
        %1128 = vmatprep.subr.mxu0 0.0
        %1129 = vmatpush1.msra.mxu0 0.0
        %1130 = vmatprep.subr.mxu0 0.0
        %1131 = vmatpush1.msra.mxu0 0.0
        %1132 = vmatprep.subr.mxu0 0.0
        %1133 = vmatpush1.msra.mxu0 0.0
        %1134 = vmatprep.subr.mxu0 0.0
        %1135 = vmatpush1.msra.mxu0 0.0
        %1136 = vmatprep.subr.mxu0 0.0
        %1137 = vmatpush1.msra.mxu0 0.0
        %1138 = vmatprep.subr.mxu0 0.0
        %1139 = vmatpush1.msra.mxu0 0.0
        %1140 = vmatprep.subr.mxu0 0.0
        %1141 = vmatpush1.msra.mxu0 0.0
        %1142 = vmatprep.subr.mxu0 0.0
        %1143 = vmatpush1.msra.mxu0 0.0
        %1144 = vmatprep.subr.mxu0 0.0
        %1145 = vmatpush1.msra.mxu0 0.0
        %1146 = vmatprep.subr.mxu0 0.0
        %1147 = vmatpush1.msra.mxu0 0.0
        %1148 = vmatprep.subr.mxu0 0.0
        %1149 = vmatpush1.msra.mxu0 0.0
        %1150 = vmatprep.subr.mxu0 0.0
        %1151 = vmatpush1.msra.mxu0 0.0
        %1152 = vmatprep.subr.mxu0 0.0
        %1153 = vmatpush1.msra.mxu0 0.0
        %1154 = vmatprep.subr.mxu0 0.0
        %1155 = vmatpush1.msra.mxu0 %v687
        %1156 = vmatprep.subr.mxu0 0.0
        %1157 = vmatpush2.msra.mxu0 0.0
        %1158 = vmatprep.subr.mxu0 0.0
        %1159 = vmatpush2.msra.mxu0 0.0
        %1160 = vmatprep.subr.mxu0 0.0
        %1161 = vmatpush2.msra.mxu0 0.0
        %1162 = vmatprep.subr.mxu0 0.0
        %1163 = vmatpush2.msra.mxu0 0.0
        %1164 = vmatprep.subr.mxu0 0.0
        %1165 = vmatpush2.msra.mxu0 0.0
        %1166 = vmatprep.subr.mxu0 0.0
        %1167 = vmatpush2.msra.mxu0 0.0
        %1168 = vmatprep.subr.mxu0 0.0
        %1169 = vmatpush2.msra.mxu0 0.0
        %1170 = vmatprep.subr.mxu0 0.0
        %1171 = vmatpush2.msra.mxu0 0.0
        %1172 = vmatprep.subr.mxu0 0.0
        %1173 = vmatpush2.msra.mxu0 0.0
        %1174 = vmatprep.subr.mxu0 0.0
        %1175 = vmatpush2.msra.mxu0 0.0
        %1176 = vmatprep.subr.mxu0 0.0
        %1177 = vmatpush2.msra.mxu0 0.0
        %1178 = vmatprep.subr.mxu0 0.0
        %1179 = vmatpush2.msra.mxu0 0.0
        %1180 = vmatprep.subr.mxu0 0.0
        %1181 = vmatpush2.msra.mxu0 0.0
        %1182 = vmatprep.subr.mxu0 0.0
        %1183 = vmatpush2.msra.mxu0 0.0
        %1184 = vmatprep.subr.mxu0 0.0
        %1185 = vmatpush2.msra.mxu0 0.0
        %1186 = vmatprep.subr.mxu0 0.0
        %1187 = vmatpush2.msra.mxu0 0.0
        %1188 = vmatprep.mubr.f32.mxu0 0.0
        %1189 = vmatmul.mubr.f32.gmra.mxu0 %v1116
        %v1190 = vpop.f32.mrf.mxu0
        %v1191 = vadd.f32 0.0, %v1190
        %v1192 = vpop.f32.mrf.mxu0
        %1193 = vmatprep.mubr.f32.mxu0 0.0
        %1194 = vmatmul.mubr.f32.gmra.mxu0 %v1118
        %v1195 = vpop.f32.mrf.mxu0
        %v1196 = vadd.f32 0.0, %v1195
        %v1197 = vpop.f32.mrf.mxu0
        %1198 = vmatprep.mubr.f32.mxu0 0.0
        %1199 = vmatmul.mubr.f32.gmra.mxu0 %v1120
        %v1200 = vpop.f32.mrf.mxu0
        %v1201 = vadd.f32 0.0, %v1200
        %v1202 = vpop.f32.mrf.mxu0
        %1203 = vmatprep.mubr.f32.mxu0 0.0
        %1204 = vmatmul.mubr.f32.gmra.mxu0 %v1122
        %v1205 = vpop.f32.mrf.mxu0
        %v1206 = vadd.f32 0.0, %v1205
        %v1207 = vpop.f32.mrf.mxu0
        %1208 = vdwg.mxu0
        %s1209 = scalar_lea.vmem [#allocation2], 128
        %1210 = vst.msk [vmem:[%s1209] sm:$0xff] %vm589, %v1191
        %1211 = vst.msk [vmem:[%s1209 + $0x8] sm:$0xff] %vm589, %v1196
        %1212 = vst.msk [vmem:[%s1209 + $0x10] sm:$0xff] %vm589, %v1201
        %1213 = vst.msk [vmem:[%s1209 + $0x18] sm:$0xff] %vm589, %v1206
        %1214 = vrot.lane.b32.xlu0 %v669, 88
        %v1215 = vpop.permute.xlu0 %1214
        %1216 = vrot.lane.b32.xlu0 %v674, 88
        %v1217 = vpop.permute.xlu0 %1216
        %1218 = vrot.lane.b32.xlu0 %v679, 88
        %v1219 = vpop.permute.xlu0 %1218
        %1220 = vrot.lane.b32.xlu0 %v684, 88
        %v1221 = vpop.permute.xlu0 %1220
        %v1222 = vsel %vm688, %v1215, 0
        %v1224 = vsel %vm688, %v1217, 0
        %v1226 = vsel %vm688, %v1219, 0
        %v1228 = vsel %vm688, %v1221, 0
        %1230 = vmatprep.subr.mxu0 0.0
        %1231 = vmatpush1.msra.mxu0 0.0
        %1232 = vmatprep.subr.mxu0 0.0
        %1233 = vmatpush1.msra.mxu0 0.0
        %1234 = vmatprep.subr.mxu0 0.0
        %1235 = vmatpush1.msra.mxu0 0.0
        %1236 = vmatprep.subr.mxu0 0.0
        %1237 = vmatpush1.msra.mxu0 0.0
        %1238 = vmatprep.subr.mxu0 0.0
        %1239 = vmatpush1.msra.mxu0 0.0
        %1240 = vmatprep.subr.mxu0 0.0
        %1241 = vmatpush1.msra.mxu0 0.0
        %1242 = vmatprep.subr.mxu0 0.0
        %1243 = vmatpush1.msra.mxu0 0.0
        %1244 = vmatprep.subr.mxu0 0.0
        %1245 = vmatpush1.msra.mxu0 0.0
        %1246 = vmatprep.subr.mxu0 0.0
        %1247 = vmatpush1.msra.mxu0 0.0
        %1248 = vmatprep.subr.mxu0 0.0
        %1249 = vmatpush1.msra.mxu0 0.0
        %1250 = vmatprep.subr.mxu0 0.0
        %1251 = vmatpush1.msra.mxu0 0.0
        %1252 = vmatprep.subr.mxu0 0.0
        %1253 = vmatpush1.msra.mxu0 0.0
        %1254 = vmatprep.subr.mxu0 0.0
        %1255 = vmatpush1.msra.mxu0 0.0
        %1256 = vmatprep.subr.mxu0 0.0
        %1257 = vmatpush1.msra.mxu0 0.0
        %1258 = vmatprep.subr.mxu0 0.0
        %1259 = vmatpush1.msra.mxu0 0.0
        %1260 = vmatprep.subr.mxu0 0.0
        %1261 = vmatpush1.msra.mxu0 %v687
        %1262 = vmatprep.subr.mxu0 0.0
        %1263 = vmatpush2.msra.mxu0 0.0
        %1264 = vmatprep.subr.mxu0 0.0
        %1265 = vmatpush2.msra.mxu0 0.0
        %1266 = vmatprep.subr.mxu0 0.0
        %1267 = vmatpush2.msra.mxu0 0.0
        %1268 = vmatprep.subr.mxu0 0.0
        %1269 = vmatpush2.msra.mxu0 0.0
        %1270 = vmatprep.subr.mxu0 0.0
        %1271 = vmatpush2.msra.mxu0 0.0
        %1272 = vmatprep.subr.mxu0 0.0
        %1273 = vmatpush2.msra.mxu0 0.0
        %1274 = vmatprep.subr.mxu0 0.0
        %1275 = vmatpush2.msra.mxu0 0.0
        %1276 = vmatprep.subr.mxu0 0.0
        %1277 = vmatpush2.msra.mxu0 0.0
        %1278 = vmatprep.subr.mxu0 0.0
        %1279 = vmatpush2.msra.mxu0 0.0
        %1280 = vmatprep.subr.mxu0 0.0
        %1281 = vmatpush2.msra.mxu0 0.0
        %1282 = vmatprep.subr.mxu0 0.0
        %1283 = vmatpush2.msra.mxu0 0.0
        %1284 = vmatprep.subr.mxu0 0.0
        %1285 = vmatpush2.msra.mxu0 0.0
        %1286 = vmatprep.subr.mxu0 0.0
        %1287 = vmatpush2.msra.mxu0 0.0
        %1288 = vmatprep.subr.mxu0 0.0
        %1289 = vmatpush2.msra.mxu0 0.0
        %1290 = vmatprep.subr.mxu0 0.0
        %1291 = vmatpush2.msra.mxu0 0.0
        %1292 = vmatprep.subr.mxu0 0.0
        %1293 = vmatpush2.msra.mxu0 0.0
        %1294 = vmatprep.mubr.f32.mxu0 0.0
        %1295 = vmatmul.mubr.f32.gmra.mxu0 %v1222
        %v1296 = vpop.f32.mrf.mxu0
        %v1297 = vadd.f32 0.0, %v1296
        %v1298 = vpop.f32.mrf.mxu0
        %1299 = vmatprep.mubr.f32.mxu0 0.0
        %1300 = vmatmul.mubr.f32.gmra.mxu0 %v1224
        %v1301 = vpop.f32.mrf.mxu0
        %v1302 = vadd.f32 0.0, %v1301
        %v1303 = vpop.f32.mrf.mxu0
        %1304 = vmatprep.mubr.f32.mxu0 0.0
        %1305 = vmatmul.mubr.f32.gmra.mxu0 %v1226
        %v1306 = vpop.f32.mrf.mxu0
        %v1307 = vadd.f32 0.0, %v1306
        %v1308 = vpop.f32.mrf.mxu0
        %1309 = vmatprep.mubr.f32.mxu0 0.0
        %1310 = vmatmul.mubr.f32.gmra.mxu0 %v1228
        %v1311 = vpop.f32.mrf.mxu0
        %v1312 = vadd.f32 0.0, %v1311
        %v1313 = vpop.f32.mrf.mxu0
        %1314 = vdwg.mxu0
        %s1315 = scalar_lea.vmem [#allocation2], 160
        %1316 = vst.msk [vmem:[%s1315] sm:$0xff] %vm589, %v1297
        %1317 = vst.msk [vmem:[%s1315 + $0x8] sm:$0xff] %vm589, %v1302
        %1318 = vst.msk [vmem:[%s1315 + $0x10] sm:$0xff] %vm589, %v1307
        %1319 = vst.msk [vmem:[%s1315 + $0x18] sm:$0xff] %vm589, %v1312
        %1320 = vrot.lane.b32.xlu0 %v669, 80
        %v1321 = vpop.permute.xlu0 %1320
        %1322 = vrot.lane.b32.xlu0 %v674, 80
        %v1323 = vpop.permute.xlu0 %1322
        %1324 = vrot.lane.b32.xlu0 %v679, 80
        %v1325 = vpop.permute.xlu0 %1324
        %1326 = vrot.lane.b32.xlu0 %v684, 80
        %v1327 = vpop.permute.xlu0 %1326
        %v1328 = vsel %vm688, %v1321, 0
        %v1330 = vsel %vm688, %v1323, 0
        %v1332 = vsel %vm688, %v1325, 0
        %v1334 = vsel %vm688, %v1327, 0
        %1336 = vmatprep.subr.mxu0 0.0
        %1337 = vmatpush1.msra.mxu0 0.0
        %1338 = vmatprep.subr.mxu0 0.0
        %1339 = vmatpush1.msra.mxu0 0.0
        %1340 = vmatprep.subr.mxu0 0.0
        %1341 = vmatpush1.msra.mxu0 0.0
        %1342 = vmatprep.subr.mxu0 0.0
        %1343 = vmatpush1.msra.mxu0 0.0
        %1344 = vmatprep.subr.mxu0 0.0
        %1345 = vmatpush1.msra.mxu0 0.0
        %1346 = vmatprep.subr.mxu0 0.0
        %1347 = vmatpush1.msra.mxu0 0.0
        %1348 = vmatprep.subr.mxu0 0.0
        %1349 = vmatpush1.msra.mxu0 0.0
        %1350 = vmatprep.subr.mxu0 0.0
        %1351 = vmatpush1.msra.mxu0 0.0
        %1352 = vmatprep.subr.mxu0 0.0
        %1353 = vmatpush1.msra.mxu0 0.0
        %1354 = vmatprep.subr.mxu0 0.0
        %1355 = vmatpush1.msra.mxu0 0.0
        %1356 = vmatprep.subr.mxu0 0.0
        %1357 = vmatpush1.msra.mxu0 0.0
        %1358 = vmatprep.subr.mxu0 0.0
        %1359 = vmatpush1.msra.mxu0 0.0
        %1360 = vmatprep.subr.mxu0 0.0
        %1361 = vmatpush1.msra.mxu0 0.0
        %1362 = vmatprep.subr.mxu0 0.0
        %1363 = vmatpush1.msra.mxu0 0.0
        %1364 = vmatprep.subr.mxu0 0.0
        %1365 = vmatpush1.msra.mxu0 0.0
        %1366 = vmatprep.subr.mxu0 0.0
        %1367 = vmatpush1.msra.mxu0 %v687
        %1368 = vmatprep.subr.mxu0 0.0
        %1369 = vmatpush2.msra.mxu0 0.0
        %1370 = vmatprep.subr.mxu0 0.0
        %1371 = vmatpush2.msra.mxu0 0.0
        %1372 = vmatprep.subr.mxu0 0.0
        %1373 = vmatpush2.msra.mxu0 0.0
        %1374 = vmatprep.subr.mxu0 0.0
        %1375 = vmatpush2.msra.mxu0 0.0
        %1376 = vmatprep.subr.mxu0 0.0
        %1377 = vmatpush2.msra.mxu0 0.0
        %1378 = vmatprep.subr.mxu0 0.0
        %1379 = vmatpush2.msra.mxu0 0.0
        %1380 = vmatprep.subr.mxu0 0.0
        %1381 = vmatpush2.msra.mxu0 0.0
        %1382 = vmatprep.subr.mxu0 0.0
        %1383 = vmatpush2.msra.mxu0 0.0
        %1384 = vmatprep.subr.mxu0 0.0
        %1385 = vmatpush2.msra.mxu0 0.0
        %1386 = vmatprep.subr.mxu0 0.0
        %1387 = vmatpush2.msra.mxu0 0.0
        %1388 = vmatprep.subr.mxu0 0.0
        %1389 = vmatpush2.msra.mxu0 0.0
        %1390 = vmatprep.subr.mxu0 0.0
        %1391 = vmatpush2.msra.mxu0 0.0
        %1392 = vmatprep.subr.mxu0 0.0
        %1393 = vmatpush2.msra.mxu0 0.0
        %1394 = vmatprep.subr.mxu0 0.0
        %1395 = vmatpush2.msra.mxu0 0.0
        %1396 = vmatprep.subr.mxu0 0.0
        %1397 = vmatpush2.msra.mxu0 0.0
        %1398 = vmatprep.subr.mxu0 0.0
        %1399 = vmatpush2.msra.mxu0 0.0
        %1400 = vmatprep.mubr.f32.mxu0 0.0
        %1401 = vmatmul.mubr.f32.gmra.mxu0 %v1328
        %v1402 = vpop.f32.mrf.mxu0
        %v1403 = vadd.f32 0.0, %v1402
        %v1404 = vpop.f32.mrf.mxu0
        %1405 = vmatprep.mubr.f32.mxu0 0.0
        %1406 = vmatmul.mubr.f32.gmra.mxu0 %v1330
        %v1407 = vpop.f32.mrf.mxu0
        %v1408 = vadd.f32 0.0, %v1407
        %v1409 = vpop.f32.mrf.mxu0
        %1410 = vmatprep.mubr.f32.mxu0 0.0
        %1411 = vmatmul.mubr.f32.gmra.mxu0 %v1332
        %v1412 = vpop.f32.mrf.mxu0
        %v1413 = vadd.f32 0.0, %v1412
        %v1414 = vpop.f32.mrf.mxu0
        %1415 = vmatprep.mubr.f32.mxu0 0.0
        %1416 = vmatmul.mubr.f32.gmra.mxu0 %v1334
        %v1417 = vpop.f32.mrf.mxu0
        %v1418 = vadd.f32 0.0, %v1417
        %v1419 = vpop.f32.mrf.mxu0
        %1420 = vdwg.mxu0
        %s1421 = scalar_lea.vmem [#allocation2], 192
        %1422 = vst.msk [vmem:[%s1421] sm:$0xff] %vm589, %v1403
        %1423 = vst.msk [vmem:[%s1421 + $0x8] sm:$0xff] %vm589, %v1408
        %1424 = vst.msk [vmem:[%s1421 + $0x10] sm:$0xff] %vm589, %v1413
        %1425 = vst.msk [vmem:[%s1421 + $0x18] sm:$0xff] %vm589, %v1418
        %1426 = vrot.lane.b32.xlu0 %v669, 72
        %v1427 = vpop.permute.xlu0 %1426
        %1428 = vrot.lane.b32.xlu0 %v674, 72
        %v1429 = vpop.permute.xlu0 %1428
        %1430 = vrot.lane.b32.xlu0 %v679, 72
        %v1431 = vpop.permute.xlu0 %1430
        %1432 = vrot.lane.b32.xlu0 %v684, 72
        %v1433 = vpop.permute.xlu0 %1432
        %v1434 = vsel %vm688, %v1427, 0
        %v1436 = vsel %vm688, %v1429, 0
        %v1438 = vsel %vm688, %v1431, 0
        %v1440 = vsel %vm688, %v1433, 0
        %1442 = vmatprep.subr.mxu0 0.0
        %1443 = vmatpush1.msra.mxu0 0.0
        %1444 = vmatprep.subr.mxu0 0.0
        %1445 = vmatpush1.msra.mxu0 0.0
        %1446 = vmatprep.subr.mxu0 0.0
        %1447 = vmatpush1.msra.mxu0 0.0
        %1448 = vmatprep.subr.mxu0 0.0
        %1449 = vmatpush1.msra.mxu0 0.0
        %1450 = vmatprep.subr.mxu0 0.0
        %1451 = vmatpush1.msra.mxu0 0.0
        %1452 = vmatprep.subr.mxu0 0.0
        %1453 = vmatpush1.msra.mxu0 0.0
        %1454 = vmatprep.subr.mxu0 0.0
        %1455 = vmatpush1.msra.mxu0 0.0
        %1456 = vmatprep.subr.mxu0 0.0
        %1457 = vmatpush1.msra.mxu0 0.0
        %1458 = vmatprep.subr.mxu0 0.0
        %1459 = vmatpush1.msra.mxu0 0.0
        %1460 = vmatprep.subr.mxu0 0.0
        %1461 = vmatpush1.msra.mxu0 0.0
        %1462 = vmatprep.subr.mxu0 0.0
        %1463 = vmatpush1.msra.mxu0 0.0
        %1464 = vmatprep.subr.mxu0 0.0
        %1465 = vmatpush1.msra.mxu0 0.0
        %1466 = vmatprep.subr.mxu0 0.0
        %1467 = vmatpush1.msra.mxu0 0.0
        %1468 = vmatprep.subr.mxu0 0.0
        %1469 = vmatpush1.msra.mxu0 0.0
        %1470 = vmatprep.subr.mxu0 0.0
        %1471 = vmatpush1.msra.mxu0 0.0
        %1472 = vmatprep.subr.mxu0 0.0
        %1473 = vmatpush1.msra.mxu0 %v687
        %1474 = vmatprep.subr.mxu0 0.0
        %1475 = vmatpush2.msra.mxu0 0.0
        %1476 = vmatprep.subr.mxu0 0.0
        %1477 = vmatpush2.msra.mxu0 0.0
        %1478 = vmatprep.subr.mxu0 0.0
        %1479 = vmatpush2.msra.mxu0 0.0
        %1480 = vmatprep.subr.mxu0 0.0
        %1481 = vmatpush2.msra.mxu0 0.0
        %1482 = vmatprep.subr.mxu0 0.0
        %1483 = vmatpush2.msra.mxu0 0.0
        %1484 = vmatprep.subr.mxu0 0.0
        %1485 = vmatpush2.msra.mxu0 0.0
        %1486 = vmatprep.subr.mxu0 0.0
        %1487 = vmatpush2.msra.mxu0 0.0
        %1488 = vmatprep.subr.mxu0 0.0
        %1489 = vmatpush2.msra.mxu0 0.0
        %1490 = vmatprep.subr.mxu0 0.0
        %1491 = vmatpush2.msra.mxu0 0.0
        %1492 = vmatprep.subr.mxu0 0.0
        %1493 = vmatpush2.msra.mxu0 0.0
        %1494 = vmatprep.subr.mxu0 0.0
        %1495 = vmatpush2.msra.mxu0 0.0
        %1496 = vmatprep.subr.mxu0 0.0
        %1497 = vmatpush2.msra.mxu0 0.0
        %1498 = vmatprep.subr.mxu0 0.0
        %1499 = vmatpush2.msra.mxu0 0.0
        %1500 = vmatprep.subr.mxu0 0.0
        %1501 = vmatpush2.msra.mxu0 0.0
        %1502 = vmatprep.subr.mxu0 0.0
        %1503 = vmatpush2.msra.mxu0 0.0
        %1504 = vmatprep.subr.mxu0 0.0
        %1505 = vmatpush2.msra.mxu0 0.0
        %1506 = vmatprep.mubr.f32.mxu0 0.0
        %1507 = vmatmul.mubr.f32.gmra.mxu0 %v1434
        %v1508 = vpop.f32.mrf.mxu0
        %v1509 = vadd.f32 0.0, %v1508
        %v1510 = vpop.f32.mrf.mxu0
        %1511 = vmatprep.mubr.f32.mxu0 0.0
        %1512 = vmatmul.mubr.f32.gmra.mxu0 %v1436
        %v1513 = vpop.f32.mrf.mxu0
        %v1514 = vadd.f32 0.0, %v1513
        %v1515 = vpop.f32.mrf.mxu0
        %1516 = vmatprep.mubr.f32.mxu0 0.0
        %1517 = vmatmul.mubr.f32.gmra.mxu0 %v1438
        %v1518 = vpop.f32.mrf.mxu0
        %v1519 = vadd.f32 0.0, %v1518
        %v1520 = vpop.f32.mrf.mxu0
        %1521 = vmatprep.mubr.f32.mxu0 0.0
        %1522 = vmatmul.mubr.f32.gmra.mxu0 %v1440
        %v1523 = vpop.f32.mrf.mxu0
        %v1524 = vadd.f32 0.0, %v1523
        %v1525 = vpop.f32.mrf.mxu0
        %1526 = vdwg.mxu0
        %s1527 = scalar_lea.vmem [#allocation2], 224
        %1528 = vst.msk [vmem:[%s1527] sm:$0xff] %vm589, %v1509
        %1529 = vst.msk [vmem:[%s1527 + $0x8] sm:$0xff] %vm589, %v1514
        %1530 = vst.msk [vmem:[%s1527 + $0x10] sm:$0xff] %vm589, %v1519
        %1531 = vst.msk [vmem:[%s1527 + $0x18] sm:$0xff] %vm589, %v1524
        %v1532 = vld [vmem:[%s11] sm:$0xff]
        %v1533 = vld [vmem:[%s11 + $0x8] sm:$0xff]
        %v1534 = vld [vmem:[%s11 + $0x10] sm:$0xff]
        %v1535 = vld [vmem:[%s11 + $0x18] sm:$0xff]
        %v1536 = vld [vmem:[%s563] sm:$0xff]
        %v1537 = vld [vmem:[%s563 + $0x8] sm:$0xff]
        %v1538 = vld [vmem:[%s563 + $0x10] sm:$0xff]
        %v1539 = vld [vmem:[%s563 + $0x18] sm:$0xff]
        %vm1540 = vcmask 261120
        %v1542 = vsel %vm1540, %v1532, 0
        %v1545 = vsel %vm1540, %v1533, 0
        %v1548 = vsel %vm1540, %v1534, 0
        %v1551 = vsel %vm1540, %v1535, 0
        %1553 = vmatprep.subr.mxu0 0.0
        %1554 = vmatpush1.msra.mxu0 0.0
        %1555 = vmatprep.subr.mxu0 0.0
        %1556 = vmatpush1.msra.mxu0 0.0
        %1557 = vmatprep.subr.mxu0 0.0
        %1558 = vmatpush1.msra.mxu0 0.0
        %1559 = vmatprep.subr.mxu0 0.0
        %1560 = vmatpush1.msra.mxu0 0.0
        %1561 = vmatprep.subr.mxu0 0.0
        %1562 = vmatpush1.msra.mxu0 0.0
        %1563 = vmatprep.subr.mxu0 0.0
        %1564 = vmatpush1.msra.mxu0 0.0
        %1565 = vmatprep.subr.mxu0 0.0
        %1566 = vmatpush1.msra.mxu0 0.0
        %1567 = vmatprep.subr.mxu0 0.0
        %1568 = vmatpush1.msra.mxu0 0.0
        %1569 = vmatprep.subr.mxu0 0.0
        %1570 = vmatpush1.msra.mxu0 0.0
        %1571 = vmatprep.subr.mxu0 0.0
        %1572 = vmatpush1.msra.mxu0 0.0
        %1573 = vmatprep.subr.mxu0 0.0
        %1574 = vmatpush1.msra.mxu0 0.0
        %1575 = vmatprep.subr.mxu0 0.0
        %1576 = vmatpush1.msra.mxu0 0.0
        %1577 = vmatprep.subr.mxu0 0.0
        %1578 = vmatpush1.msra.mxu0 %v1539
        %1579 = vmatprep.subr.mxu0 0.0
        %1580 = vmatpush1.msra.mxu0 %v1538
        %1581 = vmatprep.subr.mxu0 0.0
        %1582 = vmatpush1.msra.mxu0 %v1537
        %1583 = vmatprep.subr.mxu0 0.0
        %1584 = vmatpush1.msra.mxu0 %v1536
        %1585 = vmatprep.subr.mxu0 0.0
        %1586 = vmatpush2.msra.mxu0 0.0
        %1587 = vmatprep.subr.mxu0 0.0
        %1588 = vmatpush2.msra.mxu0 0.0
        %1589 = vmatprep.subr.mxu0 0.0
        %1590 = vmatpush2.msra.mxu0 0.0
        %1591 = vmatprep.subr.mxu0 0.0
        %1592 = vmatpush2.msra.mxu0 0.0
        %1593 = vmatprep.subr.mxu0 0.0
        %1594 = vmatpush2.msra.mxu0 0.0
        %1595 = vmatprep.subr.mxu0 0.0
        %1596 = vmatpush2.msra.mxu0 0.0
        %1597 = vmatprep.subr.mxu0 0.0
        %1598 = vmatpush2.msra.mxu0 0.0
        %1599 = vmatprep.subr.mxu0 0.0
        %1600 = vmatpush2.msra.mxu0 0.0
        %1601 = vmatprep.subr.mxu0 0.0
        %1602 = vmatpush2.msra.mxu0 0.0
        %1603 = vmatprep.subr.mxu0 0.0
        %1604 = vmatpush2.msra.mxu0 0.0
        %1605 = vmatprep.subr.mxu0 0.0
        %1606 = vmatpush2.msra.mxu0 0.0
        %1607 = vmatprep.subr.mxu0 0.0
        %1608 = vmatpush2.msra.mxu0 0.0
        %1609 = vmatprep.subr.mxu0 0.0
        %1610 = vmatpush2.msra.mxu0 0.0
        %1611 = vmatprep.subr.mxu0 0.0
        %1612 = vmatpush2.msra.mxu0 0.0
        %1613 = vmatprep.subr.mxu0 0.0
        %1614 = vmatpush2.msra.mxu0 0.0
        %1615 = vmatprep.subr.mxu0 0.0
        %1616 = vmatpush2.msra.mxu0 0.0
        %1617 = vmatprep.mubr.f32.mxu0 0.0
        %1618 = vmatmul.mubr.f32.gmra.mxu0 %v1542
        %v1619 = vpop.f32.mrf.mxu0
        %v1620 = vadd.f32 0.0, %v1619
        %v1621 = vpop.f32.mrf.mxu0
        %1622 = vmatprep.mubr.f32.mxu0 0.0
        %1623 = vmatmul.mubr.f32.gmra.mxu0 %v1545
        %v1624 = vpop.f32.mrf.mxu0
        %v1625 = vadd.f32 0.0, %v1624
        %v1626 = vpop.f32.mrf.mxu0
        %1627 = vmatprep.mubr.f32.mxu0 0.0
        %1628 = vmatmul.mubr.f32.gmra.mxu0 %v1548
        %v1629 = vpop.f32.mrf.mxu0
        %v1630 = vadd.f32 0.0, %v1629
        %v1631 = vpop.f32.mrf.mxu0
        %1632 = vmatprep.mubr.f32.mxu0 0.0
        %1633 = vmatmul.mubr.f32.gmra.mxu0 %v1551
        %v1634 = vpop.f32.mrf.mxu0
        %v1635 = vadd.f32 0.0, %v1634
        %v1636 = vpop.f32.mrf.mxu0
        %1637 = vdwg.mxu0
        %v1638 = vld [vmem:[%s7] sm:$0xf]
        %vm1639 = vcmask 31744
        %v1641 = vsel %vm1639, %v1620, 0
        %v1644 = vsel %vm1639, %v1625, 0
        %v1647 = vsel %vm1639, %v1630, 0
        %v1650 = vsel %vm1639, %v1635, 0
        %vm1652 = vcmask 1043456
        %v1654 = vsel %vm1652, %v1638, 0
        %1656 = vmatprep.subr.mxu0 0.0
        %1657 = vmatpush1.msra.mxu0 0.0
        %1658 = vmatprep.subr.mxu0 0.0
        %1659 = vmatpush1.msra.mxu0 0.0
        %1660 = vmatprep.subr.mxu0 0.0
        %1661 = vmatpush1.msra.mxu0 0.0
        %1662 = vmatprep.subr.mxu0 0.0
        %1663 = vmatpush1.msra.mxu0 0.0
        %1664 = vmatprep.subr.mxu0 0.0
        %1665 = vmatpush1.msra.mxu0 0.0
        %1666 = vmatprep.subr.mxu0 0.0
        %1667 = vmatpush1.msra.mxu0 0.0
        %1668 = vmatprep.subr.mxu0 0.0
        %1669 = vmatpush1.msra.mxu0 0.0
        %1670 = vmatprep.subr.mxu0 0.0
        %1671 = vmatpush1.msra.mxu0 0.0
        %1672 = vmatprep.subr.mxu0 0.0
        %1673 = vmatpush1.msra.mxu0 0.0
        %1674 = vmatprep.subr.mxu0 0.0
        %1675 = vmatpush1.msra.mxu0 0.0
        %1676 = vmatprep.subr.mxu0 0.0
        %1677 = vmatpush1.msra.mxu0 0.0
        %1678 = vmatprep.subr.mxu0 0.0
        %1679 = vmatpush1.msra.mxu0 0.0
        %1680 = vmatprep.subr.mxu0 0.0
        %1681 = vmatpush1.msra.mxu0 0.0
        %1682 = vmatprep.subr.mxu0 0.0
        %1683 = vmatpush1.msra.mxu0 0.0
        %1684 = vmatprep.subr.mxu0 0.0
        %1685 = vmatpush1.msra.mxu0 0.0
        %1686 = vmatprep.subr.mxu0 0.0
        %1687 = vmatpush1.msra.mxu0 %v1654
        %1688 = vmatprep.subr.mxu0 0.0
        %1689 = vmatpush2.msra.mxu0 0.0
        %1690 = vmatprep.subr.mxu0 0.0
        %1691 = vmatpush2.msra.mxu0 0.0
        %1692 = vmatprep.subr.mxu0 0.0
        %1693 = vmatpush2.msra.mxu0 0.0
        %1694 = vmatprep.subr.mxu0 0.0
        %1695 = vmatpush2.msra.mxu0 0.0
        %1696 = vmatprep.subr.mxu0 0.0
        %1697 = vmatpush2.msra.mxu0 0.0
        %1698 = vmatprep.subr.mxu0 0.0
        %1699 = vmatpush2.msra.mxu0 0.0
        %1700 = vmatprep.subr.mxu0 0.0
        %1701 = vmatpush2.msra.mxu0 0.0
        %1702 = vmatprep.subr.mxu0 0.0
        %1703 = vmatpush2.msra.mxu0 0.0
        %1704 = vmatprep.subr.mxu0 0.0
        %1705 = vmatpush2.msra.mxu0 0.0
        %1706 = vmatprep.subr.mxu0 0.0
        %1707 = vmatpush2.msra.mxu0 0.0
        %1708 = vmatprep.subr.mxu0 0.0
        %1709 = vmatpush2.msra.mxu0 0.0
        %1710 = vmatprep.subr.mxu0 0.0
        %1711 = vmatpush2.msra.mxu0 0.0
        %1712 = vmatprep.subr.mxu0 0.0
        %1713 = vmatpush2.msra.mxu0 0.0
        %1714 = vmatprep.subr.mxu0 0.0
        %1715 = vmatpush2.msra.mxu0 0.0
        %1716 = vmatprep.subr.mxu0 0.0
        %1717 = vmatpush2.msra.mxu0 0.0
        %1718 = vmatprep.subr.mxu0 0.0
        %1719 = vmatpush2.msra.mxu0 0.0
        %1720 = vmatprep.mubr.f32.mxu0 0.0
        %1721 = vmatmul.mubr.f32.gmra.mxu0 %v1641
        %v1722 = vpop.f32.mrf.mxu0
        %v1723 = vadd.f32 0.0, %v1722
        %v1724 = vpop.f32.mrf.mxu0
        %1725 = vmatprep.mubr.f32.mxu0 0.0
        %1726 = vmatmul.mubr.f32.gmra.mxu0 %v1644
        %v1727 = vpop.f32.mrf.mxu0
        %v1728 = vadd.f32 0.0, %v1727
        %v1729 = vpop.f32.mrf.mxu0
        %1730 = vmatprep.mubr.f32.mxu0 0.0
        %1731 = vmatmul.mubr.f32.gmra.mxu0 %v1647
        %v1732 = vpop.f32.mrf.mxu0
        %v1733 = vadd.f32 0.0, %v1732
        %v1734 = vpop.f32.mrf.mxu0
        %1735 = vmatprep.mubr.f32.mxu0 0.0
        %1736 = vmatmul.mubr.f32.gmra.mxu0 %v1650
        %v1737 = vpop.f32.mrf.mxu0
        %v1738 = vadd.f32 0.0, %v1737
        %v1739 = vpop.f32.mrf.mxu0
        %1740 = vdwg.mxu0
        %1741 = vst.msk [vmem:[#allocation3] sm:$0xff] %vm589, %v1723
        %1742 = vst.msk [vmem:[#allocation3 + $0x8] sm:$0xff] %vm589, %v1728
        %1743 = vst.msk [vmem:[#allocation3 + $0x10] sm:$0xff] %vm589, %v1733
        %1744 = vst.msk [vmem:[#allocation3 + $0x18] sm:$0xff] %vm589, %v1738
        %1745 = vrot.lane.b32.xlu0 %v1620, 124
        %v1746 = vpop.permute.xlu0 %1745
        %1747 = vrot.lane.b32.xlu0 %v1625, 124
        %v1748 = vpop.permute.xlu0 %1747
        %1749 = vrot.lane.b32.xlu0 %v1630, 124
        %v1750 = vpop.permute.xlu0 %1749
        %1751 = vrot.lane.b32.xlu0 %v1635, 124
        %v1752 = vpop.permute.xlu0 %1751
        %v1753 = vsel %vm1639, %v1746, 0
        %v1755 = vsel %vm1639, %v1748, 0
        %v1757 = vsel %vm1639, %v1750, 0
        %v1759 = vsel %vm1639, %v1752, 0
        %1761 = vmatprep.subr.mxu0 0.0
        %1762 = vmatpush1.msra.mxu0 0.0
        %1763 = vmatprep.subr.mxu0 0.0
        %1764 = vmatpush1.msra.mxu0 0.0
        %1765 = vmatprep.subr.mxu0 0.0
        %1766 = vmatpush1.msra.mxu0 0.0
        %1767 = vmatprep.subr.mxu0 0.0
        %1768 = vmatpush1.msra.mxu0 0.0
        %1769 = vmatprep.subr.mxu0 0.0
        %1770 = vmatpush1.msra.mxu0 0.0
        %1771 = vmatprep.subr.mxu0 0.0
        %1772 = vmatpush1.msra.mxu0 0.0
        %1773 = vmatprep.subr.mxu0 0.0
        %1774 = vmatpush1.msra.mxu0 0.0
        %1775 = vmatprep.subr.mxu0 0.0
        %1776 = vmatpush1.msra.mxu0 0.0
        %1777 = vmatprep.subr.mxu0 0.0
        %1778 = vmatpush1.msra.mxu0 0.0
        %1779 = vmatprep.subr.mxu0 0.0
        %1780 = vmatpush1.msra.mxu0 0.0
        %1781 = vmatprep.subr.mxu0 0.0
        %1782 = vmatpush1.msra.mxu0 0.0
        %1783 = vmatprep.subr.mxu0 0.0
        %1784 = vmatpush1.msra.mxu0 0.0
        %1785 = vmatprep.subr.mxu0 0.0
        %1786 = vmatpush1.msra.mxu0 0.0
        %1787 = vmatprep.subr.mxu0 0.0
        %1788 = vmatpush1.msra.mxu0 0.0
        %1789 = vmatprep.subr.mxu0 0.0
        %1790 = vmatpush1.msra.mxu0 0.0
        %1791 = vmatprep.subr.mxu0 0.0
        %1792 = vmatpush1.msra.mxu0 %v1654
        %1793 = vmatprep.subr.mxu0 0.0
        %1794 = vmatpush2.msra.mxu0 0.0
        %1795 = vmatprep.subr.mxu0 0.0
        %1796 = vmatpush2.msra.mxu0 0.0
        %1797 = vmatprep.subr.mxu0 0.0
        %1798 = vmatpush2.msra.mxu0 0.0
        %1799 = vmatprep.subr.mxu0 0.0
        %1800 = vmatpush2.msra.mxu0 0.0
        %1801 = vmatprep.subr.mxu0 0.0
        %1802 = vmatpush2.msra.mxu0 0.0
        %1803 = vmatprep.subr.mxu0 0.0
        %1804 = vmatpush2.msra.mxu0 0.0
        %1805 = vmatprep.subr.mxu0 0.0
        %1806 = vmatpush2.msra.mxu0 0.0
        %1807 = vmatprep.subr.mxu0 0.0
        %1808 = vmatpush2.msra.mxu0 0.0
        %1809 = vmatprep.subr.mxu0 0.0
        %1810 = vmatpush2.msra.mxu0 0.0
        %1811 = vmatprep.subr.mxu0 0.0
        %1812 = vmatpush2.msra.mxu0 0.0
        %1813 = vmatprep.subr.mxu0 0.0
        %1814 = vmatpush2.msra.mxu0 0.0
        %1815 = vmatprep.subr.mxu0 0.0
        %1816 = vmatpush2.msra.mxu0 0.0
        %1817 = vmatprep.subr.mxu0 0.0
        %1818 = vmatpush2.msra.mxu0 0.0
        %1819 = vmatprep.subr.mxu0 0.0
        %1820 = vmatpush2.msra.mxu0 0.0
        %1821 = vmatprep.subr.mxu0 0.0
        %1822 = vmatpush2.msra.mxu0 0.0
        %1823 = vmatprep.subr.mxu0 0.0
        %1824 = vmatpush2.msra.mxu0 0.0
        %1825 = vmatprep.mubr.f32.mxu0 0.0
        %1826 = vmatmul.mubr.f32.gmra.mxu0 %v1753
        %v1827 = vpop.f32.mrf.mxu0
        %v1828 = vadd.f32 0.0, %v1827
        %v1829 = vpop.f32.mrf.mxu0
        %1830 = vmatprep.mubr.f32.mxu0 0.0
        %1831 = vmatmul.mubr.f32.gmra.mxu0 %v1755
        %v1832 = vpop.f32.mrf.mxu0
        %v1833 = vadd.f32 0.0, %v1832
        %v1834 = vpop.f32.mrf.mxu0
        %1835 = vmatprep.mubr.f32.mxu0 0.0
        %1836 = vmatmul.mubr.f32.gmra.mxu0 %v1757
        %v1837 = vpop.f32.mrf.mxu0
        %v1838 = vadd.f32 0.0, %v1837
        %v1839 = vpop.f32.mrf.mxu0
        %1840 = vmatprep.mubr.f32.mxu0 0.0
        %1841 = vmatmul.mubr.f32.gmra.mxu0 %v1759
        %v1842 = vpop.f32.mrf.mxu0
        %v1843 = vadd.f32 0.0, %v1842
        %v1844 = vpop.f32.mrf.mxu0
        %1845 = vdwg.mxu0
        %s1846 = scalar_lea.vmem [#allocation3], 32
        %1847 = vst.msk [vmem:[%s1846] sm:$0xff] %vm589, %v1828
        %1848 = vst.msk [vmem:[%s1846 + $0x8] sm:$0xff] %vm589, %v1833
        %1849 = vst.msk [vmem:[%s1846 + $0x10] sm:$0xff] %vm589, %v1838
        %1850 = vst.msk [vmem:[%s1846 + $0x18] sm:$0xff] %vm589, %v1843
        %1851 = vrot.lane.b32.xlu0 %v1620, 120
        %v1852 = vpop.permute.xlu0 %1851
        %1853 = vrot.lane.b32.xlu0 %v1625, 120
        %v1854 = vpop.permute.xlu0 %1853
        %1855 = vrot.lane.b32.xlu0 %v1630, 120
        %v1856 = vpop.permute.xlu0 %1855
        %1857 = vrot.lane.b32.xlu0 %v1635, 120
        %v1858 = vpop.permute.xlu0 %1857
        %v1859 = vsel %vm1639, %v1852, 0
        %v1861 = vsel %vm1639, %v1854, 0
        %v1863 = vsel %vm1639, %v1856, 0
        %v1865 = vsel %vm1639, %v1858, 0
        %1867 = vmatprep.subr.mxu0 0.0
        %1868 = vmatpush1.msra.mxu0 0.0
        %1869 = vmatprep.subr.mxu0 0.0
        %1870 = vmatpush1.msra.mxu0 0.0
        %1871 = vmatprep.subr.mxu0 0.0
        %1872 = vmatpush1.msra.mxu0 0.0
        %1873 = vmatprep.subr.mxu0 0.0
        %1874 = vmatpush1.msra.mxu0 0.0
        %1875 = vmatprep.subr.mxu0 0.0
        %1876 = vmatpush1.msra.mxu0 0.0
        %1877 = vmatprep.subr.mxu0 0.0
        %1878 = vmatpush1.msra.mxu0 0.0
        %1879 = vmatprep.subr.mxu0 0.0
        %1880 = vmatpush1.msra.mxu0 0.0
        %1881 = vmatprep.subr.mxu0 0.0
        %1882 = vmatpush1.msra.mxu0 0.0
        %1883 = vmatprep.subr.mxu0 0.0
        %1884 = vmatpush1.msra.mxu0 0.0
        %1885 = vmatprep.subr.mxu0 0.0
        %1886 = vmatpush1.msra.mxu0 0.0
        %1887 = vmatprep.subr.mxu0 0.0
        %1888 = vmatpush1.msra.mxu0 0.0
        %1889 = vmatprep.subr.mxu0 0.0
        %1890 = vmatpush1.msra.mxu0 0.0
        %1891 = vmatprep.subr.mxu0 0.0
        %1892 = vmatpush1.msra.mxu0 0.0
        %1893 = vmatprep.subr.mxu0 0.0
        %1894 = vmatpush1.msra.mxu0 0.0
        %1895 = vmatprep.subr.mxu0 0.0
        %1896 = vmatpush1.msra.mxu0 0.0
        %1897 = vmatprep.subr.mxu0 0.0
        %1898 = vmatpush1.msra.mxu0 %v1654
        %1899 = vmatprep.subr.mxu0 0.0
        %1900 = vmatpush2.msra.mxu0 0.0
        %1901 = vmatprep.subr.mxu0 0.0
        %1902 = vmatpush2.msra.mxu0 0.0
        %1903 = vmatprep.subr.mxu0 0.0
        %1904 = vmatpush2.msra.mxu0 0.0
        %1905 = vmatprep.subr.mxu0 0.0
        %1906 = vmatpush2.msra.mxu0 0.0
        %1907 = vmatprep.subr.mxu0 0.0
        %1908 = vmatpush2.msra.mxu0 0.0
        %1909 = vmatprep.subr.mxu0 0.0
        %1910 = vmatpush2.msra.mxu0 0.0
        %1911 = vmatprep.subr.mxu0 0.0
        %1912 = vmatpush2.msra.mxu0 0.0
        %1913 = vmatprep.subr.mxu0 0.0
        %1914 = vmatpush2.msra.mxu0 0.0
        %1915 = vmatprep.subr.mxu0 0.0
        %1916 = vmatpush2.msra.mxu0 0.0
        %1917 = vmatprep.subr.mxu0 0.0
        %1918 = vmatpush2.msra.mxu0 0.0
        %1919 = vmatprep.subr.mxu0 0.0
        %1920 = vmatpush2.msra.mxu0 0.0
        %1921 = vmatprep.subr.mxu0 0.0
        %1922 = vmatpush2.msra.mxu0 0.0
        %1923 = vmatprep.subr.mxu0 0.0
        %1924 = vmatpush2.msra.mxu0 0.0
        %1925 = vmatprep.subr.mxu0 0.0
        %1926 = vmatpush2.msra.mxu0 0.0
        %1927 = vmatprep.subr.mxu0 0.0
        %1928 = vmatpush2.msra.mxu0 0.0
        %1929 = vmatprep.subr.mxu0 0.0
        %1930 = vmatpush2.msra.mxu0 0.0
        %1931 = vmatprep.mubr.f32.mxu0 0.0
        %1932 = vmatmul.mubr.f32.gmra.mxu0 %v1859
        %v1933 = vpop.f32.mrf.mxu0
        %v1934 = vadd.f32 0.0, %v1933
        %v1935 = vpop.f32.mrf.mxu0
        %1936 = vmatprep.mubr.f32.mxu0 0.0
        %1937 = vmatmul.mubr.f32.gmra.mxu0 %v1861
        %v1938 = vpop.f32.mrf.mxu0
        %v1939 = vadd.f32 0.0, %v1938
        %v1940 = vpop.f32.mrf.mxu0
        %1941 = vmatprep.mubr.f32.mxu0 0.0
        %1942 = vmatmul.mubr.f32.gmra.mxu0 %v1863
        %v1943 = vpop.f32.mrf.mxu0
        %v1944 = vadd.f32 0.0, %v1943
        %v1945 = vpop.f32.mrf.mxu0
        %1946 = vmatprep.mubr.f32.mxu0 0.0
        %1947 = vmatmul.mubr.f32.gmra.mxu0 %v1865
        %v1948 = vpop.f32.mrf.mxu0
        %v1949 = vadd.f32 0.0, %v1948
        %v1950 = vpop.f32.mrf.mxu0
        %1951 = vdwg.mxu0
        %s1952 = scalar_lea.vmem [#allocation3], 64
        %1953 = vst.msk [vmem:[%s1952] sm:$0xff] %vm589, %v1934
        %1954 = vst.msk [vmem:[%s1952 + $0x8] sm:$0xff] %vm589, %v1939
        %1955 = vst.msk [vmem:[%s1952 + $0x10] sm:$0xff] %vm589, %v1944
        %1956 = vst.msk [vmem:[%s1952 + $0x18] sm:$0xff] %vm589, %v1949
        %1957 = vrot.lane.b32.xlu0 %v1620, 116
        %v1958 = vpop.permute.xlu0 %1957
        %1959 = vrot.lane.b32.xlu0 %v1625, 116
        %v1960 = vpop.permute.xlu0 %1959
        %1961 = vrot.lane.b32.xlu0 %v1630, 116
        %v1962 = vpop.permute.xlu0 %1961
        %1963 = vrot.lane.b32.xlu0 %v1635, 116
        %v1964 = vpop.permute.xlu0 %1963
        %v1965 = vsel %vm1639, %v1958, 0
        %v1967 = vsel %vm1639, %v1960, 0
        %v1969 = vsel %vm1639, %v1962, 0
        %v1971 = vsel %vm1639, %v1964, 0
        %1973 = vmatprep.subr.mxu0 0.0
        %1974 = vmatpush1.msra.mxu0 0.0
        %1975 = vmatprep.subr.mxu0 0.0
        %1976 = vmatpush1.msra.mxu0 0.0
        %1977 = vmatprep.subr.mxu0 0.0
        %1978 = vmatpush1.msra.mxu0 0.0
        %1979 = vmatprep.subr.mxu0 0.0
        %1980 = vmatpush1.msra.mxu0 0.0
        %1981 = vmatprep.subr.mxu0 0.0
        %1982 = vmatpush1.msra.mxu0 0.0
        %1983 = vmatprep.subr.mxu0 0.0
        %1984 = vmatpush1.msra.mxu0 0.0
        %1985 = vmatprep.subr.mxu0 0.0
        %1986 = vmatpush1.msra.mxu0 0.0
        %1987 = vmatprep.subr.mxu0 0.0
        %1988 = vmatpush1.msra.mxu0 0.0
        %1989 = vmatprep.subr.mxu0 0.0
        %1990 = vmatpush1.msra.mxu0 0.0
        %1991 = vmatprep.subr.mxu0 0.0
        %1992 = vmatpush1.msra.mxu0 0.0
        %1993 = vmatprep.subr.mxu0 0.0
        %1994 = vmatpush1.msra.mxu0 0.0
        %1995 = vmatprep.subr.mxu0 0.0
        %1996 = vmatpush1.msra.mxu0 0.0
        %1997 = vmatprep.subr.mxu0 0.0
        %1998 = vmatpush1.msra.mxu0 0.0
        %1999 = vmatprep.subr.mxu0 0.0
        %2000 = vmatpush1.msra.mxu0 0.0
        %2001 = vmatprep.subr.mxu0 0.0
        %2002 = vmatpush1.msra.mxu0 0.0
        %2003 = vmatprep.subr.mxu0 0.0
        %2004 = vmatpush1.msra.mxu0 %v1654
        %2005 = vmatprep.subr.mxu0 0.0
        %2006 = vmatpush2.msra.mxu0 0.0
        %2007 = vmatprep.subr.mxu0 0.0
        %2008 = vmatpush2.msra.mxu0 0.0
        %2009 = vmatprep.subr.mxu0 0.0
        %2010 = vmatpush2.msra.mxu0 0.0
        %2011 = vmatprep.subr.mxu0 0.0
        %2012 = vmatpush2.msra.mxu0 0.0
        %2013 = vmatprep.subr.mxu0 0.0
        %2014 = vmatpush2.msra.mxu0 0.0
        %2015 = vmatprep.subr.mxu0 0.0
        %2016 = vmatpush2.msra.mxu0 0.0
        %2017 = vmatprep.subr.mxu0 0.0
        %2018 = vmatpush2.msra.mxu0 0.0
        %2019 = vmatprep.subr.mxu0 0.0
        %2020 = vmatpush2.msra.mxu0 0.0
        %2021 = vmatprep.subr.mxu0 0.0
        %2022 = vmatpush2.msra.mxu0 0.0
        %2023 = vmatprep.subr.mxu0 0.0
        %2024 = vmatpush2.msra.mxu0 0.0
        %2025 = vmatprep.subr.mxu0 0.0
        %2026 = vmatpush2.msra.mxu0 0.0
        %2027 = vmatprep.subr.mxu0 0.0
        %2028 = vmatpush2.msra.mxu0 0.0
        %2029 = vmatprep.subr.mxu0 0.0
        %2030 = vmatpush2.msra.mxu0 0.0
        %2031 = vmatprep.subr.mxu0 0.0
        %2032 = vmatpush2.msra.mxu0 0.0
        %2033 = vmatprep.subr.mxu0 0.0
        %2034 = vmatpush2.msra.mxu0 0.0
        %2035 = vmatprep.subr.mxu0 0.0
        %2036 = vmatpush2.msra.mxu0 0.0
        %2037 = vmatprep.mubr.f32.mxu0 0.0
        %2038 = vmatmul.mubr.f32.gmra.mxu0 %v1965
        %v2039 = vpop.f32.mrf.mxu0
        %v2040 = vadd.f32 0.0, %v2039
        %v2041 = vpop.f32.mrf.mxu0
        %2042 = vmatprep.mubr.f32.mxu0 0.0
        %2043 = vmatmul.mubr.f32.gmra.mxu0 %v1967
        %v2044 = vpop.f32.mrf.mxu0
        %v2045 = vadd.f32 0.0, %v2044
        %v2046 = vpop.f32.mrf.mxu0
        %2047 = vmatprep.mubr.f32.mxu0 0.0
        %2048 = vmatmul.mubr.f32.gmra.mxu0 %v1969
        %v2049 = vpop.f32.mrf.mxu0
        %v2050 = vadd.f32 0.0, %v2049
        %v2051 = vpop.f32.mrf.mxu0
        %2052 = vmatprep.mubr.f32.mxu0 0.0
        %2053 = vmatmul.mubr.f32.gmra.mxu0 %v1971
        %v2054 = vpop.f32.mrf.mxu0
        %v2055 = vadd.f32 0.0, %v2054
        %v2056 = vpop.f32.mrf.mxu0
        %2057 = vdwg.mxu0
        %s2058 = scalar_lea.vmem [#allocation3], 96
        %2059 = vst.msk [vmem:[%s2058] sm:$0xff] %vm589, %v2040
        %2060 = vst.msk [vmem:[%s2058 + $0x8] sm:$0xff] %vm589, %v2045
        %2061 = vst.msk [vmem:[%s2058 + $0x10] sm:$0xff] %vm589, %v2050
        %2062 = vst.msk [vmem:[%s2058 + $0x18] sm:$0xff] %vm589, %v2055
        %v2063 = vld [vmem:[%s12] sm:$0xff]
        %v2064 = vld [vmem:[%s12 + $0x8] sm:$0xff]
        %v2065 = vld [vmem:[%s12 + $0x10] sm:$0xff]
        %v2066 = vld [vmem:[%s12 + $0x18] sm:$0xff]
        %v2067 = vld [vmem:[%s568] sm:$0xff]
        %v2068 = vld [vmem:[%s568 + $0x8] sm:$0xff]
        %v2069 = vld [vmem:[%s568 + $0x10] sm:$0xff]
        %v2070 = vld [vmem:[%s568 + $0x18] sm:$0xff]
        %v2071 = vld [vmem:[%s568 + $0x20] sm:$0xff]
        %v2072 = vld [vmem:[%s568 + $0x28] sm:$0xff]
        %v2073 = vld [vmem:[%s568 + $0x30] sm:$0xff]
        %v2074 = vld [vmem:[%s568 + $0x38] sm:$0xff]
        %vm2075 = vcmask 523264
        %v2077 = vsel %vm2075, %v2063, 0
        %v2080 = vsel %vm2075, %v2064, 0
        %v2083 = vsel %vm2075, %v2065, 0
        %v2086 = vsel %vm2075, %v2066, 0
        %2088 = vmatprep.subr.mxu0 0.0
        %2089 = vmatpush1.msra.mxu0 0.0
        %2090 = vmatprep.subr.mxu0 0.0
        %2091 = vmatpush1.msra.mxu0 0.0
        %2092 = vmatprep.subr.mxu0 0.0
        %2093 = vmatpush1.msra.mxu0 0.0
        %2094 = vmatprep.subr.mxu0 0.0
        %2095 = vmatpush1.msra.mxu0 0.0
        %2096 = vmatprep.subr.mxu0 0.0
        %2097 = vmatpush1.msra.mxu0 0.0
        %2098 = vmatprep.subr.mxu0 0.0
        %2099 = vmatpush1.msra.mxu0 0.0
        %2100 = vmatprep.subr.mxu0 0.0
        %2101 = vmatpush1.msra.mxu0 0.0
        %2102 = vmatprep.subr.mxu0 0.0
        %2103 = vmatpush1.msra.mxu0 0.0
        %2104 = vmatprep.subr.mxu0 0.0
        %2105 = vmatpush1.msra.mxu0 %v2074
        %2106 = vmatprep.subr.mxu0 0.0
        %2107 = vmatpush1.msra.mxu0 %v2073
        %2108 = vmatprep.subr.mxu0 0.0
        %2109 = vmatpush1.msra.mxu0 %v2072
        %2110 = vmatprep.subr.mxu0 0.0
        %2111 = vmatpush1.msra.mxu0 %v2071
        %2112 = vmatprep.subr.mxu0 0.0
        %2113 = vmatpush1.msra.mxu0 %v2070
        %2114 = vmatprep.subr.mxu0 0.0
        %2115 = vmatpush1.msra.mxu0 %v2069
        %2116 = vmatprep.subr.mxu0 0.0
        %2117 = vmatpush1.msra.mxu0 %v2068
        %2118 = vmatprep.subr.mxu0 0.0
        %2119 = vmatpush1.msra.mxu0 %v2067
        %2120 = vmatprep.subr.mxu0 0.0
        %2121 = vmatpush2.msra.mxu0 0.0
        %2122 = vmatprep.subr.mxu0 0.0
        %2123 = vmatpush2.msra.mxu0 0.0
        %2124 = vmatprep.subr.mxu0 0.0
        %2125 = vmatpush2.msra.mxu0 0.0
        %2126 = vmatprep.subr.mxu0 0.0
        %2127 = vmatpush2.msra.mxu0 0.0
        %2128 = vmatprep.subr.mxu0 0.0
        %2129 = vmatpush2.msra.mxu0 0.0
        %2130 = vmatprep.subr.mxu0 0.0
        %2131 = vmatpush2.msra.mxu0 0.0
        %2132 = vmatprep.subr.mxu0 0.0
        %2133 = vmatpush2.msra.mxu0 0.0
        %2134 = vmatprep.subr.mxu0 0.0
        %2135 = vmatpush2.msra.mxu0 0.0
        %2136 = vmatprep.subr.mxu0 0.0
        %2137 = vmatpush2.msra.mxu0 0.0
        %2138 = vmatprep.subr.mxu0 0.0
        %2139 = vmatpush2.msra.mxu0 0.0
        %2140 = vmatprep.subr.mxu0 0.0
        %2141 = vmatpush2.msra.mxu0 0.0
        %2142 = vmatprep.subr.mxu0 0.0
        %2143 = vmatpush2.msra.mxu0 0.0
        %2144 = vmatprep.subr.mxu0 0.0
        %2145 = vmatpush2.msra.mxu0 0.0
        %2146 = vmatprep.subr.mxu0 0.0
        %2147 = vmatpush2.msra.mxu0 0.0
        %2148 = vmatprep.subr.mxu0 0.0
        %2149 = vmatpush2.msra.mxu0 0.0
        %2150 = vmatprep.subr.mxu0 0.0
        %2151 = vmatpush2.msra.mxu0 0.0
        %2152 = vmatprep.mubr.f32.mxu0 0.0
        %2153 = vmatmul.mubr.f32.gmra.mxu0 %v2077
        %v2154 = vpop.f32.mrf.mxu0
        %v2155 = vadd.f32 0.0, %v2154
        %v2156 = vpop.f32.mrf.mxu0
        %2157 = vmatprep.mubr.f32.mxu0 0.0
        %2158 = vmatmul.mubr.f32.gmra.mxu0 %v2080
        %v2159 = vpop.f32.mrf.mxu0
        %v2160 = vadd.f32 0.0, %v2159
        %v2161 = vpop.f32.mrf.mxu0
        %2162 = vmatprep.mubr.f32.mxu0 0.0
        %2163 = vmatmul.mubr.f32.gmra.mxu0 %v2083
        %v2164 = vpop.f32.mrf.mxu0
        %v2165 = vadd.f32 0.0, %v2164
        %v2166 = vpop.f32.mrf.mxu0
        %2167 = vmatprep.mubr.f32.mxu0 0.0
        %2168 = vmatmul.mubr.f32.gmra.mxu0 %v2086
        %v2169 = vpop.f32.mrf.mxu0
        %v2170 = vadd.f32 0.0, %v2169
        %v2171 = vpop.f32.mrf.mxu0
        %2172 = vdwg.mxu0
        %v2173 = vld [vmem:[%s8] sm:$0x3]
        %vm2174 = vcmask 15360
        %v2176 = vsel %vm2174, %v2155, 0
        %v2179 = vsel %vm2174, %v2160, 0
        %v2182 = vsel %vm2174, %v2165, 0
        %v2185 = vsel %vm2174, %v2170, 0
        %vm2187 = vcmask 1041408
        %v2189 = vsel %vm2187, %v2173, 0
        %2191 = vmatprep.subr.mxu0 0.0
        %2192 = vmatpush1.msra.mxu0 0.0
        %2193 = vmatprep.subr.mxu0 0.0
        %2194 = vmatpush1.msra.mxu0 0.0
        %2195 = vmatprep.subr.mxu0 0.0
        %2196 = vmatpush1.msra.mxu0 0.0
        %2197 = vmatprep.subr.mxu0 0.0
        %2198 = vmatpush1.msra.mxu0 0.0
        %2199 = vmatprep.subr.mxu0 0.0
        %2200 = vmatpush1.msra.mxu0 0.0
        %2201 = vmatprep.subr.mxu0 0.0
        %2202 = vmatpush1.msra.mxu0 0.0
        %2203 = vmatprep.subr.mxu0 0.0
        %2204 = vmatpush1.msra.mxu0 0.0
        %2205 = vmatprep.subr.mxu0 0.0
        %2206 = vmatpush1.msra.mxu0 0.0
        %2207 = vmatprep.subr.mxu0 0.0
        %2208 = vmatpush1.msra.mxu0 0.0
        %2209 = vmatprep.subr.mxu0 0.0
        %2210 = vmatpush1.msra.mxu0 0.0
        %2211 = vmatprep.subr.mxu0 0.0
        %2212 = vmatpush1.msra.mxu0 0.0
        %2213 = vmatprep.subr.mxu0 0.0
        %2214 = vmatpush1.msra.mxu0 0.0
        %2215 = vmatprep.subr.mxu0 0.0
        %2216 = vmatpush1.msra.mxu0 0.0
        %2217 = vmatprep.subr.mxu0 0.0
        %2218 = vmatpush1.msra.mxu0 0.0
        %2219 = vmatprep.subr.mxu0 0.0
        %2220 = vmatpush1.msra.mxu0 0.0
        %2221 = vmatprep.subr.mxu0 0.0
        %2222 = vmatpush1.msra.mxu0 %v2189
        %2223 = vmatprep.subr.mxu0 0.0
        %2224 = vmatpush2.msra.mxu0 0.0
        %2225 = vmatprep.subr.mxu0 0.0
        %2226 = vmatpush2.msra.mxu0 0.0
        %2227 = vmatprep.subr.mxu0 0.0
        %2228 = vmatpush2.msra.mxu0 0.0
        %2229 = vmatprep.subr.mxu0 0.0
        %2230 = vmatpush2.msra.mxu0 0.0
        %2231 = vmatprep.subr.mxu0 0.0
        %2232 = vmatpush2.msra.mxu0 0.0
        %2233 = vmatprep.subr.mxu0 0.0
        %2234 = vmatpush2.msra.mxu0 0.0
        %2235 = vmatprep.subr.mxu0 0.0
        %2236 = vmatpush2.msra.mxu0 0.0
        %2237 = vmatprep.subr.mxu0 0.0
        %2238 = vmatpush2.msra.mxu0 0.0
        %2239 = vmatprep.subr.mxu0 0.0
        %2240 = vmatpush2.msra.mxu0 0.0
        %2241 = vmatprep.subr.mxu0 0.0
        %2242 = vmatpush2.msra.mxu0 0.0
        %2243 = vmatprep.subr.mxu0 0.0
        %2244 = vmatpush2.msra.mxu0 0.0
        %2245 = vmatprep.subr.mxu0 0.0
        %2246 = vmatpush2.msra.mxu0 0.0
        %2247 = vmatprep.subr.mxu0 0.0
        %2248 = vmatpush2.msra.mxu0 0.0
        %2249 = vmatprep.subr.mxu0 0.0
        %2250 = vmatpush2.msra.mxu0 0.0
        %2251 = vmatprep.subr.mxu0 0.0
        %2252 = vmatpush2.msra.mxu0 0.0
        %2253 = vmatprep.subr.mxu0 0.0
        %2254 = vmatpush2.msra.mxu0 0.0
        %2255 = vmatprep.mubr.f32.mxu0 0.0
        %2256 = vmatmul.mubr.f32.gmra.mxu0 %v2176
        %v2257 = vpop.f32.mrf.mxu0
        %v2258 = vadd.f32 0.0, %v2257
        %v2259 = vpop.f32.mrf.mxu0
        %2260 = vmatprep.mubr.f32.mxu0 0.0
        %2261 = vmatmul.mubr.f32.gmra.mxu0 %v2179
        %v2262 = vpop.f32.mrf.mxu0
        %v2263 = vadd.f32 0.0, %v2262
        %v2264 = vpop.f32.mrf.mxu0
        %2265 = vmatprep.mubr.f32.mxu0 0.0
        %2266 = vmatmul.mubr.f32.gmra.mxu0 %v2182
        %v2267 = vpop.f32.mrf.mxu0
        %v2268 = vadd.f32 0.0, %v2267
        %v2269 = vpop.f32.mrf.mxu0
        %2270 = vmatprep.mubr.f32.mxu0 0.0
        %2271 = vmatmul.mubr.f32.gmra.mxu0 %v2185
        %v2272 = vpop.f32.mrf.mxu0
        %v2273 = vadd.f32 0.0, %v2272
        %v2274 = vpop.f32.mrf.mxu0
        %2275 = vdwg.mxu0
        %2276 = vst.msk [vmem:[#allocation4] sm:$0xff] %vm589, %v2258
        %2277 = vst.msk [vmem:[#allocation4 + $0x8] sm:$0xff] %vm589, %v2263
        %2278 = vst.msk [vmem:[#allocation4 + $0x10] sm:$0xff] %vm589, %v2268
        %2279 = vst.msk [vmem:[#allocation4 + $0x18] sm:$0xff] %vm589, %v2273
        %2280 = vrot.lane.b32.xlu0 %v2155, 126
        %v2281 = vpop.permute.xlu0 %2280
        %2282 = vrot.lane.b32.xlu0 %v2160, 126
        %v2283 = vpop.permute.xlu0 %2282
        %2284 = vrot.lane.b32.xlu0 %v2165, 126
        %v2285 = vpop.permute.xlu0 %2284
        %2286 = vrot.lane.b32.xlu0 %v2170, 126
        %v2287 = vpop.permute.xlu0 %2286
        %v2288 = vsel %vm2174, %v2281, 0
        %v2290 = vsel %vm2174, %v2283, 0
        %v2292 = vsel %vm2174, %v2285, 0
        %v2294 = vsel %vm2174, %v2287, 0
        %2296 = vmatprep.subr.mxu0 0.0
        %2297 = vmatpush1.msra.mxu0 0.0
        %2298 = vmatprep.subr.mxu0 0.0
        %2299 = vmatpush1.msra.mxu0 0.0
        %2300 = vmatprep.subr.mxu0 0.0
        %2301 = vmatpush1.msra.mxu0 0.0
        %2302 = vmatprep.subr.mxu0 0.0
        %2303 = vmatpush1.msra.mxu0 0.0
        %2304 = vmatprep.subr.mxu0 0.0
        %2305 = vmatpush1.msra.mxu0 0.0
        %2306 = vmatprep.subr.mxu0 0.0
        %2307 = vmatpush1.msra.mxu0 0.0
        %2308 = vmatprep.subr.mxu0 0.0
        %2309 = vmatpush1.msra.mxu0 0.0
        %2310 = vmatprep.subr.mxu0 0.0
        %2311 = vmatpush1.msra.mxu0 0.0
        %2312 = vmatprep.subr.mxu0 0.0
        %2313 = vmatpush1.msra.mxu0 0.0
        %2314 = vmatprep.subr.mxu0 0.0
        %2315 = vmatpush1.msra.mxu0 0.0
        %2316 = vmatprep.subr.mxu0 0.0
        %2317 = vmatpush1.msra.mxu0 0.0
        %2318 = vmatprep.subr.mxu0 0.0
        %2319 = vmatpush1.msra.mxu0 0.0
        %2320 = vmatprep.subr.mxu0 0.0
        %2321 = vmatpush1.msra.mxu0 0.0
        %2322 = vmatprep.subr.mxu0 0.0
        %2323 = vmatpush1.msra.mxu0 0.0
        %2324 = vmatprep.subr.mxu0 0.0
        %2325 = vmatpush1.msra.mxu0 0.0
        %2326 = vmatprep.subr.mxu0 0.0
        %2327 = vmatpush1.msra.mxu0 %v2189
        %2328 = vmatprep.subr.mxu0 0.0
        %2329 = vmatpush2.msra.mxu0 0.0
        %2330 = vmatprep.subr.mxu0 0.0
        %2331 = vmatpush2.msra.mxu0 0.0
        %2332 = vmatprep.subr.mxu0 0.0
        %2333 = vmatpush2.msra.mxu0 0.0
        %2334 = vmatprep.subr.mxu0 0.0
        %2335 = vmatpush2.msra.mxu0 0.0
        %2336 = vmatprep.subr.mxu0 0.0
        %2337 = vmatpush2.msra.mxu0 0.0
        %2338 = vmatprep.subr.mxu0 0.0
        %2339 = vmatpush2.msra.mxu0 0.0
        %2340 = vmatprep.subr.mxu0 0.0
        %2341 = vmatpush2.msra.mxu0 0.0
        %2342 = vmatprep.subr.mxu0 0.0
        %2343 = vmatpush2.msra.mxu0 0.0
        %2344 = vmatprep.subr.mxu0 0.0
        %2345 = vmatpush2.msra.mxu0 0.0
        %2346 = vmatprep.subr.mxu0 0.0
        %2347 = vmatpush2.msra.mxu0 0.0
        %2348 = vmatprep.subr.mxu0 0.0
        %2349 = vmatpush2.msra.mxu0 0.0
        %2350 = vmatprep.subr.mxu0 0.0
        %2351 = vmatpush2.msra.mxu0 0.0
        %2352 = vmatprep.subr.mxu0 0.0
        %2353 = vmatpush2.msra.mxu0 0.0
        %2354 = vmatprep.subr.mxu0 0.0
        %2355 = vmatpush2.msra.mxu0 0.0
        %2356 = vmatprep.subr.mxu0 0.0
        %2357 = vmatpush2.msra.mxu0 0.0
        %2358 = vmatprep.subr.mxu0 0.0
        %2359 = vmatpush2.msra.mxu0 0.0
        %2360 = vmatprep.mubr.f32.mxu0 0.0
        %2361 = vmatmul.mubr.f32.gmra.mxu0 %v2288
        %v2362 = vpop.f32.mrf.mxu0
        %v2363 = vadd.f32 0.0, %v2362
        %v2364 = vpop.f32.mrf.mxu0
        %2365 = vmatprep.mubr.f32.mxu0 0.0
        %2366 = vmatmul.mubr.f32.gmra.mxu0 %v2290
        %v2367 = vpop.f32.mrf.mxu0
        %v2368 = vadd.f32 0.0, %v2367
        %v2369 = vpop.f32.mrf.mxu0
        %2370 = vmatprep.mubr.f32.mxu0 0.0
        %2371 = vmatmul.mubr.f32.gmra.mxu0 %v2292
        %v2372 = vpop.f32.mrf.mxu0
        %v2373 = vadd.f32 0.0, %v2372
        %v2374 = vpop.f32.mrf.mxu0
        %2375 = vmatprep.mubr.f32.mxu0 0.0
        %2376 = vmatmul.mubr.f32.gmra.mxu0 %v2294
        %v2377 = vpop.f32.mrf.mxu0
        %v2378 = vadd.f32 0.0, %v2377
        %v2379 = vpop.f32.mrf.mxu0
        %2380 = vdwg.mxu0
        %s2381 = scalar_lea.vmem [#allocation4], 32
        %2382 = vst.msk [vmem:[%s2381] sm:$0xff] %vm589, %v2363
        %2383 = vst.msk [vmem:[%s2381 + $0x8] sm:$0xff] %vm589, %v2368
        %2384 = vst.msk [vmem:[%s2381 + $0x10] sm:$0xff] %vm589, %v2373
        %2385 = vst.msk [vmem:[%s2381 + $0x18] sm:$0xff] %vm589, %v2378
      $region80: #{segformer_head_forward.1} parent=75 // pred_fallthru
        _
      %v2386 = vld [vmem:[%s9] sm:$0xff]
      %v2387 = vld [vmem:[%s9 + $0x8] sm:$0xff]
      %v2388 = vld [vmem:[%s9 + $0x10] sm:$0xff]
      %v2389 = vld [vmem:[%s9 + $0x18] sm:$0xff]
      %v2390 = vld [vmem:[%s552] sm:$0xff]
      %v2391 = vld [vmem:[%s552 + $0x8] sm:$0xff]
      %s2392 = smul.u32 %s42, 16
      %s2393 = sld [smem:[#allocation6 + %s2392]]
      %s2394 = sadd.s32 %s2393, 1
      %p2395 = scmp.lt.s32.totalorder %s2394, 7
      %s2396 = scalar_select %p2395, %s2394, 7
      %s2397 = sld [smem:[#allocation7 + %s2392]]
      %s2398 = ssub.f32 1.0, %s2397
      %s2399 = smul.u32 %s2393, 32
      %s2400 = scalar_lea.vmem [#allocation2], %s2399
      %v2401 = vld [vmem:[%s2400] sm:$0xff]
      %v2402 = vld [vmem:[%s2400 + $0x8] sm:$0xff]
      %v2403 = vld [vmem:[%s2400 + $0x10] sm:$0xff]
      %v2404 = vld [vmem:[%s2400 + $0x18] sm:$0xff]
      %v2405 = vstv %s2398
      %v2406 = vmul.f32 %v2405, %v2401
      %v2407 = vmul.f32 %v2405, %v2402
      %v2408 = vmul.f32 %v2405, %v2403
      %v2409 = vmul.f32 %v2405, %v2404
      %s2410 = smul.u32 %s2396, 32
      %s2411 = scalar_lea.vmem [#allocation2], %s2410
      %v2412 = vld [vmem:[%s2411] sm:$0xff]
      %v2413 = vld [vmem:[%s2411 + $0x8] sm:$0xff]
      %v2414 = vld [vmem:[%s2411 + $0x10] sm:$0xff]
      %v2415 = vld [vmem:[%s2411 + $0x18] sm:$0xff]
      %v2416 = vstv %s2397
      %v2417 = vmul.f32 %v2416, %v2412
      %v2418 = vmul.f32 %v2416, %v2413
      %v2419 = vmul.f32 %v2416, %v2414
      %v2420 = vmul.f32 %v2416, %v2415
      %v2421 = vadd.f32 %v2406, %v2417
      %v2422 = vadd.f32 %v2407, %v2418
      %v2423 = vadd.f32 %v2408, %v2419
      %v2424 = vadd.f32 %v2409, %v2420
      %s2425 = sshra.s32 %s2392, 7
      %s2426 = sand.u32 %s2392, 127
      %s2427 = sadd.s32 %s2425, 1
      %s2428 = smul.u32 %s2427, 128
      %s2429 = sshra.s32 %s2392, 7
      %s2430 = sand.u32 %s2392, 127
      %s2431 = sadd.s32 %s2428, %s2430
      %s2432 = sld [smem:[#allocation6 + %s2431]]
      %s2433 = sadd.s32 %s2432, 1
      %p2434 = scmp.lt.s32.totalorder %s2433, 3
      %s2435 = scalar_select %p2434, %s2433, 3
      %s2436 = sld [smem:[#allocation7 + %s2431]]
      %s2437 = ssub.f32 1.0, %s2436
      %s2438 = smul.u32 %s2432, 32
      %s2439 = scalar_lea.vmem [#allocation3], %s2438
      %v2440 = vld [vmem:[%s2439] sm:$0xff]
      %v2441 = vld [vmem:[%s2439 + $0x8] sm:$0xff]
      %v2442 = vld [vmem:[%s2439 + $0x10] sm:$0xff]
      %v2443 = vld [vmem:[%s2439 + $0x18] sm:$0xff]
      %v2444 = vstv %s2437
      %v2445 = vmul.f32 %v2444, %v2440
      %v2446 = vmul.f32 %v2444, %v2441
      %v2447 = vmul.f32 %v2444, %v2442
      %v2448 = vmul.f32 %v2444, %v2443
      %s2449 = smul.u32 %s2435, 32
      %s2450 = scalar_lea.vmem [#allocation3], %s2449
      %v2451 = vld [vmem:[%s2450] sm:$0xff]
      %v2452 = vld [vmem:[%s2450 + $0x8] sm:$0xff]
      %v2453 = vld [vmem:[%s2450 + $0x10] sm:$0xff]
      %v2454 = vld [vmem:[%s2450 + $0x18] sm:$0xff]
      %v2455 = vstv %s2436
      %v2456 = vmul.f32 %v2455, %v2451
      %v2457 = vmul.f32 %v2455, %v2452
      %v2458 = vmul.f32 %v2455, %v2453
      %v2459 = vmul.f32 %v2455, %v2454
      %v2460 = vadd.f32 %v2445, %v2456
      %v2461 = vadd.f32 %v2446, %v2457
      %v2462 = vadd.f32 %v2447, %v2458
      %v2463 = vadd.f32 %v2448, %v2459
      %v2464 = vadd.f32 %v2421, %v2460
      %v2465 = vadd.f32 %v2422, %v2461
      %v2466 = vadd.f32 %v2423, %v2462
      %v2467 = vadd.f32 %v2424, %v2463
      %s2468 = sadd.s32 %s2425, 2
      %s2469 = smul.u32 %s2468, 128
      %s2470 = sadd.s32 %s2469, %s2430
      %s2471 = sld [smem:[#allocation6 + %s2470]]
      %s2472 = sadd.s32 %s2471, 1
      %p2473 = scmp.lt.s32.totalorder %s2472, 1
      %s2474 = scalar_select %p2473, %s2472, 1
      %s2475 = sld [smem:[#allocation7 + %s2470]]
      %s2476 = ssub.f32 1.0, %s2475
      %s2477 = smul.u32 %s2471, 32
      %s2478 = scalar_lea.vmem [#allocation4], %s2477
      %v2479 = vld [vmem:[%s2478] sm:$0xff]
      %v2480 = vld [vmem:[%s2478 + $0x8] sm:$0xff]
      %v2481 = vld [vmem:[%s2478 + $0x10] sm:$0xff]
      %v2482 = vld [vmem:[%s2478 + $0x18] sm:$0xff]
      %v2483 = vstv %s2476
      %v2484 = vmul.f32 %v2483, %v2479
      %v2485 = vmul.f32 %v2483, %v2480
      %v2486 = vmul.f32 %v2483, %v2481
      %v2487 = vmul.f32 %v2483, %v2482
      %s2488 = smul.u32 %s2474, 32
      %s2489 = scalar_lea.vmem [#allocation4], %s2488
      %v2490 = vld [vmem:[%s2489] sm:$0xff]
      %v2491 = vld [vmem:[%s2489 + $0x8] sm:$0xff]
      %v2492 = vld [vmem:[%s2489 + $0x10] sm:$0xff]
      %v2493 = vld [vmem:[%s2489 + $0x18] sm:$0xff]
      %v2494 = vstv %s2475
      %v2495 = vmul.f32 %v2494, %v2490
      %v2496 = vmul.f32 %v2494, %v2491
      %v2497 = vmul.f32 %v2494, %v2492
      %v2498 = vmul.f32 %v2494, %v2493
      %v2499 = vadd.f32 %v2484, %v2495
      %v2500 = vadd.f32 %v2485, %v2496
      %v2501 = vadd.f32 %v2486, %v2497
      %v2502 = vadd.f32 %v2487, %v2498
      %v2503 = vadd.f32 %v2464, %v2499
      %v2504 = vadd.f32 %v2465, %v2500
      %v2505 = vadd.f32 %v2466, %v2501
      %v2506 = vadd.f32 %v2467, %v2502
      %s2507 = sadd.s32 %s2392, 1
      %s2508 = sld [smem:[#allocation6 + %s2507]]
      %s2509 = sadd.s32 %s2508, 1
      %p2510 = scmp.lt.s32.totalorder %s2509, 7
      %s2511 = scalar_select %p2510, %s2509, 7
      %s2512 = sld [smem:[#allocation7 + %s2507]]
      %s2513 = ssub.f32 1.0, %s2512
      %s2514 = smul.u32 %s2508, 32
      %s2515 = scalar_lea.vmem [#allocation2], %s2514
      %v2516 = vld [vmem:[%s2515] sm:$0xff]
      %v2517 = vld [vmem:[%s2515 + $0x8] sm:$0xff]
      %v2518 = vld [vmem:[%s2515 + $0x10] sm:$0xff]
      %v2519 = vld [vmem:[%s2515 + $0x18] sm:$0xff]
      %v2520 = vstv %s2513
      %v2521 = vmul.f32 %v2520, %v2516
      %v2522 = vmul.f32 %v2520, %v2517
      %v2523 = vmul.f32 %v2520, %v2518
      %v2524 = vmul.f32 %v2520, %v2519
      %s2525 = smul.u32 %s2511, 32
      %s2526 = scalar_lea.vmem [#allocation2], %s2525
      %v2527 = vld [vmem:[%s2526] sm:$0xff]
      %v2528 = vld [vmem:[%s2526 + $0x8] sm:$0xff]
      %v2529 = vld [vmem:[%s2526 + $0x10] sm:$0xff]
      %v2530 = vld [vmem:[%s2526 + $0x18] sm:$0xff]
      %v2531 = vstv %s2512
      %v2532 = vmul.f32 %v2531, %v2527
      %v2533 = vmul.f32 %v2531, %v2528
      %v2534 = vmul.f32 %v2531, %v2529
      %v2535 = vmul.f32 %v2531, %v2530
      %v2536 = vadd.f32 %v2521, %v2532
      %v2537 = vadd.f32 %v2522, %v2533
      %v2538 = vadd.f32 %v2523, %v2534
      %v2539 = vadd.f32 %v2524, %v2535
      %s2540 = sshra.s32 %s2507, 7
      %s2541 = sand.u32 %s2507, 127
      %s2542 = sadd.s32 %s2540, 1
      %s2543 = smul.u32 %s2542, 128
      %s2544 = sshra.s32 %s2507, 7
      %s2545 = sand.u32 %s2507, 127
      %s2546 = sadd.s32 %s2543, %s2545
      %s2547 = sld [smem:[#allocation6 + %s2546]]
      %s2548 = sadd.s32 %s2547, 1
      %p2549 = scmp.lt.s32.totalorder %s2548, 3
      %s2550 = scalar_select %p2549, %s2548, 3
      %s2551 = sld [smem:[#allocation7 + %s2546]]
      %s2552 = ssub.f32 1.0, %s2551
      %s2553 = smul.u32 %s2547, 32
      %s2554 = scalar_lea.vmem [#allocation3], %s2553
      %v2555 = vld [vmem:[%s2554] sm:$0xff]
      %v2556 = vld [vmem:[%s2554 + $0x8] sm:$0xff]
      %v2557 = vld [vmem:[%s2554 + $0x10] sm:$0xff]
      %v2558 = vld [vmem:[%s2554 + $0x18] sm:$0xff]
      %v2559 = vstv %s2552
      %v2560 = vmul.f32 %v2559, %v2555
      %v2561 = vmul.f32 %v2559, %v2556
      %v2562 = vmul.f32 %v2559, %v2557
      %v2563 = vmul.f32 %v2559, %v2558
      %s2564 = smul.u32 %s2550, 32
      %s2565 = scalar_lea.vmem [#allocation3], %s2564
      %v2566 = vld [vmem:[%s2565] sm:$0xff]
      %v2567 = vld [vmem:[%s2565 + $0x8] sm:$0xff]
      %v2568 = vld [vmem:[%s2565 + $0x10] sm:$0xff]
      %v2569 = vld [vmem:[%s2565 + $0x18] sm:$0xff]
      %v2570 = vstv %s2551
      %v2571 = vmul.f32 %v2570, %v2566
      %v2572 = vmul.f32 %v2570, %v2567
      %v2573 = vmul.f32 %v2570, %v2568
      %v2574 = vmul.f32 %v2570, %v2569
      %v2575 = vadd.f32 %v2560, %v2571
      %v2576 = vadd.f32 %v2561, %v2572
      %v2577 = vadd.f32 %v2562, %v2573
      %v2578 = vadd.f32 %v2563, %v2574
      %v2579 = vadd.f32 %v2536, %v2575
      %v2580 = vadd.f32 %v2537, %v2576
      %v2581 = vadd.f32 %v2538, %v2577
      %v2582 = vadd.f32 %v2539, %v2578
      %s2583 = sadd.s32 %s2540, 2
      %s2584 = smul.u32 %s2583, 128
      %s2585 = sadd.s32 %s2584, %s2545
      %s2586 = sld [smem:[#allocation6 + %s2585]]
      %s2587 = sadd.s32 %s2586, 1
      %p2588 = scmp.lt.s32.totalorder %s2587, 1
      %s2589 = scalar_select %p2588, %s2587, 1
      %s2590 = sld [smem:[#allocation7 + %s2585]]
      %s2591 = ssub.f32 1.0, %s2590
      %s2592 = smul.u32 %s2586, 32
      %s2593 = scalar_lea.vmem [#allocation4], %s2592
      %v2594 = vld [vmem:[%s2593] sm:$0xff]
      %v2595 = vld [vmem:[%s2593 + $0x8] sm:$0xff]
      %v2596 = vld [vmem:[%s2593 + $0x10] sm:$0xff]
      %v2597 = vld [vmem:[%s2593 + $0x18] sm:$0xff]
      %v2598 = vstv %s2591
      %v2599 = vmul.f32 %v2598, %v2594
      %v2600 = vmul.f32 %v2598, %v2595
      %v2601 = vmul.f32 %v2598, %v2596
      %v2602 = vmul.f32 %v2598, %v2597
      %s2603 = smul.u32 %s2589, 32
      %s2604 = scalar_lea.vmem [#allocation4], %s2603
      %v2605 = vld [vmem:[%s2604] sm:$0xff]
      %v2606 = vld [vmem:[%s2604 + $0x8] sm:$0xff]
      %v2607 = vld [vmem:[%s2604 + $0x10] sm:$0xff]
      %v2608 = vld [vmem:[%s2604 + $0x18] sm:$0xff]
      %v2609 = vstv %s2590
      %v2610 = vmul.f32 %v2609, %v2605
      %v2611 = vmul.f32 %v2609, %v2606
      %v2612 = vmul.f32 %v2609, %v2607
      %v2613 = vmul.f32 %v2609, %v2608
      %v2614 = vadd.f32 %v2599, %v2610
      %v2615 = vadd.f32 %v2600, %v2611
      %v2616 = vadd.f32 %v2601, %v2612
      %v2617 = vadd.f32 %v2602, %v2613
      %v2618 = vadd.f32 %v2579, %v2614
      %v2619 = vadd.f32 %v2580, %v2615
      %v2620 = vadd.f32 %v2581, %v2616
      %v2621 = vadd.f32 %v2582, %v2617
      %s2622 = sadd.s32 %s2392, 2
      %s2623 = sld [smem:[#allocation6 + %s2622]]
      %s2624 = sadd.s32 %s2623, 1
      %p2625 = scmp.lt.s32.totalorder %s2624, 7
      %s2626 = scalar_select %p2625, %s2624, 7
      %s2627 = sld [smem:[#allocation7 + %s2622]]
      %s2628 = ssub.f32 1.0, %s2627
      %s2629 = smul.u32 %s2623, 32
      %s2630 = scalar_lea.vmem [#allocation2], %s2629
      %v2631 = vld [vmem:[%s2630] sm:$0xff]
      %v2632 = vld [vmem:[%s2630 + $0x8] sm:$0xff]
      %v2633 = vld [vmem:[%s2630 + $0x10] sm:$0xff]
      %v2634 = vld [vmem:[%s2630 + $0x18] sm:$0xff]
      %v2635 = vstv %s2628
      %v2636 = vmul.f32 %v2635, %v2631
      %v2637 = vmul.f32 %v2635, %v2632
      %v2638 = vmul.f32 %v2635, %v2633
      %v2639 = vmul.f32 %v2635, %v2634
      %s2640 = smul.u32 %s2626, 32
      %s2641 = scalar_lea.vmem [#allocation2], %s2640
      %v2642 = vld [vmem:[%s2641] sm:$0xff]
      %v2643 = vld [vmem:[%s2641 + $0x8] sm:$0xff]
      %v2644 = vld [vmem:[%s2641 + $0x10] sm:$0xff]
      %v2645 = vld [vmem:[%s2641 + $0x18] sm:$0xff]
      %v2646 = vstv %s2627
      %v2647 = vmul.f32 %v2646, %v2642
      %v2648 = vmul.f32 %v2646, %v2643
      %v2649 = vmul.f32 %v2646, %v2644
      %v2650 = vmul.f32 %v2646, %v2645
      %v2651 = vadd.f32 %v2636, %v2647
      %v2652 = vadd.f32 %v2637, %v2648
      %v2653 = vadd.f32 %v2638, %v2649
      %v2654 = vadd.f32 %v2639, %v2650
      %s2655 = sshra.s32 %s2622, 7
      %s2656 = sand.u32 %s2622, 127
      %s2657 = sadd.s32 %s2655, 1
      %s2658 = smul.u32 %s2657, 128
      %s2659 = sshra.s32 %s2622, 7
      %s2660 = sand.u32 %s2622, 127
      %s2661 = sadd.s32 %s2658, %s2660
      %s2662 = sld [smem:[#allocation6 + %s2661]]
      %s2663 = sadd.s32 %s2662, 1
      %p2664 = scmp.lt.s32.totalorder %s2663, 3
      %s2665 = scalar_select %p2664, %s2663, 3
      %s2666 = sld [smem:[#allocation7 + %s2661]]
      %s2667 = ssub.f32 1.0, %s2666
      %s2668 = smul.u32 %s2662, 32
      %s2669 = scalar_lea.vmem [#allocation3], %s2668
      %v2670 = vld [vmem:[%s2669] sm:$0xff]
      %v2671 = vld [vmem:[%s2669 + $0x8] sm:$0xff]
      %v2672 = vld [vmem:[%s2669 + $0x10] sm:$0xff]
      %v2673 = vld [vmem:[%s2669 + $0x18] sm:$0xff]
      %v2674 = vstv %s2667
      %v2675 = vmul.f32 %v2674, %v2670
      %v2676 = vmul.f32 %v2674, %v2671
      %v2677 = vmul.f32 %v2674, %v2672
      %v2678 = vmul.f32 %v2674, %v2673
      %s2679 = smul.u32 %s2665, 32
      %s2680 = scalar_lea.vmem [#allocation3], %s2679
      %v2681 = vld [vmem:[%s2680] sm:$0xff]
      %v2682 = vld [vmem:[%s2680 + $0x8] sm:$0xff]
      %v2683 = vld [vmem:[%s2680 + $0x10] sm:$0xff]
      %v2684 = vld [vmem:[%s2680 + $0x18] sm:$0xff]
      %v2685 = vstv %s2666
      %v2686 = vmul.f32 %v2685, %v2681
      %v2687 = vmul.f32 %v2685, %v2682
      %v2688 = vmul.f32 %v2685, %v2683
      %v2689 = vmul.f32 %v2685, %v2684
      %v2690 = vadd.f32 %v2675, %v2686
      %v2691 = vadd.f32 %v2676, %v2687
      %v2692 = vadd.f32 %v2677, %v2688
      %v2693 = vadd.f32 %v2678, %v2689
      %v2694 = vadd.f32 %v2651, %v2690
      %v2695 = vadd.f32 %v2652, %v2691
      %v2696 = vadd.f32 %v2653, %v2692
      %v2697 = vadd.f32 %v2654, %v2693
      %s2698 = sadd.s32 %s2655, 2
      %s2699 = smul.u32 %s2698, 128
      %s2700 = sadd.s32 %s2699, %s2660
      %s2701 = sld [smem:[#allocation6 + %s2700]]
      %s2702 = sadd.s32 %s2701, 1
      %p2703 = scmp.lt.s32.totalorder %s2702, 1
      %s2704 = scalar_select %p2703, %s2702, 1
      %s2705 = sld [smem:[#allocation7 + %s2700]]
      %s2706 = ssub.f32 1.0, %s2705
      %s2707 = smul.u32 %s2701, 32
      %s2708 = scalar_lea.vmem [#allocation4], %s2707
      %v2709 = vld [vmem:[%s2708] sm:$0xff]
      %v2710 = vld [vmem:[%s2708 + $0x8] sm:$0xff]
      %v2711 = vld [vmem:[%s2708 + $0x10] sm:$0xff]
      %v2712 = vld [vmem:[%s2708 + $0x18] sm:$0xff]
      %v2713 = vstv %s2706
      %v2714 = vmul.f32 %v2713, %v2709
      %v2715 = vmul.f32 %v2713, %v2710
      %v2716 = vmul.f32 %v2713, %v2711
      %v2717 = vmul.f32 %v2713, %v2712
      %s2718 = smul.u32 %s2704, 32
      %s2719 = scalar_lea.vmem [#allocation4], %s2718
      %v2720 = vld [vmem:[%s2719] sm:$0xff]
      %v2721 = vld [vmem:[%s2719 + $0x8] sm:$0xff]
      %v2722 = vld [vmem:[%s2719 + $0x10] sm:$0xff]
      %v2723 = vld [vmem:[%s2719 + $0x18] sm:$0xff]
      %v2724 = vstv %s2705
      %v2725 = vmul.f32 %v2724, %v2720
      %v2726 = vmul.f32 %v2724, %v2721
      %v2727 = vmul.f32 %v2724, %v2722
      %v2728 = vmul.f32 %v2724, %v2723
      %v2729 = vadd.f32 %v2714, %v2725
      %v2730 = vadd.f32 %v2715, %v2726
      %v2731 = vadd.f32 %v2716, %v2727
      %v2732 = vadd.f32 %v2717, %v2728
      %v2733 = vadd.f32 %v2694, %v2729
      %v2734 = vadd.f32 %v2695, %v2730
      %v2735 = vadd.f32 %v2696, %v2731
      %v2736 = vadd.f32 %v2697, %v2732
      %s2737 = sadd.s32 %s2392, 3
      %s2738 = sld [smem:[#allocation6 + %s2737]]
      %s2739 = sadd.s32 %s2738, 1
      %p2740 = scmp.lt.s32.totalorder %s2739, 7
      %s2741 = scalar_select %p2740, %s2739, 7
      %s2742 = sld [smem:[#allocation7 + %s2737]]
      %s2743 = ssub.f32 1.0, %s2742
      %s2744 = smul.u32 %s2738, 32
      %s2745 = scalar_lea.vmem [#allocation2], %s2744
      %v2746 = vld [vmem:[%s2745] sm:$0xff]
      %v2747 = vld [vmem:[%s2745 + $0x8] sm:$0xff]
      %v2748 = vld [vmem:[%s2745 + $0x10] sm:$0xff]
      %v2749 = vld [vmem:[%s2745 + $0x18] sm:$0xff]
      %v2750 = vstv %s2743
      %v2751 = vmul.f32 %v2750, %v2746
      %v2752 = vmul.f32 %v2750, %v2747
      %v2753 = vmul.f32 %v2750, %v2748
      %v2754 = vmul.f32 %v2750, %v2749
      %s2755 = smul.u32 %s2741, 32
      %s2756 = scalar_lea.vmem [#allocation2], %s2755
      %v2757 = vld [vmem:[%s2756] sm:$0xff]
      %v2758 = vld [vmem:[%s2756 + $0x8] sm:$0xff]
      %v2759 = vld [vmem:[%s2756 + $0x10] sm:$0xff]
      %v2760 = vld [vmem:[%s2756 + $0x18] sm:$0xff]
      %v2761 = vstv %s2742
      %v2762 = vmul.f32 %v2761, %v2757
      %v2763 = vmul.f32 %v2761, %v2758
      %v2764 = vmul.f32 %v2761, %v2759
      %v2765 = vmul.f32 %v2761, %v2760
      %v2766 = vadd.f32 %v2751, %v2762
      %v2767 = vadd.f32 %v2752, %v2763
      %v2768 = vadd.f32 %v2753, %v2764
      %v2769 = vadd.f32 %v2754, %v2765
      %s2770 = sshra.s32 %s2737, 7
      %s2771 = sand.u32 %s2737, 127
      %s2772 = sadd.s32 %s2770, 1
      %s2773 = smul.u32 %s2772, 128
      %s2774 = sshra.s32 %s2737, 7
      %s2775 = sand.u32 %s2737, 127
      %s2776 = sadd.s32 %s2773, %s2775
      %s2777 = sld [smem:[#allocation6 + %s2776]]
      %s2778 = sadd.s32 %s2777, 1
      %p2779 = scmp.lt.s32.totalorder %s2778, 3
      %s2780 = scalar_select %p2779, %s2778, 3
      %s2781 = sld [smem:[#allocation7 + %s2776]]
      %s2782 = ssub.f32 1.0, %s2781
      %s2783 = smul.u32 %s2777, 32
      %s2784 = scalar_lea.vmem [#allocation3], %s2783
      %v2785 = vld [vmem:[%s2784] sm:$0xff]
      %v2786 = vld [vmem:[%s2784 + $0x8] sm:$0xff]
      %v2787 = vld [vmem:[%s2784 + $0x10] sm:$0xff]
      %v2788 = vld [vmem:[%s2784 + $0x18] sm:$0xff]
      %v2789 = vstv %s2782
      %v2790 = vmul.f32 %v2789, %v2785
      %v2791 = vmul.f32 %v2789, %v2786
      %v2792 = vmul.f32 %v2789, %v2787
      %v2793 = vmul.f32 %v2789, %v2788
      %s2794 = smul.u32 %s2780, 32
      %s2795 = scalar_lea.vmem [#allocation3], %s2794
      %v2796 = vld [vmem:[%s2795] sm:$0xff]
      %v2797 = vld [vmem:[%s2795 + $0x8] sm:$0xff]
      %v2798 = vld [vmem:[%s2795 + $0x10] sm:$0xff]
      %v2799 = vld [vmem:[%s2795 + $0x18] sm:$0xff]
      %v2800 = vstv %s2781
      %v2801 = vmul.f32 %v2800, %v2796
      %v2802 = vmul.f32 %v2800, %v2797
      %v2803 = vmul.f32 %v2800, %v2798
      %v2804 = vmul.f32 %v2800, %v2799
      %v2805 = vadd.f32 %v2790, %v2801
      %v2806 = vadd.f32 %v2791, %v2802
      %v2807 = vadd.f32 %v2792, %v2803
      %v2808 = vadd.f32 %v2793, %v2804
      %v2809 = vadd.f32 %v2766, %v2805
      %v2810 = vadd.f32 %v2767, %v2806
      %v2811 = vadd.f32 %v2768, %v2807
      %v2812 = vadd.f32 %v2769, %v2808
      %s2813 = sadd.s32 %s2770, 2
      %s2814 = smul.u32 %s2813, 128
      %s2815 = sadd.s32 %s2814, %s2775
      %s2816 = sld [smem:[#allocation6 + %s2815]]
      %s2817 = sadd.s32 %s2816, 1
      %p2818 = scmp.lt.s32.totalorder %s2817, 1
      %s2819 = scalar_select %p2818, %s2817, 1
      %s2820 = sld [smem:[#allocation7 + %s2815]]
      %s2821 = ssub.f32 1.0, %s2820
      %s2822 = smul.u32 %s2816, 32
      %s2823 = scalar_lea.vmem [#allocation4], %s2822
      %v2824 = vld [vmem:[%s2823] sm:$0xff]
      %v2825 = vld [vmem:[%s2823 + $0x8] sm:$0xff]
      %v2826 = vld [vmem:[%s2823 + $0x10] sm:$0xff]
      %v2827 = vld [vmem:[%s2823 + $0x18] sm:$0xff]
      %v2828 = vstv %s2821
      %v2829 = vmul.f32 %v2828, %v2824
      %v2830 = vmul.f32 %v2828, %v2825
      %v2831 = vmul.f32 %v2828, %v2826
      %v2832 = vmul.f32 %v2828, %v2827
      %s2833 = smul.u32 %s2819, 32
      %s2834 = scalar_lea.vmem [#allocation4], %s2833
      %v2835 = vld [vmem:[%s2834] sm:$0xff]
      %v2836 = vld [vmem:[%s2834 + $0x8] sm:$0xff]
      %v2837 = vld [vmem:[%s2834 + $0x10] sm:$0xff]
      %v2838 = vld [vmem:[%s2834 + $0x18] sm:$0xff]
      %v2839 = vstv %s2820
      %v2840 = vmul.f32 %v2839, %v2835
      %v2841 = vmul.f32 %v2839, %v2836
      %v2842 = vmul.f32 %v2839, %v2837
      %v2843 = vmul.f32 %v2839, %v2838
      %v2844 = vadd.f32 %v2829, %v2840
      %v2845 = vadd.f32 %v2830, %v2841
      %v2846 = vadd.f32 %v2831, %v2842
      %v2847 = vadd.f32 %v2832, %v2843
      %v2848 = vadd.f32 %v2809, %v2844
      %v2849 = vadd.f32 %v2810, %v2845
      %v2850 = vadd.f32 %v2811, %v2846
      %v2851 = vadd.f32 %v2812, %v2847
      %s2852 = sadd.s32 %s2392, 4
      %s2853 = sld [smem:[#allocation6 + %s2852]]
      %s2854 = sadd.s32 %s2853, 1
      %p2855 = scmp.lt.s32.totalorder %s2854, 7
      %s2856 = scalar_select %p2855, %s2854, 7
      %s2857 = sld [smem:[#allocation7 + %s2852]]
      %s2858 = ssub.f32 1.0, %s2857
      %s2859 = smul.u32 %s2853, 32
      %s2860 = scalar_lea.vmem [#allocation2], %s2859
      %v2861 = vld [vmem:[%s2860] sm:$0xff]
      %v2862 = vld [vmem:[%s2860 + $0x8] sm:$0xff]
      %v2863 = vld [vmem:[%s2860 + $0x10] sm:$0xff]
      %v2864 = vld [vmem:[%s2860 + $0x18] sm:$0xff]
      %v2865 = vstv %s2858
      %v2866 = vmul.f32 %v2865, %v2861
      %v2867 = vmul.f32 %v2865, %v2862
      %v2868 = vmul.f32 %v2865, %v2863
      %v2869 = vmul.f32 %v2865, %v2864
      %s2870 = smul.u32 %s2856, 32
      %s2871 = scalar_lea.vmem [#allocation2], %s2870
      %v2872 = vld [vmem:[%s2871] sm:$0xff]
      %v2873 = vld [vmem:[%s2871 + $0x8] sm:$0xff]
      %v2874 = vld [vmem:[%s2871 + $0x10] sm:$0xff]
      %v2875 = vld [vmem:[%s2871 + $0x18] sm:$0xff]
      %v2876 = vstv %s2857
      %v2877 = vmul.f32 %v2876, %v2872
      %v2878 = vmul.f32 %v2876, %v2873
      %v2879 = vmul.f32 %v2876, %v2874
      %v2880 = vmul.f32 %v2876, %v2875
      %v2881 = vadd.f32 %v2866, %v2877
      %v2882 = vadd.f32 %v2867, %v2878
      %v2883 = vadd.f32 %v2868, %v2879
      %v2884 = vadd.f32 %v2869, %v2880
      %s2885 = sshra.s32 %s2852, 7
      %s2886 = sand.u32 %s2852, 127
      %s2887 = sadd.s32 %s2885, 1
      %s2888 = smul.u32 %s2887, 128
      %s2889 = sshra.s32 %s2852, 7
      %s2890 = sand.u32 %s2852, 127
      %s2891 = sadd.s32 %s2888, %s2890
      %s2892 = sld [smem:[#allocation6 + %s2891]]
      %s2893 = sadd.s32 %s2892, 1
      %p2894 = scmp.lt.s32.totalorder %s2893, 3
      %s2895 = scalar_select %p2894, %s2893, 3
      %s2896 = sld [smem:[#allocation7 + %s2891]]
      %s2897 = ssub.f32 1.0, %s2896
      %s2898 = smul.u32 %s2892, 32
      %s2899 = scalar_lea.vmem [#allocation3], %s2898
      %v2900 = vld [vmem:[%s2899] sm:$0xff]
      %v2901 = vld [vmem:[%s2899 + $0x8] sm:$0xff]
      %v2902 = vld [vmem:[%s2899 + $0x10] sm:$0xff]
      %v2903 = vld [vmem:[%s2899 + $0x18] sm:$0xff]
      %v2904 = vstv %s2897
      %v2905 = vmul.f32 %v2904, %v2900
      %v2906 = vmul.f32 %v2904, %v2901
      %v2907 = vmul.f32 %v2904, %v2902
      %v2908 = vmul.f32 %v2904, %v2903
      %s2909 = smul.u32 %s2895, 32
      %s2910 = scalar_lea.vmem [#allocation3], %s2909
      %v2911 = vld [vmem:[%s2910] sm:$0xff]
      %v2912 = vld [vmem:[%s2910 + $0x8] sm:$0xff]
      %v2913 = vld [vmem:[%s2910 + $0x10] sm:$0xff]
      %v2914 = vld [vmem:[%s2910 + $0x18] sm:$0xff]
      %v2915 = vstv %s2896
      %v2916 = vmul.f32 %v2915, %v2911
      %v2917 = vmul.f32 %v2915, %v2912
      %v2918 = vmul.f32 %v2915, %v2913
      %v2919 = vmul.f32 %v2915, %v2914
      %v2920 = vadd.f32 %v2905, %v2916
      %v2921 = vadd.f32 %v2906, %v2917
      %v2922 = vadd.f32 %v2907, %v2918
      %v2923 = vadd.f32 %v2908, %v2919
      %v2924 = vadd.f32 %v2881, %v2920
      %v2925 = vadd.f32 %v2882, %v2921
      %v2926 = vadd.f32 %v2883, %v2922
      %v2927 = vadd.f32 %v2884, %v2923
      %s2928 = sadd.s32 %s2885, 2
      %s2929 = smul.u32 %s2928, 128
      %s2930 = sadd.s32 %s2929, %s2890
      %s2931 = sld [smem:[#allocation6 + %s2930]]
      %s2932 = sadd.s32 %s2931, 1
      %p2933 = scmp.lt.s32.totalorder %s2932, 1
      %s2934 = scalar_select %p2933, %s2932, 1
      %s2935 = sld [smem:[#allocation7 + %s2930]]
      %s2936 = ssub.f32 1.0, %s2935
      %s2937 = smul.u32 %s2931, 32
      %s2938 = scalar_lea.vmem [#allocation4], %s2937
      %v2939 = vld [vmem:[%s2938] sm:$0xff]
      %v2940 = vld [vmem:[%s2938 + $0x8] sm:$0xff]
      %v2941 = vld [vmem:[%s2938 + $0x10] sm:$0xff]
      %v2942 = vld [vmem:[%s2938 + $0x18] sm:$0xff]
      %v2943 = vstv %s2936
      %v2944 = vmul.f32 %v2943, %v2939
      %v2945 = vmul.f32 %v2943, %v2940
      %v2946 = vmul.f32 %v2943, %v2941
      %v2947 = vmul.f32 %v2943, %v2942
      %s2948 = smul.u32 %s2934, 32
      %s2949 = scalar_lea.vmem [#allocation4], %s2948
      %v2950 = vld [vmem:[%s2949] sm:$0xff]
      %v2951 = vld [vmem:[%s2949 + $0x8] sm:$0xff]
      %v2952 = vld [vmem:[%s2949 + $0x10] sm:$0xff]
      %v2953 = vld [vmem:[%s2949 + $0x18] sm:$0xff]
      %v2954 = vstv %s2935
      %v2955 = vmul.f32 %v2954, %v2950
      %v2956 = vmul.f32 %v2954, %v2951
      %v2957 = vmul.f32 %v2954, %v2952
      %v2958 = vmul.f32 %v2954, %v2953
      %v2959 = vadd.f32 %v2944, %v2955
      %v2960 = vadd.f32 %v2945, %v2956
      %v2961 = vadd.f32 %v2946, %v2957
      %v2962 = vadd.f32 %v2947, %v2958
      %v2963 = vadd.f32 %v2924, %v2959
      %v2964 = vadd.f32 %v2925, %v2960
      %v2965 = vadd.f32 %v2926, %v2961
      %v2966 = vadd.f32 %v2927, %v2962
      %s2967 = sadd.s32 %s2392, 5
      %s2968 = sld [smem:[#allocation6 + %s2967]]
      %s2969 = sadd.s32 %s2968, 1
      %p2970 = scmp.lt.s32.totalorder %s2969, 7
      %s2971 = scalar_select %p2970, %s2969, 7
      %s2972 = sld [smem:[#allocation7 + %s2967]]
      %s2973 = ssub.f32 1.0, %s2972
      %s2974 = smul.u32 %s2968, 32
      %s2975 = scalar_lea.vmem [#allocation2], %s2974
      %v2976 = vld [vmem:[%s2975] sm:$0xff]
      %v2977 = vld [vmem:[%s2975 + $0x8] sm:$0xff]
      %v2978 = vld [vmem:[%s2975 + $0x10] sm:$0xff]
      %v2979 = vld [vmem:[%s2975 + $0x18] sm:$0xff]
      %v2980 = vstv %s2973
      %v2981 = vmul.f32 %v2980, %v2976
      %v2982 = vmul.f32 %v2980, %v2977
      %v2983 = vmul.f32 %v2980, %v2978
      %v2984 = vmul.f32 %v2980, %v2979
      %s2985 = smul.u32 %s2971, 32
      %s2986 = scalar_lea.vmem [#allocation2], %s2985
      %v2987 = vld [vmem:[%s2986] sm:$0xff]
      %v2988 = vld [vmem:[%s2986 + $0x8] sm:$0xff]
      %v2989 = vld [vmem:[%s2986 + $0x10] sm:$0xff]
      %v2990 = vld [vmem:[%s2986 + $0x18] sm:$0xff]
      %v2991 = vstv %s2972
      %v2992 = vmul.f32 %v2991, %v2987
      %v2993 = vmul.f32 %v2991, %v2988
      %v2994 = vmul.f32 %v2991, %v2989
      %v2995 = vmul.f32 %v2991, %v2990
      %v2996 = vadd.f32 %v2981, %v2992
      %v2997 = vadd.f32 %v2982, %v2993
      %v2998 = vadd.f32 %v2983, %v2994
      %v2999 = vadd.f32 %v2984, %v2995
      %s3000 = sshra.s32 %s2967, 7
      %s3001 = sand.u32 %s2967, 127
      %s3002 = sadd.s32 %s3000, 1
      %s3003 = smul.u32 %s3002, 128
      %s3004 = sshra.s32 %s2967, 7
      %s3005 = sand.u32 %s2967, 127
      %s3006 = sadd.s32 %s3003, %s3005
      %s3007 = sld [smem:[#allocation6 + %s3006]]
      %s3008 = sadd.s32 %s3007, 1
      %p3009 = scmp.lt.s32.totalorder %s3008, 3
      %s3010 = scalar_select %p3009, %s3008, 3
      %s3011 = sld [smem:[#allocation7 + %s3006]]
      %s3012 = ssub.f32 1.0, %s3011
      %s3013 = smul.u32 %s3007, 32
      %s3014 = scalar_lea.vmem [#allocation3], %s3013
      %v3015 = vld [vmem:[%s3014] sm:$0xff]
      %v3016 = vld [vmem:[%s3014 + $0x8] sm:$0xff]
      %v3017 = vld [vmem:[%s3014 + $0x10] sm:$0xff]
      %v3018 = vld [vmem:[%s3014 + $0x18] sm:$0xff]
      %v3019 = vstv %s3012
      %v3020 = vmul.f32 %v3019, %v3015
      %v3021 = vmul.f32 %v3019, %v3016
      %v3022 = vmul.f32 %v3019, %v3017
      %v3023 = vmul.f32 %v3019, %v3018
      %s3024 = smul.u32 %s3010, 32
      %s3025 = scalar_lea.vmem [#allocation3], %s3024
      %v3026 = vld [vmem:[%s3025] sm:$0xff]
      %v3027 = vld [vmem:[%s3025 + $0x8] sm:$0xff]
      %v3028 = vld [vmem:[%s3025 + $0x10] sm:$0xff]
      %v3029 = vld [vmem:[%s3025 + $0x18] sm:$0xff]
      %v3030 = vstv %s3011
      %v3031 = vmul.f32 %v3030, %v3026
      %v3032 = vmul.f32 %v3030, %v3027
      %v3033 = vmul.f32 %v3030, %v3028
      %v3034 = vmul.f32 %v3030, %v3029
      %v3035 = vadd.f32 %v3020, %v3031
      %v3036 = vadd.f32 %v3021, %v3032
      %v3037 = vadd.f32 %v3022, %v3033
      %v3038 = vadd.f32 %v3023, %v3034
      %v3039 = vadd.f32 %v2996, %v3035
      %v3040 = vadd.f32 %v2997, %v3036
      %v3041 = vadd.f32 %v2998, %v3037
      %v3042 = vadd.f32 %v2999, %v3038
      %s3043 = sadd.s32 %s3000, 2
      %s3044 = smul.u32 %s3043, 128
      %s3045 = sadd.s32 %s3044, %s3005
      %s3046 = sld [smem:[#allocation6 + %s3045]]
      %s3047 = sadd.s32 %s3046, 1
      %p3048 = scmp.lt.s32.totalorder %s3047, 1
      %s3049 = scalar_select %p3048, %s3047, 1
      %s3050 = sld [smem:[#allocation7 + %s3045]]
      %s3051 = ssub.f32 1.0, %s3050
      %s3052 = smul.u32 %s3046, 32
      %s3053 = scalar_lea.vmem [#allocation4], %s3052
      %v3054 = vld [vmem:[%s3053] sm:$0xff]
      %v3055 = vld [vmem:[%s3053 + $0x8] sm:$0xff]
      %v3056 = vld [vmem:[%s3053 + $0x10] sm:$0xff]
      %v3057 = vld [vmem:[%s3053 + $0x18] sm:$0xff]
      %v3058 = vstv %s3051
      %v3059 = vmul.f32 %v3058, %v3054
      %v3060 = vmul.f32 %v3058, %v3055
      %v3061 = vmul.f32 %v3058, %v3056
      %v3062 = vmul.f32 %v3058, %v3057
      %s3063 = smul.u32 %s3049, 32
      %s3064 = scalar_lea.vmem [#allocation4], %s3063
      %v3065 = vld [vmem:[%s3064] sm:$0xff]
      %v3066 = vld [vmem:[%s3064 + $0x8] sm:$0xff]
      %v3067 = vld [vmem:[%s3064 + $0x10] sm:$0xff]
      %v3068 = vld [vmem:[%s3064 + $0x18] sm:$0xff]
      %v3069 = vstv %s3050
      %v3070 = vmul.f32 %v3069, %v3065
      %v3071 = vmul.f32 %v3069, %v3066
      %v3072 = vmul.f32 %v3069, %v3067
      %v3073 = vmul.f32 %v3069, %v3068
      %v3074 = vadd.f32 %v3059, %v3070
      %v3075 = vadd.f32 %v3060, %v3071
      %v3076 = vadd.f32 %v3061, %v3072
      %v3077 = vadd.f32 %v3062, %v3073
      %v3078 = vadd.f32 %v3039, %v3074
      %v3079 = vadd.f32 %v3040, %v3075
      %v3080 = vadd.f32 %v3041, %v3076
      %v3081 = vadd.f32 %v3042, %v3077
      %s3082 = sadd.s32 %s2392, 6
      %s3083 = sld [smem:[#allocation6 + %s3082]]
      %s3084 = sadd.s32 %s3083, 1
      %p3085 = scmp.lt.s32.totalorder %s3084, 7
      %s3086 = scalar_select %p3085, %s3084, 7
      %s3087 = sld [smem:[#allocation7 + %s3082]]
      %s3088 = ssub.f32 1.0, %s3087
      %s3089 = smul.u32 %s3083, 32
      %s3090 = scalar_lea.vmem [#allocation2], %s3089
      %v3091 = vld [vmem:[%s3090] sm:$0xff]
      %v3092 = vld [vmem:[%s3090 + $0x8] sm:$0xff]
      %v3093 = vld [vmem:[%s3090 + $0x10] sm:$0xff]
      %v3094 = vld [vmem:[%s3090 + $0x18] sm:$0xff]
      %v3095 = vstv %s3088
      %v3096 = vmul.f32 %v3095, %v3091
      %v3097 = vmul.f32 %v3095, %v3092
      %v3098 = vmul.f32 %v3095, %v3093
      %v3099 = vmul.f32 %v3095, %v3094
      %s3100 = smul.u32 %s3086, 32
      %s3101 = scalar_lea.vmem [#allocation2], %s3100
      %v3102 = vld [vmem:[%s3101] sm:$0xff]
      %v3103 = vld [vmem:[%s3101 + $0x8] sm:$0xff]
      %v3104 = vld [vmem:[%s3101 + $0x10] sm:$0xff]
      %v3105 = vld [vmem:[%s3101 + $0x18] sm:$0xff]
      %v3106 = vstv %s3087
      %v3107 = vmul.f32 %v3106, %v3102
      %v3108 = vmul.f32 %v3106, %v3103
      %v3109 = vmul.f32 %v3106, %v3104
      %v3110 = vmul.f32 %v3106, %v3105
      %v3111 = vadd.f32 %v3096, %v3107
      %v3112 = vadd.f32 %v3097, %v3108
      %v3113 = vadd.f32 %v3098, %v3109
      %v3114 = vadd.f32 %v3099, %v3110
      %s3115 = sshra.s32 %s3082, 7
      %s3116 = sand.u32 %s3082, 127
      %s3117 = sadd.s32 %s3115, 1
      %s3118 = smul.u32 %s3117, 128
      %s3119 = sshra.s32 %s3082, 7
      %s3120 = sand.u32 %s3082, 127
      %s3121 = sadd.s32 %s3118, %s3120
      %s3122 = sld [smem:[#allocation6 + %s3121]]
      %s3123 = sadd.s32 %s3122, 1
      %p3124 = scmp.lt.s32.totalorder %s3123, 3
      %s3125 = scalar_select %p3124, %s3123, 3
      %s3126 = sld [smem:[#allocation7 + %s3121]]
      %s3127 = ssub.f32 1.0, %s3126
      %s3128 = smul.u32 %s3122, 32
      %s3129 = scalar_lea.vmem [#allocation3], %s3128
      %v3130 = vld [vmem:[%s3129] sm:$0xff]
      %v3131 = vld [vmem:[%s3129 + $0x8] sm:$0xff]
      %v3132 = vld [vmem:[%s3129 + $0x10] sm:$0xff]
      %v3133 = vld [vmem:[%s3129 + $0x18] sm:$0xff]
      %v3134 = vstv %s3127
      %v3135 = vmul.f32 %v3134, %v3130
      %v3136 = vmul.f32 %v3134, %v3131
      %v3137 = vmul.f32 %v3134, %v3132
      %v3138 = vmul.f32 %v3134, %v3133
      %s3139 = smul.u32 %s3125, 32
      %s3140 = scalar_lea.vmem [#allocation3], %s3139
      %v3141 = vld [vmem:[%s3140] sm:$0xff]
      %v3142 = vld [vmem:[%s3140 + $0x8] sm:$0xff]
      %v3143 = vld [vmem:[%s3140 + $0x10] sm:$0xff]
      %v3144 = vld [vmem:[%s3140 + $0x18] sm:$0xff]
      %v3145 = vstv %s3126
      %v3146 = vmul.f32 %v3145, %v3141
      %v3147 = vmul.f32 %v3145, %v3142
      %v3148 = vmul.f32 %v3145, %v3143
      %v3149 = vmul.f32 %v3145, %v3144
      %v3150 = vadd.f32 %v3135, %v3146
      %v3151 = vadd.f32 %v3136, %v3147
      %v3152 = vadd.f32 %v3137, %v3148
      %v3153 = vadd.f32 %v3138, %v3149
      %v3154 = vadd.f32 %v3111, %v3150
      %v3155 = vadd.f32 %v3112, %v3151
      %v3156 = vadd.f32 %v3113, %v3152
      %v3157 = vadd.f32 %v3114, %v3153
      %s3158 = sadd.s32 %s3115, 2
      %s3159 = smul.u32 %s3158, 128
      %s3160 = sadd.s32 %s3159, %s3120
      %s3161 = sld [smem:[#allocation6 + %s3160]]
      %s3162 = sadd.s32 %s3161, 1
      %p3163 = scmp.lt.s32.totalorder %s3162, 1
      %s3164 = scalar_select %p3163, %s3162, 1
      %s3165 = sld [smem:[#allocation7 + %s3160]]
      %s3166 = ssub.f32 1.0, %s3165
      %s3167 = smul.u32 %s3161, 32
      %s3168 = scalar_lea.vmem [#allocation4], %s3167
      %v3169 = vld [vmem:[%s3168] sm:$0xff]
      %v3170 = vld [vmem:[%s3168 + $0x8] sm:$0xff]
      %v3171 = vld [vmem:[%s3168 + $0x10] sm:$0xff]
      %v3172 = vld [vmem:[%s3168 + $0x18] sm:$0xff]
      %v3173 = vstv %s3166
      %v3174 = vmul.f32 %v3173, %v3169
      %v3175 = vmul.f32 %v3173, %v3170
      %v3176 = vmul.f32 %v3173, %v3171
      %v3177 = vmul.f32 %v3173, %v3172
      %s3178 = smul.u32 %s3164, 32
      %s3179 = scalar_lea.vmem [#allocation4], %s3178
      %v3180 = vld [vmem:[%s3179] sm:$0xff]
      %v3181 = vld [vmem:[%s3179 + $0x8] sm:$0xff]
      %v3182 = vld [vmem:[%s3179 + $0x10] sm:$0xff]
      %v3183 = vld [vmem:[%s3179 + $0x18] sm:$0xff]
      %v3184 = vstv %s3165
      %v3185 = vmul.f32 %v3184, %v3180
      %v3186 = vmul.f32 %v3184, %v3181
      %v3187 = vmul.f32 %v3184, %v3182
      %v3188 = vmul.f32 %v3184, %v3183
      %v3189 = vadd.f32 %v3174, %v3185
      %v3190 = vadd.f32 %v3175, %v3186
      %v3191 = vadd.f32 %v3176, %v3187
      %v3192 = vadd.f32 %v3177, %v3188
      %v3193 = vadd.f32 %v3154, %v3189
      %v3194 = vadd.f32 %v3155, %v3190
      %v3195 = vadd.f32 %v3156, %v3191
      %v3196 = vadd.f32 %v3157, %v3192
      %s3197 = sadd.s32 %s2392, 7
      %s3198 = sld [smem:[#allocation6 + %s3197]]
      %s3199 = sadd.s32 %s3198, 1
      %p3200 = scmp.lt.s32.totalorder %s3199, 7
      %s3201 = scalar_select %p3200, %s3199, 7
      %s3202 = sld [smem:[#allocation7 + %s3197]]
      %s3203 = ssub.f32 1.0, %s3202
      %s3204 = smul.u32 %s3198, 32
      %s3205 = scalar_lea.vmem [#allocation2], %s3204
      %v3206 = vld [vmem:[%s3205] sm:$0xff]
      %v3207 = vld [vmem:[%s3205 + $0x8] sm:$0xff]
      %v3208 = vld [vmem:[%s3205 + $0x10] sm:$0xff]
      %v3209 = vld [vmem:[%s3205 + $0x18] sm:$0xff]
      %v3210 = vstv %s3203
      %v3211 = vmul.f32 %v3210, %v3206
      %v3212 = vmul.f32 %v3210, %v3207
      %v3213 = vmul.f32 %v3210, %v3208
      %v3214 = vmul.f32 %v3210, %v3209
      %s3215 = smul.u32 %s3201, 32
      %s3216 = scalar_lea.vmem [#allocation2], %s3215
      %v3217 = vld [vmem:[%s3216] sm:$0xff]
      %v3218 = vld [vmem:[%s3216 + $0x8] sm:$0xff]
      %v3219 = vld [vmem:[%s3216 + $0x10] sm:$0xff]
      %v3220 = vld [vmem:[%s3216 + $0x18] sm:$0xff]
      %v3221 = vstv %s3202
      %v3222 = vmul.f32 %v3221, %v3217
      %v3223 = vmul.f32 %v3221, %v3218
      %v3224 = vmul.f32 %v3221, %v3219
      %v3225 = vmul.f32 %v3221, %v3220
      %v3226 = vadd.f32 %v3211, %v3222
      %v3227 = vadd.f32 %v3212, %v3223
      %v3228 = vadd.f32 %v3213, %v3224
      %v3229 = vadd.f32 %v3214, %v3225
      %s3230 = sshra.s32 %s3197, 7
      %s3231 = sand.u32 %s3197, 127
      %s3232 = sadd.s32 %s3230, 1
      %s3233 = smul.u32 %s3232, 128
      %s3234 = sshra.s32 %s3197, 7
      %s3235 = sand.u32 %s3197, 127
      %s3236 = sadd.s32 %s3233, %s3235
      %s3237 = sld [smem:[#allocation6 + %s3236]]
      %s3238 = sadd.s32 %s3237, 1
      %p3239 = scmp.lt.s32.totalorder %s3238, 3
      %s3240 = scalar_select %p3239, %s3238, 3
      %s3241 = sld [smem:[#allocation7 + %s3236]]
      %s3242 = ssub.f32 1.0, %s3241
      %s3243 = smul.u32 %s3237, 32
      %s3244 = scalar_lea.vmem [#allocation3], %s3243
      %v3245 = vld [vmem:[%s3244] sm:$0xff]
      %v3246 = vld [vmem:[%s3244 + $0x8] sm:$0xff]
      %v3247 = vld [vmem:[%s3244 + $0x10] sm:$0xff]
      %v3248 = vld [vmem:[%s3244 + $0x18] sm:$0xff]
      %v3249 = vstv %s3242
      %v3250 = vmul.f32 %v3249, %v3245
      %v3251 = vmul.f32 %v3249, %v3246
      %v3252 = vmul.f32 %v3249, %v3247
      %v3253 = vmul.f32 %v3249, %v3248
      %s3254 = smul.u32 %s3240, 32
      %s3255 = scalar_lea.vmem [#allocation3], %s3254
      %v3256 = vld [vmem:[%s3255] sm:$0xff]
      %v3257 = vld [vmem:[%s3255 + $0x8] sm:$0xff]
      %v3258 = vld [vmem:[%s3255 + $0x10] sm:$0xff]
      %v3259 = vld [vmem:[%s3255 + $0x18] sm:$0xff]
      %v3260 = vstv %s3241
      %v3261 = vmul.f32 %v3260, %v3256
      %v3262 = vmul.f32 %v3260, %v3257
      %v3263 = vmul.f32 %v3260, %v3258
      %v3264 = vmul.f32 %v3260, %v3259
      %v3265 = vadd.f32 %v3250, %v3261
      %v3266 = vadd.f32 %v3251, %v3262
      %v3267 = vadd.f32 %v3252, %v3263
      %v3268 = vadd.f32 %v3253, %v3264
      %v3269 = vadd.f32 %v3226, %v3265
      %v3270 = vadd.f32 %v3227, %v3266
      %v3271 = vadd.f32 %v3228, %v3267
      %v3272 = vadd.f32 %v3229, %v3268
      %s3273 = sadd.s32 %s3230, 2
      %s3274 = smul.u32 %s3273, 128
      %s3275 = sadd.s32 %s3274, %s3235
      %s3276 = sld [smem:[#allocation6 + %s3275]]
      %s3277 = sadd.s32 %s3276, 1
      %p3278 = scmp.lt.s32.totalorder %s3277, 1
      %s3279 = scalar_select %p3278, %s3277, 1
      %s3280 = sld [smem:[#allocation7 + %s3275]]
      %s3281 = ssub.f32 1.0, %s3280
      %s3282 = smul.u32 %s3276, 32
      %s3283 = scalar_lea.vmem [#allocation4], %s3282
      %v3284 = vld [vmem:[%s3283] sm:$0xff]
      %v3285 = vld [vmem:[%s3283 + $0x8] sm:$0xff]
      %v3286 = vld [vmem:[%s3283 + $0x10] sm:$0xff]
      %v3287 = vld [vmem:[%s3283 + $0x18] sm:$0xff]
      %v3288 = vstv %s3281
      %v3289 = vmul.f32 %v3288, %v3284
      %v3290 = vmul.f32 %v3288, %v3285
      %v3291 = vmul.f32 %v3288, %v3286
      %v3292 = vmul.f32 %v3288, %v3287
      %s3293 = smul.u32 %s3279, 32
      %s3294 = scalar_lea.vmem [#allocation4], %s3293
      %v3295 = vld [vmem:[%s3294] sm:$0xff]
      %v3296 = vld [vmem:[%s3294 + $0x8] sm:$0xff]
      %v3297 = vld [vmem:[%s3294 + $0x10] sm:$0xff]
      %v3298 = vld [vmem:[%s3294 + $0x18] sm:$0xff]
      %v3299 = vstv %s3280
      %v3300 = vmul.f32 %v3299, %v3295
      %v3301 = vmul.f32 %v3299, %v3296
      %v3302 = vmul.f32 %v3299, %v3297
      %v3303 = vmul.f32 %v3299, %v3298
      %v3304 = vadd.f32 %v3289, %v3300
      %v3305 = vadd.f32 %v3290, %v3301
      %v3306 = vadd.f32 %v3291, %v3302
      %v3307 = vadd.f32 %v3292, %v3303
      %v3308 = vadd.f32 %v3269, %v3304
      %v3309 = vadd.f32 %v3270, %v3305
      %v3310 = vadd.f32 %v3271, %v3306
      %v3311 = vadd.f32 %v3272, %v3307
      %s3312 = sadd.s32 %s2392, 8
      %s3313 = sld [smem:[#allocation6 + %s3312]]
      %s3314 = sadd.s32 %s3313, 1
      %p3315 = scmp.lt.s32.totalorder %s3314, 7
      %s3316 = scalar_select %p3315, %s3314, 7
      %s3317 = sld [smem:[#allocation7 + %s3312]]
      %s3318 = ssub.f32 1.0, %s3317
      %s3319 = smul.u32 %s3313, 32
      %s3320 = scalar_lea.vmem [#allocation2], %s3319
      %v3321 = vld [vmem:[%s3320] sm:$0xff]
      %v3322 = vld [vmem:[%s3320 + $0x8] sm:$0xff]
      %v3323 = vld [vmem:[%s3320 + $0x10] sm:$0xff]
      %v3324 = vld [vmem:[%s3320 + $0x18] sm:$0xff]
      %v3325 = vstv %s3318
      %v3326 = vmul.f32 %v3325, %v3321
      %v3327 = vmul.f32 %v3325, %v3322
      %v3328 = vmul.f32 %v3325, %v3323
      %v3329 = vmul.f32 %v3325, %v3324
      %s3330 = smul.u32 %s3316, 32
      %s3331 = scalar_lea.vmem [#allocation2], %s3330
      %v3332 = vld [vmem:[%s3331] sm:$0xff]
      %v3333 = vld [vmem:[%s3331 + $0x8] sm:$0xff]
      %v3334 = vld [vmem:[%s3331 + $0x10] sm:$0xff]
      %v3335 = vld [vmem:[%s3331 + $0x18] sm:$0xff]
      %v3336 = vstv %s3317
      %v3337 = vmul.f32 %v3336, %v3332
      %v3338 = vmul.f32 %v3336, %v3333
      %v3339 = vmul.f32 %v3336, %v3334
      %v3340 = vmul.f32 %v3336, %v3335
      %v3341 = vadd.f32 %v3326, %v3337
      %v3342 = vadd.f32 %v3327, %v3338
      %v3343 = vadd.f32 %v3328, %v3339
      %v3344 = vadd.f32 %v3329, %v3340
      %s3345 = sshra.s32 %s3312, 7
      %s3346 = sand.u32 %s3312, 127
      %s3347 = sadd.s32 %s3345, 1
      %s3348 = smul.u32 %s3347, 128
      %s3349 = sshra.s32 %s3312, 7
      %s3350 = sand.u32 %s3312, 127
      %s3351 = sadd.s32 %s3348, %s3350
      %s3352 = sld [smem:[#allocation6 + %s3351]]
      %s3353 = sadd.s32 %s3352, 1
      %p3354 = scmp.lt.s32.totalorder %s3353, 3
      %s3355 = scalar_select %p3354, %s3353, 3
      %s3356 = sld [smem:[#allocation7 + %s3351]]
      %s3357 = ssub.f32 1.0, %s3356
      %s3358 = smul.u32 %s3352, 32
      %s3359 = scalar_lea.vmem [#allocation3], %s3358
      %v3360 = vld [vmem:[%s3359] sm:$0xff]
      %v3361 = vld [vmem:[%s3359 + $0x8] sm:$0xff]
      %v3362 = vld [vmem:[%s3359 + $0x10] sm:$0xff]
      %v3363 = vld [vmem:[%s3359 + $0x18] sm:$0xff]
      %v3364 = vstv %s3357
      %v3365 = vmul.f32 %v3364, %v3360
      %v3366 = vmul.f32 %v3364, %v3361
      %v3367 = vmul.f32 %v3364, %v3362
      %v3368 = vmul.f32 %v3364, %v3363
      %s3369 = smul.u32 %s3355, 32
      %s3370 = scalar_lea.vmem [#allocation3], %s3369
      %v3371 = vld [vmem:[%s3370] sm:$0xff]
      %v3372 = vld [vmem:[%s3370 + $0x8] sm:$0xff]
      %v3373 = vld [vmem:[%s3370 + $0x10] sm:$0xff]
      %v3374 = vld [vmem:[%s3370 + $0x18] sm:$0xff]
      %v3375 = vstv %s3356
      %v3376 = vmul.f32 %v3375, %v3371
      %v3377 = vmul.f32 %v3375, %v3372
      %v3378 = vmul.f32 %v3375, %v3373
      %v3379 = vmul.f32 %v3375, %v3374
      %v3380 = vadd.f32 %v3365, %v3376
      %v3381 = vadd.f32 %v3366, %v3377
      %v3382 = vadd.f32 %v3367, %v3378
      %v3383 = vadd.f32 %v3368, %v3379
      %v3384 = vadd.f32 %v3341, %v3380
      %v3385 = vadd.f32 %v3342, %v3381
      %v3386 = vadd.f32 %v3343, %v3382
      %v3387 = vadd.f32 %v3344, %v3383
      %s3388 = sadd.s32 %s3345, 2
      %s3389 = smul.u32 %s3388, 128
      %s3390 = sadd.s32 %s3389, %s3350
      %s3391 = sld [smem:[#allocation6 + %s3390]]
      %s3392 = sadd.s32 %s3391, 1
      %p3393 = scmp.lt.s32.totalorder %s3392, 1
      %s3394 = scalar_select %p3393, %s3392, 1
      %s3395 = sld [smem:[#allocation7 + %s3390]]
      %s3396 = ssub.f32 1.0, %s3395
      %s3397 = smul.u32 %s3391, 32
      %s3398 = scalar_lea.vmem [#allocation4], %s3397
      %v3399 = vld [vmem:[%s3398] sm:$0xff]
      %v3400 = vld [vmem:[%s3398 + $0x8] sm:$0xff]
      %v3401 = vld [vmem:[%s3398 + $0x10] sm:$0xff]
      %v3402 = vld [vmem:[%s3398 + $0x18] sm:$0xff]
      %v3403 = vstv %s3396
      %v3404 = vmul.f32 %v3403, %v3399
      %v3405 = vmul.f32 %v3403, %v3400
      %v3406 = vmul.f32 %v3403, %v3401
      %v3407 = vmul.f32 %v3403, %v3402
      %s3408 = smul.u32 %s3394, 32
      %s3409 = scalar_lea.vmem [#allocation4], %s3408
      %v3410 = vld [vmem:[%s3409] sm:$0xff]
      %v3411 = vld [vmem:[%s3409 + $0x8] sm:$0xff]
      %v3412 = vld [vmem:[%s3409 + $0x10] sm:$0xff]
      %v3413 = vld [vmem:[%s3409 + $0x18] sm:$0xff]
      %v3414 = vstv %s3395
      %v3415 = vmul.f32 %v3414, %v3410
      %v3416 = vmul.f32 %v3414, %v3411
      %v3417 = vmul.f32 %v3414, %v3412
      %v3418 = vmul.f32 %v3414, %v3413
      %v3419 = vadd.f32 %v3404, %v3415
      %v3420 = vadd.f32 %v3405, %v3416
      %v3421 = vadd.f32 %v3406, %v3417
      %v3422 = vadd.f32 %v3407, %v3418
      %v3423 = vadd.f32 %v3384, %v3419
      %v3424 = vadd.f32 %v3385, %v3420
      %v3425 = vadd.f32 %v3386, %v3421
      %v3426 = vadd.f32 %v3387, %v3422
      %s3427 = sadd.s32 %s2392, 9
      %s3428 = sld [smem:[#allocation6 + %s3427]]
      %s3429 = sadd.s32 %s3428, 1
      %p3430 = scmp.lt.s32.totalorder %s3429, 7
      %s3431 = scalar_select %p3430, %s3429, 7
      %s3432 = sld [smem:[#allocation7 + %s3427]]
      %s3433 = ssub.f32 1.0, %s3432
      %s3434 = smul.u32 %s3428, 32
      %s3435 = scalar_lea.vmem [#allocation2], %s3434
      %v3436 = vld [vmem:[%s3435] sm:$0xff]
      %v3437 = vld [vmem:[%s3435 + $0x8] sm:$0xff]
      %v3438 = vld [vmem:[%s3435 + $0x10] sm:$0xff]
      %v3439 = vld [vmem:[%s3435 + $0x18] sm:$0xff]
      %v3440 = vstv %s3433
      %v3441 = vmul.f32 %v3440, %v3436
      %v3442 = vmul.f32 %v3440, %v3437
      %v3443 = vmul.f32 %v3440, %v3438
      %v3444 = vmul.f32 %v3440, %v3439
      %s3445 = smul.u32 %s3431, 32
      %s3446 = scalar_lea.vmem [#allocation2], %s3445
      %v3447 = vld [vmem:[%s3446] sm:$0xff]
      %v3448 = vld [vmem:[%s3446 + $0x8] sm:$0xff]
      %v3449 = vld [vmem:[%s3446 + $0x10] sm:$0xff]
      %v3450 = vld [vmem:[%s3446 + $0x18] sm:$0xff]
      %v3451 = vstv %s3432
      %v3452 = vmul.f32 %v3451, %v3447
      %v3453 = vmul.f32 %v3451, %v3448
      %v3454 = vmul.f32 %v3451, %v3449
      %v3455 = vmul.f32 %v3451, %v3450
      %v3456 = vadd.f32 %v3441, %v3452
      %v3457 = vadd.f32 %v3442, %v3453
      %v3458 = vadd.f32 %v3443, %v3454
      %v3459 = vadd.f32 %v3444, %v3455
      %s3460 = sshra.s32 %s3427, 7
      %s3461 = sand.u32 %s3427, 127
      %s3462 = sadd.s32 %s3460, 1
      %s3463 = smul.u32 %s3462, 128
      %s3464 = sshra.s32 %s3427, 7
      %s3465 = sand.u32 %s3427, 127
      %s3466 = sadd.s32 %s3463, %s3465
      %s3467 = sld [smem:[#allocation6 + %s3466]]
      %s3468 = sadd.s32 %s3467, 1
      %p3469 = scmp.lt.s32.totalorder %s3468, 3
      %s3470 = scalar_select %p3469, %s3468, 3
      %s3471 = sld [smem:[#allocation7 + %s3466]]
      %s3472 = ssub.f32 1.0, %s3471
      %s3473 = smul.u32 %s3467, 32
      %s3474 = scalar_lea.vmem [#allocation3], %s3473
      %v3475 = vld [vmem:[%s3474] sm:$0xff]
      %v3476 = vld [vmem:[%s3474 + $0x8] sm:$0xff]
      %v3477 = vld [vmem:[%s3474 + $0x10] sm:$0xff]
      %v3478 = vld [vmem:[%s3474 + $0x18] sm:$0xff]
      %v3479 = vstv %s3472
      %v3480 = vmul.f32 %v3479, %v3475
      %v3481 = vmul.f32 %v3479, %v3476
      %v3482 = vmul.f32 %v3479, %v3477
      %v3483 = vmul.f32 %v3479, %v3478
      %s3484 = smul.u32 %s3470, 32
      %s3485 = scalar_lea.vmem [#allocation3], %s3484
      %v3486 = vld [vmem:[%s3485] sm:$0xff]
      %v3487 = vld [vmem:[%s3485 + $0x8] sm:$0xff]
      %v3488 = vld [vmem:[%s3485 + $0x10] sm:$0xff]
      %v3489 = vld [vmem:[%s3485 + $0x18] sm:$0xff]
      %v3490 = vstv %s3471
      %v3491 = vmul.f32 %v3490, %v3486
      %v3492 = vmul.f32 %v3490, %v3487
      %v3493 = vmul.f32 %v3490, %v3488
      %v3494 = vmul.f32 %v3490, %v3489
      %v3495 = vadd.f32 %v3480, %v3491
      %v3496 = vadd.f32 %v3481, %v3492
      %v3497 = vadd.f32 %v3482, %v3493
      %v3498 = vadd.f32 %v3483, %v3494
      %v3499 = vadd.f32 %v3456, %v3495
      %v3500 = vadd.f32 %v3457, %v3496
      %v3501 = vadd.f32 %v3458, %v3497
      %v3502 = vadd.f32 %v3459, %v3498
      %s3503 = sadd.s32 %s3460, 2
      %s3504 = smul.u32 %s3503, 128
      %s3505 = sadd.s32 %s3504, %s3465
      %s3506 = sld [smem:[#allocation6 + %s3505]]
      %s3507 = sadd.s32 %s3506, 1
      %p3508 = scmp.lt.s32.totalorder %s3507, 1
      %s3509 = scalar_select %p3508, %s3507, 1
      %s3510 = sld [smem:[#allocation7 + %s3505]]
      %s3511 = ssub.f32 1.0, %s3510
      %s3512 = smul.u32 %s3506, 32
      %s3513 = scalar_lea.vmem [#allocation4], %s3512
      %v3514 = vld [vmem:[%s3513] sm:$0xff]
      %v3515 = vld [vmem:[%s3513 + $0x8] sm:$0xff]
      %v3516 = vld [vmem:[%s3513 + $0x10] sm:$0xff]
      %v3517 = vld [vmem:[%s3513 + $0x18] sm:$0xff]
      %v3518 = vstv %s3511
      %v3519 = vmul.f32 %v3518, %v3514
      %v3520 = vmul.f32 %v3518, %v3515
      %v3521 = vmul.f32 %v3518, %v3516
      %v3522 = vmul.f32 %v3518, %v3517
      %s3523 = smul.u32 %s3509, 32
      %s3524 = scalar_lea.vmem [#allocation4], %s3523
      %v3525 = vld [vmem:[%s3524] sm:$0xff]
      %v3526 = vld [vmem:[%s3524 + $0x8] sm:$0xff]
      %v3527 = vld [vmem:[%s3524 + $0x10] sm:$0xff]
      %v3528 = vld [vmem:[%s3524 + $0x18] sm:$0xff]
      %v3529 = vstv %s3510
      %v3530 = vmul.f32 %v3529, %v3525
      %v3531 = vmul.f32 %v3529, %v3526
      %v3532 = vmul.f32 %v3529, %v3527
      %v3533 = vmul.f32 %v3529, %v3528
      %v3534 = vadd.f32 %v3519, %v3530
      %v3535 = vadd.f32 %v3520, %v3531
      %v3536 = vadd.f32 %v3521, %v3532
      %v3537 = vadd.f32 %v3522, %v3533
      %v3538 = vadd.f32 %v3499, %v3534
      %v3539 = vadd.f32 %v3500, %v3535
      %v3540 = vadd.f32 %v3501, %v3536
      %v3541 = vadd.f32 %v3502, %v3537
      %s3542 = sadd.s32 %s2392, 10
      %s3543 = sld [smem:[#allocation6 + %s3542]]
      %s3544 = sadd.s32 %s3543, 1
      %p3545 = scmp.lt.s32.totalorder %s3544, 7
      %s3546 = scalar_select %p3545, %s3544, 7
      %s3547 = sld [smem:[#allocation7 + %s3542]]
      %s3548 = ssub.f32 1.0, %s3547
      %s3549 = smul.u32 %s3543, 32
      %s3550 = scalar_lea.vmem [#allocation2], %s3549
      %v3551 = vld [vmem:[%s3550] sm:$0xff]
      %v3552 = vld [vmem:[%s3550 + $0x8] sm:$0xff]
      %v3553 = vld [vmem:[%s3550 + $0x10] sm:$0xff]
      %v3554 = vld [vmem:[%s3550 + $0x18] sm:$0xff]
      %v3555 = vstv %s3548
      %v3556 = vmul.f32 %v3555, %v3551
      %v3557 = vmul.f32 %v3555, %v3552
      %v3558 = vmul.f32 %v3555, %v3553
      %v3559 = vmul.f32 %v3555, %v3554
      %s3560 = smul.u32 %s3546, 32
      %s3561 = scalar_lea.vmem [#allocation2], %s3560
      %v3562 = vld [vmem:[%s3561] sm:$0xff]
      %v3563 = vld [vmem:[%s3561 + $0x8] sm:$0xff]
      %v3564 = vld [vmem:[%s3561 + $0x10] sm:$0xff]
      %v3565 = vld [vmem:[%s3561 + $0x18] sm:$0xff]
      %v3566 = vstv %s3547
      %v3567 = vmul.f32 %v3566, %v3562
      %v3568 = vmul.f32 %v3566, %v3563
      %v3569 = vmul.f32 %v3566, %v3564
      %v3570 = vmul.f32 %v3566, %v3565
      %v3571 = vadd.f32 %v3556, %v3567
      %v3572 = vadd.f32 %v3557, %v3568
      %v3573 = vadd.f32 %v3558, %v3569
      %v3574 = vadd.f32 %v3559, %v3570
      %s3575 = sshra.s32 %s3542, 7
      %s3576 = sand.u32 %s3542, 127
      %s3577 = sadd.s32 %s3575, 1
      %s3578 = smul.u32 %s3577, 128
      %s3579 = sshra.s32 %s3542, 7
      %s3580 = sand.u32 %s3542, 127
      %s3581 = sadd.s32 %s3578, %s3580
      %s3582 = sld [smem:[#allocation6 + %s3581]]
      %s3583 = sadd.s32 %s3582, 1
      %p3584 = scmp.lt.s32.totalorder %s3583, 3
      %s3585 = scalar_select %p3584, %s3583, 3
      %s3586 = sld [smem:[#allocation7 + %s3581]]
      %s3587 = ssub.f32 1.0, %s3586
      %s3588 = smul.u32 %s3582, 32
      %s3589 = scalar_lea.vmem [#allocation3], %s3588
      %v3590 = vld [vmem:[%s3589] sm:$0xff]
      %v3591 = vld [vmem:[%s3589 + $0x8] sm:$0xff]
      %v3592 = vld [vmem:[%s3589 + $0x10] sm:$0xff]
      %v3593 = vld [vmem:[%s3589 + $0x18] sm:$0xff]
      %v3594 = vstv %s3587
      %v3595 = vmul.f32 %v3594, %v3590
      %v3596 = vmul.f32 %v3594, %v3591
      %v3597 = vmul.f32 %v3594, %v3592
      %v3598 = vmul.f32 %v3594, %v3593
      %s3599 = smul.u32 %s3585, 32
      %s3600 = scalar_lea.vmem [#allocation3], %s3599
      %v3601 = vld [vmem:[%s3600] sm:$0xff]
      %v3602 = vld [vmem:[%s3600 + $0x8] sm:$0xff]
      %v3603 = vld [vmem:[%s3600 + $0x10] sm:$0xff]
      %v3604 = vld [vmem:[%s3600 + $0x18] sm:$0xff]
      %v3605 = vstv %s3586
      %v3606 = vmul.f32 %v3605, %v3601
      %v3607 = vmul.f32 %v3605, %v3602
      %v3608 = vmul.f32 %v3605, %v3603
      %v3609 = vmul.f32 %v3605, %v3604
      %v3610 = vadd.f32 %v3595, %v3606
      %v3611 = vadd.f32 %v3596, %v3607
      %v3612 = vadd.f32 %v3597, %v3608
      %v3613 = vadd.f32 %v3598, %v3609
      %v3614 = vadd.f32 %v3571, %v3610
      %v3615 = vadd.f32 %v3572, %v3611
      %v3616 = vadd.f32 %v3573, %v3612
      %v3617 = vadd.f32 %v3574, %v3613
      %s3618 = sadd.s32 %s3575, 2
      %s3619 = smul.u32 %s3618, 128
      %s3620 = sadd.s32 %s3619, %s3580
      %s3621 = sld [smem:[#allocation6 + %s3620]]
      %s3622 = sadd.s32 %s3621, 1
      %p3623 = scmp.lt.s32.totalorder %s3622, 1
      %s3624 = scalar_select %p3623, %s3622, 1
      %s3625 = sld [smem:[#allocation7 + %s3620]]
      %s3626 = ssub.f32 1.0, %s3625
      %s3627 = smul.u32 %s3621, 32
      %s3628 = scalar_lea.vmem [#allocation4], %s3627
      %v3629 = vld [vmem:[%s3628] sm:$0xff]
      %v3630 = vld [vmem:[%s3628 + $0x8] sm:$0xff]
      %v3631 = vld [vmem:[%s3628 + $0x10] sm:$0xff]
      %v3632 = vld [vmem:[%s3628 + $0x18] sm:$0xff]
      %v3633 = vstv %s3626
      %v3634 = vmul.f32 %v3633, %v3629
      %v3635 = vmul.f32 %v3633, %v3630
      %v3636 = vmul.f32 %v3633, %v3631
      %v3637 = vmul.f32 %v3633, %v3632
      %s3638 = smul.u32 %s3624, 32
      %s3639 = scalar_lea.vmem [#allocation4], %s3638
      %v3640 = vld [vmem:[%s3639] sm:$0xff]
      %v3641 = vld [vmem:[%s3639 + $0x8] sm:$0xff]
      %v3642 = vld [vmem:[%s3639 + $0x10] sm:$0xff]
      %v3643 = vld [vmem:[%s3639 + $0x18] sm:$0xff]
      %v3644 = vstv %s3625
      %v3645 = vmul.f32 %v3644, %v3640
      %v3646 = vmul.f32 %v3644, %v3641
      %v3647 = vmul.f32 %v3644, %v3642
      %v3648 = vmul.f32 %v3644, %v3643
      %v3649 = vadd.f32 %v3634, %v3645
      %v3650 = vadd.f32 %v3635, %v3646
      %v3651 = vadd.f32 %v3636, %v3647
      %v3652 = vadd.f32 %v3637, %v3648
      %v3653 = vadd.f32 %v3614, %v3649
      %v3654 = vadd.f32 %v3615, %v3650
      %v3655 = vadd.f32 %v3616, %v3651
      %v3656 = vadd.f32 %v3617, %v3652
      %s3657 = sadd.s32 %s2392, 11
      %s3658 = sld [smem:[#allocation6 + %s3657]]
      %s3659 = sadd.s32 %s3658, 1
      %p3660 = scmp.lt.s32.totalorder %s3659, 7
      %s3661 = scalar_select %p3660, %s3659, 7
      %s3662 = sld [smem:[#allocation7 + %s3657]]
      %s3663 = ssub.f32 1.0, %s3662
      %s3664 = smul.u32 %s3658, 32
      %s3665 = scalar_lea.vmem [#allocation2], %s3664
      %v3666 = vld [vmem:[%s3665] sm:$0xff]
      %v3667 = vld [vmem:[%s3665 + $0x8] sm:$0xff]
      %v3668 = vld [vmem:[%s3665 + $0x10] sm:$0xff]
      %v3669 = vld [vmem:[%s3665 + $0x18] sm:$0xff]
      %v3670 = vstv %s3663
      %v3671 = vmul.f32 %v3670, %v3666
      %v3672 = vmul.f32 %v3670, %v3667
      %v3673 = vmul.f32 %v3670, %v3668
      %v3674 = vmul.f32 %v3670, %v3669
      %s3675 = smul.u32 %s3661, 32
      %s3676 = scalar_lea.vmem [#allocation2], %s3675
      %v3677 = vld [vmem:[%s3676] sm:$0xff]
      %v3678 = vld [vmem:[%s3676 + $0x8] sm:$0xff]
      %v3679 = vld [vmem:[%s3676 + $0x10] sm:$0xff]
      %v3680 = vld [vmem:[%s3676 + $0x18] sm:$0xff]
      %v3681 = vstv %s3662
      %v3682 = vmul.f32 %v3681, %v3677
      %v3683 = vmul.f32 %v3681, %v3678
      %v3684 = vmul.f32 %v3681, %v3679
      %v3685 = vmul.f32 %v3681, %v3680
      %v3686 = vadd.f32 %v3671, %v3682
      %v3687 = vadd.f32 %v3672, %v3683
      %v3688 = vadd.f32 %v3673, %v3684
      %v3689 = vadd.f32 %v3674, %v3685
      %s3690 = sshra.s32 %s3657, 7
      %s3691 = sand.u32 %s3657, 127
      %s3692 = sadd.s32 %s3690, 1
      %s3693 = smul.u32 %s3692, 128
      %s3694 = sshra.s32 %s3657, 7
      %s3695 = sand.u32 %s3657, 127
      %s3696 = sadd.s32 %s3693, %s3695
      %s3697 = sld [smem:[#allocation6 + %s3696]]
      %s3698 = sadd.s32 %s3697, 1
      %p3699 = scmp.lt.s32.totalorder %s3698, 3
      %s3700 = scalar_select %p3699, %s3698, 3
      %s3701 = sld [smem:[#allocation7 + %s3696]]
      %s3702 = ssub.f32 1.0, %s3701
      %s3703 = smul.u32 %s3697, 32
      %s3704 = scalar_lea.vmem [#allocation3], %s3703
      %v3705 = vld [vmem:[%s3704] sm:$0xff]
      %v3706 = vld [vmem:[%s3704 + $0x8] sm:$0xff]
      %v3707 = vld [vmem:[%s3704 + $0x10] sm:$0xff]
      %v3708 = vld [vmem:[%s3704 + $0x18] sm:$0xff]
      %v3709 = vstv %s3702
      %v3710 = vmul.f32 %v3709, %v3705
      %v3711 = vmul.f32 %v3709, %v3706
      %v3712 = vmul.f32 %v3709, %v3707
      %v3713 = vmul.f32 %v3709, %v3708
      %s3714 = smul.u32 %s3700, 32
      %s3715 = scalar_lea.vmem [#allocation3], %s3714
      %v3716 = vld [vmem:[%s3715] sm:$0xff]
      %v3717 = vld [vmem:[%s3715 + $0x8] sm:$0xff]
      %v3718 = vld [vmem:[%s3715 + $0x10] sm:$0xff]
      %v3719 = vld [vmem:[%s3715 + $0x18] sm:$0xff]
      %v3720 = vstv %s3701
      %v3721 = vmul.f32 %v3720, %v3716
      %v3722 = vmul.f32 %v3720, %v3717
      %v3723 = vmul.f32 %v3720, %v3718
      %v3724 = vmul.f32 %v3720, %v3719
      %v3725 = vadd.f32 %v3710, %v3721
      %v3726 = vadd.f32 %v3711, %v3722
      %v3727 = vadd.f32 %v3712, %v3723
      %v3728 = vadd.f32 %v3713, %v3724
      %v3729 = vadd.f32 %v3686, %v3725
      %v3730 = vadd.f32 %v3687, %v3726
      %v3731 = vadd.f32 %v3688, %v3727
      %v3732 = vadd.f32 %v3689, %v3728
      %s3733 = sadd.s32 %s3690, 2
      %s3734 = smul.u32 %s3733, 128
      %s3735 = sadd.s32 %s3734, %s3695
      %s3736 = sld [smem:[#allocation6 + %s3735]]
      %s3737 = sadd.s32 %s3736, 1
      %p3738 = scmp.lt.s32.totalorder %s3737, 1
      %s3739 = scalar_select %p3738, %s3737, 1
      %s3740 = sld [smem:[#allocation7 + %s3735]]
      %s3741 = ssub.f32 1.0, %s3740
      %s3742 = smul.u32 %s3736, 32
      %s3743 = scalar_lea.vmem [#allocation4], %s3742
      %v3744 = vld [vmem:[%s3743] sm:$0xff]
      %v3745 = vld [vmem:[%s3743 + $0x8] sm:$0xff]
      %v3746 = vld [vmem:[%s3743 + $0x10] sm:$0xff]
      %v3747 = vld [vmem:[%s3743 + $0x18] sm:$0xff]
      %v3748 = vstv %s3741
      %v3749 = vmul.f32 %v3748, %v3744
      %v3750 = vmul.f32 %v3748, %v3745
      %v3751 = vmul.f32 %v3748, %v3746
      %v3752 = vmul.f32 %v3748, %v3747
      %s3753 = smul.u32 %s3739, 32
      %s3754 = scalar_lea.vmem [#allocation4], %s3753
      %v3755 = vld [vmem:[%s3754] sm:$0xff]
      %v3756 = vld [vmem:[%s3754 + $0x8] sm:$0xff]
      %v3757 = vld [vmem:[%s3754 + $0x10] sm:$0xff]
      %v3758 = vld [vmem:[%s3754 + $0x18] sm:$0xff]
      %v3759 = vstv %s3740
      %v3760 = vmul.f32 %v3759, %v3755
      %v3761 = vmul.f32 %v3759, %v3756
      %v3762 = vmul.f32 %v3759, %v3757
      %v3763 = vmul.f32 %v3759, %v3758
      %v3764 = vadd.f32 %v3749, %v3760
      %v3765 = vadd.f32 %v3750, %v3761
      %v3766 = vadd.f32 %v3751, %v3762
      %v3767 = vadd.f32 %v3752, %v3763
      %v3768 = vadd.f32 %v3729, %v3764
      %v3769 = vadd.f32 %v3730, %v3765
      %v3770 = vadd.f32 %v3731, %v3766
      %v3771 = vadd.f32 %v3732, %v3767
      %s3772 = sadd.s32 %s2392, 12
      %s3773 = sld [smem:[#allocation6 + %s3772]]
      %s3774 = sadd.s32 %s3773, 1
      %p3775 = scmp.lt.s32.totalorder %s3774, 7
      %s3776 = scalar_select %p3775, %s3774, 7
      %s3777 = sld [smem:[#allocation7 + %s3772]]
      %s3778 = ssub.f32 1.0, %s3777
      %s3779 = smul.u32 %s3773, 32
      %s3780 = scalar_lea.vmem [#allocation2], %s3779
      %v3781 = vld [vmem:[%s3780] sm:$0xff]
      %v3782 = vld [vmem:[%s3780 + $0x8] sm:$0xff]
      %v3783 = vld [vmem:[%s3780 + $0x10] sm:$0xff]
      %v3784 = vld [vmem:[%s3780 + $0x18] sm:$0xff]
      %v3785 = vstv %s3778
      %v3786 = vmul.f32 %v3785, %v3781
      %v3787 = vmul.f32 %v3785, %v3782
      %v3788 = vmul.f32 %v3785, %v3783
      %v3789 = vmul.f32 %v3785, %v3784
      %s3790 = smul.u32 %s3776, 32
      %s3791 = scalar_lea.vmem [#allocation2], %s3790
      %v3792 = vld [vmem:[%s3791] sm:$0xff]
      %v3793 = vld [vmem:[%s3791 + $0x8] sm:$0xff]
      %v3794 = vld [vmem:[%s3791 + $0x10] sm:$0xff]
      %v3795 = vld [vmem:[%s3791 + $0x18] sm:$0xff]
      %v3796 = vstv %s3777
      %v3797 = vmul.f32 %v3796, %v3792
      %v3798 = vmul.f32 %v3796, %v3793
      %v3799 = vmul.f32 %v3796, %v3794
      %v3800 = vmul.f32 %v3796, %v3795
      %v3801 = vadd.f32 %v3786, %v3797
      %v3802 = vadd.f32 %v3787, %v3798
      %v3803 = vadd.f32 %v3788, %v3799
      %v3804 = vadd.f32 %v3789, %v3800
      %s3805 = sshra.s32 %s3772, 7
      %s3806 = sand.u32 %s3772, 127
      %s3807 = sadd.s32 %s3805, 1
      %s3808 = smul.u32 %s3807, 128
      %s3809 = sshra.s32 %s3772, 7
      %s3810 = sand.u32 %s3772, 127
      %s3811 = sadd.s32 %s3808, %s3810
      %s3812 = sld [smem:[#allocation6 + %s3811]]
      %s3813 = sadd.s32 %s3812, 1
      %p3814 = scmp.lt.s32.totalorder %s3813, 3
      %s3815 = scalar_select %p3814, %s3813, 3
      %s3816 = sld [smem:[#allocation7 + %s3811]]
      %s3817 = ssub.f32 1.0, %s3816
      %s3818 = smul.u32 %s3812, 32
      %s3819 = scalar_lea.vmem [#allocation3], %s3818
      %v3820 = vld [vmem:[%s3819] sm:$0xff]
      %v3821 = vld [vmem:[%s3819 + $0x8] sm:$0xff]
      %v3822 = vld [vmem:[%s3819 + $0x10] sm:$0xff]
      %v3823 = vld [vmem:[%s3819 + $0x18] sm:$0xff]
      %v3824 = vstv %s3817
      %v3825 = vmul.f32 %v3824, %v3820
      %v3826 = vmul.f32 %v3824, %v3821
      %v3827 = vmul.f32 %v3824, %v3822
      %v3828 = vmul.f32 %v3824, %v3823
      %s3829 = smul.u32 %s3815, 32
      %s3830 = scalar_lea.vmem [#allocation3], %s3829
      %v3831 = vld [vmem:[%s3830] sm:$0xff]
      %v3832 = vld [vmem:[%s3830 + $0x8] sm:$0xff]
      %v3833 = vld [vmem:[%s3830 + $0x10] sm:$0xff]
      %v3834 = vld [vmem:[%s3830 + $0x18] sm:$0xff]
      %v3835 = vstv %s3816
      %v3836 = vmul.f32 %v3835, %v3831
      %v3837 = vmul.f32 %v3835, %v3832
      %v3838 = vmul.f32 %v3835, %v3833
      %v3839 = vmul.f32 %v3835, %v3834
      %v3840 = vadd.f32 %v3825, %v3836
      %v3841 = vadd.f32 %v3826, %v3837
      %v3842 = vadd.f32 %v3827, %v3838
      %v3843 = vadd.f32 %v3828, %v3839
      %v3844 = vadd.f32 %v3801, %v3840
      %v3845 = vadd.f32 %v3802, %v3841
      %v3846 = vadd.f32 %v3803, %v3842
      %v3847 = vadd.f32 %v3804, %v3843
      %s3848 = sadd.s32 %s3805, 2
      %s3849 = smul.u32 %s3848, 128
      %s3850 = sadd.s32 %s3849, %s3810
      %s3851 = sld [smem:[#allocation6 + %s3850]]
      %s3852 = sadd.s32 %s3851, 1
      %p3853 = scmp.lt.s32.totalorder %s3852, 1
      %s3854 = scalar_select %p3853, %s3852, 1
      %s3855 = sld [smem:[#allocation7 + %s3850]]
      %s3856 = ssub.f32 1.0, %s3855
      %s3857 = smul.u32 %s3851, 32
      %s3858 = scalar_lea.vmem [#allocation4], %s3857
      %v3859 = vld [vmem:[%s3858] sm:$0xff]
      %v3860 = vld [vmem:[%s3858 + $0x8] sm:$0xff]
      %v3861 = vld [vmem:[%s3858 + $0x10] sm:$0xff]
      %v3862 = vld [vmem:[%s3858 + $0x18] sm:$0xff]
      %v3863 = vstv %s3856
      %v3864 = vmul.f32 %v3863, %v3859
      %v3865 = vmul.f32 %v3863, %v3860
      %v3866 = vmul.f32 %v3863, %v3861
      %v3867 = vmul.f32 %v3863, %v3862
      %s3868 = smul.u32 %s3854, 32
      %s3869 = scalar_lea.vmem [#allocation4], %s3868
      %v3870 = vld [vmem:[%s3869] sm:$0xff]
      %v3871 = vld [vmem:[%s3869 + $0x8] sm:$0xff]
      %v3872 = vld [vmem:[%s3869 + $0x10] sm:$0xff]
      %v3873 = vld [vmem:[%s3869 + $0x18] sm:$0xff]
      %v3874 = vstv %s3855
      %v3875 = vmul.f32 %v3874, %v3870
      %v3876 = vmul.f32 %v3874, %v3871
      %v3877 = vmul.f32 %v3874, %v3872
      %v3878 = vmul.f32 %v3874, %v3873
      %v3879 = vadd.f32 %v3864, %v3875
      %v3880 = vadd.f32 %v3865, %v3876
      %v3881 = vadd.f32 %v3866, %v3877
      %v3882 = vadd.f32 %v3867, %v3878
      %v3883 = vadd.f32 %v3844, %v3879
      %v3884 = vadd.f32 %v3845, %v3880
      %v3885 = vadd.f32 %v3846, %v3881
      %v3886 = vadd.f32 %v3847, %v3882
      %s3887 = sadd.s32 %s2392, 13
      %s3888 = sld [smem:[#allocation6 + %s3887]]
      %s3889 = sadd.s32 %s3888, 1
      %p3890 = scmp.lt.s32.totalorder %s3889, 7
      %s3891 = scalar_select %p3890, %s3889, 7
      %s3892 = sld [smem:[#allocation7 + %s3887]]
      %s3893 = ssub.f32 1.0, %s3892
      %s3894 = smul.u32 %s3888, 32
      %s3895 = scalar_lea.vmem [#allocation2], %s3894
      %v3896 = vld [vmem:[%s3895] sm:$0xff]
      %v3897 = vld [vmem:[%s3895 + $0x8] sm:$0xff]
      %v3898 = vld [vmem:[%s3895 + $0x10] sm:$0xff]
      %v3899 = vld [vmem:[%s3895 + $0x18] sm:$0xff]
      %v3900 = vstv %s3893
      %v3901 = vmul.f32 %v3900, %v3896
      %v3902 = vmul.f32 %v3900, %v3897
      %v3903 = vmul.f32 %v3900, %v3898
      %v3904 = vmul.f32 %v3900, %v3899
      %s3905 = smul.u32 %s3891, 32
      %s3906 = scalar_lea.vmem [#allocation2], %s3905
      %v3907 = vld [vmem:[%s3906] sm:$0xff]
      %v3908 = vld [vmem:[%s3906 + $0x8] sm:$0xff]
      %v3909 = vld [vmem:[%s3906 + $0x10] sm:$0xff]
      %v3910 = vld [vmem:[%s3906 + $0x18] sm:$0xff]
      %v3911 = vstv %s3892
      %v3912 = vmul.f32 %v3911, %v3907
      %v3913 = vmul.f32 %v3911, %v3908
      %v3914 = vmul.f32 %v3911, %v3909
      %v3915 = vmul.f32 %v3911, %v3910
      %v3916 = vadd.f32 %v3901, %v3912
      %v3917 = vadd.f32 %v3902, %v3913
      %v3918 = vadd.f32 %v3903, %v3914
      %v3919 = vadd.f32 %v3904, %v3915
      %s3920 = sshra.s32 %s3887, 7
      %s3921 = sand.u32 %s3887, 127
      %s3922 = sadd.s32 %s3920, 1
      %s3923 = smul.u32 %s3922, 128
      %s3924 = sshra.s32 %s3887, 7
      %s3925 = sand.u32 %s3887, 127
      %s3926 = sadd.s32 %s3923, %s3925
      %s3927 = sld [smem:[#allocation6 + %s3926]]
      %s3928 = sadd.s32 %s3927, 1
      %p3929 = scmp.lt.s32.totalorder %s3928, 3
      %s3930 = scalar_select %p3929, %s3928, 3
      %s3931 = sld [smem:[#allocation7 + %s3926]]
      %s3932 = ssub.f32 1.0, %s3931
      %s3933 = smul.u32 %s3927, 32
      %s3934 = scalar_lea.vmem [#allocation3], %s3933
      %v3935 = vld [vmem:[%s3934] sm:$0xff]
      %v3936 = vld [vmem:[%s3934 + $0x8] sm:$0xff]
      %v3937 = vld [vmem:[%s3934 + $0x10] sm:$0xff]
      %v3938 = vld [vmem:[%s3934 + $0x18] sm:$0xff]
      %v3939 = vstv %s3932
      %v3940 = vmul.f32 %v3939, %v3935
      %v3941 = vmul.f32 %v3939, %v3936
      %v3942 = vmul.f32 %v3939, %v3937
      %v3943 = vmul.f32 %v3939, %v3938
      %s3944 = smul.u32 %s3930, 32
      %s3945 = scalar_lea.vmem [#allocation3], %s3944
      %v3946 = vld [vmem:[%s3945] sm:$0xff]
      %v3947 = vld [vmem:[%s3945 + $0x8] sm:$0xff]
      %v3948 = vld [vmem:[%s3945 + $0x10] sm:$0xff]
      %v3949 = vld [vmem:[%s3945 + $0x18] sm:$0xff]
      %v3950 = vstv %s3931
      %v3951 = vmul.f32 %v3950, %v3946
      %v3952 = vmul.f32 %v3950, %v3947
      %v3953 = vmul.f32 %v3950, %v3948
      %v3954 = vmul.f32 %v3950, %v3949
      %v3955 = vadd.f32 %v3940, %v3951
      %v3956 = vadd.f32 %v3941, %v3952
      %v3957 = vadd.f32 %v3942, %v3953
      %v3958 = vadd.f32 %v3943, %v3954
      %v3959 = vadd.f32 %v3916, %v3955
      %v3960 = vadd.f32 %v3917, %v3956
      %v3961 = vadd.f32 %v3918, %v3957
      %v3962 = vadd.f32 %v3919, %v3958
      %s3963 = sadd.s32 %s3920, 2
      %s3964 = smul.u32 %s3963, 128
      %s3965 = sadd.s32 %s3964, %s3925
      %s3966 = sld [smem:[#allocation6 + %s3965]]
      %s3967 = sadd.s32 %s3966, 1
      %p3968 = scmp.lt.s32.totalorder %s3967, 1
      %s3969 = scalar_select %p3968, %s3967, 1
      %s3970 = sld [smem:[#allocation7 + %s3965]]
      %s3971 = ssub.f32 1.0, %s3970
      %s3972 = smul.u32 %s3966, 32
      %s3973 = scalar_lea.vmem [#allocation4], %s3972
      %v3974 = vld [vmem:[%s3973] sm:$0xff]
      %v3975 = vld [vmem:[%s3973 + $0x8] sm:$0xff]
      %v3976 = vld [vmem:[%s3973 + $0x10] sm:$0xff]
      %v3977 = vld [vmem:[%s3973 + $0x18] sm:$0xff]
      %v3978 = vstv %s3971
      %v3979 = vmul.f32 %v3978, %v3974
      %v3980 = vmul.f32 %v3978, %v3975
      %v3981 = vmul.f32 %v3978, %v3976
      %v3982 = vmul.f32 %v3978, %v3977
      %s3983 = smul.u32 %s3969, 32
      %s3984 = scalar_lea.vmem [#allocation4], %s3983
      %v3985 = vld [vmem:[%s3984] sm:$0xff]
      %v3986 = vld [vmem:[%s3984 + $0x8] sm:$0xff]
      %v3987 = vld [vmem:[%s3984 + $0x10] sm:$0xff]
      %v3988 = vld [vmem:[%s3984 + $0x18] sm:$0xff]
      %v3989 = vstv %s3970
      %v3990 = vmul.f32 %v3989, %v3985
      %v3991 = vmul.f32 %v3989, %v3986
      %v3992 = vmul.f32 %v3989, %v3987
      %v3993 = vmul.f32 %v3989, %v3988
      %v3994 = vadd.f32 %v3979, %v3990
      %v3995 = vadd.f32 %v3980, %v3991
      %v3996 = vadd.f32 %v3981, %v3992
      %v3997 = vadd.f32 %v3982, %v3993
      %v3998 = vadd.f32 %v3959, %v3994
      %v3999 = vadd.f32 %v3960, %v3995
      %v4000 = vadd.f32 %v3961, %v3996
      %v4001 = vadd.f32 %v3962, %v3997
      %s4002 = sadd.s32 %s2392, 14
      %s4003 = sld [smem:[#allocation6 + %s4002]]
      %s4004 = sadd.s32 %s4003, 1
      %p4005 = scmp.lt.s32.totalorder %s4004, 7
      %s4006 = scalar_select %p4005, %s4004, 7
      %s4007 = sld [smem:[#allocation7 + %s4002]]
      %s4008 = ssub.f32 1.0, %s4007
      %s4009 = smul.u32 %s4003, 32
      %s4010 = scalar_lea.vmem [#allocation2], %s4009
      %v4011 = vld [vmem:[%s4010] sm:$0xff]
      %v4012 = vld [vmem:[%s4010 + $0x8] sm:$0xff]
      %v4013 = vld [vmem:[%s4010 + $0x10] sm:$0xff]
      %v4014 = vld [vmem:[%s4010 + $0x18] sm:$0xff]
      %v4015 = vstv %s4008
      %v4016 = vmul.f32 %v4015, %v4011
      %v4017 = vmul.f32 %v4015, %v4012
      %v4018 = vmul.f32 %v4015, %v4013
      %v4019 = vmul.f32 %v4015, %v4014
      %s4020 = smul.u32 %s4006, 32
      %s4021 = scalar_lea.vmem [#allocation2], %s4020
      %v4022 = vld [vmem:[%s4021] sm:$0xff]
      %v4023 = vld [vmem:[%s4021 + $0x8] sm:$0xff]
      %v4024 = vld [vmem:[%s4021 + $0x10] sm:$0xff]
      %v4025 = vld [vmem:[%s4021 + $0x18] sm:$0xff]
      %v4026 = vstv %s4007
      %v4027 = vmul.f32 %v4026, %v4022
      %v4028 = vmul.f32 %v4026, %v4023
      %v4029 = vmul.f32 %v4026, %v4024
      %v4030 = vmul.f32 %v4026, %v4025
      %v4031 = vadd.f32 %v4016, %v4027
      %v4032 = vadd.f32 %v4017, %v4028
      %v4033 = vadd.f32 %v4018, %v4029
      %v4034 = vadd.f32 %v4019, %v4030
      %s4035 = sshra.s32 %s4002, 7
      %s4036 = sand.u32 %s4002, 127
      %s4037 = sadd.s32 %s4035, 1
      %s4038 = smul.u32 %s4037, 128
      %s4039 = sshra.s32 %s4002, 7
      %s4040 = sand.u32 %s4002, 127
      %s4041 = sadd.s32 %s4038, %s4040
      %s4042 = sld [smem:[#allocation6 + %s4041]]
      %s4043 = sadd.s32 %s4042, 1
      %p4044 = scmp.lt.s32.totalorder %s4043, 3
      %s4045 = scalar_select %p4044, %s4043, 3
      %s4046 = sld [smem:[#allocation7 + %s4041]]
      %s4047 = ssub.f32 1.0, %s4046
      %s4048 = smul.u32 %s4042, 32
      %s4049 = scalar_lea.vmem [#allocation3], %s4048
      %v4050 = vld [vmem:[%s4049] sm:$0xff]
      %v4051 = vld [vmem:[%s4049 + $0x8] sm:$0xff]
      %v4052 = vld [vmem:[%s4049 + $0x10] sm:$0xff]
      %v4053 = vld [vmem:[%s4049 + $0x18] sm:$0xff]
      %v4054 = vstv %s4047
      %v4055 = vmul.f32 %v4054, %v4050
      %v4056 = vmul.f32 %v4054, %v4051
      %v4057 = vmul.f32 %v4054, %v4052
      %v4058 = vmul.f32 %v4054, %v4053
      %s4059 = smul.u32 %s4045, 32
      %s4060 = scalar_lea.vmem [#allocation3], %s4059
      %v4061 = vld [vmem:[%s4060] sm:$0xff]
      %v4062 = vld [vmem:[%s4060 + $0x8] sm:$0xff]
      %v4063 = vld [vmem:[%s4060 + $0x10] sm:$0xff]
      %v4064 = vld [vmem:[%s4060 + $0x18] sm:$0xff]
      %v4065 = vstv %s4046
      %v4066 = vmul.f32 %v4065, %v4061
      %v4067 = vmul.f32 %v4065, %v4062
      %v4068 = vmul.f32 %v4065, %v4063
      %v4069 = vmul.f32 %v4065, %v4064
      %v4070 = vadd.f32 %v4055, %v4066
      %v4071 = vadd.f32 %v4056, %v4067
      %v4072 = vadd.f32 %v4057, %v4068
      %v4073 = vadd.f32 %v4058, %v4069
      %v4074 = vadd.f32 %v4031, %v4070
      %v4075 = vadd.f32 %v4032, %v4071
      %v4076 = vadd.f32 %v4033, %v4072
      %v4077 = vadd.f32 %v4034, %v4073
      %s4078 = sadd.s32 %s4035, 2
      %s4079 = smul.u32 %s4078, 128
      %s4080 = sadd.s32 %s4079, %s4040
      %s4081 = sld [smem:[#allocation6 + %s4080]]
      %s4082 = sadd.s32 %s4081, 1
      %p4083 = scmp.lt.s32.totalorder %s4082, 1
      %s4084 = scalar_select %p4083, %s4082, 1
      %s4085 = sld [smem:[#allocation7 + %s4080]]
      %s4086 = ssub.f32 1.0, %s4085
      %s4087 = smul.u32 %s4081, 32
      %s4088 = scalar_lea.vmem [#allocation4], %s4087
      %v4089 = vld [vmem:[%s4088] sm:$0xff]
      %v4090 = vld [vmem:[%s4088 + $0x8] sm:$0xff]
      %v4091 = vld [vmem:[%s4088 + $0x10] sm:$0xff]
      %v4092 = vld [vmem:[%s4088 + $0x18] sm:$0xff]
      %v4093 = vstv %s4086
      %v4094 = vmul.f32 %v4093, %v4089
      %v4095 = vmul.f32 %v4093, %v4090
      %v4096 = vmul.f32 %v4093, %v4091
      %v4097 = vmul.f32 %v4093, %v4092
      %s4098 = smul.u32 %s4084, 32
      %s4099 = scalar_lea.vmem [#allocation4], %s4098
      %v4100 = vld [vmem:[%s4099] sm:$0xff]
      %v4101 = vld [vmem:[%s4099 + $0x8] sm:$0xff]
      %v4102 = vld [vmem:[%s4099 + $0x10] sm:$0xff]
      %v4103 = vld [vmem:[%s4099 + $0x18] sm:$0xff]
      %v4104 = vstv %s4085
      %v4105 = vmul.f32 %v4104, %v4100
      %v4106 = vmul.f32 %v4104, %v4101
      %v4107 = vmul.f32 %v4104, %v4102
      %v4108 = vmul.f32 %v4104, %v4103
      %v4109 = vadd.f32 %v4094, %v4105
      %v4110 = vadd.f32 %v4095, %v4106
      %v4111 = vadd.f32 %v4096, %v4107
      %v4112 = vadd.f32 %v4097, %v4108
      %v4113 = vadd.f32 %v4074, %v4109
      %v4114 = vadd.f32 %v4075, %v4110
      %v4115 = vadd.f32 %v4076, %v4111
      %v4116 = vadd.f32 %v4077, %v4112
      %s4117 = sadd.s32 %s2392, 15
      %s4118 = sld [smem:[#allocation6 + %s4117]]
      %s4119 = sadd.s32 %s4118, 1
      %p4120 = scmp.lt.s32.totalorder %s4119, 7
      %s4121 = scalar_select %p4120, %s4119, 7
      %s4122 = sld [smem:[#allocation7 + %s4117]]
      %s4123 = ssub.f32 1.0, %s4122
      %s4124 = smul.u32 %s4118, 32
      %s4125 = scalar_lea.vmem [#allocation2], %s4124
      %v4126 = vld [vmem:[%s4125] sm:$0xff]
      %v4127 = vld [vmem:[%s4125 + $0x8] sm:$0xff]
      %v4128 = vld [vmem:[%s4125 + $0x10] sm:$0xff]
      %v4129 = vld [vmem:[%s4125 + $0x18] sm:$0xff]
      %v4130 = vstv %s4123
      %v4131 = vmul.f32 %v4130, %v4126
      %v4132 = vmul.f32 %v4130, %v4127
      %v4133 = vmul.f32 %v4130, %v4128
      %v4134 = vmul.f32 %v4130, %v4129
      %s4135 = smul.u32 %s4121, 32
      %s4136 = scalar_lea.vmem [#allocation2], %s4135
      %v4137 = vld [vmem:[%s4136] sm:$0xff]
      %v4138 = vld [vmem:[%s4136 + $0x8] sm:$0xff]
      %v4139 = vld [vmem:[%s4136 + $0x10] sm:$0xff]
      %v4140 = vld [vmem:[%s4136 + $0x18] sm:$0xff]
      %v4141 = vstv %s4122
      %v4142 = vmul.f32 %v4141, %v4137
      %v4143 = vmul.f32 %v4141, %v4138
      %v4144 = vmul.f32 %v4141, %v4139
      %v4145 = vmul.f32 %v4141, %v4140
      %v4146 = vadd.f32 %v4131, %v4142
      %v4147 = vadd.f32 %v4132, %v4143
      %v4148 = vadd.f32 %v4133, %v4144
      %v4149 = vadd.f32 %v4134, %v4145
      %s4150 = sshra.s32 %s4117, 7
      %s4151 = sand.u32 %s4117, 127
      %s4152 = sadd.s32 %s4150, 1
      %s4153 = smul.u32 %s4152, 128
      %s4154 = sshra.s32 %s4117, 7
      %s4155 = sand.u32 %s4117, 127
      %s4156 = sadd.s32 %s4153, %s4155
      %s4157 = sld [smem:[#allocation6 + %s4156]]
      %s4158 = sadd.s32 %s4157, 1
      %p4159 = scmp.lt.s32.totalorder %s4158, 3
      %s4160 = scalar_select %p4159, %s4158, 3
      %s4161 = sld [smem:[#allocation7 + %s4156]]
      %s4162 = ssub.f32 1.0, %s4161
      %s4163 = smul.u32 %s4157, 32
      %s4164 = scalar_lea.vmem [#allocation3], %s4163
      %v4165 = vld [vmem:[%s4164] sm:$0xff]
      %v4166 = vld [vmem:[%s4164 + $0x8] sm:$0xff]
      %v4167 = vld [vmem:[%s4164 + $0x10] sm:$0xff]
      %v4168 = vld [vmem:[%s4164 + $0x18] sm:$0xff]
      %v4169 = vstv %s4162
      %v4170 = vmul.f32 %v4169, %v4165
      %v4171 = vmul.f32 %v4169, %v4166
      %v4172 = vmul.f32 %v4169, %v4167
      %v4173 = vmul.f32 %v4169, %v4168
      %s4174 = smul.u32 %s4160, 32
      %s4175 = scalar_lea.vmem [#allocation3], %s4174
      %v4176 = vld [vmem:[%s4175] sm:$0xff]
      %v4177 = vld [vmem:[%s4175 + $0x8] sm:$0xff]
      %v4178 = vld [vmem:[%s4175 + $0x10] sm:$0xff]
      %v4179 = vld [vmem:[%s4175 + $0x18] sm:$0xff]
      %v4180 = vstv %s4161
      %v4181 = vmul.f32 %v4180, %v4176
      %v4182 = vmul.f32 %v4180, %v4177
      %v4183 = vmul.f32 %v4180, %v4178
      %v4184 = vmul.f32 %v4180, %v4179
      %v4185 = vadd.f32 %v4170, %v4181
      %v4186 = vadd.f32 %v4171, %v4182
      %v4187 = vadd.f32 %v4172, %v4183
      %v4188 = vadd.f32 %v4173, %v4184
      %v4189 = vadd.f32 %v4146, %v4185
      %v4190 = vadd.f32 %v4147, %v4186
      %v4191 = vadd.f32 %v4148, %v4187
      %v4192 = vadd.f32 %v4149, %v4188
      %s4193 = sadd.s32 %s4150, 2
      %s4194 = smul.u32 %s4193, 128
      %s4195 = sadd.s32 %s4194, %s4155
      %s4196 = sld [smem:[#allocation6 + %s4195]]
      %s4197 = sadd.s32 %s4196, 1
      %p4198 = scmp.lt.s32.totalorder %s4197, 1
      %s4199 = scalar_select %p4198, %s4197, 1
      %s4200 = sld [smem:[#allocation7 + %s4195]]
      %s4201 = ssub.f32 1.0, %s4200
      %s4202 = smul.u32 %s4196, 32
      %s4203 = scalar_lea.vmem [#allocation4], %s4202
      %v4204 = vld [vmem:[%s4203] sm:$0xff]
      %v4205 = vld [vmem:[%s4203 + $0x8] sm:$0xff]
      %v4206 = vld [vmem:[%s4203 + $0x10] sm:$0xff]
      %v4207 = vld [vmem:[%s4203 + $0x18] sm:$0xff]
      %v4208 = vstv %s4201
      %v4209 = vmul.f32 %v4208, %v4204
      %v4210 = vmul.f32 %v4208, %v4205
      %v4211 = vmul.f32 %v4208, %v4206
      %v4212 = vmul.f32 %v4208, %v4207
      %s4213 = smul.u32 %s4199, 32
      %s4214 = scalar_lea.vmem [#allocation4], %s4213
      %v4215 = vld [vmem:[%s4214] sm:$0xff]
      %v4216 = vld [vmem:[%s4214 + $0x8] sm:$0xff]
      %v4217 = vld [vmem:[%s4214 + $0x10] sm:$0xff]
      %v4218 = vld [vmem:[%s4214 + $0x18] sm:$0xff]
      %v4219 = vstv %s4200
      %v4220 = vmul.f32 %v4219, %v4215
      %v4221 = vmul.f32 %v4219, %v4216
      %v4222 = vmul.f32 %v4219, %v4217
      %v4223 = vmul.f32 %v4219, %v4218
      %v4224 = vadd.f32 %v4209, %v4220
      %v4225 = vadd.f32 %v4210, %v4221
      %v4226 = vadd.f32 %v4211, %v4222
      %v4227 = vadd.f32 %v4212, %v4223
      %v4228 = vadd.f32 %v4189, %v4224
      %v4229 = vadd.f32 %v4190, %v4225
      %v4230 = vadd.f32 %v4191, %v4226
      %v4231 = vadd.f32 %v4192, %v4227
      %4236 = vrot.lane.b32.xlu0 %v2618, 16
      %v4237 = vpop.permute.xlu0 %4236
      %4238 = vrot.lane.b32.xlu0 %v2619, 16
      %v4239 = vpop.permute.xlu0 %4238
      %4240 = vrot.lane.b32.xlu0 %v2620, 16
      %v4241 = vpop.permute.xlu0 %4240
      %4242 = vrot.lane.b32.xlu0 %v2621, 16
      %v4243 = vpop.permute.xlu0 %4242
      %4252 = vrot.lane.b32.xlu0 %v2733, 32
      %v4253 = vpop.permute.xlu0 %4252
      %4254 = vrot.lane.b32.xlu0 %v2734, 32
      %v4255 = vpop.permute.xlu0 %4254
      %4256 = vrot.lane.b32.xlu0 %v2735, 32
      %v4257 = vpop.permute.xlu0 %4256
      %4258 = vrot.lane.b32.xlu0 %v2736, 32
      %v4259 = vpop.permute.xlu0 %4258
      %4268 = vrot.lane.b32.xlu0 %v2848, 48
      %v4269 = vpop.permute.xlu0 %4268
      %4270 = vrot.lane.b32.xlu0 %v2849, 48
      %v4271 = vpop.permute.xlu0 %4270
      %4272 = vrot.lane.b32.xlu0 %v2850, 48
      %v4273 = vpop.permute.xlu0 %4272
      %4274 = vrot.lane.b32.xlu0 %v2851, 48
      %v4275 = vpop.permute.xlu0 %4274
      %4284 = vrot.lane.b32.xlu0 %v2963, 64
      %v4285 = vpop.permute.xlu0 %4284
      %4286 = vrot.lane.b32.xlu0 %v2964, 64
      %v4287 = vpop.permute.xlu0 %4286
      %4288 = vrot.lane.b32.xlu0 %v2965, 64
      %v4289 = vpop.permute.xlu0 %4288
      %4290 = vrot.lane.b32.xlu0 %v2966, 64
      %v4291 = vpop.permute.xlu0 %4290
      %4300 = vrot.lane.b32.xlu0 %v3078, 80
      %v4301 = vpop.permute.xlu0 %4300
      %4302 = vrot.lane.b32.xlu0 %v3079, 80
      %v4303 = vpop.permute.xlu0 %4302
      %4304 = vrot.lane.b32.xlu0 %v3080, 80
      %v4305 = vpop.permute.xlu0 %4304
      %4306 = vrot.lane.b32.xlu0 %v3081, 80
      %v4307 = vpop.permute.xlu0 %4306
      %4316 = vrot.lane.b32.xlu0 %v3193, 96
      %v4317 = vpop.permute.xlu0 %4316
      %4318 = vrot.lane.b32.xlu0 %v3194, 96
      %v4319 = vpop.permute.xlu0 %4318
      %4320 = vrot.lane.b32.xlu0 %v3195, 96
      %v4321 = vpop.permute.xlu0 %4320
      %4322 = vrot.lane.b32.xlu0 %v3196, 96
      %v4323 = vpop.permute.xlu0 %4322
      %4332 = vrot.lane.b32.xlu0 %v3308, 112
      %v4333 = vpop.permute.xlu0 %4332
      %4334 = vrot.lane.b32.xlu0 %v3309, 112
      %v4335 = vpop.permute.xlu0 %4334
      %4336 = vrot.lane.b32.xlu0 %v3310, 112
      %v4337 = vpop.permute.xlu0 %4336
      %4338 = vrot.lane.b32.xlu0 %v3311, 112
      %v4339 = vpop.permute.xlu0 %4338
      %4348 = vrot.lane.b32.xlu0 %v3538, 16
      %v4349 = vpop.permute.xlu0 %4348
      %4350 = vrot.lane.b32.xlu0 %v3539, 16
      %v4351 = vpop.permute.xlu0 %4350
      %4352 = vrot.lane.b32.xlu0 %v3540, 16
      %v4353 = vpop.permute.xlu0 %4352
      %4354 = vrot.lane.b32.xlu0 %v3541, 16
      %v4355 = vpop.permute.xlu0 %4354
      %4364 = vrot.lane.b32.xlu0 %v3653, 32
      %v4365 = vpop.permute.xlu0 %4364
      %4366 = vrot.lane.b32.xlu0 %v3654, 32
      %v4367 = vpop.permute.xlu0 %4366
      %4368 = vrot.lane.b32.xlu0 %v3655, 32
      %v4369 = vpop.permute.xlu0 %4368
      %4370 = vrot.lane.b32.xlu0 %v3656, 32
      %v4371 = vpop.permute.xlu0 %4370
      %4380 = vrot.lane.b32.xlu0 %v3768, 48
      %v4381 = vpop.permute.xlu0 %4380
      %4382 = vrot.lane.b32.xlu0 %v3769, 48
      %v4383 = vpop.permute.xlu0 %4382
      %4384 = vrot.lane.b32.xlu0 %v3770, 48
      %v4385 = vpop.permute.xlu0 %4384
      %4386 = vrot.lane.b32.xlu0 %v3771, 48
      %v4387 = vpop.permute.xlu0 %4386
      %4396 = vrot.lane.b32.xlu0 %v3883, 64
      %v4397 = vpop.permute.xlu0 %4396
      %4398 = vrot.lane.b32.xlu0 %v3884, 64
      %v4399 = vpop.permute.xlu0 %4398
      %4400 = vrot.lane.b32.xlu0 %v3885, 64
      %v4401 = vpop.permute.xlu0 %4400
      %4402 = vrot.lane.b32.xlu0 %v3886, 64
      %v4403 = vpop.permute.xlu0 %4402
      %4412 = vrot.lane.b32.xlu0 %v3998, 80
      %v4413 = vpop.permute.xlu0 %4412
      %4414 = vrot.lane.b32.xlu0 %v3999, 80
      %v4415 = vpop.permute.xlu0 %4414
      %4416 = vrot.lane.b32.xlu0 %v4000, 80
      %v4417 = vpop.permute.xlu0 %4416
      %4418 = vrot.lane.b32.xlu0 %v4001, 80
      %v4419 = vpop.permute.xlu0 %4418
      %4428 = vrot.lane.b32.xlu0 %v4113, 96
      %v4429 = vpop.permute.xlu0 %4428
      %4430 = vrot.lane.b32.xlu0 %v4114, 96
      %v4431 = vpop.permute.xlu0 %4430
      %4432 = vrot.lane.b32.xlu0 %v4115, 96
      %v4433 = vpop.permute.xlu0 %4432
      %4434 = vrot.lane.b32.xlu0 %v4116, 96
      %v4435 = vpop.permute.xlu0 %4434
      %4444 = vrot.lane.b32.xlu0 %v4228, 112
      %v4445 = vpop.permute.xlu0 %4444
      %4446 = vrot.lane.b32.xlu0 %v4229, 112
      %v4447 = vpop.permute.xlu0 %4446
      %4448 = vrot.lane.b32.xlu0 %v4230, 112
      %v4449 = vpop.permute.xlu0 %4448
      %4450 = vrot.lane.b32.xlu0 %v4231, 112
      %v4451 = vpop.permute.xlu0 %4450
      %vm4456 = vcmask 130048
      %v4457 = vsel %vm4456, %v2503, %v4237
      %v4458 = vsel %vm4456, %v2504, %v4239
      %v4459 = vsel %vm4456, %v2505, %v4241
      %v4460 = vsel %vm4456, %v2506, %v4243
      %vm4461 = vcmask 261120
      %v4462 = vsel %vm4461, %v4457, %v4253
      %v4463 = vsel %vm4461, %v4458, %v4255
      %v4464 = vsel %vm4461, %v4459, %v4257
      %v4465 = vsel %vm4461, %v4460, %v4259
      %vm4466 = vcmask 392192
      %v4467 = vsel %vm4466, %v4462, %v4269
      %v4468 = vsel %vm4466, %v4463, %v4271
      %v4469 = vsel %vm4466, %v4464, %v4273
      %v4470 = vsel %vm4466, %v4465, %v4275
      %vm4471 = vcmask 523264
      %v4472 = vsel %vm4471, %v4467, %v4285
      %v4473 = vsel %vm4471, %v4468, %v4287
      %v4474 = vsel %vm4471, %v4469, %v4289
      %v4475 = vsel %vm4471, %v4470, %v4291
      %vm4476 = vcmask 654336
      %v4477 = vsel %vm4476, %v4472, %v4301
      %v4478 = vsel %vm4476, %v4473, %v4303
      %v4479 = vsel %vm4476, %v4474, %v4305
      %v4480 = vsel %vm4476, %v4475, %v4307
      %vm4481 = vcmask 785408
      %v4482 = vsel %vm4481, %v4477, %v4317
      %v4483 = vsel %vm4481, %v4478, %v4319
      %v4484 = vsel %vm4481, %v4479, %v4321
      %v4485 = vsel %vm4481, %v4480, %v4323
      %vm4486 = vcmask 916480
      %v4487 = vsel %vm4486, %v4482, %v4333
      %v4488 = vsel %vm4486, %v4483, %v4335
      %v4489 = vsel %vm4486, %v4484, %v4337
      %v4490 = vsel %vm4486, %v4485, %v4339
      %v4491 = vsel %vm4456, %v3423, %v4349
      %v4492 = vsel %vm4456, %v3424, %v4351
      %v4493 = vsel %vm4456, %v3425, %v4353
      %v4494 = vsel %vm4456, %v3426, %v4355
      %v4495 = vsel %vm4461, %v4491, %v4365
      %v4496 = vsel %vm4461, %v4492, %v4367
      %v4497 = vsel %vm4461, %v4493, %v4369
      %v4498 = vsel %vm4461, %v4494, %v4371
      %v4499 = vsel %vm4466, %v4495, %v4381
      %v4500 = vsel %vm4466, %v4496, %v4383
      %v4501 = vsel %vm4466, %v4497, %v4385
      %v4502 = vsel %vm4466, %v4498, %v4387
      %v4503 = vsel %vm4471, %v4499, %v4397
      %v4504 = vsel %vm4471, %v4500, %v4399
      %v4505 = vsel %vm4471, %v4501, %v4401
      %v4506 = vsel %vm4471, %v4502, %v4403
      %v4507 = vsel %vm4476, %v4503, %v4413
      %v4508 = vsel %vm4476, %v4504, %v4415
      %v4509 = vsel %vm4476, %v4505, %v4417
      %v4510 = vsel %vm4476, %v4506, %v4419
      %v4511 = vsel %vm4481, %v4507, %v4429
      %v4512 = vsel %vm4481, %v4508, %v4431
      %v4513 = vsel %vm4481, %v4509, %v4433
      %v4514 = vsel %vm4481, %v4510, %v4435
      %v4515 = vsel %vm4486, %v4511, %v4445
      %v4516 = vsel %vm4486, %v4512, %v4447
      %v4517 = vsel %vm4486, %v4513, %v4449
      %v4518 = vsel %vm4486, %v4514, %v4451
      %vm4519 = vcmask 64512
      %v4521 = vsel %vm4519, %v2386, 0
      %v4524 = vsel %vm4519, %v2387, 0
      %v4527 = vsel %vm4519, %v2388, 0
      %v4530 = vsel %vm4519, %v2389, 0
      %4532 = vmatprep.subr.mxu0 0.0
      %4533 = vmatpush1.msra.mxu0 0.0
      %4534 = vmatprep.subr.mxu0 0.0
      %4535 = vmatpush1.msra.mxu0 0.0
      %4536 = vmatprep.subr.mxu0 0.0
      %4537 = vmatpush1.msra.mxu0 0.0
      %4538 = vmatprep.subr.mxu0 0.0
      %4539 = vmatpush1.msra.mxu0 0.0
      %4540 = vmatprep.subr.mxu0 0.0
      %4541 = vmatpush1.msra.mxu0 0.0
      %4542 = vmatprep.subr.mxu0 0.0
      %4543 = vmatpush1.msra.mxu0 0.0
      %4544 = vmatprep.subr.mxu0 0.0
      %4545 = vmatpush1.msra.mxu0 0.0
      %4546 = vmatprep.subr.mxu0 0.0
      %4547 = vmatpush1.msra.mxu0 0.0
      %4548 = vmatprep.subr.mxu0 0.0
      %4549 = vmatpush1.msra.mxu0 0.0
      %4550 = vmatprep.subr.mxu0 0.0
      %4551 = vmatpush1.msra.mxu0 0.0
      %4552 = vmatprep.subr.mxu0 0.0
      %4553 = vmatpush1.msra.mxu0 0.0
      %4554 = vmatprep.subr.mxu0 0.0
      %4555 = vmatpush1.msra.mxu0 0.0
      %4556 = vmatprep.subr.mxu0 0.0
      %4557 = vmatpush1.msra.mxu0 0.0
      %4558 = vmatprep.subr.mxu0 0.0
      %4559 = vmatpush1.msra.mxu0 0.0
      %4560 = vmatprep.subr.mxu0 0.0
      %4561 = vmatpush1.msra.mxu0 0.0
      %4562 = vmatprep.subr.mxu0 %v2391
      %4563 = vmatpush1.msra.mxu0 %v2390
      %4564 = vmatprep.subr.mxu0 0.0
      %4565 = vmatpush2.msra.mxu0 0.0
      %4566 = vmatprep.subr.mxu0 0.0
      %4567 = vmatpush2.msra.mxu0 0.0
      %4568 = vmatprep.subr.mxu0 0.0
      %4569 = vmatpush2.msra.mxu0 0.0
      %4570 = vmatprep.subr.mxu0 0.0
      %4571 = vmatpush2.msra.mxu0 0.0
      %4572 = vmatprep.subr.mxu0 0.0
      %4573 = vmatpush2.msra.mxu0 0.0
      %4574 = vmatprep.subr.mxu0 0.0
      %4575 = vmatpush2.msra.mxu0 0.0
      %4576 = vmatprep.subr.mxu0 0.0
      %4577 = vmatpush2.msra.mxu0 0.0
      %4578 = vmatprep.subr.mxu0 0.0
      %4579 = vmatpush2.msra.mxu0 0.0
      %4580 = vmatprep.subr.mxu0 0.0
      %4581 = vmatpush2.msra.mxu0 0.0
      %4582 = vmatprep.subr.mxu0 0.0
      %4583 = vmatpush2.msra.mxu0 0.0
      %4584 = vmatprep.subr.mxu0 0.0
      %4585 = vmatpush2.msra.mxu0 0.0
      %4586 = vmatprep.subr.mxu0 0.0
      %4587 = vmatpush2.msra.mxu0 0.0
      %4588 = vmatprep.subr.mxu0 0.0
      %4589 = vmatpush2.msra.mxu0 0.0
      %4590 = vmatprep.subr.mxu0 0.0
      %4591 = vmatpush2.msra.mxu0 0.0
      %4592 = vmatprep.subr.mxu0 0.0
      %4593 = vmatpush2.msra.mxu0 0.0
      %4594 = vmatprep.subr.mxu0 0.0
      %4595 = vmatpush2.msra.mxu0 0.0
      %4596 = vmatprep.mubr.f32.mxu0 0.0
      %4597 = vmatmul.mubr.f32.gmra.mxu0 %v4521
      %v4598 = vpop.f32.mrf.mxu0
      %v4599 = vadd.f32 %v4487, %v4598
      %v4600 = vpop.f32.mrf.mxu0
      %v4601 = vadd.f32 %v4515, %v4600
      %4602 = vmatprep.mubr.f32.mxu0 0.0
      %4603 = vmatmul.mubr.f32.gmra.mxu0 %v4524
      %v4604 = vpop.f32.mrf.mxu0
      %v4605 = vadd.f32 %v4488, %v4604
      %v4606 = vpop.f32.mrf.mxu0
      %v4607 = vadd.f32 %v4516, %v4606
      %4608 = vmatprep.mubr.f32.mxu0 0.0
      %4609 = vmatmul.mubr.f32.gmra.mxu0 %v4527
      %v4610 = vpop.f32.mrf.mxu0
      %v4611 = vadd.f32 %v4489, %v4610
      %v4612 = vpop.f32.mrf.mxu0
      %v4613 = vadd.f32 %v4517, %v4612
      %4614 = vmatprep.mubr.f32.mxu0 0.0
      %4615 = vmatmul.mubr.f32.gmra.mxu0 %v4530
      %v4616 = vpop.f32.mrf.mxu0
      %v4617 = vadd.f32 %v4490, %v4616
      %v4618 = vpop.f32.mrf.mxu0
      %v4619 = vadd.f32 %v4518, %v4618
      %4620 = vdwg.mxu0
      %v4621 = vld [vmem:[%s13] sm:$0xff]
      %v4622 = vld [vmem:[%s13 + $0x8] sm:$0xff]
      %v4623 = vld [vmem:[%s13 + $0x10] sm:$0xff]
      %v4624 = vld [vmem:[%s13 + $0x18] sm:$0xff]
      %4626 = vset.pattern.permute.xlu0 0
      %4627 = vperm.xlu0 %4626, %v4621
      %v4628 = vpop.permute.xlu0 %4627
      %4631 = vset.pattern.permute.xlu0 0
      %4632 = vperm.xlu0 %4631, %v4622
      %v4633 = vpop.permute.xlu0 %4632
      %4636 = vset.pattern.permute.xlu0 0
      %4637 = vperm.xlu0 %4636, %v4623
      %v4638 = vpop.permute.xlu0 %4637
      %4641 = vset.pattern.permute.xlu0 0
      %4642 = vperm.xlu0 %4641, %v4624
      %v4643 = vpop.permute.xlu0 %4642
      %v4645 = vadd.f32 %v4599, %v4628
      %v4646 = vadd.f32 %v4601, %v4628
      %v4647 = vadd.f32 %v4605, %v4633
      %v4648 = vadd.f32 %v4607, %v4633
      %v4649 = vadd.f32 %v4611, %v4638
      %v4650 = vadd.f32 %v4613, %v4638
      %v4651 = vadd.f32 %v4617, %v4643
      %v4652 = vadd.f32 %v4619, %v4643
      %v4653 = vmax.f32 %v4645, 0.0
      %v4654 = vmax.f32 %v4646, 0.0
      %v4655 = vmax.f32 %v4647, 0.0
      %v4656 = vmax.f32 %v4648, 0.0
      %v4657 = vmax.f32 %v4649, 0.0
      %v4658 = vmax.f32 %v4650, 0.0
      %v4659 = vmax.f32 %v4651, 0.0
      %v4660 = vmax.f32 %v4652, 0.0
      %v4661 = vld [vmem:[%s14] sm:$0xff]
      %v4662 = vld [vmem:[%s15] sm:$0xff]
      %4664 = vset.pattern.permute.xlu0 0
      %4665 = vperm.xlu0 %4664, %v4662
      %v4666 = vpop.permute.xlu0 %4665
      %v4669 = vsel %vm4461, %v4661, 0
      %4671 = vmatprep.subr.mxu0 0.0
      %4672 = vmatpush1.msra.mxu0 0.0
      %4673 = vmatprep.subr.mxu0 0.0
      %4674 = vmatpush1.msra.mxu0 0.0
      %4675 = vmatprep.subr.mxu0 0.0
      %4676 = vmatpush1.msra.mxu0 0.0
      %4677 = vmatprep.subr.mxu0 0.0
      %4678 = vmatpush1.msra.mxu0 0.0
      %4679 = vmatprep.subr.mxu0 0.0
      %4680 = vmatpush1.msra.mxu0 0.0
      %4681 = vmatprep.subr.mxu0 0.0
      %4682 = vmatpush1.msra.mxu0 0.0
      %4683 = vmatprep.subr.mxu0 0.0
      %4684 = vmatpush1.msra.mxu0 0.0
      %4685 = vmatprep.subr.mxu0 0.0
      %4686 = vmatpush1.msra.mxu0 0.0
      %4687 = vmatprep.subr.mxu0 0.0
      %4688 = vmatpush1.msra.mxu0 0.0
      %4689 = vmatprep.subr.mxu0 0.0
      %4690 = vmatpush1.msra.mxu0 0.0
      %4691 = vmatprep.subr.mxu0 0.0
      %4692 = vmatpush1.msra.mxu0 0.0
      %4693 = vmatprep.subr.mxu0 0.0
      %4694 = vmatpush1.msra.mxu0 0.0
      %4695 = vmatprep.subr.mxu0 %v4660
      %4696 = vmatpush1.msra.mxu0 %v4659
      %4697 = vmatprep.subr.mxu0 %v4658
      %4698 = vmatpush1.msra.mxu0 %v4657
      %4699 = vmatprep.subr.mxu0 %v4656
      %4700 = vmatpush1.msra.mxu0 %v4655
      %4701 = vmatprep.subr.mxu0 %v4654
      %4702 = vmatpush1.msra.mxu0 %v4653
      %4703 = vmatprep.subr.mxu0 0.0
      %4704 = vmatpush2.msra.mxu0 0.0
      %4705 = vmatprep.subr.mxu0 0.0
      %4706 = vmatpush2.msra.mxu0 0.0
      %4707 = vmatprep.subr.mxu0 0.0
      %4708 = vmatpush2.msra.mxu0 0.0
      %4709 = vmatprep.subr.mxu0 0.0
      %4710 = vmatpush2.msra.mxu0 0.0
      %4711 = vmatprep.subr.mxu0 0.0
      %4712 = vmatpush2.msra.mxu0 0.0
      %4713 = vmatprep.subr.mxu0 0.0
      %4714 = vmatpush2.msra.mxu0 0.0
      %4715 = vmatprep.subr.mxu0 0.0
      %4716 = vmatpush2.msra.mxu0 0.0
      %4717 = vmatprep.subr.mxu0 0.0
      %4718 = vmatpush2.msra.mxu0 0.0
      %4719 = vmatprep.subr.mxu0 0.0
      %4720 = vmatpush2.msra.mxu0 0.0
      %4721 = vmatprep.subr.mxu0 0.0
      %4722 = vmatpush2.msra.mxu0 0.0
      %4723 = vmatprep.subr.mxu0 0.0
      %4724 = vmatpush2.msra.mxu0 0.0
      %4725 = vmatprep.subr.mxu0 0.0
      %4726 = vmatpush2.msra.mxu0 0.0
      %4727 = vmatprep.subr.mxu0 0.0
      %4728 = vmatpush2.msra.mxu0 0.0
      %4729 = vmatprep.subr.mxu0 0.0
      %4730 = vmatpush2.msra.mxu0 0.0
      %4731 = vmatprep.subr.mxu0 0.0
      %4732 = vmatpush2.msra.mxu0 0.0
      %4733 = vmatprep.subr.mxu0 0.0
      %4734 = vmatpush2.msra.mxu0 0.0
      %4735 = vmatprep.mubr.f32.mxu0 0.0
      %4736 = vmatmul.mubr.f32.gmra.mxu0 %v4669
      %v4737 = vpop.f32.mrf.mxu0
      %v4738 = vadd.f32 %v4666, %v4737
      %v4739 = vpop.f32.mrf.mxu0
      %v4740 = vadd.f32 %v4666, %v4739
      %4741 = vdwg.mxu0
      %4742 = vst [vmem:[%s577] sm:$0xff] %v4738
      %4743 = vst [vmem:[%s577 + $0x8] sm:$0xff] %v4740
      %s4744 = smul.u32 2, %s42
      %p4745 = scmp.lt.s32.totalorder %s41, 1
      %s4746 = scalar_select %p4745, %s41, 1
      %p4747 = scmp.lt.s32.totalorder %s4744, 1
      %s4748 = scalar_select %p4747, %s4744, 1
      %s4749 = smul.addr %s4746, 2
      %s4750 = sadd.s32 %s4748, %s4749
      %s4751 = smul.addr %s4750, 8
      %s4752 = scalar_lea.vmem %s16, %s4751
      // Predicated region
      $region81: #{segformer_head_forward.1} parent=75 // pred_check
        %p4753 = pneg %p385
      $region82: #{segformer_head_forward.1} parent=75 // pred_check_branch
        %4755 = sbr.rel (%p4753) target = $region84
      $region83: #{segformer_head_forward.1} parent=75 // pred_region
        %s4756 = smul.u32 2, %s42
      $region84: #{segformer_head_forward.1} parent=75 // pred_fallthru
        _
    $region76: #{segformer_head_forward.1} parent=5 // pred_fallthru
      _
    %p4757 = scmp.le.s32.totalorder 2, %s32
    // Predicated region
    $region85: #{segformer_head_forward.1} parent=5 // pred_check
      %p4758 = pneg %p4757
    $region86: #{segformer_head_forward.1} parent=5 // pred_check_branch
      %4760 = sbr.rel (%p4758) target = $region88
    $region87: #{segformer_head_forward.1} parent=5 // pred_region
      %s4761 = ssub.s32 %s32, 2
      // Predicated region
      $region89: #{segformer_head_forward.1} parent=87 // pred_check
        %p4762 = pneg %p391
      $region90: #{segformer_head_forward.1} parent=87 // pred_check_branch
        %4764 = sbr.rel (%p4762) target = $region92
      $region91: #{segformer_head_forward.1} parent=87 // pred_region
        %s4765 = smul.u32 2, %s44
        %p4766 = scmp.lt.s32.totalorder %s43, 1
        %s4767 = scalar_select %p4766, %s43, 1
        %p4768 = scmp.lt.s32.totalorder %s4765, 1
        %s4769 = scalar_select %p4768, %s4765, 1
        %s4770 = smul.addr %s4767, 2
        %s4771 = sadd.s32 %s4769, %s4770
        %s4772 = smul.addr %s4771, 8
        %s4773 = scalar_lea.vmem %s16, %s4772
      $region92: #{segformer_head_forward.1} parent=87 // pred_fallthru
        _
    $region88: #{segformer_head_forward.1} parent=5 // pred_fallthru
      _
  $region6: #{segformer_head_forward.1} parent=0 // loop_footer
    %s36 = sadd.s32 1, %s32
  $region7: #{segformer_head_forward.1} parent=0 // loop_footer_branch
    %31 = sbr.rel target = $region3
  $region8: #{segformer_head_forward.1} parent=0 // loop_exit
    _

</llo_original>
